<compile_context>
chip_gen: v7x
topology: tpu7x:2x2x1
jax: 0.10.0
libtpu: 0.0.40
codegen_flags: <defaults>
</compile_context>

<pallas_src>
import jax
import jax.numpy as jnp
from jax.experimental import pallas as pl
from jax.experimental.pallas import tpu as pltpu

# ----------------------------------------------------------------------------
# Model configuration (module defaults) and padded tile sizes
# ----------------------------------------------------------------------------
IN_CH, Z_CH, LATENT, HIDDEN = 2, 4, 10, 16
IMG_H, IMG_W = 20, 20
H1, W1 = 10, 10                      # encoder conv1 output spatial
H2, W2 = 5, 5                        # encoder conv2 output spatial
D = H2 * W2                          # encoded_image_dim = 25
K = 3
N_TAPS = K * K

CP = 16                              # channel rows padded to 16 (bf16 packing)
K1P = 32                             # conv1 contraction dim: Cin*9 = 18 -> 32
M1, M1P = H1 * W1, 128               # conv1 output lanes (100 -> 128)
M2, M2P = D, 128                     # conv2 output / latent feature lanes (25 -> 128)
LP = 128                             # latent lanes (10 -> 128)
MD1, MD1P = H1 * W1, 128             # decoder convT1 output lanes (100 -> 128)
MOUT, MOUTP = IMG_H * IMG_W, 512     # decoder convT2 output lanes (400 -> 512)


# ----------------------------------------------------------------------------
# Pack-time helpers (run once, outside the forward)
# ----------------------------------------------------------------------------
def _pad_to(a, shape):
    return jnp.pad(a, [(0, s - d) for d, s in zip(a.shape, shape)])


def _pack_taps(w, cout_pad, cin_pad):
    """(Cout, Cin, K, K) conv weight -> (9, cout_pad, cin_pad) bf16, tap t = i*K + j.
    Zero padding outside the valid (Cout, Cin) block keeps padded activation rows inert."""
    co, ci, kh, kw = w.shape
    taps = w.transpose(2, 3, 0, 1).reshape(kh * kw, co, ci)
    return _pad_to(taps, (kh * kw, cout_pad, cin_pad)).astype(jnp.bfloat16)


def _gather_mats(h, w, *, stride, padding, transposed=False, output_padding=0,
                 rows_pad, cols_pad):
    """Per-tap 0/1 gather operators G_t mapping a flattened (h*w)-lane activation to
    each tap's output-lane matrix, built by pushing an identity 'image' (channel ==
    flattened input position) through the exact pad/dilate/slice path an im2col would
    use — geometry is consistent by construction.  Rows >= h*w and cols >= OH*OW are
    zero, so padded-lane garbage in activations never propagates."""
    m_in = h * w
    eye = jnp.eye(m_in, dtype=jnp.float32).reshape(m_in, h, w)
    if transposed:
        hd, wd = (h - 1) * stride + 1, (w - 1) * stride + 1
        dil = jnp.zeros((m_in, hd, wd), jnp.float32).at[:, ::stride, ::stride].set(eye)
        lo = K - 1 - padding
        hi = K - 1 - padding + output_padding
        xp = jnp.pad(dil, ((0, 0), (lo, hi), (lo, hi)))
        s = 1
    else:
        xp = jnp.pad(eye, ((0, 0), (padding, padding), (padding, padding)))
        s = stride
    hp, wp = xp.shape[1], xp.shape[2]
    oh, ow = (hp - K) // s + 1, (wp - K) // s + 1
    mats = []
    for i in range(K):
        for j in range(K):
            g = xp[:, i:i + s * oh:s, j:j + s * ow:s].reshape(m_in, oh * ow)
            mats.append(_pad_to(g, (rows_pad, cols_pad)))
    return jnp.stack(mats).astype(jnp.bfloat16)


def init_params(key):
    """Raw PyTorch-layout parameters (Conv: (Cout,Cin,K,K); ConvT: (Cin,Cout,K,K))."""
    ks = jax.random.split(key, 14)

    def u(k, shape, fan_in):
        b = 1.0 / float(fan_in) ** 0.5
        return jax.random.uniform(k, shape, jnp.float32, -b, b)

    return {
        "enc_w1": u(ks[0], (HIDDEN, IN_CH, K, K), IN_CH * K * K),
        "enc_b1": u(ks[1], (HIDDEN,), IN_CH * K * K),
        "enc_w2": u(ks[2], (Z_CH, HIDDEN, K, K), HIDDEN * K * K),
        "enc_b2": u(ks[3], (Z_CH,), HIDDEN * K * K),
        "w_mean": u(ks[4], (LATENT, D), D),
        "b_mean": u(ks[5], (LATENT,), D),
        "w_logvar": u(ks[6], (LATENT, D), D),
        "b_logvar": u(ks[7], (LATENT,), D),
        "w_rec": u(ks[8], (D, LATENT), LATENT),
        "b_rec": u(ks[9], (D,), LATENT),
        "dec_w1": u(ks[10], (Z_CH, HIDDEN, K, K), Z_CH * K * K),
        "dec_b1": u(ks[11], (HIDDEN,), Z_CH * K * K),
        "dec_w2": u(ks[12], (HIDDEN, IN_CH, K, K), HIDDEN * K * K),
        "dec_b2": u(ks[13], (IN_CH,), HIDDEN * K * K),
    }


def pack_params(p):
    """One-time, kernel-ready parameter prep: bf16 MXU operands, f32 biases,
    per-tap conv weights, constant gather operators, transposed latent linears."""
    f32 = jnp.float32
    bf = jnp.bfloat16
    q = {}
    # encoder conv1: dense (Cout, Cin*9) operator (input im2col is done by the host)
    q["w1"] = _pad_to(p["enc_w1"].reshape(HIDDEN, IN_CH * N_TAPS), (CP, K1P)).astype(bf)
    q["b1"] = _pad_to(p["enc_b1"].reshape(HIDDEN, 1), (CP, 1)).astype(f32)
    # encoder conv2: per-tap weights + gather operators (10x10, s=2, p=1 -> 5x5)
    q["w2"] = _pack_taps(p["enc_w2"], CP, CP)
    q["b2"] = _pad_to(p["enc_b2"].reshape(Z_CH, 1), (CP, 1)).astype(f32)
    q["g2"] = _gather_mats(H1, W1, stride=2, padding=1, rows_pad=M1P, cols_pad=M2P)
    # latent linears (per batch element, shared across the batch grid)
    q["wm"] = _pad_to(p["w_mean"].T, (M2P, LP)).astype(bf)
    q["bm"] = _pad_to(p["b_mean"].reshape(1, LATENT), (1, LP)).astype(f32)
    q["wlv"] = _pad_to(p["w_logvar"].T, (M2P, LP)).astype(bf)
    q["blv"] = _pad_to(p["b_logvar"].reshape(1, LATENT), (1, LP)).astype(f32)
    q["wr"] = _pad_to(p["w_rec"].T, (LP, M2P)).astype(bf)
    q["br"] = _pad_to(p["b_rec"].reshape(1, D), (1, M2P)).astype(f32)
    # decoder transposed convs: flip + in/out swap -> ordinary conv taps over the
    # zero-dilated, (lo=1, hi=2)-padded input (geometry baked into gd1/gd2)
    wd1 = jnp.flip(p["dec_w1"], axis=(2, 3)).transpose(1, 0, 2, 3)   # (HIDDEN, Z_CH, K, K)
    wd2 = jnp.flip(p["dec_w2"], axis=(2, 3)).transpose(1, 0, 2, 3)   # (IN_CH, HIDDEN, K, K)
    q["wd1"] = _pack_taps(wd1, CP, CP)
    q["bd1"] = _pad_to(p["dec_b1"].reshape(HIDDEN, 1), (CP, 1)).astype(f32)
    q["gd1"] = _gather_mats(H2, W2, stride=2, padding=1, transposed=True,
                            output_padding=1, rows_pad=M2P, cols_pad=MD1P)
    q["wd2"] = _pack_taps(wd2, CP, CP)
    q["bd2"] = _pad_to(p["dec_b2"].reshape(IN_CH, 1), (CP, 1)).astype(f32)
    q["gd2"] = _gather_mats(H1, W1, stride=2, padding=1, transposed=True,
                            output_padding=1, rows_pad=MD1P, cols_pad=MOUTP)
    return q


# ----------------------------------------------------------------------------
# Fused Pallas kernel (one grid step == one batch element)
# ----------------------------------------------------------------------------
def _tap_accum(x_b, w_taps_ref, g_taps_ref):
    """sum_t W_t @ (x @ G_t): exact 0/1 gather of bf16 values, then the channel-mix
    matmul; accumulated in f32."""
    pre = None
    for t in range(N_TAPS):
        gathered = jnp.dot(x_b, g_taps_ref[t],
                           preferred_element_type=jnp.float32).astype(jnp.bfloat16)
        contrib = jnp.dot(w_taps_ref[t], gathered, preferred_element_type=jnp.float32)
        pre = contrib if pre is None else pre + contrib
    return pre


def _conv_vae_kernel(a1_ref, w1_ref, b1_ref,
                     w2_ref, b2_ref, g2_ref,
                     wm_ref, bm_ref, wlv_ref, blv_ref,
                     eps_ref, wr_ref, br_ref,
                     wd1_ref, bd1_ref, gd1_ref,
                     wd2_ref, bd2_ref, gd2_ref,
                     mean_ref, logvar_ref, rec_ref):
    f32, bf = jnp.float32, jnp.bfloat16

    # encoder conv1 (+ReLU): dense im2col matmul, f32 epilogue
    h1 = jnp.dot(w1_ref[...], a1_ref[0], preferred_element_type=f32) + b1_ref[...]
    h1 = jnp.maximum(h1, 0.0).astype(bf)

    # encoder conv2 (+ReLU): in-kernel im2col via constant gather operators
    h2 = jnp.maximum(_tap_accum(h1, w2_ref, g2_ref) + b2_ref[...], 0.0)
    # dropout(p=0.2): eval mode -> identity
    h2b = h2.astype(bf)

    # latent heads: mean / logvar / clamp / reparameterize / reconstruct
    mean = jnp.dot(h2b, wm_ref[...], preferred_element_type=f32) + bm_ref[...]
    logvar = jnp.dot(h2b, wlv_ref[...], preferred_element_type=f32) + blv_ref[...]
    logvar = jnp.clip(logvar, -30.0, 20.0)
    std = jnp.exp(0.5 * logvar)                                  # f32 EUP path
    z = mean + eps_ref[0] * std
    zrec = jnp.dot(z.astype(bf), wr_ref[...], preferred_element_type=f32) + br_ref[...]

    # decoder: convT1 (+ReLU), convT2 (+sigmoid)
    d1 = jnp.maximum(_tap_accum(zrec.astype(bf), wd1_ref, gd1_ref) + bd1_ref[...], 0.0)
    rec = jax.nn.sigmoid(_tap_accum(d1.astype(bf), wd2_ref, gd2_ref) + bd2_ref[...])

    # lane-dense (128 / 512 wide) stores; host slices the valid region
    mean_ref[0] = mean
    logvar_ref[0] = logvar
    rec_ref[0] = rec


# ----------------------------------------------------------------------------
# Forward wrapper
# ----------------------------------------------------------------------------
def conv_vae_forward(q, x, eps):
    """x: (N, in_channels, 20, 20) f32; eps: (N, z_channels, latent_dim) f32.
    Returns (reconstructed_x, mean, logvar) exactly like the PyTorch module."""
    n = x.shape[0]

    # Input prep (the only per-forward host glue): im2col of the raw input + eps pad.
    xp = jnp.pad(x, ((0, 0), (0, 0), (1, 1), (1, 1)))
    cols = [xp[:, :, i:i + 2 * H1:2, j:j + 2 * W1:2] for i in range(K) for j in range(K)]
    a1 = jnp.stack(cols, axis=2).reshape(n, IN_CH * N_TAPS, M1)          # rows = (ci, tap)
    a1 = _pad_to(a1, (n, K1P, M1P)).astype(jnp.bfloat16)
    eps_p = jnp.zeros((n, CP, LP), jnp.float32).at[:, :Z_CH, :LATENT].set(eps)

    const2 = lambda b: (0, 0)
    const3 = lambda b: (0, 0, 0)
    batch3 = lambda b: (b, 0, 0)
    in_specs = [
        pl.BlockSpec((1, K1P, M1P), batch3),          # a1 (per batch element)
        pl.BlockSpec((CP, K1P), const2),              # w1
        pl.BlockSpec((CP, 1), const2),                # b1
        pl.BlockSpec((N_TAPS, CP, CP), const3),       # w2 taps
        pl.BlockSpec((CP, 1), const2),                # b2
        pl.BlockSpec((N_TAPS, M1P, M2P), const3),     # g2
        pl.BlockSpec((M2P, LP), const2),              # wm
        pl.BlockSpec((1, LP), const2),                # bm
        pl.BlockSpec((M2P, LP), const2),              # wlv
        pl.BlockSpec((1, LP), const2),                # blv
        pl.BlockSpec((1, CP, LP), batch3),            # eps (per batch element)
        pl.BlockSpec((LP, M2P), const2),              # wr
        pl.BlockSpec((1, M2P), const2),               # br
        pl.BlockSpec((N_TAPS, CP, CP), const3),       # wd1 taps
        pl.BlockSpec((CP, 1), const2),                # bd1
        pl.BlockSpec((N_TAPS, M2P, MD1P), const3),    # gd1
        pl.BlockSpec((N_TAPS, CP, CP), const3),       # wd2 taps
        pl.BlockSpec((CP, 1), const2),                # bd2
        pl.BlockSpec((N_TAPS, MD1P, MOUTP), const3),  # gd2
    ]
    out_specs = (
        pl.BlockSpec((1, CP, LP), batch3),            # mean
        pl.BlockSpec((1, CP, LP), batch3),            # logvar
        pl.BlockSpec((1, CP, MOUTP), batch3),         # reconstruction
    )
    out_shape = (
        jax.ShapeDtypeStruct((n, CP, LP), jnp.float32),
        jax.ShapeDtypeStruct((n, CP, LP), jnp.float32),
        jax.ShapeDtypeStruct((n, CP, MOUTP), jnp.float32),
    )

    mean_p, logvar_p, rec_p = pl.pallas_call(
        _conv_vae_kernel,
        out_shape=out_shape,
        grid_spec=pltpu.PrefetchScalarGridSpec(
            num_scalar_prefetch=0,
            grid=(n,),                                # batch elements are independent
            in_specs=in_specs,
            out_specs=out_specs,
        ),
        compiler_params=pltpu.CompilerParams(
            dimension_semantics=("parallel",)),       # v7x: one element per TensorCore
    )(a1, q["w1"], q["b1"], q["w2"], q["b2"], q["g2"],
      q["wm"], q["bm"], q["wlv"], q["blv"], eps_p, q["wr"], q["br"],
      q["wd1"], q["bd1"], q["gd1"], q["wd2"], q["bd2"], q["gd2"])

    mean = mean_p[:, :Z_CH, :LATENT]
    logvar = logvar_p[:, :Z_CH, :LATENT]
    rec = rec_p[:, :IN_CH, :MOUT].reshape(n, IN_CH, IMG_H, IMG_W)
    return rec, mean, logvar


# ----------------------------------------------------------------------------
# Pure-JAX (f32) reference for correctness validation
# ----------------------------------------------------------------------------
def reference_forward(p, x, eps):
    dn = ("NCHW", "OIHW", "NCHW")
    hi = jax.lax.Precision.HIGHEST

    def conv(v, w, b):
        y = jax.lax.conv_general_dilated(v, w, (2, 2), ((1, 1), (1, 1)),
                                         dimension_numbers=dn, precision=hi)
        return y + b.reshape(1, -1, 1, 1)

    def convT(v, w, b):   # ConvTranspose2d(k=3, s=2, p=1, output_padding=1)
        weq = jnp.flip(w, axis=(2, 3)).transpose(1, 0, 2, 3)
        y = jax.lax.conv_general_dilated(v, weq, (1, 1), ((1, 2), (1, 2)),
                                         lhs_dilation=(2, 2),
                                         dimension_numbers=dn, precision=hi)
        return y + b.reshape(1, -1, 1, 1)

    h1 = jax.nn.relu(conv(x, p["enc_w1"], p["enc_b1"]))
    h2 = jax.nn.relu(conv(h1, p["enc_w2"], p["enc_b2"]))
    b, zc, hh, ww = h2.shape
    feat = h2.reshape(b, zc, hh * ww)                        # dropout: eval -> identity
    mean = jnp.einsum("bcd,ld->bcl", feat, p["w_mean"], precision=hi) + p["b_mean"]
    logvar = jnp.einsum("bcd,ld->bcl", feat, p["w_logvar"], precision=hi) + p["b_logvar"]
    logvar = jnp.clip(logvar, -30.0, 20.0)
    z = mean + eps * jnp.exp(0.5 * logvar)
    zr = jnp.einsum("bcl,dl->bcd", z, p["w_rec"], precision=hi) + p["b_rec"]
    zr = zr.reshape(b, zc, hh, ww)
    d1 = jax.nn.relu(convT(zr, p["dec_w1"], p["dec_b1"]))
    rec = jax.nn.sigmoid(convT(d1, p["dec_w2"], p["dec_b2"]))
    return rec, mean, logvar


# ----------------------------------------------------------------------------
if __name__ == "__main__":
    key = jax.random.PRNGKey(0)
    kp, kx, ke = jax.random.split(key, 3)
    batch = 2

    raw = init_params(kp)
    packed = pack_params(raw)

    x = jax.random.normal(kx, (batch, IN_CH, IMG_H, IMG_W), jnp.float32)
    eps = jax.random.normal(ke, (batch, Z_CH, LATENT), jnp.float32)

    fwd = jax.jit(conv_vae_forward)
    rec, mean, logvar = fwd(packed, x, eps)
    jax.block_until_ready((rec, mean, logvar))

    assert rec.shape == (batch, IN_CH, IMG_H, IMG_W)
    assert mean.shape == (batch, Z_CH, LATENT)
    assert logvar.shape == (batch, Z_CH, LATENT)
    assert bool(jnp.all(jnp.isfinite(rec)))
    assert bool(jnp.all(jnp.isfinite(mean)))
    assert bool(jnp.all(jnp.isfinite(logvar)))

    # numerical check vs. f32 reference (kernel uses bf16 MXU operands -> loose tol)
    rec_r, mean_r, logvar_r = jax.jit(reference_forward)(raw, x, eps)
    err_rec = float(jnp.max(jnp.abs(rec - rec_r)))
    err_mean = float(jnp.max(jnp.abs(mean - mean_r)))
    err_lv = float(jnp.max(jnp.abs(logvar - logvar_r)))
    print(f"max abs err  rec={err_rec:.2e}  mean={err_mean:.2e}  logvar={err_lv:.2e}")
    assert err_rec < 5e-2 and err_mean < 5e-2 and err_lv < 5e-2

    print("KERNEL_OK")
</pallas_src>

<mosaic_0001>
module attributes {stable_mosaic.version = 11 : i64} {
  func.func @_conv_vae_kernel(%arg0: i32, %arg1: memref<1x32x128xbf16, #tpu.memory_space<vmem>>, %arg2: memref<16x32xbf16, #tpu.memory_space<vmem>>, %arg3: memref<16x1xf32, #tpu.memory_space<vmem>>, %arg4: memref<9x16x16xbf16, #tpu.memory_space<vmem>>, %arg5: memref<16x1xf32, #tpu.memory_space<vmem>>, %arg6: memref<9x128x128xbf16, #tpu.memory_space<vmem>>, %arg7: memref<128x128xbf16, #tpu.memory_space<vmem>>, %arg8: memref<1x128xf32, #tpu.memory_space<vmem>>, %arg9: memref<128x128xbf16, #tpu.memory_space<vmem>>, %arg10: memref<1x128xf32, #tpu.memory_space<vmem>>, %arg11: memref<1x16x128xf32, #tpu.memory_space<vmem>>, %arg12: memref<128x128xbf16, #tpu.memory_space<vmem>>, %arg13: memref<1x128xf32, #tpu.memory_space<vmem>>, %arg14: memref<9x16x16xbf16, #tpu.memory_space<vmem>>, %arg15: memref<16x1xf32, #tpu.memory_space<vmem>>, %arg16: memref<9x128x128xbf16, #tpu.memory_space<vmem>>, %arg17: memref<9x16x16xbf16, #tpu.memory_space<vmem>>, %arg18: memref<16x1xf32, #tpu.memory_space<vmem>>, %arg19: memref<9x128x512xbf16, #tpu.memory_space<vmem>>, %arg20: memref<1x16x128xf32, #tpu.memory_space<vmem>>, %arg21: memref<1x16x128xf32, #tpu.memory_space<vmem>>, %arg22: memref<1x16x512xf32, #tpu.memory_space<vmem>>) attributes {dimension_semantics = [#tpu.dimension_semantics<parallel>], iteration_bounds = array<i64: 2>, scalar_prefetch = 0 : i64, scratch_operands = 0 : i64, tpu.core_type = #tpu.core_type<tc>, window_params = [{transform_indices = @transform_0, window_bounds = array<i64: 1, 32, 128>}, {pipeline_mode = #tpu.pipeline_mode<synchronous>, transform_indices = @transform_1, window_bounds = array<i64: 16, 32>}, {pipeline_mode = #tpu.pipeline_mode<synchronous>, transform_indices = @transform_2, window_bounds = array<i64: 16, 1>}, {pipeline_mode = #tpu.pipeline_mode<synchronous>, transform_indices = @transform_3, window_bounds = array<i64: 9, 16, 16>}, {pipeline_mode = #tpu.pipeline_mode<synchronous>, transform_indices = @transform_4, window_bounds = array<i64: 16, 1>}, {pipeline_mode = #tpu.pipeline_mode<synchronous>, transform_indices = @transform_5, window_bounds = array<i64: 9, 128, 128>}, {pipeline_mode = #tpu.pipeline_mode<synchronous>, transform_indices = @transform_6, window_bounds = array<i64: 128, 128>}, {pipeline_mode = #tpu.pipeline_mode<synchronous>, transform_indices = @transform_7, window_bounds = array<i64: 1, 128>}, {pipeline_mode = #tpu.pipeline_mode<synchronous>, transform_indices = @transform_8, window_bounds = array<i64: 128, 128>}, {pipeline_mode = #tpu.pipeline_mode<synchronous>, transform_indices = @transform_9, window_bounds = array<i64: 1, 128>}, {transform_indices = @transform_10, window_bounds = array<i64: 1, 16, 128>}, {pipeline_mode = #tpu.pipeline_mode<synchronous>, transform_indices = @transform_11, window_bounds = array<i64: 128, 128>}, {pipeline_mode = #tpu.pipeline_mode<synchronous>, transform_indices = @transform_12, window_bounds = array<i64: 1, 128>}, {pipeline_mode = #tpu.pipeline_mode<synchronous>, transform_indices = @transform_13, window_bounds = array<i64: 9, 16, 16>}, {pipeline_mode = #tpu.pipeline_mode<synchronous>, transform_indices = @transform_14, window_bounds = array<i64: 16, 1>}, {pipeline_mode = #tpu.pipeline_mode<synchronous>, transform_indices = @transform_15, window_bounds = array<i64: 9, 128, 128>}, {pipeline_mode = #tpu.pipeline_mode<synchronous>, transform_indices = @transform_16, window_bounds = array<i64: 9, 16, 16>}, {pipeline_mode = #tpu.pipeline_mode<synchronous>, transform_indices = @transform_17, window_bounds = array<i64: 16, 1>}, {pipeline_mode = #tpu.pipeline_mode<synchronous>, transform_indices = @transform_18, window_bounds = array<i64: 9, 128, 512>}, {transform_indices = @transform_19, window_bounds = array<i64: 1, 16, 128>}, {transform_indices = @transform_20, window_bounds = array<i64: 1, 16, 128>}, {transform_indices = @transform_21, window_bounds = array<i64: 1, 16, 512>}]} {
    %c0 = arith.constant 0 : index
    %c0_0 = arith.constant 0 : index
    %0 = vector.load %arg2[%c0, %c0_0] : memref<16x32xbf16, #tpu.memory_space<vmem>>, vector<16x32xbf16>
    %c0_1 = arith.constant 0 : index
    %c0_2 = arith.constant 0 : index
    %c0_3 = arith.constant 0 : index
    %1 = vector.load %arg1[%c0_1, %c0_2, %c0_3] : memref<1x32x128xbf16, #tpu.memory_space<vmem>>, vector<1x32x128xbf16>
    %2 = vector.shape_cast %1 : vector<1x32x128xbf16> to vector<32x128xbf16>
    %cst = arith.constant dense<0.000000e+00> : vector<16x128xf32>
    %3 = tpu.matmul %0, %2, %cst {dimension_numbers = #tpu.dot_dimension_numbers<[1], [0], [0], [1], [0, 0, 1, 1], [], []>} : vector<16x32xbf16>, vector<32x128xbf16>, vector<16x128xf32> -> vector<16x128xf32>
    %c0_4 = arith.constant 0 : index
    %c0_5 = arith.constant 0 : index
    %4 = vector.load %arg3[%c0_4, %c0_5] : memref<16x1xf32, #tpu.memory_space<vmem>>, vector<16x1xf32>
    %5 = vector.broadcast %4 : vector<16x1xf32> to vector<16x128xf32>
    %6 = arith.addf %3, %5 : vector<16x128xf32>
    %cst_6 = arith.constant 0.000000e+00 : f32
    %7 = vector.broadcast %cst_6 : f32 to vector<16x128xf32>
    %8 = arith.maximumf %6, %7 : vector<16x128xf32>
    %9 = arith.truncf %8 : vector<16x128xf32> to vector<16x128xbf16>
    %c0_7 = arith.constant 0 : index
    %c0_8 = arith.constant 0 : index
    %c0_9 = arith.constant 0 : index
    %10 = vector.load %arg6[%c0_7, %c0_8, %c0_9] : memref<9x128x128xbf16, #tpu.memory_space<vmem>>, vector<1x128x128xbf16>
    %11 = vector.shape_cast %10 : vector<1x128x128xbf16> to vector<128x128xbf16>
    %cst_10 = arith.constant dense<0.000000e+00> : vector<16x128xf32>
    %12 = tpu.matmul %9, %11, %cst_10 {dimension_numbers = #tpu.dot_dimension_numbers<[1], [0], [0], [1], [0, 0, 1, 1], [], []>} : vector<16x128xbf16>, vector<128x128xbf16>, vector<16x128xf32> -> vector<16x128xf32>
    %13 = arith.truncf %12 : vector<16x128xf32> to vector<16x128xbf16>
    %c0_11 = arith.constant 0 : index
    %c0_12 = arith.constant 0 : index
    %c0_13 = arith.constant 0 : index
    %14 = vector.load %arg4[%c0_11, %c0_12, %c0_13] : memref<9x16x16xbf16, #tpu.memory_space<vmem>>, vector<1x16x16xbf16>
    %15 = vector.shape_cast %14 : vector<1x16x16xbf16> to vector<16x16xbf16>
    %cst_14 = arith.constant dense<0.000000e+00> : vector<16x128xf32>
    %16 = tpu.matmul %15, %13, %cst_14 {dimension_numbers = #tpu.dot_dimension_numbers<[1], [0], [0], [1], [0, 0, 1, 1], [], []>} : vector<16x16xbf16>, vector<16x128xbf16>, vector<16x128xf32> -> vector<16x128xf32>
    %c1 = arith.constant 1 : index
    %c0_15 = arith.constant 0 : index
    %c0_16 = arith.constant 0 : index
    %17 = vector.load %arg6[%c1, %c0_15, %c0_16] : memref<9x128x128xbf16, #tpu.memory_space<vmem>>, vector<1x128x128xbf16>
    %18 = vector.shape_cast %17 : vector<1x128x128xbf16> to vector<128x128xbf16>
    %cst_17 = arith.constant dense<0.000000e+00> : vector<16x128xf32>
    %19 = tpu.matmul %9, %18, %cst_17 {dimension_numbers = #tpu.dot_dimension_numbers<[1], [0], [0], [1], [0, 0, 1, 1], [], []>} : vector<16x128xbf16>, vector<128x128xbf16>, vector<16x128xf32> -> vector<16x128xf32>
    %20 = arith.truncf %19 : vector<16x128xf32> to vector<16x128xbf16>
    %c1_18 = arith.constant 1 : index
    %c0_19 = arith.constant 0 : index
    %c0_20 = arith.constant 0 : index
    %21 = vector.load %arg4[%c1_18, %c0_19, %c0_20] : memref<9x16x16xbf16, #tpu.memory_space<vmem>>, vector<1x16x16xbf16>
    %22 = vector.shape_cast %21 : vector<1x16x16xbf16> to vector<16x16xbf16>
    %cst_21 = arith.constant dense<0.000000e+00> : vector<16x128xf32>
    %23 = tpu.matmul %22, %20, %cst_21 {dimension_numbers = #tpu.dot_dimension_numbers<[1], [0], [0], [1], [0, 0, 1, 1], [], []>} : vector<16x16xbf16>, vector<16x128xbf16>, vector<16x128xf32> -> vector<16x128xf32>
    %24 = arith.addf %16, %23 : vector<16x128xf32>
    %c2 = arith.constant 2 : index
    %c0_22 = arith.constant 0 : index
    %c0_23 = arith.constant 0 : index
    %25 = vector.load %arg6[%c2, %c0_22, %c0_23] : memref<9x128x128xbf16, #tpu.memory_space<vmem>>, vector<1x128x128xbf16>
    %26 = vector.shape_cast %25 : vector<1x128x128xbf16> to vector<128x128xbf16>
    %cst_24 = arith.constant dense<0.000000e+00> : vector<16x128xf32>
    %27 = tpu.matmul %9, %26, %cst_24 {dimension_numbers = #tpu.dot_dimension_numbers<[1], [0], [0], [1], [0, 0, 1, 1], [], []>} : vector<16x128xbf16>, vector<128x128xbf16>, vector<16x128xf32> -> vector<16x128xf32>
    %28 = arith.truncf %27 : vector<16x128xf32> to vector<16x128xbf16>
    %c2_25 = arith.constant 2 : index
    %c0_26 = arith.constant 0 : index
    %c0_27 = arith.constant 0 : index
    %29 = vector.load %arg4[%c2_25, %c0_26, %c0_27] : memref<9x16x16xbf16, #tpu.memory_space<vmem>>, vector<1x16x16xbf16>
    %30 = vector.shape_cast %29 : vector<1x16x16xbf16> to vector<16x16xbf16>
    %cst_28 = arith.constant dense<0.000000e+00> : vector<16x128xf32>
    %31 = tpu.matmul %30, %28, %cst_28 {dimension_numbers = #tpu.dot_dimension_numbers<[1], [0], [0], [1], [0, 0, 1, 1], [], []>} : vector<16x16xbf16>, vector<16x128xbf16>, vector<16x128xf32> -> vector<16x128xf32>
    %32 = arith.addf %24, %31 : vector<16x128xf32>
    %c3 = arith.constant 3 : index
    %c0_29 = arith.constant 0 : index
    %c0_30 = arith.constant 0 : index
    %33 = vector.load %arg6[%c3, %c0_29, %c0_30] : memref<9x128x128xbf16, #tpu.memory_space<vmem>>, vector<1x128x128xbf16>
    %34 = vector.shape_cast %33 : vector<1x128x128xbf16> to vector<128x128xbf16>
    %cst_31 = arith.constant dense<0.000000e+00> : vector<16x128xf32>
    %35 = tpu.matmul %9, %34, %cst_31 {dimension_numbers = #tpu.dot_dimension_numbers<[1], [0], [0], [1], [0, 0, 1, 1], [], []>} : vector<16x128xbf16>, vector<128x128xbf16>, vector<16x128xf32> -> vector<16x128xf32>
    %36 = arith.truncf %35 : vector<16x128xf32> to vector<16x128xbf16>
    %c3_32 = arith.constant 3 : index
    %c0_33 = arith.constant 0 : index
    %c0_34 = arith.constant 0 : index
    %37 = vector.load %arg4[%c3_32, %c0_33, %c0_34] : memref<9x16x16xbf16, #tpu.memory_space<vmem>>, vector<1x16x16xbf16>
    %38 = vector.shape_cast %37 : vector<1x16x16xbf16> to vector<16x16xbf16>
    %cst_35 = arith.constant dense<0.000000e+00> : vector<16x128xf32>
    %39 = tpu.matmul %38, %36, %cst_35 {dimension_numbers = #tpu.dot_dimension_numbers<[1], [0], [0], [1], [0, 0, 1, 1], [], []>} : vector<16x16xbf16>, vector<16x128xbf16>, vector<16x128xf32> -> vector<16x128xf32>
    %40 = arith.addf %32, %39 : vector<16x128xf32>
    %c4 = arith.constant 4 : index
    %c0_36 = arith.constant 0 : index
    %c0_37 = arith.constant 0 : index
    %41 = vector.load %arg6[%c4, %c0_36, %c0_37] : memref<9x128x128xbf16, #tpu.memory_space<vmem>>, vector<1x128x128xbf16>
    %42 = vector.shape_cast %41 : vector<1x128x128xbf16> to vector<128x128xbf16>
    %cst_38 = arith.constant dense<0.000000e+00> : vector<16x128xf32>
    %43 = tpu.matmul %9, %42, %cst_38 {dimension_numbers = #tpu.dot_dimension_numbers<[1], [0], [0], [1], [0, 0, 1, 1], [], []>} : vector<16x128xbf16>, vector<128x128xbf16>, vector<16x128xf32> -> vector<16x128xf32>
    %44 = arith.truncf %43 : vector<16x128xf32> to vector<16x128xbf16>
    %c4_39 = arith.constant 4 : index
    %c0_40 = arith.constant 0 : index
    %c0_41 = arith.constant 0 : index
    %45 = vector.load %arg4[%c4_39, %c0_40, %c0_41] : memref<9x16x16xbf16, #tpu.memory_space<vmem>>, vector<1x16x16xbf16>
    %46 = vector.shape_cast %45 : vector<1x16x16xbf16> to vector<16x16xbf16>
    %cst_42 = arith.constant dense<0.000000e+00> : vector<16x128xf32>
    %47 = tpu.matmul %46, %44, %cst_42 {dimension_numbers = #tpu.dot_dimension_numbers<[1], [0], [0], [1], [0, 0, 1, 1], [], []>} : vector<16x16xbf16>, vector<16x128xbf16>, vector<16x128xf32> -> vector<16x128xf32>
    %48 = arith.addf %40, %47 : vector<16x128xf32>
    %c5 = arith.constant 5 : index
    %c0_43 = arith.constant 0 : index
    %c0_44 = arith.constant 0 : index
    %49 = vector.load %arg6[%c5, %c0_43, %c0_44] : memref<9x128x128xbf16, #tpu.memory_space<vmem>>, vector<1x128x128xbf16>
    %50 = vector.shape_cast %49 : vector<1x128x128xbf16> to vector<128x128xbf16>
    %cst_45 = arith.constant dense<0.000000e+00> : vector<16x128xf32>
    %51 = tpu.matmul %9, %50, %cst_45 {dimension_numbers = #tpu.dot_dimension_numbers<[1], [0], [0], [1], [0, 0, 1, 1], [], []>} : vector<16x128xbf16>, vector<128x128xbf16>, vector<16x128xf32> -> vector<16x128xf32>
    %52 = arith.truncf %51 : vector<16x128xf32> to vector<16x128xbf16>
    %c5_46 = arith.constant 5 : index
    %c0_47 = arith.constant 0 : index
    %c0_48 = arith.constant 0 : index
    %53 = vector.load %arg4[%c5_46, %c0_47, %c0_48] : memref<9x16x16xbf16, #tpu.memory_space<vmem>>, vector<1x16x16xbf16>
    %54 = vector.shape_cast %53 : vector<1x16x16xbf16> to vector<16x16xbf16>
    %cst_49 = arith.constant dense<0.000000e+00> : vector<16x128xf32>
    %55 = tpu.matmul %54, %52, %cst_49 {dimension_numbers = #tpu.dot_dimension_numbers<[1], [0], [0], [1], [0, 0, 1, 1], [], []>} : vector<16x16xbf16>, vector<16x128xbf16>, vector<16x128xf32> -> vector<16x128xf32>
    %56 = arith.addf %48, %55 : vector<16x128xf32>
    %c6 = arith.constant 6 : index
    %c0_50 = arith.constant 0 : index
    %c0_51 = arith.constant 0 : index
    %57 = vector.load %arg6[%c6, %c0_50, %c0_51] : memref<9x128x128xbf16, #tpu.memory_space<vmem>>, vector<1x128x128xbf16>
    %58 = vector.shape_cast %57 : vector<1x128x128xbf16> to vector<128x128xbf16>
    %cst_52 = arith.constant dense<0.000000e+00> : vector<16x128xf32>
    %59 = tpu.matmul %9, %58, %cst_52 {dimension_numbers = #tpu.dot_dimension_numbers<[1], [0], [0], [1], [0, 0, 1, 1], [], []>} : vector<16x128xbf16>, vector<128x128xbf16>, vector<16x128xf32> -> vector<16x128xf32>
    %60 = arith.truncf %59 : vector<16x128xf32> to vector<16x128xbf16>
    %c6_53 = arith.constant 6 : index
    %c0_54 = arith.constant 0 : index
    %c0_55 = arith.constant 0 : index
    %61 = vector.load %arg4[%c6_53, %c0_54, %c0_55] : memref<9x16x16xbf16, #tpu.memory_space<vmem>>, vector<1x16x16xbf16>
    %62 = vector.shape_cast %61 : vector<1x16x16xbf16> to vector<16x16xbf16>
    %cst_56 = arith.constant dense<0.000000e+00> : vector<16x128xf32>
    %63 = tpu.matmul %62, %60, %cst_56 {dimension_numbers = #tpu.dot_dimension_numbers<[1], [0], [0], [1], [0, 0, 1, 1], [], []>} : vector<16x16xbf16>, vector<16x128xbf16>, vector<16x128xf32> -> vector<16x128xf32>
    %64 = arith.addf %56, %63 : vector<16x128xf32>
    %c7 = arith.constant 7 : index
    %c0_57 = arith.constant 0 : index
    %c0_58 = arith.constant 0 : index
    %65 = vector.load %arg6[%c7, %c0_57, %c0_58] : memref<9x128x128xbf16, #tpu.memory_space<vmem>>, vector<1x128x128xbf16>
    %66 = vector.shape_cast %65 : vector<1x128x128xbf16> to vector<128x128xbf16>
    %cst_59 = arith.constant dense<0.000000e+00> : vector<16x128xf32>
    %67 = tpu.matmul %9, %66, %cst_59 {dimension_numbers = #tpu.dot_dimension_numbers<[1], [0], [0], [1], [0, 0, 1, 1], [], []>} : vector<16x128xbf16>, vector<128x128xbf16>, vector<16x128xf32> -> vector<16x128xf32>
    %68 = arith.truncf %67 : vector<16x128xf32> to vector<16x128xbf16>
    %c7_60 = arith.constant 7 : index
    %c0_61 = arith.constant 0 : index
    %c0_62 = arith.constant 0 : index
    %69 = vector.load %arg4[%c7_60, %c0_61, %c0_62] : memref<9x16x16xbf16, #tpu.memory_space<vmem>>, vector<1x16x16xbf16>
    %70 = vector.shape_cast %69 : vector<1x16x16xbf16> to vector<16x16xbf16>
    %cst_63 = arith.constant dense<0.000000e+00> : vector<16x128xf32>
    %71 = tpu.matmul %70, %68, %cst_63 {dimension_numbers = #tpu.dot_dimension_numbers<[1], [0], [0], [1], [0, 0, 1, 1], [], []>} : vector<16x16xbf16>, vector<16x128xbf16>, vector<16x128xf32> -> vector<16x128xf32>
    %72 = arith.addf %64, %71 : vector<16x128xf32>
    %c8 = arith.constant 8 : index
    %c0_64 = arith.constant 0 : index
    %c0_65 = arith.constant 0 : index
    %73 = vector.load %arg6[%c8, %c0_64, %c0_65] : memref<9x128x128xbf16, #tpu.memory_space<vmem>>, vector<1x128x128xbf16>
    %74 = vector.shape_cast %73 : vector<1x128x128xbf16> to vector<128x128xbf16>
    %cst_66 = arith.constant dense<0.000000e+00> : vector<16x128xf32>
    %75 = tpu.matmul %9, %74, %cst_66 {dimension_numbers = #tpu.dot_dimension_numbers<[1], [0], [0], [1], [0, 0, 1, 1], [], []>} : vector<16x128xbf16>, vector<128x128xbf16>, vector<16x128xf32> -> vector<16x128xf32>
    %76 = arith.truncf %75 : vector<16x128xf32> to vector<16x128xbf16>
    %c8_67 = arith.constant 8 : index
    %c0_68 = arith.constant 0 : index
    %c0_69 = arith.constant 0 : index
    %77 = vector.load %arg4[%c8_67, %c0_68, %c0_69] : memref<9x16x16xbf16, #tpu.memory_space<vmem>>, vector<1x16x16xbf16>
    %78 = vector.shape_cast %77 : vector<1x16x16xbf16> to vector<16x16xbf16>
    %cst_70 = arith.constant dense<0.000000e+00> : vector<16x128xf32>
    %79 = tpu.matmul %78, %76, %cst_70 {dimension_numbers = #tpu.dot_dimension_numbers<[1], [0], [0], [1], [0, 0, 1, 1], [], []>} : vector<16x16xbf16>, vector<16x128xbf16>, vector<16x128xf32> -> vector<16x128xf32>
    %80 = arith.addf %72, %79 : vector<16x128xf32>
    %c0_71 = arith.constant 0 : index
    %c0_72 = arith.constant 0 : index
    %81 = vector.load %arg5[%c0_71, %c0_72] : memref<16x1xf32, #tpu.memory_space<vmem>>, vector<16x1xf32>
    %82 = vector.broadcast %81 : vector<16x1xf32> to vector<16x128xf32>
    %83 = arith.addf %80, %82 : vector<16x128xf32>
    %cst_73 = arith.constant 0.000000e+00 : f32
    %84 = vector.broadcast %cst_73 : f32 to vector<16x128xf32>
    %85 = arith.maximumf %83, %84 : vector<16x128xf32>
    %86 = arith.truncf %85 : vector<16x128xf32> to vector<16x128xbf16>
    %c0_74 = arith.constant 0 : index
    %c0_75 = arith.constant 0 : index
    %87 = vector.load %arg7[%c0_74, %c0_75] : memref<128x128xbf16, #tpu.memory_space<vmem>>, vector<128x128xbf16>
    %cst_76 = arith.constant dense<0.000000e+00> : vector<16x128xf32>
    %88 = tpu.matmul %86, %87, %cst_76 {dimension_numbers = #tpu.dot_dimension_numbers<[1], [0], [0], [1], [0, 0, 1, 1], [], []>} : vector<16x128xbf16>, vector<128x128xbf16>, vector<16x128xf32> -> vector<16x128xf32>
    %c0_77 = arith.constant 0 : index
    %c0_78 = arith.constant 0 : index
    %89 = vector.load %arg8[%c0_77, %c0_78] : memref<1x128xf32, #tpu.memory_space<vmem>>, vector<1x128xf32>
    %90 = vector.broadcast %89 : vector<1x128xf32> to vector<16x128xf32>
    %91 = arith.addf %88, %90 : vector<16x128xf32>
    %c0_79 = arith.constant 0 : index
    %c0_80 = arith.constant 0 : index
    %92 = vector.load %arg9[%c0_79, %c0_80] : memref<128x128xbf16, #tpu.memory_space<vmem>>, vector<128x128xbf16>
    %cst_81 = arith.constant dense<0.000000e+00> : vector<16x128xf32>
    %93 = tpu.matmul %86, %92, %cst_81 {dimension_numbers = #tpu.dot_dimension_numbers<[1], [0], [0], [1], [0, 0, 1, 1], [], []>} : vector<16x128xbf16>, vector<128x128xbf16>, vector<16x128xf32> -> vector<16x128xf32>
    %c0_82 = arith.constant 0 : index
    %c0_83 = arith.constant 0 : index
    %94 = vector.load %arg10[%c0_82, %c0_83] : memref<1x128xf32, #tpu.memory_space<vmem>>, vector<1x128xf32>
    %95 = vector.broadcast %94 : vector<1x128xf32> to vector<16x128xf32>
    %96 = arith.addf %93, %95 : vector<16x128xf32>
    %cst_84 = arith.constant -3.000000e+01 : f32
    %cst_85 = arith.constant 2.000000e+01 : f32
    %97 = vector.broadcast %cst_84 : f32 to vector<16x128xf32>
    %98 = arith.maximumf %97, %96 : vector<16x128xf32>
    %99 = vector.broadcast %cst_85 : f32 to vector<16x128xf32>
    %100 = arith.minimumf %99, %98 : vector<16x128xf32>
    %cst_86 = arith.constant 5.000000e-01 : f32
    %101 = vector.broadcast %cst_86 : f32 to vector<16x128xf32>
    %102 = arith.mulf %101, %100 : vector<16x128xf32>
    %103 = math.exp %102 : vector<16x128xf32>
    %c0_87 = arith.constant 0 : index
    %c0_88 = arith.constant 0 : index
    %c0_89 = arith.constant 0 : index
    %104 = vector.load %arg11[%c0_87, %c0_88, %c0_89] : memref<1x16x128xf32, #tpu.memory_space<vmem>>, vector<1x16x128xf32>
    %105 = vector.shape_cast %104 : vector<1x16x128xf32> to vector<16x128xf32>
    %106 = arith.mulf %105, %103 : vector<16x128xf32>
    %107 = arith.addf %91, %106 : vector<16x128xf32>
    %108 = arith.truncf %107 : vector<16x128xf32> to vector<16x128xbf16>
    %c0_90 = arith.constant 0 : index
    %c0_91 = arith.constant 0 : index
    %109 = vector.load %arg12[%c0_90, %c0_91] : memref<128x128xbf16, #tpu.memory_space<vmem>>, vector<128x128xbf16>
    %cst_92 = arith.constant dense<0.000000e+00> : vector<16x128xf32>
    %110 = tpu.matmul %108, %109, %cst_92 {dimension_numbers = #tpu.dot_dimension_numbers<[1], [0], [0], [1], [0, 0, 1, 1], [], []>} : vector<16x128xbf16>, vector<128x128xbf16>, vector<16x128xf32> -> vector<16x128xf32>
    %c0_93 = arith.constant 0 : index
    %c0_94 = arith.constant 0 : index
    %111 = vector.load %arg13[%c0_93, %c0_94] : memref<1x128xf32, #tpu.memory_space<vmem>>, vector<1x128xf32>
    %112 = vector.broadcast %111 : vector<1x128xf32> to vector<16x128xf32>
    %113 = arith.addf %110, %112 : vector<16x128xf32>
    %114 = arith.truncf %113 : vector<16x128xf32> to vector<16x128xbf16>
    %c0_95 = arith.constant 0 : index
    %c0_96 = arith.constant 0 : index
    %c0_97 = arith.constant 0 : index
    %115 = vector.load %arg16[%c0_95, %c0_96, %c0_97] : memref<9x128x128xbf16, #tpu.memory_space<vmem>>, vector<1x128x128xbf16>
    %116 = vector.shape_cast %115 : vector<1x128x128xbf16> to vector<128x128xbf16>
    %cst_98 = arith.constant dense<0.000000e+00> : vector<16x128xf32>
    %117 = tpu.matmul %114, %116, %cst_98 {dimension_numbers = #tpu.dot_dimension_numbers<[1], [0], [0], [1], [0, 0, 1, 1], [], []>} : vector<16x128xbf16>, vector<128x128xbf16>, vector<16x128xf32> -> vector<16x128xf32>
    %118 = arith.truncf %117 : vector<16x128xf32> to vector<16x128xbf16>
    %c0_99 = arith.constant 0 : index
    %c0_100 = arith.constant 0 : index
    %c0_101 = arith.constant 0 : index
    %119 = vector.load %arg14[%c0_99, %c0_100, %c0_101] : memref<9x16x16xbf16, #tpu.memory_space<vmem>>, vector<1x16x16xbf16>
    %120 = vector.shape_cast %119 : vector<1x16x16xbf16> to vector<16x16xbf16>
    %cst_102 = arith.constant dense<0.000000e+00> : vector<16x128xf32>
    %121 = tpu.matmul %120, %118, %cst_102 {dimension_numbers = #tpu.dot_dimension_numbers<[1], [0], [0], [1], [0, 0, 1, 1], [], []>} : vector<16x16xbf16>, vector<16x128xbf16>, vector<16x128xf32> -> vector<16x128xf32>
    %c1_103 = arith.constant 1 : index
    %c0_104 = arith.constant 0 : index
    %c0_105 = arith.constant 0 : index
    %122 = vector.load %arg16[%c1_103, %c0_104, %c0_105] : memref<9x128x128xbf16, #tpu.memory_space<vmem>>, vector<1x128x128xbf16>
    %123 = vector.shape_cast %122 : vector<1x128x128xbf16> to vector<128x128xbf16>
    %cst_106 = arith.constant dense<0.000000e+00> : vector<16x128xf32>
    %124 = tpu.matmul %114, %123, %cst_106 {dimension_numbers = #tpu.dot_dimension_numbers<[1], [0], [0], [1], [0, 0, 1, 1], [], []>} : vector<16x128xbf16>, vector<128x128xbf16>, vector<16x128xf32> -> vector<16x128xf32>
    %125 = arith.truncf %124 : vector<16x128xf32> to vector<16x128xbf16>
    %c1_107 = arith.constant 1 : index
    %c0_108 = arith.constant 0 : index
    %c0_109 = arith.constant 0 : index
    %126 = vector.load %arg14[%c1_107, %c0_108, %c0_109] : memref<9x16x16xbf16, #tpu.memory_space<vmem>>, vector<1x16x16xbf16>
    %127 = vector.shape_cast %126 : vector<1x16x16xbf16> to vector<16x16xbf16>
    %cst_110 = arith.constant dense<0.000000e+00> : vector<16x128xf32>
    %128 = tpu.matmul %127, %125, %cst_110 {dimension_numbers = #tpu.dot_dimension_numbers<[1], [0], [0], [1], [0, 0, 1, 1], [], []>} : vector<16x16xbf16>, vector<16x128xbf16>, vector<16x128xf32> -> vector<16x128xf32>
    %129 = arith.addf %121, %128 : vector<16x128xf32>
    %c2_111 = arith.constant 2 : index
    %c0_112 = arith.constant 0 : index
    %c0_113 = arith.constant 0 : index
    %130 = vector.load %arg16[%c2_111, %c0_112, %c0_113] : memref<9x128x128xbf16, #tpu.memory_space<vmem>>, vector<1x128x128xbf16>
    %131 = vector.shape_cast %130 : vector<1x128x128xbf16> to vector<128x128xbf16>
    %cst_114 = arith.constant dense<0.000000e+00> : vector<16x128xf32>
    %132 = tpu.matmul %114, %131, %cst_114 {dimension_numbers = #tpu.dot_dimension_numbers<[1], [0], [0], [1], [0, 0, 1, 1], [], []>} : vector<16x128xbf16>, vector<128x128xbf16>, vector<16x128xf32> -> vector<16x128xf32>
    %133 = arith.truncf %132 : vector<16x128xf32> to vector<16x128xbf16>
    %c2_115 = arith.constant 2 : index
    %c0_116 = arith.constant 0 : index
    %c0_117 = arith.constant 0 : index
    %134 = vector.load %arg14[%c2_115, %c0_116, %c0_117] : memref<9x16x16xbf16, #tpu.memory_space<vmem>>, vector<1x16x16xbf16>
    %135 = vector.shape_cast %134 : vector<1x16x16xbf16> to vector<16x16xbf16>
    %cst_118 = arith.constant dense<0.000000e+00> : vector<16x128xf32>
    %136 = tpu.matmul %135, %133, %cst_118 {dimension_numbers = #tpu.dot_dimension_numbers<[1], [0], [0], [1], [0, 0, 1, 1], [], []>} : vector<16x16xbf16>, vector<16x128xbf16>, vector<16x128xf32> -> vector<16x128xf32>
    %137 = arith.addf %129, %136 : vector<16x128xf32>
    %c3_119 = arith.constant 3 : index
    %c0_120 = arith.constant 0 : index
    %c0_121 = arith.constant 0 : index
    %138 = vector.load %arg16[%c3_119, %c0_120, %c0_121] : memref<9x128x128xbf16, #tpu.memory_space<vmem>>, vector<1x128x128xbf16>
    %139 = vector.shape_cast %138 : vector<1x128x128xbf16> to vector<128x128xbf16>
    %cst_122 = arith.constant dense<0.000000e+00> : vector<16x128xf32>
    %140 = tpu.matmul %114, %139, %cst_122 {dimension_numbers = #tpu.dot_dimension_numbers<[1], [0], [0], [1], [0, 0, 1, 1], [], []>} : vector<16x128xbf16>, vector<128x128xbf16>, vector<16x128xf32> -> vector<16x128xf32>
    %141 = arith.truncf %140 : vector<16x128xf32> to vector<16x128xbf16>
    %c3_123 = arith.constant 3 : index
    %c0_124 = arith.constant 0 : index
    %c0_125 = arith.constant 0 : index
    %142 = vector.load %arg14[%c3_123, %c0_124, %c0_125] : memref<9x16x16xbf16, #tpu.memory_space<vmem>>, vector<1x16x16xbf16>
    %143 = vector.shape_cast %142 : vector<1x16x16xbf16> to vector<16x16xbf16>
    %cst_126 = arith.constant dense<0.000000e+00> : vector<16x128xf32>
    %144 = tpu.matmul %143, %141, %cst_126 {dimension_numbers = #tpu.dot_dimension_numbers<[1], [0], [0], [1], [0, 0, 1, 1], [], []>} : vector<16x16xbf16>, vector<16x128xbf16>, vector<16x128xf32> -> vector<16x128xf32>
    %145 = arith.addf %137, %144 : vector<16x128xf32>
    %c4_127 = arith.constant 4 : index
    %c0_128 = arith.constant 0 : index
    %c0_129 = arith.constant 0 : index
    %146 = vector.load %arg16[%c4_127, %c0_128, %c0_129] : memref<9x128x128xbf16, #tpu.memory_space<vmem>>, vector<1x128x128xbf16>
    %147 = vector.shape_cast %146 : vector<1x128x128xbf16> to vector<128x128xbf16>
    %cst_130 = arith.constant dense<0.000000e+00> : vector<16x128xf32>
    %148 = tpu.matmul %114, %147, %cst_130 {dimension_numbers = #tpu.dot_dimension_numbers<[1], [0], [0], [1], [0, 0, 1, 1], [], []>} : vector<16x128xbf16>, vector<128x128xbf16>, vector<16x128xf32> -> vector<16x128xf32>
    %149 = arith.truncf %148 : vector<16x128xf32> to vector<16x128xbf16>
    %c4_131 = arith.constant 4 : index
    %c0_132 = arith.constant 0 : index
    %c0_133 = arith.constant 0 : index
    %150 = vector.load %arg14[%c4_131, %c0_132, %c0_133] : memref<9x16x16xbf16, #tpu.memory_space<vmem>>, vector<1x16x16xbf16>
    %151 = vector.shape_cast %150 : vector<1x16x16xbf16> to vector<16x16xbf16>
    %cst_134 = arith.constant dense<0.000000e+00> : vector<16x128xf32>
    %152 = tpu.matmul %151, %149, %cst_134 {dimension_numbers = #tpu.dot_dimension_numbers<[1], [0], [0], [1], [0, 0, 1, 1], [], []>} : vector<16x16xbf16>, vector<16x128xbf16>, vector<16x128xf32> -> vector<16x128xf32>
    %153 = arith.addf %145, %152 : vector<16x128xf32>
    %c5_135 = arith.constant 5 : index
    %c0_136 = arith.constant 0 : index
    %c0_137 = arith.constant 0 : index
    %154 = vector.load %arg16[%c5_135, %c0_136, %c0_137] : memref<9x128x128xbf16, #tpu.memory_space<vmem>>, vector<1x128x128xbf16>
    %155 = vector.shape_cast %154 : vector<1x128x128xbf16> to vector<128x128xbf16>
    %cst_138 = arith.constant dense<0.000000e+00> : vector<16x128xf32>
    %156 = tpu.matmul %114, %155, %cst_138 {dimension_numbers = #tpu.dot_dimension_numbers<[1], [0], [0], [1], [0, 0, 1, 1], [], []>} : vector<16x128xbf16>, vector<128x128xbf16>, vector<16x128xf32> -> vector<16x128xf32>
    %157 = arith.truncf %156 : vector<16x128xf32> to vector<16x128xbf16>
    %c5_139 = arith.constant 5 : index
    %c0_140 = arith.constant 0 : index
    %c0_141 = arith.constant 0 : index
    %158 = vector.load %arg14[%c5_139, %c0_140, %c0_141] : memref<9x16x16xbf16, #tpu.memory_space<vmem>>, vector<1x16x16xbf16>
    %159 = vector.shape_cast %158 : vector<1x16x16xbf16> to vector<16x16xbf16>
    %cst_142 = arith.constant dense<0.000000e+00> : vector<16x128xf32>
    %160 = tpu.matmul %159, %157, %cst_142 {dimension_numbers = #tpu.dot_dimension_numbers<[1], [0], [0], [1], [0, 0, 1, 1], [], []>} : vector<16x16xbf16>, vector<16x128xbf16>, vector<16x128xf32> -> vector<16x128xf32>
    %161 = arith.addf %153, %160 : vector<16x128xf32>
    %c6_143 = arith.constant 6 : index
    %c0_144 = arith.constant 0 : index
    %c0_145 = arith.constant 0 : index
    %162 = vector.load %arg16[%c6_143, %c0_144, %c0_145] : memref<9x128x128xbf16, #tpu.memory_space<vmem>>, vector<1x128x128xbf16>
    %163 = vector.shape_cast %162 : vector<1x128x128xbf16> to vector<128x128xbf16>
    %cst_146 = arith.constant dense<0.000000e+00> : vector<16x128xf32>
    %164 = tpu.matmul %114, %163, %cst_146 {dimension_numbers = #tpu.dot_dimension_numbers<[1], [0], [0], [1], [0, 0, 1, 1], [], []>} : vector<16x128xbf16>, vector<128x128xbf16>, vector<16x128xf32> -> vector<16x128xf32>
    %165 = arith.truncf %164 : vector<16x128xf32> to vector<16x128xbf16>
    %c6_147 = arith.constant 6 : index
    %c0_148 = arith.constant 0 : index
    %c0_149 = arith.constant 0 : index
    %166 = vector.load %arg14[%c6_147, %c0_148, %c0_149] : memref<9x16x16xbf16, #tpu.memory_space<vmem>>, vector<1x16x16xbf16>
    %167 = vector.shape_cast %166 : vector<1x16x16xbf16> to vector<16x16xbf16>
    %cst_150 = arith.constant dense<0.000000e+00> : vector<16x128xf32>
    %168 = tpu.matmul %167, %165, %cst_150 {dimension_numbers = #tpu.dot_dimension_numbers<[1], [0], [0], [1], [0, 0, 1, 1], [], []>} : vector<16x16xbf16>, vector<16x128xbf16>, vector<16x128xf32> -> vector<16x128xf32>
    %169 = arith.addf %161, %168 : vector<16x128xf32>
    %c7_151 = arith.constant 7 : index
    %c0_152 = arith.constant 0 : index
    %c0_153 = arith.constant 0 : index
    %170 = vector.load %arg16[%c7_151, %c0_152, %c0_153] : memref<9x128x128xbf16, #tpu.memory_space<vmem>>, vector<1x128x128xbf16>
    %171 = vector.shape_cast %170 : vector<1x128x128xbf16> to vector<128x128xbf16>
    %cst_154 = arith.constant dense<0.000000e+00> : vector<16x128xf32>
    %172 = tpu.matmul %114, %171, %cst_154 {dimension_numbers = #tpu.dot_dimension_numbers<[1], [0], [0], [1], [0, 0, 1, 1], [], []>} : vector<16x128xbf16>, vector<128x128xbf16>, vector<16x128xf32> -> vector<16x128xf32>
    %173 = arith.truncf %172 : vector<16x128xf32> to vector<16x128xbf16>
    %c7_155 = arith.constant 7 : index
    %c0_156 = arith.constant 0 : index
    %c0_157 = arith.constant 0 : index
    %174 = vector.load %arg14[%c7_155, %c0_156, %c0_157] : memref<9x16x16xbf16, #tpu.memory_space<vmem>>, vector<1x16x16xbf16>
    %175 = vector.shape_cast %174 : vector<1x16x16xbf16> to vector<16x16xbf16>
    %cst_158 = arith.constant dense<0.000000e+00> : vector<16x128xf32>
    %176 = tpu.matmul %175, %173, %cst_158 {dimension_numbers = #tpu.dot_dimension_numbers<[1], [0], [0], [1], [0, 0, 1, 1], [], []>} : vector<16x16xbf16>, vector<16x128xbf16>, vector<16x128xf32> -> vector<16x128xf32>
    %177 = arith.addf %169, %176 : vector<16x128xf32>
    %c8_159 = arith.constant 8 : index
    %c0_160 = arith.constant 0 : index
    %c0_161 = arith.constant 0 : index
    %178 = vector.load %arg16[%c8_159, %c0_160, %c0_161] : memref<9x128x128xbf16, #tpu.memory_space<vmem>>, vector<1x128x128xbf16>
    %179 = vector.shape_cast %178 : vector<1x128x128xbf16> to vector<128x128xbf16>
    %cst_162 = arith.constant dense<0.000000e+00> : vector<16x128xf32>
    %180 = tpu.matmul %114, %179, %cst_162 {dimension_numbers = #tpu.dot_dimension_numbers<[1], [0], [0], [1], [0, 0, 1, 1], [], []>} : vector<16x128xbf16>, vector<128x128xbf16>, vector<16x128xf32> -> vector<16x128xf32>
    %181 = arith.truncf %180 : vector<16x128xf32> to vector<16x128xbf16>
    %c8_163 = arith.constant 8 : index
    %c0_164 = arith.constant 0 : index
    %c0_165 = arith.constant 0 : index
    %182 = vector.load %arg14[%c8_163, %c0_164, %c0_165] : memref<9x16x16xbf16, #tpu.memory_space<vmem>>, vector<1x16x16xbf16>
    %183 = vector.shape_cast %182 : vector<1x16x16xbf16> to vector<16x16xbf16>
    %cst_166 = arith.constant dense<0.000000e+00> : vector<16x128xf32>
    %184 = tpu.matmul %183, %181, %cst_166 {dimension_numbers = #tpu.dot_dimension_numbers<[1], [0], [0], [1], [0, 0, 1, 1], [], []>} : vector<16x16xbf16>, vector<16x128xbf16>, vector<16x128xf32> -> vector<16x128xf32>
    %185 = arith.addf %177, %184 : vector<16x128xf32>
    %c0_167 = arith.constant 0 : index
    %c0_168 = arith.constant 0 : index
    %186 = vector.load %arg15[%c0_167, %c0_168] : memref<16x1xf32, #tpu.memory_space<vmem>>, vector<16x1xf32>
    %187 = vector.broadcast %186 : vector<16x1xf32> to vector<16x128xf32>
    %188 = arith.addf %185, %187 : vector<16x128xf32>
    %cst_169 = arith.constant 0.000000e+00 : f32
    %189 = vector.broadcast %cst_169 : f32 to vector<16x128xf32>
    %190 = arith.maximumf %188, %189 : vector<16x128xf32>
    %191 = arith.truncf %190 : vector<16x128xf32> to vector<16x128xbf16>
    %c0_170 = arith.constant 0 : index
    %c0_171 = arith.constant 0 : index
    %c0_172 = arith.constant 0 : index
    %192 = vector.load %arg19[%c0_170, %c0_171, %c0_172] : memref<9x128x512xbf16, #tpu.memory_space<vmem>>, vector<1x128x512xbf16>
    %193 = vector.shape_cast %192 : vector<1x128x512xbf16> to vector<128x512xbf16>
    %cst_173 = arith.constant dense<0.000000e+00> : vector<16x512xf32>
    %194 = tpu.matmul %191, %193, %cst_173 {dimension_numbers = #tpu.dot_dimension_numbers<[1], [0], [0], [1], [0, 0, 1, 1], [], []>} : vector<16x128xbf16>, vector<128x512xbf16>, vector<16x512xf32> -> vector<16x512xf32>
    %195 = arith.truncf %194 : vector<16x512xf32> to vector<16x512xbf16>
    %c0_174 = arith.constant 0 : index
    %c0_175 = arith.constant 0 : index
    %c0_176 = arith.constant 0 : index
    %196 = vector.load %arg17[%c0_174, %c0_175, %c0_176] : memref<9x16x16xbf16, #tpu.memory_space<vmem>>, vector<1x16x16xbf16>
    %197 = vector.shape_cast %196 : vector<1x16x16xbf16> to vector<16x16xbf16>
    %cst_177 = arith.constant dense<0.000000e+00> : vector<16x512xf32>
    %198 = tpu.matmul %197, %195, %cst_177 {dimension_numbers = #tpu.dot_dimension_numbers<[1], [0], [0], [1], [0, 0, 1, 1], [], []>} : vector<16x16xbf16>, vector<16x512xbf16>, vector<16x512xf32> -> vector<16x512xf32>
    %c1_178 = arith.constant 1 : index
    %c0_179 = arith.constant 0 : index
    %c0_180 = arith.constant 0 : index
    %199 = vector.load %arg19[%c1_178, %c0_179, %c0_180] : memref<9x128x512xbf16, #tpu.memory_space<vmem>>, vector<1x128x512xbf16>
    %200 = vector.shape_cast %199 : vector<1x128x512xbf16> to vector<128x512xbf16>
    %cst_181 = arith.constant dense<0.000000e+00> : vector<16x512xf32>
    %201 = tpu.matmul %191, %200, %cst_181 {dimension_numbers = #tpu.dot_dimension_numbers<[1], [0], [0], [1], [0, 0, 1, 1], [], []>} : vector<16x128xbf16>, vector<128x512xbf16>, vector<16x512xf32> -> vector<16x512xf32>
    %202 = arith.truncf %201 : vector<16x512xf32> to vector<16x512xbf16>
    %c1_182 = arith.constant 1 : index
    %c0_183 = arith.constant 0 : index
    %c0_184 = arith.constant 0 : index
    %203 = vector.load %arg17[%c1_182, %c0_183, %c0_184] : memref<9x16x16xbf16, #tpu.memory_space<vmem>>, vector<1x16x16xbf16>
    %204 = vector.shape_cast %203 : vector<1x16x16xbf16> to vector<16x16xbf16>
    %cst_185 = arith.constant dense<0.000000e+00> : vector<16x512xf32>
    %205 = tpu.matmul %204, %202, %cst_185 {dimension_numbers = #tpu.dot_dimension_numbers<[1], [0], [0], [1], [0, 0, 1, 1], [], []>} : vector<16x16xbf16>, vector<16x512xbf16>, vector<16x512xf32> -> vector<16x512xf32>
    %206 = arith.addf %198, %205 : vector<16x512xf32>
    %c2_186 = arith.constant 2 : index
    %c0_187 = arith.constant 0 : index
    %c0_188 = arith.constant 0 : index
    %207 = vector.load %arg19[%c2_186, %c0_187, %c0_188] : memref<9x128x512xbf16, #tpu.memory_space<vmem>>, vector<1x128x512xbf16>
    %208 = vector.shape_cast %207 : vector<1x128x512xbf16> to vector<128x512xbf16>
    %cst_189 = arith.constant dense<0.000000e+00> : vector<16x512xf32>
    %209 = tpu.matmul %191, %208, %cst_189 {dimension_numbers = #tpu.dot_dimension_numbers<[1], [0], [0], [1], [0, 0, 1, 1], [], []>} : vector<16x128xbf16>, vector<128x512xbf16>, vector<16x512xf32> -> vector<16x512xf32>
    %210 = arith.truncf %209 : vector<16x512xf32> to vector<16x512xbf16>
    %c2_190 = arith.constant 2 : index
    %c0_191 = arith.constant 0 : index
    %c0_192 = arith.constant 0 : index
    %211 = vector.load %arg17[%c2_190, %c0_191, %c0_192] : memref<9x16x16xbf16, #tpu.memory_space<vmem>>, vector<1x16x16xbf16>
    %212 = vector.shape_cast %211 : vector<1x16x16xbf16> to vector<16x16xbf16>
    %cst_193 = arith.constant dense<0.000000e+00> : vector<16x512xf32>
    %213 = tpu.matmul %212, %210, %cst_193 {dimension_numbers = #tpu.dot_dimension_numbers<[1], [0], [0], [1], [0, 0, 1, 1], [], []>} : vector<16x16xbf16>, vector<16x512xbf16>, vector<16x512xf32> -> vector<16x512xf32>
    %214 = arith.addf %206, %213 : vector<16x512xf32>
    %c3_194 = arith.constant 3 : index
    %c0_195 = arith.constant 0 : index
    %c0_196 = arith.constant 0 : index
    %215 = vector.load %arg19[%c3_194, %c0_195, %c0_196] : memref<9x128x512xbf16, #tpu.memory_space<vmem>>, vector<1x128x512xbf16>
    %216 = vector.shape_cast %215 : vector<1x128x512xbf16> to vector<128x512xbf16>
    %cst_197 = arith.constant dense<0.000000e+00> : vector<16x512xf32>
    %217 = tpu.matmul %191, %216, %cst_197 {dimension_numbers = #tpu.dot_dimension_numbers<[1], [0], [0], [1], [0, 0, 1, 1], [], []>} : vector<16x128xbf16>, vector<128x512xbf16>, vector<16x512xf32> -> vector<16x512xf32>
    %218 = arith.truncf %217 : vector<16x512xf32> to vector<16x512xbf16>
    %c3_198 = arith.constant 3 : index
    %c0_199 = arith.constant 0 : index
    %c0_200 = arith.constant 0 : index
    %219 = vector.load %arg17[%c3_198, %c0_199, %c0_200] : memref<9x16x16xbf16, #tpu.memory_space<vmem>>, vector<1x16x16xbf16>
    %220 = vector.shape_cast %219 : vector<1x16x16xbf16> to vector<16x16xbf16>
    %cst_201 = arith.constant dense<0.000000e+00> : vector<16x512xf32>
    %221 = tpu.matmul %220, %218, %cst_201 {dimension_numbers = #tpu.dot_dimension_numbers<[1], [0], [0], [1], [0, 0, 1, 1], [], []>} : vector<16x16xbf16>, vector<16x512xbf16>, vector<16x512xf32> -> vector<16x512xf32>
    %222 = arith.addf %214, %221 : vector<16x512xf32>
    %c4_202 = arith.constant 4 : index
    %c0_203 = arith.constant 0 : index
    %c0_204 = arith.constant 0 : index
    %223 = vector.load %arg19[%c4_202, %c0_203, %c0_204] : memref<9x128x512xbf16, #tpu.memory_space<vmem>>, vector<1x128x512xbf16>
    %224 = vector.shape_cast %223 : vector<1x128x512xbf16> to vector<128x512xbf16>
    %cst_205 = arith.constant dense<0.000000e+00> : vector<16x512xf32>
    %225 = tpu.matmul %191, %224, %cst_205 {dimension_numbers = #tpu.dot_dimension_numbers<[1], [0], [0], [1], [0, 0, 1, 1], [], []>} : vector<16x128xbf16>, vector<128x512xbf16>, vector<16x512xf32> -> vector<16x512xf32>
    %226 = arith.truncf %225 : vector<16x512xf32> to vector<16x512xbf16>
    %c4_206 = arith.constant 4 : index
    %c0_207 = arith.constant 0 : index
    %c0_208 = arith.constant 0 : index
    %227 = vector.load %arg17[%c4_206, %c0_207, %c0_208] : memref<9x16x16xbf16, #tpu.memory_space<vmem>>, vector<1x16x16xbf16>
    %228 = vector.shape_cast %227 : vector<1x16x16xbf16> to vector<16x16xbf16>
    %cst_209 = arith.constant dense<0.000000e+00> : vector<16x512xf32>
    %229 = tpu.matmul %228, %226, %cst_209 {dimension_numbers = #tpu.dot_dimension_numbers<[1], [0], [0], [1], [0, 0, 1, 1], [], []>} : vector<16x16xbf16>, vector<16x512xbf16>, vector<16x512xf32> -> vector<16x512xf32>
    %230 = arith.addf %222, %229 : vector<16x512xf32>
    %c5_210 = arith.constant 5 : index
    %c0_211 = arith.constant 0 : index
    %c0_212 = arith.constant 0 : index
    %231 = vector.load %arg19[%c5_210, %c0_211, %c0_212] : memref<9x128x512xbf16, #tpu.memory_space<vmem>>, vector<1x128x512xbf16>
    %232 = vector.shape_cast %231 : vector<1x128x512xbf16> to vector<128x512xbf16>
    %cst_213 = arith.constant dense<0.000000e+00> : vector<16x512xf32>
    %233 = tpu.matmul %191, %232, %cst_213 {dimension_numbers = #tpu.dot_dimension_numbers<[1], [0], [0], [1], [0, 0, 1, 1], [], []>} : vector<16x128xbf16>, vector<128x512xbf16>, vector<16x512xf32> -> vector<16x512xf32>
    %234 = arith.truncf %233 : vector<16x512xf32> to vector<16x512xbf16>
    %c5_214 = arith.constant 5 : index
    %c0_215 = arith.constant 0 : index
    %c0_216 = arith.constant 0 : index
    %235 = vector.load %arg17[%c5_214, %c0_215, %c0_216] : memref<9x16x16xbf16, #tpu.memory_space<vmem>>, vector<1x16x16xbf16>
    %236 = vector.shape_cast %235 : vector<1x16x16xbf16> to vector<16x16xbf16>
    %cst_217 = arith.constant dense<0.000000e+00> : vector<16x512xf32>
    %237 = tpu.matmul %236, %234, %cst_217 {dimension_numbers = #tpu.dot_dimension_numbers<[1], [0], [0], [1], [0, 0, 1, 1], [], []>} : vector<16x16xbf16>, vector<16x512xbf16>, vector<16x512xf32> -> vector<16x512xf32>
    %238 = arith.addf %230, %237 : vector<16x512xf32>
    %c6_218 = arith.constant 6 : index
    %c0_219 = arith.constant 0 : index
    %c0_220 = arith.constant 0 : index
    %239 = vector.load %arg19[%c6_218, %c0_219, %c0_220] : memref<9x128x512xbf16, #tpu.memory_space<vmem>>, vector<1x128x512xbf16>
    %240 = vector.shape_cast %239 : vector<1x128x512xbf16> to vector<128x512xbf16>
    %cst_221 = arith.constant dense<0.000000e+00> : vector<16x512xf32>
    %241 = tpu.matmul %191, %240, %cst_221 {dimension_numbers = #tpu.dot_dimension_numbers<[1], [0], [0], [1], [0, 0, 1, 1], [], []>} : vector<16x128xbf16>, vector<128x512xbf16>, vector<16x512xf32> -> vector<16x512xf32>
    %242 = arith.truncf %241 : vector<16x512xf32> to vector<16x512xbf16>
    %c6_222 = arith.constant 6 : index
    %c0_223 = arith.constant 0 : index
    %c0_224 = arith.constant 0 : index
    %243 = vector.load %arg17[%c6_222, %c0_223, %c0_224] : memref<9x16x16xbf16, #tpu.memory_space<vmem>>, vector<1x16x16xbf16>
    %244 = vector.shape_cast %243 : vector<1x16x16xbf16> to vector<16x16xbf16>
    %cst_225 = arith.constant dense<0.000000e+00> : vector<16x512xf32>
    %245 = tpu.matmul %244, %242, %cst_225 {dimension_numbers = #tpu.dot_dimension_numbers<[1], [0], [0], [1], [0, 0, 1, 1], [], []>} : vector<16x16xbf16>, vector<16x512xbf16>, vector<16x512xf32> -> vector<16x512xf32>
    %246 = arith.addf %238, %245 : vector<16x512xf32>
    %c7_226 = arith.constant 7 : index
    %c0_227 = arith.constant 0 : index
    %c0_228 = arith.constant 0 : index
    %247 = vector.load %arg19[%c7_226, %c0_227, %c0_228] : memref<9x128x512xbf16, #tpu.memory_space<vmem>>, vector<1x128x512xbf16>
    %248 = vector.shape_cast %247 : vector<1x128x512xbf16> to vector<128x512xbf16>
    %cst_229 = arith.constant dense<0.000000e+00> : vector<16x512xf32>
    %249 = tpu.matmul %191, %248, %cst_229 {dimension_numbers = #tpu.dot_dimension_numbers<[1], [0], [0], [1], [0, 0, 1, 1], [], []>} : vector<16x128xbf16>, vector<128x512xbf16>, vector<16x512xf32> -> vector<16x512xf32>
    %250 = arith.truncf %249 : vector<16x512xf32> to vector<16x512xbf16>
    %c7_230 = arith.constant 7 : index
    %c0_231 = arith.constant 0 : index
    %c0_232 = arith.constant 0 : index
    %251 = vector.load %arg17[%c7_230, %c0_231, %c0_232] : memref<9x16x16xbf16, #tpu.memory_space<vmem>>, vector<1x16x16xbf16>
    %252 = vector.shape_cast %251 : vector<1x16x16xbf16> to vector<16x16xbf16>
    %cst_233 = arith.constant dense<0.000000e+00> : vector<16x512xf32>
    %253 = tpu.matmul %252, %250, %cst_233 {dimension_numbers = #tpu.dot_dimension_numbers<[1], [0], [0], [1], [0, 0, 1, 1], [], []>} : vector<16x16xbf16>, vector<16x512xbf16>, vector<16x512xf32> -> vector<16x512xf32>
    %254 = arith.addf %246, %253 : vector<16x512xf32>
    %c8_234 = arith.constant 8 : index
    %c0_235 = arith.constant 0 : index
    %c0_236 = arith.constant 0 : index
    %255 = vector.load %arg19[%c8_234, %c0_235, %c0_236] : memref<9x128x512xbf16, #tpu.memory_space<vmem>>, vector<1x128x512xbf16>
    %256 = vector.shape_cast %255 : vector<1x128x512xbf16> to vector<128x512xbf16>
    %cst_237 = arith.constant dense<0.000000e+00> : vector<16x512xf32>
    %257 = tpu.matmul %191, %256, %cst_237 {dimension_numbers = #tpu.dot_dimension_numbers<[1], [0], [0], [1], [0, 0, 1, 1], [], []>} : vector<16x128xbf16>, vector<128x512xbf16>, vector<16x512xf32> -> vector<16x512xf32>
    %258 = arith.truncf %257 : vector<16x512xf32> to vector<16x512xbf16>
    %c8_238 = arith.constant 8 : index
    %c0_239 = arith.constant 0 : index
    %c0_240 = arith.constant 0 : index
    %259 = vector.load %arg17[%c8_238, %c0_239, %c0_240] : memref<9x16x16xbf16, #tpu.memory_space<vmem>>, vector<1x16x16xbf16>
    %260 = vector.shape_cast %259 : vector<1x16x16xbf16> to vector<16x16xbf16>
    %cst_241 = arith.constant dense<0.000000e+00> : vector<16x512xf32>
    %261 = tpu.matmul %260, %258, %cst_241 {dimension_numbers = #tpu.dot_dimension_numbers<[1], [0], [0], [1], [0, 0, 1, 1], [], []>} : vector<16x16xbf16>, vector<16x512xbf16>, vector<16x512xf32> -> vector<16x512xf32>
    %262 = arith.addf %254, %261 : vector<16x512xf32>
    %c0_242 = arith.constant 0 : index
    %c0_243 = arith.constant 0 : index
    %263 = vector.load %arg18[%c0_242, %c0_243] : memref<16x1xf32, #tpu.memory_space<vmem>>, vector<16x1xf32>
    %264 = vector.broadcast %263 : vector<16x1xf32> to vector<16x512xf32>
    %265 = arith.addf %262, %264 : vector<16x512xf32>
    %266 = arith.negf %265 : vector<16x512xf32>
    %267 = math.exp %266 : vector<16x512xf32>
    %cst_244 = arith.constant 1.000000e+00 : f32
    %268 = vector.broadcast %cst_244 : f32 to vector<16x512xf32>
    %269 = arith.addf %268, %267 : vector<16x512xf32>
    %270 = arith.divf %268, %269 : vector<16x512xf32>
    %c0_245 = arith.constant 0 : index
    %c0_246 = arith.constant 0 : index
    %c0_247 = arith.constant 0 : index
    %271 = vector.load %arg20[%c0_245, %c0_246, %c0_247] : memref<1x16x128xf32, #tpu.memory_space<vmem>>, vector<1x16x128xf32>
    %272 = vector.shape_cast %271 : vector<1x16x128xf32> to vector<16x128xf32>
    %273 = vector.shape_cast %91 : vector<16x128xf32> to vector<1x16x128xf32>
    tpu.vector_store %arg20[%c0_245, %c0_246, %c0_247], %273 {strides = array<i32>} : memref<1x16x128xf32, #tpu.memory_space<vmem>>, vector<1x16x128xf32>,
    %c0_248 = arith.constant 0 : index
    %c0_249 = arith.constant 0 : index
    %c0_250 = arith.constant 0 : index
    %274 = vector.load %arg21[%c0_248, %c0_249, %c0_250] : memref<1x16x128xf32, #tpu.memory_space<vmem>>, vector<1x16x128xf32>
    %275 = vector.shape_cast %274 : vector<1x16x128xf32> to vector<16x128xf32>
    %276 = vector.shape_cast %100 : vector<16x128xf32> to vector<1x16x128xf32>
    tpu.vector_store %arg21[%c0_248, %c0_249, %c0_250], %276 {strides = array<i32>} : memref<1x16x128xf32, #tpu.memory_space<vmem>>, vector<1x16x128xf32>,
    %c0_251 = arith.constant 0 : index
    %c0_252 = arith.constant 0 : index
    %c0_253 = arith.constant 0 : index
    %277 = vector.load %arg22[%c0_251, %c0_252, %c0_253] : memref<1x16x512xf32, #tpu.memory_space<vmem>>, vector<1x16x512xf32>
    %278 = vector.shape_cast %277 : vector<1x16x512xf32> to vector<16x512xf32>
    %279 = vector.shape_cast %270 : vector<16x512xf32> to vector<1x16x512xf32>
    tpu.vector_store %arg22[%c0_251, %c0_252, %c0_253], %279 {strides = array<i32>} : memref<1x16x512xf32, #tpu.memory_space<vmem>>, vector<1x16x512xf32>,
    return
  }
  func.func @transform_0(%arg0: i32) -> (i32, i32, i32) {
    %c0_i32 = arith.constant 0 : i32
    %c0_i32_0 = arith.constant 0 : i32
    %c0_i32_1 = arith.constant 0 : i32
    return %arg0, %c0_i32, %c0_i32_0 : i32, i32, i32
  }
  func.func @transform_1(%arg0: i32) -> (i32, i32) {
    %c0_i32 = arith.constant 0 : i32
    %c0_i32_0 = arith.constant 0 : i32
    %c0_i32_1 = arith.constant 0 : i32
    return %c0_i32, %c0_i32_0 : i32, i32
  }
  func.func @transform_2(%arg0: i32) -> (i32, i32) {
    %c0_i32 = arith.constant 0 : i32
    %c0_i32_0 = arith.constant 0 : i32
    %c0_i32_1 = arith.constant 0 : i32
    return %c0_i32, %c0_i32_0 : i32, i32
  }
  func.func @transform_3(%arg0: i32) -> (i32, i32, i32) {
    %c0_i32 = arith.constant 0 : i32
    %c0_i32_0 = arith.constant 0 : i32
    %c0_i32_1 = arith.constant 0 : i32
    %c0_i32_2 = arith.constant 0 : i32
    return %c0_i32, %c0_i32_0, %c0_i32_1 : i32, i32, i32
  }
  func.func @transform_4(%arg0: i32) -> (i32, i32) {
    %c0_i32 = arith.constant 0 : i32
    %c0_i32_0 = arith.constant 0 : i32
    %c0_i32_1 = arith.constant 0 : i32
    return %c0_i32, %c0_i32_0 : i32, i32
  }
  func.func @transform_5(%arg0: i32) -> (i32, i32, i32) {
    %c0_i32 = arith.constant 0 : i32
    %c0_i32_0 = arith.constant 0 : i32
    %c0_i32_1 = arith.constant 0 : i32
    %c0_i32_2 = arith.constant 0 : i32
    return %c0_i32, %c0_i32_0, %c0_i32_1 : i32, i32, i32
  }
  func.func @transform_6(%arg0: i32) -> (i32, i32) {
    %c0_i32 = arith.constant 0 : i32
    %c0_i32_0 = arith.constant 0 : i32
    %c0_i32_1 = arith.constant 0 : i32
    return %c0_i32, %c0_i32_0 : i32, i32
  }
  func.func @transform_7(%arg0: i32) -> (i32, i32) {
    %c0_i32 = arith.constant 0 : i32
    %c0_i32_0 = arith.constant 0 : i32
    %c0_i32_1 = arith.constant 0 : i32
    return %c0_i32, %c0_i32_0 : i32, i32
  }
  func.func @transform_8(%arg0: i32) -> (i32, i32) {
    %c0_i32 = arith.constant 0 : i32
    %c0_i32_0 = arith.constant 0 : i32
    %c0_i32_1 = arith.constant 0 : i32
    return %c0_i32, %c0_i32_0 : i32, i32
  }
  func.func @transform_9(%arg0: i32) -> (i32, i32) {
    %c0_i32 = arith.constant 0 : i32
    %c0_i32_0 = arith.constant 0 : i32
    %c0_i32_1 = arith.constant 0 : i32
    return %c0_i32, %c0_i32_0 : i32, i32
  }
  func.func @transform_10(%arg0: i32) -> (i32, i32, i32) {
    %c0_i32 = arith.constant 0 : i32
    %c0_i32_0 = arith.constant 0 : i32
    %c0_i32_1 = arith.constant 0 : i32
    return %arg0, %c0_i32, %c0_i32_0 : i32, i32, i32
  }
  func.func @transform_11(%arg0: i32) -> (i32, i32) {
    %c0_i32 = arith.constant 0 : i32
    %c0_i32_0 = arith.constant 0 : i32
    %c0_i32_1 = arith.constant 0 : i32
    return %c0_i32, %c0_i32_0 : i32, i32
  }
  func.func @transform_12(%arg0: i32) -> (i32, i32) {
    %c0_i32 = arith.constant 0 : i32
    %c0_i32_0 = arith.constant 0 : i32
    %c0_i32_1 = arith.constant 0 : i32
    return %c0_i32, %c0_i32_0 : i32, i32
  }
  func.func @transform_13(%arg0: i32) -> (i32, i32, i32) {
    %c0_i32 = arith.constant 0 : i32
    %c0_i32_0 = arith.constant 0 : i32
    %c0_i32_1 = arith.constant 0 : i32
    %c0_i32_2 = arith.constant 0 : i32
    return %c0_i32, %c0_i32_0, %c0_i32_1 : i32, i32, i32
  }
  func.func @transform_14(%arg0: i32) -> (i32, i32) {
    %c0_i32 = arith.constant 0 : i32
    %c0_i32_0 = arith.constant 0 : i32
    %c0_i32_1 = arith.constant 0 : i32
    return %c0_i32, %c0_i32_0 : i32, i32
  }
  func.func @transform_15(%arg0: i32) -> (i32, i32, i32) {
    %c0_i32 = arith.constant 0 : i32
    %c0_i32_0 = arith.constant 0 : i32
    %c0_i32_1 = arith.constant 0 : i32
    %c0_i32_2 = arith.constant 0 : i32
    return %c0_i32, %c0_i32_0, %c0_i32_1 : i32, i32, i32
  }
  func.func @transform_16(%arg0: i32) -> (i32, i32, i32) {
    %c0_i32 = arith.constant 0 : i32
    %c0_i32_0 = arith.constant 0 : i32
    %c0_i32_1 = arith.constant 0 : i32
    %c0_i32_2 = arith.constant 0 : i32
    return %c0_i32, %c0_i32_0, %c0_i32_1 : i32, i32, i32
  }
  func.func @transform_17(%arg0: i32) -> (i32, i32) {
    %c0_i32 = arith.constant 0 : i32
    %c0_i32_0 = arith.constant 0 : i32
    %c0_i32_1 = arith.constant 0 : i32
    return %c0_i32, %c0_i32_0 : i32, i32
  }
  func.func @transform_18(%arg0: i32) -> (i32, i32, i32) {
    %c0_i32 = arith.constant 0 : i32
    %c0_i32_0 = arith.constant 0 : i32
    %c0_i32_1 = arith.constant 0 : i32
    %c0_i32_2 = arith.constant 0 : i32
    return %c0_i32, %c0_i32_0, %c0_i32_1 : i32, i32, i32
  }
  func.func @transform_19(%arg0: i32) -> (i32, i32, i32) {
    %c0_i32 = arith.constant 0 : i32
    %c0_i32_0 = arith.constant 0 : i32
    %c0_i32_1 = arith.constant 0 : i32
    return %arg0, %c0_i32, %c0_i32_0 : i32, i32, i32
  }
  func.func @transform_20(%arg0: i32) -> (i32, i32, i32) {
    %c0_i32 = arith.constant 0 : i32
    %c0_i32_0 = arith.constant 0 : i32
    %c0_i32_1 = arith.constant 0 : i32
    return %arg0, %c0_i32, %c0_i32_0 : i32, i32, i32
  }
  func.func @transform_21(%arg0: i32) -> (i32, i32, i32) {
    %c0_i32 = arith.constant 0 : i32
    %c0_i32_0 = arith.constant 0 : i32
    %c0_i32_1 = arith.constant 0 : i32
    return %arg0, %c0_i32, %c0_i32_0 : i32, i32, i32
  }
}

</mosaic_0001>

<llo_original>
// kernel: conv_vae_forward.1
$region0: #{conv_vae_forward.1}
  #allocation0 [shape = 'u32[]', space=smem, size = 0x4, offset = 0x4, fixed_abs, tag = 'smem constant byte address 0x4 - core index']
  #allocation1 [shape = 'u32[144,128]{1,0:T(1,128)}', space=vmem, size = 0x12000, scoped, tag = 'internal scratch']
  %s0 = inlined_call_operand.vmem [shape: bf16[2,32,128], index: 0, kind: input, shape index: {}]
  %s1 = inlined_call_operand.hbm [shape: bf16[16,32], index: 1, kind: input, shape index: {}]
  %s2 = inlined_call_operand.vmem [shape: f32[16,1], index: 2, kind: input, shape index: {}]
  %s3 = inlined_call_operand.hbm [shape: bf16[9,16,16], index: 3, kind: input, shape index: {}]
  %s4 = inlined_call_operand.vmem [shape: f32[16,1], index: 4, kind: input, shape index: {}]
  %s5 = inlined_call_operand.hbm [shape: bf16[9,128,128], index: 5, kind: input, shape index: {}]
  %s6 = inlined_call_operand.hbm [shape: bf16[128,128], index: 6, kind: input, shape index: {}]
  %s7 = inlined_call_operand.hbm [shape: f32[1,128], index: 7, kind: input, shape index: {}]
  %s8 = inlined_call_operand.hbm [shape: bf16[128,128], index: 8, kind: input, shape index: {}]
  %s9 = inlined_call_operand.hbm [shape: f32[1,128], index: 9, kind: input, shape index: {}]
  %s10 = inlined_call_operand.vmem [shape: f32[2,16,128], index: 10, kind: input, shape index: {}]
  %s11 = inlined_call_operand.hbm [shape: bf16[128,128], index: 11, kind: input, shape index: {}]
  %s12 = inlined_call_operand.hbm [shape: f32[1,128], index: 12, kind: input, shape index: {}]
  %s13 = inlined_call_operand.hbm [shape: bf16[9,16,16], index: 13, kind: input, shape index: {}]
  %s14 = inlined_call_operand.vmem [shape: f32[16,1], index: 14, kind: input, shape index: {}]
  %s15 = inlined_call_operand.hbm [shape: bf16[9,128,128], index: 15, kind: input, shape index: {}]
  %s16 = inlined_call_operand.hbm [shape: bf16[9,16,16], index: 16, kind: input, shape index: {}]
  %s17 = inlined_call_operand.vmem [shape: f32[16,1], index: 17, kind: input, shape index: {}]
  %s18 = inlined_call_operand.hbm [shape: bf16[9,128,512], index: 18, kind: input, shape index: {}]
  %s19 = inlined_call_operand.vmem [shape: f32[2,16,128], index: 19, kind: output, shape index: {0}]
  %s20 = inlined_call_operand.vmem [shape: f32[2,16,128], index: 20, kind: output, shape index: {1}]
  %s21 = inlined_call_operand.vmem [shape: f32[2,16,512], index: 21, kind: output, shape index: {2}]
  %22 = xla_tuple %s19, %s20, %s21
  %s23 = sld [smem:[#allocation0]]
  $region177: #{conv_vae_forward.1} parent=0
    _
  %s25 = ssub.s32 1, %s23
  %s26 = scalar_select 0, %s25, %s23
  $region1: #{conv_vae_forward.1} parent=0
    #allocation2 [shape = 'u8[4096]{0}', space=vmem, size = 0x1000, scoped, tag = 'input window, operand 1, single buffered']
    #allocation3 [shape = 's32[2]{0}', space=sflag, size = 0x8, scoped, tag = 'scoped memory for conv_vae_forward.1']
    #allocation4 [shape = 'u8[36864]{0}', space=vmem, size = 0x9000, scoped, tag = 'input window, operand 3, single buffered']
    #allocation5 [shape = 's32[1]{0}', space=sflag, size = 0x4, scoped, tag = 'scoped memory for conv_vae_forward.1']
    #allocation6 [shape = 'u8[294912]{0}', space=vmem, size = 0x48000, scoped, tag = 'input window, operand 5, single buffered']
    #allocation7 [shape = 'u8[32768]{0}', space=vmem, size = 0x8000, scoped, tag = 'input window, operand 6, single buffered']
    #allocation8 [shape = 's32[1]{0}', space=sflag, size = 0x4, scoped, tag = 'scoped memory for conv_vae_forward.1']
    #allocation9 [shape = 'u8[512]{0}', space=vmem, size = 0x400, scoped, tag = 'input window, operand 7, single buffered']
    #allocation10 [shape = 'u8[32768]{0}', space=vmem, size = 0x8000, scoped, tag = 'input window, operand 8, single buffered']
    #allocation11 [shape = 's32[1]{0}', space=sflag, size = 0x4, scoped, tag = 'scoped memory for conv_vae_forward.1']
    #allocation12 [shape = 'u8[512]{0}', space=vmem, size = 0x400, scoped, tag = 'input window, operand 9, single buffered']
    #allocation13 [shape = 'u8[32768]{0}', space=vmem, size = 0x8000, scoped, tag = 'input window, operand 11, single buffered']
    #allocation14 [shape = 's32[1]{0}', space=sflag, size = 0x4, scoped, tag = 'scoped memory for conv_vae_forward.1']
    #allocation15 [shape = 'u8[512]{0}', space=vmem, size = 0x400, scoped, tag = 'input window, operand 12, single buffered']
    #allocation16 [shape = 'u8[36864]{0}', space=vmem, size = 0x9000, scoped, tag = 'input window, operand 13, single buffered']
    #allocation17 [shape = 's32[1]{0}', space=sflag, size = 0x4, scoped, tag = 'scoped memory for conv_vae_forward.1']
    #allocation18 [shape = 'u8[294912]{0}', space=vmem, size = 0x48000, scoped, tag = 'input window, operand 15, single buffered']
    #allocation19 [shape = 'u8[36864]{0}', space=vmem, size = 0x9000, scoped, tag = 'input window, operand 16, single buffered']
    #allocation20 [shape = 's32[1]{0}', space=sflag, size = 0x4, scoped, tag = 'scoped memory for conv_vae_forward.1']
    #allocation21 [shape = 'u8[1179648]{0}', space=vmem, size = 0x120000, scoped, tag = 'input window, operand 18, single buffered']
    %27 = vsyncpa [#allocation3], 0
    %28 = vsyncpa [#allocation5], 0
    %29 = vsyncpa [#allocation8], 0
    %30 = vsyncpa [#allocation11], 0
    %31 = vsyncpa [#allocation14], 0
    %32 = vsyncpa [#allocation17], 0
    %33 = vsyncpa [#allocation20], 0
    loop: start=0, step=1, limit=4
    $region2: #{conv_vae_forward.1} parent=1 // loop_pre_header
      _
    $region3: #{conv_vae_forward.1} parent=1 // loop_header
      %s35 = sphi 0, %s39
      %p36 = scmp.ge.s32.totalorder %s35, 4
      %s45 = sphi 0, %s47
      %s48 = sphi 0, %s45
      %s49 = sphi 0, %s48
      %s65 = sphi 0, %s49
      %s69 = sphi 0, %s69
      %s71 = sphi 0, %s69
      %s72 = sphi 0, %s71
      %s86 = sphi 0, %s72
      %s90 = sphi 0, %s90
      %s92 = sphi 0, %s90
      %s93 = sphi 0, %s92
      %s107 = sphi 0, %s93
      %s111 = sphi 0, %s111
      %s113 = sphi 0, %s111
      %s114 = sphi 0, %s113
      %s128 = sphi 0, %s114
      %s132 = sphi 0, %s132
      %s134 = sphi 0, %s132
      %s135 = sphi 0, %s134
      %s149 = sphi 0, %s135
      %s153 = sphi 0, %s153
      %s155 = sphi 0, %s153
      %s156 = sphi 0, %s155
      %s170 = sphi 0, %s156
      %s174 = sphi 0, %s174
      %s176 = sphi 0, %s174
      %s177 = sphi 0, %s176
      %s191 = sphi 0, %s177
      %s195 = sphi 0, %s195
      %s197 = sphi 0, %s195
      %s198 = sphi 0, %s197
      %s212 = sphi 0, %s198
      %s216 = sphi 0, %s216
      %s218 = sphi 0, %s216
      %s219 = sphi 0, %s218
      %s233 = sphi 0, %s219
      %s237 = sphi 0, %s237
      %s239 = sphi 0, %s237
      %s240 = sphi 0, %s239
      %s254 = sphi 0, %s240
      %s260 = sphi 0, %s262
      %s263 = sphi 0, %s260
      %s264 = sphi 0, %s263
      %s280 = sphi 0, %s264
      %s284 = sphi 0, %s284
      %s286 = sphi 0, %s284
      %s287 = sphi 0, %s286
      %s301 = sphi 0, %s287
      %s305 = sphi 0, %s305
      %s307 = sphi 0, %s305
      %s308 = sphi 0, %s307
      %s322 = sphi 0, %s308
      %s326 = sphi 0, %s326
      %s328 = sphi 0, %s326
      %s329 = sphi 0, %s328
      %s343 = sphi 0, %s329
      %s347 = sphi 0, %s347
      %s349 = sphi 0, %s347
      %s350 = sphi 0, %s349
      %s364 = sphi 0, %s350
      %s368 = sphi 0, %s368
      %s370 = sphi 0, %s368
      %s371 = sphi 0, %s370
      %s385 = sphi 0, %s371
      %s389 = sphi 0, %s389
      %s391 = sphi 0, %s389
      %s392 = sphi 0, %s391
      %s406 = sphi 0, %s392
      %s410 = sphi 0, %s410
      %s412 = sphi 0, %s410
      %s413 = sphi 0, %s412
      %s427 = sphi 0, %s413
      %s431 = sphi 0, %s431
      %s433 = sphi 0, %s431
      %s434 = sphi 0, %s433
      %s448 = sphi 0, %s434
      %s454 = sphi 0, %s456
      %s457 = sphi 0, %s454
      %s458 = sphi 0, %s457
      %s474 = sphi 0, %s458
      %s480 = sphi 0, %s482
      %s483 = sphi 0, %s480
      %s484 = sphi 0, %s483
      %s500 = sphi 0, %s484
      %s506 = sphi 0, %s508
      %s509 = sphi 0, %s506
      %s510 = sphi 0, %s509
      %s526 = sphi 0, %s510
    $region4: #{conv_vae_forward.1} parent=1 // loop_header_branch
      %38 = sbr.rel (%p36) target = $region8
    $region5: #{conv_vae_forward.1} parent=1 // loop_body
      %s40 = ssub.s32 %s35, 1
      %s41 = ssub.s32 %s35, 2
      %s42 = sadd.s32 %s35, 1
      %s43 = ssub.s32 %s35, %s42
      %p44 = scmp.eq.s32.totalorder %s43, 0
      %s46 = sadd.s32 %s45, 1
      %s47 = scalar_select %p44, %s45, %s46
      %p50 = pneg %p44
      %p51 = scmp.eq.s32.totalorder %s35, 1
      %p52 = por %p50, %p51
      %p53 = scmp.ne.s32.totalorder %s45, %s48
      %p54 = scmp.eq.s32.totalorder %s35, 0
      %p55 = por %p53, %p54
      %p56 = scmp.ne.s32.totalorder %s45, %s48
      %p57 = scmp.eq.s32.totalorder %s40, 1
      %p58 = por %p56, %p57
      %p59 = scmp.ne.s32.totalorder %s48, %s49
      %p60 = scmp.eq.s32.totalorder %s40, 0
      %p61 = por %p59, %p60
      %p62 = scmp.ne.s32.totalorder %s48, %s49
      %p63 = scmp.eq.s32.totalorder %s41, 1
      %p64 = por %p62, %p63
      %p66 = scmp.ne.s32.totalorder %s49, %s65
      %p67 = scmp.eq.s32.totalorder %s41, 0
      %p68 = por %p66, %p67
      %s70 = sadd.s32 %s69, 1
      %p73 = scmp.eq.s32.totalorder %s35, 1
      %p74 = scmp.ne.s32.totalorder %s69, %s71
      %p75 = scmp.eq.s32.totalorder %s35, 0
      %p76 = por %p74, %p75
      %p77 = scmp.ne.s32.totalorder %s69, %s71
      %p78 = scmp.eq.s32.totalorder %s40, 1
      %p79 = por %p77, %p78
      %p80 = scmp.ne.s32.totalorder %s71, %s72
      %p81 = scmp.eq.s32.totalorder %s40, 0
      %p82 = por %p80, %p81
      %p83 = scmp.ne.s32.totalorder %s71, %s72
      %p84 = scmp.eq.s32.totalorder %s41, 1
      %p85 = por %p83, %p84
      %p87 = scmp.ne.s32.totalorder %s72, %s86
      %p88 = scmp.eq.s32.totalorder %s41, 0
      %p89 = por %p87, %p88
      %s91 = sadd.s32 %s90, 1
      %p94 = scmp.eq.s32.totalorder %s35, 1
      %p95 = scmp.ne.s32.totalorder %s90, %s92
      %p96 = scmp.eq.s32.totalorder %s35, 0
      %p97 = por %p95, %p96
      %p98 = scmp.ne.s32.totalorder %s90, %s92
      %p99 = scmp.eq.s32.totalorder %s40, 1
      %p100 = por %p98, %p99
      %p101 = scmp.ne.s32.totalorder %s92, %s93
      %p102 = scmp.eq.s32.totalorder %s40, 0
      %p103 = por %p101, %p102
      %p104 = scmp.ne.s32.totalorder %s92, %s93
      %p105 = scmp.eq.s32.totalorder %s41, 1
      %p106 = por %p104, %p105
      %p108 = scmp.ne.s32.totalorder %s93, %s107
      %p109 = scmp.eq.s32.totalorder %s41, 0
      %p110 = por %p108, %p109
      %s112 = sadd.s32 %s111, 1
      %p115 = scmp.eq.s32.totalorder %s35, 1
      %p116 = scmp.ne.s32.totalorder %s111, %s113
      %p117 = scmp.eq.s32.totalorder %s35, 0
      %p118 = por %p116, %p117
      %p119 = scmp.ne.s32.totalorder %s111, %s113
      %p120 = scmp.eq.s32.totalorder %s40, 1
      %p121 = por %p119, %p120
      %p122 = scmp.ne.s32.totalorder %s113, %s114
      %p123 = scmp.eq.s32.totalorder %s40, 0
      %p124 = por %p122, %p123
      %p125 = scmp.ne.s32.totalorder %s113, %s114
      %p126 = scmp.eq.s32.totalorder %s41, 1
      %p127 = por %p125, %p126
      %p129 = scmp.ne.s32.totalorder %s114, %s128
      %p130 = scmp.eq.s32.totalorder %s41, 0
      %p131 = por %p129, %p130
      %s133 = sadd.s32 %s132, 1
      %p136 = scmp.eq.s32.totalorder %s35, 1
      %p137 = scmp.ne.s32.totalorder %s132, %s134
      %p138 = scmp.eq.s32.totalorder %s35, 0
      %p139 = por %p137, %p138
      %p140 = scmp.ne.s32.totalorder %s132, %s134
      %p141 = scmp.eq.s32.totalorder %s40, 1
      %p142 = por %p140, %p141
      %p143 = scmp.ne.s32.totalorder %s134, %s135
      %p144 = scmp.eq.s32.totalorder %s40, 0
      %p145 = por %p143, %p144
      %p146 = scmp.ne.s32.totalorder %s134, %s135
      %p147 = scmp.eq.s32.totalorder %s41, 1
      %p148 = por %p146, %p147
      %p150 = scmp.ne.s32.totalorder %s135, %s149
      %p151 = scmp.eq.s32.totalorder %s41, 0
      %p152 = por %p150, %p151
      %s154 = sadd.s32 %s153, 1
      %p157 = scmp.eq.s32.totalorder %s35, 1
      %p158 = scmp.ne.s32.totalorder %s153, %s155
      %p159 = scmp.eq.s32.totalorder %s35, 0
      %p160 = por %p158, %p159
      %p161 = scmp.ne.s32.totalorder %s153, %s155
      %p162 = scmp.eq.s32.totalorder %s40, 1
      %p163 = por %p161, %p162
      %p164 = scmp.ne.s32.totalorder %s155, %s156
      %p165 = scmp.eq.s32.totalorder %s40, 0
      %p166 = por %p164, %p165
      %p167 = scmp.ne.s32.totalorder %s155, %s156
      %p168 = scmp.eq.s32.totalorder %s41, 1
      %p169 = por %p167, %p168
      %p171 = scmp.ne.s32.totalorder %s156, %s170
      %p172 = scmp.eq.s32.totalorder %s41, 0
      %p173 = por %p171, %p172
      %s175 = sadd.s32 %s174, 1
      %p178 = scmp.eq.s32.totalorder %s35, 1
      %p179 = scmp.ne.s32.totalorder %s174, %s176
      %p180 = scmp.eq.s32.totalorder %s35, 0
      %p181 = por %p179, %p180
      %p182 = scmp.ne.s32.totalorder %s174, %s176
      %p183 = scmp.eq.s32.totalorder %s40, 1
      %p184 = por %p182, %p183
      %p185 = scmp.ne.s32.totalorder %s176, %s177
      %p186 = scmp.eq.s32.totalorder %s40, 0
      %p187 = por %p185, %p186
      %p188 = scmp.ne.s32.totalorder %s176, %s177
      %p189 = scmp.eq.s32.totalorder %s41, 1
      %p190 = por %p188, %p189
      %p192 = scmp.ne.s32.totalorder %s177, %s191
      %p193 = scmp.eq.s32.totalorder %s41, 0
      %p194 = por %p192, %p193
      %s196 = sadd.s32 %s195, 1
      %p199 = scmp.eq.s32.totalorder %s35, 1
      %p200 = scmp.ne.s32.totalorder %s195, %s197
      %p201 = scmp.eq.s32.totalorder %s35, 0
      %p202 = por %p200, %p201
      %p203 = scmp.ne.s32.totalorder %s195, %s197
      %p204 = scmp.eq.s32.totalorder %s40, 1
      %p205 = por %p203, %p204
      %p206 = scmp.ne.s32.totalorder %s197, %s198
      %p207 = scmp.eq.s32.totalorder %s40, 0
      %p208 = por %p206, %p207
      %p209 = scmp.ne.s32.totalorder %s197, %s198
      %p210 = scmp.eq.s32.totalorder %s41, 1
      %p211 = por %p209, %p210
      %p213 = scmp.ne.s32.totalorder %s198, %s212
      %p214 = scmp.eq.s32.totalorder %s41, 0
      %p215 = por %p213, %p214
      %s217 = sadd.s32 %s216, 1
      %p220 = scmp.eq.s32.totalorder %s35, 1
      %p221 = scmp.ne.s32.totalorder %s216, %s218
      %p222 = scmp.eq.s32.totalorder %s35, 0
      %p223 = por %p221, %p222
      %p224 = scmp.ne.s32.totalorder %s216, %s218
      %p225 = scmp.eq.s32.totalorder %s40, 1
      %p226 = por %p224, %p225
      %p227 = scmp.ne.s32.totalorder %s218, %s219
      %p228 = scmp.eq.s32.totalorder %s40, 0
      %p229 = por %p227, %p228
      %p230 = scmp.ne.s32.totalorder %s218, %s219
      %p231 = scmp.eq.s32.totalorder %s41, 1
      %p232 = por %p230, %p231
      %p234 = scmp.ne.s32.totalorder %s219, %s233
      %p235 = scmp.eq.s32.totalorder %s41, 0
      %p236 = por %p234, %p235
      %s238 = sadd.s32 %s237, 1
      %p241 = scmp.eq.s32.totalorder %s35, 1
      %p242 = scmp.ne.s32.totalorder %s237, %s239
      %p243 = scmp.eq.s32.totalorder %s35, 0
      %p244 = por %p242, %p243
      %p245 = scmp.ne.s32.totalorder %s237, %s239
      %p246 = scmp.eq.s32.totalorder %s40, 1
      %p247 = por %p245, %p246
      %p248 = scmp.ne.s32.totalorder %s239, %s240
      %p249 = scmp.eq.s32.totalorder %s40, 0
      %p250 = por %p248, %p249
      %p251 = scmp.ne.s32.totalorder %s239, %s240
      %p252 = scmp.eq.s32.totalorder %s41, 1
      %p253 = por %p251, %p252
      %p255 = scmp.ne.s32.totalorder %s240, %s254
      %p256 = scmp.eq.s32.totalorder %s41, 0
      %p257 = por %p255, %p256
      %s258 = ssub.s32 %s35, %s42
      %p259 = scmp.eq.s32.totalorder %s258, 0
      %s261 = sadd.s32 %s260, 1
      %s262 = scalar_select %p259, %s260, %s261
      %p265 = pneg %p259
      %p266 = scmp.eq.s32.totalorder %s35, 1
      %p267 = por %p265, %p266
      %p268 = scmp.ne.s32.totalorder %s260, %s263
      %p269 = scmp.eq.s32.totalorder %s35, 0
      %p270 = por %p268, %p269
      %p271 = scmp.ne.s32.totalorder %s260, %s263
      %p272 = scmp.eq.s32.totalorder %s40, 1
      %p273 = por %p271, %p272
      %p274 = scmp.ne.s32.totalorder %s263, %s264
      %p275 = scmp.eq.s32.totalorder %s40, 0
      %p276 = por %p274, %p275
      %p277 = scmp.ne.s32.totalorder %s263, %s264
      %p278 = scmp.eq.s32.totalorder %s41, 1
      %p279 = por %p277, %p278
      %p281 = scmp.ne.s32.totalorder %s264, %s280
      %p282 = scmp.eq.s32.totalorder %s41, 0
      %p283 = por %p281, %p282
      %s285 = sadd.s32 %s284, 1
      %p288 = scmp.eq.s32.totalorder %s35, 1
      %p289 = scmp.ne.s32.totalorder %s284, %s286
      %p290 = scmp.eq.s32.totalorder %s35, 0
      %p291 = por %p289, %p290
      %p292 = scmp.ne.s32.totalorder %s284, %s286
      %p293 = scmp.eq.s32.totalorder %s40, 1
      %p294 = por %p292, %p293
      %p295 = scmp.ne.s32.totalorder %s286, %s287
      %p296 = scmp.eq.s32.totalorder %s40, 0
      %p297 = por %p295, %p296
      %p298 = scmp.ne.s32.totalorder %s286, %s287
      %p299 = scmp.eq.s32.totalorder %s41, 1
      %p300 = por %p298, %p299
      %p302 = scmp.ne.s32.totalorder %s287, %s301
      %p303 = scmp.eq.s32.totalorder %s41, 0
      %p304 = por %p302, %p303
      %s306 = sadd.s32 %s305, 1
      %p309 = scmp.eq.s32.totalorder %s35, 1
      %p310 = scmp.ne.s32.totalorder %s305, %s307
      %p311 = scmp.eq.s32.totalorder %s35, 0
      %p312 = por %p310, %p311
      %p313 = scmp.ne.s32.totalorder %s305, %s307
      %p314 = scmp.eq.s32.totalorder %s40, 1
      %p315 = por %p313, %p314
      %p316 = scmp.ne.s32.totalorder %s307, %s308
      %p317 = scmp.eq.s32.totalorder %s40, 0
      %p318 = por %p316, %p317
      %p319 = scmp.ne.s32.totalorder %s307, %s308
      %p320 = scmp.eq.s32.totalorder %s41, 1
      %p321 = por %p319, %p320
      %p323 = scmp.ne.s32.totalorder %s308, %s322
      %p324 = scmp.eq.s32.totalorder %s41, 0
      %p325 = por %p323, %p324
      %s327 = sadd.s32 %s326, 1
      %p330 = scmp.eq.s32.totalorder %s35, 1
      %p331 = scmp.ne.s32.totalorder %s326, %s328
      %p332 = scmp.eq.s32.totalorder %s35, 0
      %p333 = por %p331, %p332
      %p334 = scmp.ne.s32.totalorder %s326, %s328
      %p335 = scmp.eq.s32.totalorder %s40, 1
      %p336 = por %p334, %p335
      %p337 = scmp.ne.s32.totalorder %s328, %s329
      %p338 = scmp.eq.s32.totalorder %s40, 0
      %p339 = por %p337, %p338
      %p340 = scmp.ne.s32.totalorder %s328, %s329
      %p341 = scmp.eq.s32.totalorder %s41, 1
      %p342 = por %p340, %p341
      %p344 = scmp.ne.s32.totalorder %s329, %s343
      %p345 = scmp.eq.s32.totalorder %s41, 0
      %p346 = por %p344, %p345
      %s348 = sadd.s32 %s347, 1
      %p351 = scmp.eq.s32.totalorder %s35, 1
      %p352 = scmp.ne.s32.totalorder %s347, %s349
      %p353 = scmp.eq.s32.totalorder %s35, 0
      %p354 = por %p352, %p353
      %p355 = scmp.ne.s32.totalorder %s347, %s349
      %p356 = scmp.eq.s32.totalorder %s40, 1
      %p357 = por %p355, %p356
      %p358 = scmp.ne.s32.totalorder %s349, %s350
      %p359 = scmp.eq.s32.totalorder %s40, 0
      %p360 = por %p358, %p359
      %p361 = scmp.ne.s32.totalorder %s349, %s350
      %p362 = scmp.eq.s32.totalorder %s41, 1
      %p363 = por %p361, %p362
      %p365 = scmp.ne.s32.totalorder %s350, %s364
      %p366 = scmp.eq.s32.totalorder %s41, 0
      %p367 = por %p365, %p366
      %s369 = sadd.s32 %s368, 1
      %p372 = scmp.eq.s32.totalorder %s35, 1
      %p373 = scmp.ne.s32.totalorder %s368, %s370
      %p374 = scmp.eq.s32.totalorder %s35, 0
      %p375 = por %p373, %p374
      %p376 = scmp.ne.s32.totalorder %s368, %s370
      %p377 = scmp.eq.s32.totalorder %s40, 1
      %p378 = por %p376, %p377
      %p379 = scmp.ne.s32.totalorder %s370, %s371
      %p380 = scmp.eq.s32.totalorder %s40, 0
      %p381 = por %p379, %p380
      %p382 = scmp.ne.s32.totalorder %s370, %s371
      %p383 = scmp.eq.s32.totalorder %s41, 1
      %p384 = por %p382, %p383
      %p386 = scmp.ne.s32.totalorder %s371, %s385
      %p387 = scmp.eq.s32.totalorder %s41, 0
      %p388 = por %p386, %p387
      %s390 = sadd.s32 %s389, 1
      %p393 = scmp.eq.s32.totalorder %s35, 1
      %p394 = scmp.ne.s32.totalorder %s389, %s391
      %p395 = scmp.eq.s32.totalorder %s35, 0
      %p396 = por %p394, %p395
      %p397 = scmp.ne.s32.totalorder %s389, %s391
      %p398 = scmp.eq.s32.totalorder %s40, 1
      %p399 = por %p397, %p398
      %p400 = scmp.ne.s32.totalorder %s391, %s392
      %p401 = scmp.eq.s32.totalorder %s40, 0
      %p402 = por %p400, %p401
      %p403 = scmp.ne.s32.totalorder %s391, %s392
      %p404 = scmp.eq.s32.totalorder %s41, 1
      %p405 = por %p403, %p404
      %p407 = scmp.ne.s32.totalorder %s392, %s406
      %p408 = scmp.eq.s32.totalorder %s41, 0
      %p409 = por %p407, %p408
      %s411 = sadd.s32 %s410, 1
      %p414 = scmp.eq.s32.totalorder %s35, 1
      %p415 = scmp.ne.s32.totalorder %s410, %s412
      %p416 = scmp.eq.s32.totalorder %s35, 0
      %p417 = por %p415, %p416
      %p418 = scmp.ne.s32.totalorder %s410, %s412
      %p419 = scmp.eq.s32.totalorder %s40, 1
      %p420 = por %p418, %p419
      %p421 = scmp.ne.s32.totalorder %s412, %s413
      %p422 = scmp.eq.s32.totalorder %s40, 0
      %p423 = por %p421, %p422
      %p424 = scmp.ne.s32.totalorder %s412, %s413
      %p425 = scmp.eq.s32.totalorder %s41, 1
      %p426 = por %p424, %p425
      %p428 = scmp.ne.s32.totalorder %s413, %s427
      %p429 = scmp.eq.s32.totalorder %s41, 0
      %p430 = por %p428, %p429
      %s432 = sadd.s32 %s431, 1
      %p435 = scmp.eq.s32.totalorder %s35, 1
      %p436 = scmp.ne.s32.totalorder %s431, %s433
      %p437 = scmp.eq.s32.totalorder %s35, 0
      %p438 = por %p436, %p437
      %p439 = scmp.ne.s32.totalorder %s431, %s433
      %p440 = scmp.eq.s32.totalorder %s40, 1
      %p441 = por %p439, %p440
      %p442 = scmp.ne.s32.totalorder %s433, %s434
      %p443 = scmp.eq.s32.totalorder %s40, 0
      %p444 = por %p442, %p443
      %p445 = scmp.ne.s32.totalorder %s433, %s434
      %p446 = scmp.eq.s32.totalorder %s41, 1
      %p447 = por %p445, %p446
      %p449 = scmp.ne.s32.totalorder %s434, %s448
      %p450 = scmp.eq.s32.totalorder %s41, 0
      %p451 = por %p449, %p450
      %s452 = ssub.s32 %s35, %s42
      %p453 = scmp.eq.s32.totalorder %s452, 0
      %s455 = sadd.s32 %s454, 1
      %s456 = scalar_select %p453, %s454, %s455
      %p459 = pneg %p453
      %p460 = scmp.eq.s32.totalorder %s35, 1
      %p461 = por %p459, %p460
      %p462 = scmp.ne.s32.totalorder %s454, %s457
      %p463 = scmp.eq.s32.totalorder %s35, 0
      %p464 = por %p462, %p463
      %p465 = scmp.ne.s32.totalorder %s454, %s457
      %p466 = scmp.eq.s32.totalorder %s40, 1
      %p467 = por %p465, %p466
      %p468 = scmp.ne.s32.totalorder %s457, %s458
      %p469 = scmp.eq.s32.totalorder %s40, 0
      %p470 = por %p468, %p469
      %p471 = scmp.ne.s32.totalorder %s457, %s458
      %p472 = scmp.eq.s32.totalorder %s41, 1
      %p473 = por %p471, %p472
      %p475 = scmp.ne.s32.totalorder %s458, %s474
      %p476 = scmp.eq.s32.totalorder %s41, 0
      %p477 = por %p475, %p476
      %s478 = ssub.s32 %s35, %s42
      %p479 = scmp.eq.s32.totalorder %s478, 0
      %s481 = sadd.s32 %s480, 1
      %s482 = scalar_select %p479, %s480, %s481
      %p485 = pneg %p479
      %p486 = scmp.eq.s32.totalorder %s35, 1
      %p487 = por %p485, %p486
      %p488 = scmp.ne.s32.totalorder %s480, %s483
      %p489 = scmp.eq.s32.totalorder %s35, 0
      %p490 = por %p488, %p489
      %p491 = scmp.ne.s32.totalorder %s480, %s483
      %p492 = scmp.eq.s32.totalorder %s40, 1
      %p493 = por %p491, %p492
      %p494 = scmp.ne.s32.totalorder %s483, %s484
      %p495 = scmp.eq.s32.totalorder %s40, 0
      %p496 = por %p494, %p495
      %p497 = scmp.ne.s32.totalorder %s483, %s484
      %p498 = scmp.eq.s32.totalorder %s41, 1
      %p499 = por %p497, %p498
      %p501 = scmp.ne.s32.totalorder %s484, %s500
      %p502 = scmp.eq.s32.totalorder %s41, 0
      %p503 = por %p501, %p502
      %s504 = ssub.s32 %s35, %s42
      %p505 = scmp.eq.s32.totalorder %s504, 0
      %s507 = sadd.s32 %s506, 1
      %s508 = scalar_select %p505, %s506, %s507
      %p511 = pneg %p505
      %p512 = scmp.eq.s32.totalorder %s35, 1
      %p513 = por %p511, %p512
      %p514 = scmp.ne.s32.totalorder %s506, %s509
      %p515 = scmp.eq.s32.totalorder %s35, 0
      %p516 = por %p514, %p515
      %p517 = scmp.ne.s32.totalorder %s506, %s509
      %p518 = scmp.eq.s32.totalorder %s40, 1
      %p519 = por %p517, %p518
      %p520 = scmp.ne.s32.totalorder %s509, %s510
      %p521 = scmp.eq.s32.totalorder %s40, 0
      %p522 = por %p520, %p521
      %p523 = scmp.ne.s32.totalorder %s509, %s510
      %p524 = scmp.eq.s32.totalorder %s41, 1
      %p525 = por %p523, %p524
      %p527 = scmp.ne.s32.totalorder %s510, %s526
      %p528 = scmp.eq.s32.totalorder %s41, 0
      %p529 = por %p527, %p528
      %p530 = scmp.le.s32.totalorder 1, %s35
      %p531 = scmp.lt.s32.totalorder %s35, 3
      %p532 = pnand %p530, %p531
      %p533 = pneg %p532
      // Predicated region
      $region9: #{conv_vae_forward.1} parent=5 // pred_check
        _
      $region10: #{conv_vae_forward.1} parent=5 // pred_check_branch
        %535 = sbr.rel (%p532) target = $region12
      $region11: #{conv_vae_forward.1} parent=5 // pred_region
        %s536 = ssub.s32 %s35, 1
        // Predicated region
        $region13: #{conv_vae_forward.1} parent=11 // pred_check
          %p537 = pneg %p82
        $region14: #{conv_vae_forward.1} parent=11 // pred_check_branch
          %539 = sbr.rel (%p537) target = $region16
        $region15: #{conv_vae_forward.1} parent=11 // pred_region
          %s541 = ssub.s32 128, 128
          %542 = vsyncadd [#allocation3], %s541
          %s543 = sshll.u32 [#allocation2], 4
          %s544 = int_to_ptr.vmem [resolvable:$true] %s543
          %549 = dma.hbm_to_vmem [thread:$0]  %s1, 128, %s544, [#allocation3], 64, 64, 4
        $region16: #{conv_vae_forward.1} parent=11 // pred_fallthru
          _
        // Predicated region
        $region17: #{conv_vae_forward.1} parent=11 // pred_check
          %p550 = pneg %p103
        $region18: #{conv_vae_forward.1} parent=11 // pred_check_branch
          %552 = sbr.rel (%p550) target = $region20
        $region19: #{conv_vae_forward.1} parent=11 // pred_region
          _
        $region20: #{conv_vae_forward.1} parent=11 // pred_fallthru
          _
        // Predicated region
        $region21: #{conv_vae_forward.1} parent=11 // pred_check
          %p553 = pneg %p124
        $region22: #{conv_vae_forward.1} parent=11 // pred_check_branch
          %555 = sbr.rel (%p553) target = $region24
        $region23: #{conv_vae_forward.1} parent=11 // pred_region
          %s557 = ssub.s32 1152, 1152
          %558 = vsyncadd [#allocation5], %s557
          %s559 = sshll.u32 [#allocation4], 4
          %s560 = int_to_ptr.vmem [resolvable:$true] %s559
          %565 = dma.hbm_to_vmem [thread:$0]  %s3, 1152, %s560, [#allocation5], 64, 64, 4
        $region24: #{conv_vae_forward.1} parent=11 // pred_fallthru
          _
        // Predicated region
        $region25: #{conv_vae_forward.1} parent=11 // pred_check
          %p566 = pneg %p145
        $region26: #{conv_vae_forward.1} parent=11 // pred_check_branch
          %568 = sbr.rel (%p566) target = $region28
        $region27: #{conv_vae_forward.1} parent=11 // pred_region
          _
        $region28: #{conv_vae_forward.1} parent=11 // pred_fallthru
          _
        // Predicated region
        $region29: #{conv_vae_forward.1} parent=11 // pred_check
          %p569 = pneg %p166
        $region30: #{conv_vae_forward.1} parent=11 // pred_check_branch
          %571 = sbr.rel (%p569) target = $region32
        $region31: #{conv_vae_forward.1} parent=11 // pred_region
          %s573 = ssub.s32 9216, 9216
          %574 = vsyncadd [#allocation5], %s573
          %s575 = sshll.u32 [#allocation6], 4
          %s576 = int_to_ptr.vmem [resolvable:$true] %s575
          %581 = dma.hbm_to_vmem [thread:$0]  %s5, 9216, %s576, [#allocation5], 64, 64, 4
        $region32: #{conv_vae_forward.1} parent=11 // pred_fallthru
          _
        // Predicated region
        $region33: #{conv_vae_forward.1} parent=11 // pred_check
          %p582 = pneg %p187
        $region34: #{conv_vae_forward.1} parent=11 // pred_check_branch
          %584 = sbr.rel (%p582) target = $region36
        $region35: #{conv_vae_forward.1} parent=11 // pred_region
          %s586 = ssub.s32 1024, 1024
          %587 = vsyncadd [#allocation8], %s586
          %s588 = sshll.u32 [#allocation7], 4
          %s589 = int_to_ptr.vmem [resolvable:$true] %s588
          %594 = dma.hbm_to_vmem [thread:$0]  %s6, 1024, %s589, [#allocation8], 64, 64, 4
        $region36: #{conv_vae_forward.1} parent=11 // pred_fallthru
          _
        // Predicated region
        $region37: #{conv_vae_forward.1} parent=11 // pred_check
          %p595 = pneg %p208
        $region38: #{conv_vae_forward.1} parent=11 // pred_check_branch
          %597 = sbr.rel (%p595) target = $region40
        $region39: #{conv_vae_forward.1} parent=11 // pred_region
          %s599 = ssub.s32 16, 16
          %600 = vsyncadd [#allocation8], %s599
          %s602 = sshll.u32 [#allocation9], 4
          %s603 = int_to_ptr.vmem [resolvable:$true] %s602
          %605 = dma.hbm_to_vmem [thread:$0]  %s7, 16, %s603, [#allocation8]
        $region40: #{conv_vae_forward.1} parent=11 // pred_fallthru
          _
        // Predicated region
        $region41: #{conv_vae_forward.1} parent=11 // pred_check
          %p606 = pneg %p229
        $region42: #{conv_vae_forward.1} parent=11 // pred_check_branch
          %608 = sbr.rel (%p606) target = $region44
        $region43: #{conv_vae_forward.1} parent=11 // pred_region
          %s610 = ssub.s32 1024, 1024
          %611 = vsyncadd [#allocation11], %s610
          %s612 = sshll.u32 [#allocation10], 4
          %s613 = int_to_ptr.vmem [resolvable:$true] %s612
          %618 = dma.hbm_to_vmem [thread:$0]  %s8, 1024, %s613, [#allocation11], 64, 64, 4
        $region44: #{conv_vae_forward.1} parent=11 // pred_fallthru
          _
        // Predicated region
        $region45: #{conv_vae_forward.1} parent=11 // pred_check
          %p619 = pneg %p250
        $region46: #{conv_vae_forward.1} parent=11 // pred_check_branch
          %621 = sbr.rel (%p619) target = $region48
        $region47: #{conv_vae_forward.1} parent=11 // pred_region
          %s623 = ssub.s32 16, 16
          %624 = vsyncadd [#allocation11], %s623
          %s626 = sshll.u32 [#allocation12], 4
          %s627 = int_to_ptr.vmem [resolvable:$true] %s626
          %629 = dma.hbm_to_vmem [thread:$0]  %s9, 16, %s627, [#allocation11]
        $region48: #{conv_vae_forward.1} parent=11 // pred_fallthru
          _
        // Predicated region
        $region49: #{conv_vae_forward.1} parent=11 // pred_check
          %p630 = pneg %p297
        $region50: #{conv_vae_forward.1} parent=11 // pred_check_branch
          %632 = sbr.rel (%p630) target = $region52
        $region51: #{conv_vae_forward.1} parent=11 // pred_region
          %s634 = ssub.s32 1024, 1024
          %635 = vsyncadd [#allocation14], %s634
          %s636 = sshll.u32 [#allocation13], 4
          %s637 = int_to_ptr.vmem [resolvable:$true] %s636
          %642 = dma.hbm_to_vmem [thread:$0]  %s11, 1024, %s637, [#allocation14], 64, 64, 4
        $region52: #{conv_vae_forward.1} parent=11 // pred_fallthru
          _
        // Predicated region
        $region53: #{conv_vae_forward.1} parent=11 // pred_check
          %p643 = pneg %p318
        $region54: #{conv_vae_forward.1} parent=11 // pred_check_branch
          %645 = sbr.rel (%p643) target = $region56
        $region55: #{conv_vae_forward.1} parent=11 // pred_region
          %s647 = ssub.s32 16, 16
          %648 = vsyncadd [#allocation14], %s647
          %s650 = sshll.u32 [#allocation15], 4
          %s651 = int_to_ptr.vmem [resolvable:$true] %s650
          %653 = dma.hbm_to_vmem [thread:$0]  %s12, 16, %s651, [#allocation14]
        $region56: #{conv_vae_forward.1} parent=11 // pred_fallthru
          _
        // Predicated region
        $region57: #{conv_vae_forward.1} parent=11 // pred_check
          %p654 = pneg %p339
        $region58: #{conv_vae_forward.1} parent=11 // pred_check_branch
          %656 = sbr.rel (%p654) target = $region60
        $region59: #{conv_vae_forward.1} parent=11 // pred_region
          %s658 = ssub.s32 1152, 1152
          %659 = vsyncadd [#allocation17], %s658
          %s660 = sshll.u32 [#allocation16], 4
          %s661 = int_to_ptr.vmem [resolvable:$true] %s660
          %666 = dma.hbm_to_vmem [thread:$0]  %s13, 1152, %s661, [#allocation17], 64, 64, 4
        $region60: #{conv_vae_forward.1} parent=11 // pred_fallthru
          _
        // Predicated region
        $region61: #{conv_vae_forward.1} parent=11 // pred_check
          %p667 = pneg %p360
        $region62: #{conv_vae_forward.1} parent=11 // pred_check_branch
          %669 = sbr.rel (%p667) target = $region64
        $region63: #{conv_vae_forward.1} parent=11 // pred_region
          _
        $region64: #{conv_vae_forward.1} parent=11 // pred_fallthru
          _
        // Predicated region
        $region65: #{conv_vae_forward.1} parent=11 // pred_check
          %p670 = pneg %p381
        $region66: #{conv_vae_forward.1} parent=11 // pred_check_branch
          %672 = sbr.rel (%p670) target = $region68
        $region67: #{conv_vae_forward.1} parent=11 // pred_region
          %s674 = ssub.s32 9216, 9216
          %675 = vsyncadd [#allocation17], %s674
          %s676 = sshll.u32 [#allocation18], 4
          %s677 = int_to_ptr.vmem [resolvable:$true] %s676
          %682 = dma.hbm_to_vmem [thread:$0]  %s15, 9216, %s677, [#allocation17], 64, 64, 4
        $region68: #{conv_vae_forward.1} parent=11 // pred_fallthru
          _
        // Predicated region
        $region69: #{conv_vae_forward.1} parent=11 // pred_check
          %p683 = pneg %p402
        $region70: #{conv_vae_forward.1} parent=11 // pred_check_branch
          %685 = sbr.rel (%p683) target = $region72
        $region71: #{conv_vae_forward.1} parent=11 // pred_region
          %s687 = ssub.s32 1152, 1152
          %688 = vsyncadd [#allocation20], %s687
          %s689 = sshll.u32 [#allocation19], 4
          %s690 = int_to_ptr.vmem [resolvable:$true] %s689
          %695 = dma.hbm_to_vmem [thread:$0]  %s16, 1152, %s690, [#allocation20], 64, 64, 4
        $region72: #{conv_vae_forward.1} parent=11 // pred_fallthru
          _
        // Predicated region
        $region73: #{conv_vae_forward.1} parent=11 // pred_check
          %p696 = pneg %p423
        $region74: #{conv_vae_forward.1} parent=11 // pred_check_branch
          %698 = sbr.rel (%p696) target = $region76
        $region75: #{conv_vae_forward.1} parent=11 // pred_region
          _
        $region76: #{conv_vae_forward.1} parent=11 // pred_fallthru
          _
        // Predicated region
        $region77: #{conv_vae_forward.1} parent=11 // pred_check
          %p699 = pneg %p444
        $region78: #{conv_vae_forward.1} parent=11 // pred_check_branch
          %701 = sbr.rel (%p699) target = $region80
        $region79: #{conv_vae_forward.1} parent=11 // pred_region
          %s703 = ssub.s32 36864, 36864
          %704 = vsyncadd [#allocation20], %s703
          %s705 = sshll.u32 [#allocation21], 4
          %s706 = int_to_ptr.vmem [resolvable:$true] %s705
          %711 = dma.hbm_to_vmem [thread:$0]  %s18, 36864, %s706, [#allocation20], 256, 256, 16
        $region80: #{conv_vae_forward.1} parent=11 // pred_fallthru
          _
      $region12: #{conv_vae_forward.1} parent=5 // pred_fallthru
        _
      %p712 = scmp.lt.s32.totalorder %s35, 2
      // Predicated region
      $region81: #{conv_vae_forward.1} parent=5 // pred_check
        %p713 = pneg %p712
      $region82: #{conv_vae_forward.1} parent=5 // pred_check_branch
        %715 = sbr.rel (%p713) target = $region84
      $region83: #{conv_vae_forward.1} parent=5 // pred_region
        // Predicated region
        $region85: #{conv_vae_forward.1} parent=83 // pred_check
          %p716 = pneg %p55
        $region86: #{conv_vae_forward.1} parent=83 // pred_check_branch
          %718 = sbr.rel (%p716) target = $region88
        $region87: #{conv_vae_forward.1} parent=83 // pred_region
          %p719 = scmp.lt.s32.totalorder %s35, 1
          %s720 = scalar_select %p719, %s35, 1
          %s721 = smul.addr %s720, 4
          %s722 = smul.addr %s721, 4
          %s723 = scalar_lea.vmem %s0, %s722
        $region88: #{conv_vae_forward.1} parent=83 // pred_fallthru
          _
        // Predicated region
        $region89: #{conv_vae_forward.1} parent=83 // pred_check
          %p724 = pneg %p270
        $region90: #{conv_vae_forward.1} parent=83 // pred_check_branch
          %726 = sbr.rel (%p724) target = $region92
        $region91: #{conv_vae_forward.1} parent=83 // pred_region
          %p727 = scmp.lt.s32.totalorder %s35, 1
          %s728 = scalar_select %p727, %s35, 1
          %s729 = smul.addr %s728, 2
          %s730 = smul.addr %s729, 8
          %s731 = scalar_lea.vmem %s10, %s730
        $region92: #{conv_vae_forward.1} parent=83 // pred_fallthru
          _
      $region84: #{conv_vae_forward.1} parent=5 // pred_fallthru
        _
      %p732 = scmp.le.s32.totalorder 1, %s35
      %p733 = scmp.lt.s32.totalorder %s35, 3
      %p734 = pnand %p732, %p733
      %p735 = pneg %p734
      // Predicated region
      $region93: #{conv_vae_forward.1} parent=5 // pred_check
        _
      $region94: #{conv_vae_forward.1} parent=5 // pred_check_branch
        %737 = sbr.rel (%p734) target = $region96
      $region95: #{conv_vae_forward.1} parent=5 // pred_region
        %s738 = ssub.s32 %s35, 1
        // Predicated region
        $region97: #{conv_vae_forward.1} parent=95 // pred_check
          %p739 = pneg %p82
        $region98: #{conv_vae_forward.1} parent=95 // pred_check_branch
          %741 = sbr.rel (%p739) target = $region100
        $region99: #{conv_vae_forward.1} parent=95 // pred_region
          %742 = dma.done [#allocation3], 128
        $region100: #{conv_vae_forward.1} parent=95 // pred_fallthru
          _
        // Predicated region
        $region101: #{conv_vae_forward.1} parent=95 // pred_check
          %p743 = pneg %p124
        $region102: #{conv_vae_forward.1} parent=95 // pred_check_branch
          %745 = sbr.rel (%p743) target = $region104
        $region103: #{conv_vae_forward.1} parent=95 // pred_region
          %746 = dma.done [#allocation5], 1152
        $region104: #{conv_vae_forward.1} parent=95 // pred_fallthru
          _
        // Predicated region
        $region105: #{conv_vae_forward.1} parent=95 // pred_check
          %p747 = pneg %p166
        $region106: #{conv_vae_forward.1} parent=95 // pred_check_branch
          %749 = sbr.rel (%p747) target = $region108
        $region107: #{conv_vae_forward.1} parent=95 // pred_region
          %750 = dma.done [#allocation5], 9216
        $region108: #{conv_vae_forward.1} parent=95 // pred_fallthru
          _
        // Predicated region
        $region109: #{conv_vae_forward.1} parent=95 // pred_check
          %p751 = pneg %p187
        $region110: #{conv_vae_forward.1} parent=95 // pred_check_branch
          %753 = sbr.rel (%p751) target = $region112
        $region111: #{conv_vae_forward.1} parent=95 // pred_region
          %754 = dma.done [#allocation8], 1024
        $region112: #{conv_vae_forward.1} parent=95 // pred_fallthru
          _
        // Predicated region
        $region113: #{conv_vae_forward.1} parent=95 // pred_check
          %p755 = pneg %p208
        $region114: #{conv_vae_forward.1} parent=95 // pred_check_branch
          %757 = sbr.rel (%p755) target = $region116
        $region115: #{conv_vae_forward.1} parent=95 // pred_region
          %758 = dma.done [#allocation8], 16
        $region116: #{conv_vae_forward.1} parent=95 // pred_fallthru
          _
        // Predicated region
        $region117: #{conv_vae_forward.1} parent=95 // pred_check
          %p759 = pneg %p229
        $region118: #{conv_vae_forward.1} parent=95 // pred_check_branch
          %761 = sbr.rel (%p759) target = $region120
        $region119: #{conv_vae_forward.1} parent=95 // pred_region
          %762 = dma.done [#allocation11], 1024
        $region120: #{conv_vae_forward.1} parent=95 // pred_fallthru
          _
        // Predicated region
        $region121: #{conv_vae_forward.1} parent=95 // pred_check
          %p763 = pneg %p250
        $region122: #{conv_vae_forward.1} parent=95 // pred_check_branch
          %765 = sbr.rel (%p763) target = $region124
        $region123: #{conv_vae_forward.1} parent=95 // pred_region
          %766 = dma.done [#allocation11], 16
        $region124: #{conv_vae_forward.1} parent=95 // pred_fallthru
          _
        // Predicated region
        $region125: #{conv_vae_forward.1} parent=95 // pred_check
          %p767 = pneg %p297
        $region126: #{conv_vae_forward.1} parent=95 // pred_check_branch
          %769 = sbr.rel (%p767) target = $region128
        $region127: #{conv_vae_forward.1} parent=95 // pred_region
          %770 = dma.done [#allocation14], 1024
        $region128: #{conv_vae_forward.1} parent=95 // pred_fallthru
          _
        // Predicated region
        $region129: #{conv_vae_forward.1} parent=95 // pred_check
          %p771 = pneg %p318
        $region130: #{conv_vae_forward.1} parent=95 // pred_check_branch
          %773 = sbr.rel (%p771) target = $region132
        $region131: #{conv_vae_forward.1} parent=95 // pred_region
          %774 = dma.done [#allocation14], 16
        $region132: #{conv_vae_forward.1} parent=95 // pred_fallthru
          _
        // Predicated region
        $region133: #{conv_vae_forward.1} parent=95 // pred_check
          %p775 = pneg %p339
        $region134: #{conv_vae_forward.1} parent=95 // pred_check_branch
          %777 = sbr.rel (%p775) target = $region136
        $region135: #{conv_vae_forward.1} parent=95 // pred_region
          %778 = dma.done [#allocation17], 1152
        $region136: #{conv_vae_forward.1} parent=95 // pred_fallthru
          _
        // Predicated region
        $region137: #{conv_vae_forward.1} parent=95 // pred_check
          %p779 = pneg %p381
        $region138: #{conv_vae_forward.1} parent=95 // pred_check_branch
          %781 = sbr.rel (%p779) target = $region140
        $region139: #{conv_vae_forward.1} parent=95 // pred_region
          %782 = dma.done [#allocation17], 9216
        $region140: #{conv_vae_forward.1} parent=95 // pred_fallthru
          _
        // Predicated region
        $region141: #{conv_vae_forward.1} parent=95 // pred_check
          %p783 = pneg %p402
        $region142: #{conv_vae_forward.1} parent=95 // pred_check_branch
          %785 = sbr.rel (%p783) target = $region144
        $region143: #{conv_vae_forward.1} parent=95 // pred_region
          %786 = dma.done [#allocation20], 1152
        $region144: #{conv_vae_forward.1} parent=95 // pred_fallthru
          _
        // Predicated region
        $region145: #{conv_vae_forward.1} parent=95 // pred_check
          %p787 = pneg %p444
        $region146: #{conv_vae_forward.1} parent=95 // pred_check_branch
          %789 = sbr.rel (%p787) target = $region148
        $region147: #{conv_vae_forward.1} parent=95 // pred_region
          %790 = dma.done [#allocation20], 36864
        $region148: #{conv_vae_forward.1} parent=95 // pred_fallthru
          _
        %p791 = scmp.lt.s32.totalorder %s40, 1
        %s792 = scalar_select %p791, %s40, 1
        %s793 = smul.addr %s792, 4
        %s794 = smul.addr %s793, 4
        %s795 = scalar_lea.vmem %s0, %s794
        %p796 = pneg %p61
        %p797 = pneg %p58
        %p798 = pneg %p82
        %p799 = pneg %p79
        %p800 = pneg %p103
        %p801 = pneg %p100
        %p802 = pneg %p124
        %p803 = pneg %p121
        %p804 = pneg %p145
        %p805 = pneg %p142
        %p806 = pneg %p166
        %p807 = pneg %p163
        %p808 = pneg %p187
        %p809 = pneg %p184
        %p810 = pneg %p208
        %p811 = pneg %p205
        %p812 = pneg %p229
        %p813 = pneg %p226
        %p814 = pneg %p250
        %p815 = pneg %p247
        %p816 = scmp.lt.s32.totalorder %s40, 1
        %s817 = scalar_select %p816, %s40, 1
        %s818 = smul.addr %s817, 2
        %s819 = smul.addr %s818, 8
        %s820 = scalar_lea.vmem %s10, %s819
        %p821 = pneg %p276
        %p822 = pneg %p273
        %p823 = pneg %p297
        %p824 = pneg %p294
        %p825 = pneg %p318
        %p826 = pneg %p315
        %p827 = pneg %p339
        %p828 = pneg %p336
        %p829 = pneg %p360
        %p830 = pneg %p357
        %p831 = pneg %p381
        %p832 = pneg %p378
        %p833 = pneg %p402
        %p834 = pneg %p399
        %p835 = pneg %p423
        %p836 = pneg %p420
        %p837 = pneg %p444
        %p838 = pneg %p441
        %p839 = pneg %p470
        %p840 = pneg %p467
        %p841 = scmp.lt.s32.totalorder %s40, 1
        %s842 = scalar_select %p841, %s40, 1
        %s843 = smul.addr %s842, 2
        %s844 = smul.addr %s843, 8
        %s845 = scalar_lea.vmem %s19, %s844
        %p846 = pneg %p496
        %p847 = pneg %p493
        %p848 = scmp.lt.s32.totalorder %s40, 1
        %s849 = scalar_select %p848, %s40, 1
        %s850 = smul.addr %s849, 2
        %s851 = smul.addr %s850, 8
        %s852 = scalar_lea.vmem %s20, %s851
        %p853 = pneg %p522
        %p854 = pneg %p519
        %p855 = scmp.lt.s32.totalorder %s40, 1
        %s856 = scalar_select %p855, %s40, 1
        %s857 = smul.addr %s856, 8
        %s858 = smul.addr %s857, 8
        %s859 = scalar_lea.vmem %s21, %s858
        %p860 = scmp.lt.s32.totalorder %s40, 1
        %s861 = scalar_select %p860, %s40, 1
        %s862 = smul.addr %s861, 4
        %s863 = smul.addr %s862, 4
        %s864 = scalar_lea.vmem %s0, %s863
        %p865 = scmp.lt.s32.totalorder %s40, 1
        %s866 = scalar_select %p865, %s40, 1
        %s867 = smul.addr %s866, 2
        %s868 = smul.addr %s867, 8
        %s869 = scalar_lea.vmem %s10, %s868
        %p870 = scmp.lt.s32.totalorder %s40, 1
        %s871 = scalar_select %p870, %s40, 1
        %s872 = smul.addr %s871, 2
        %s873 = smul.addr %s872, 8
        %s874 = scalar_lea.vmem %s19, %s873
        %p875 = scmp.lt.s32.totalorder %s40, 1
        %s876 = scalar_select %p875, %s40, 1
        %s877 = smul.addr %s876, 2
        %s878 = smul.addr %s877, 8
        %s879 = scalar_lea.vmem %s20, %s878
        %p880 = scmp.lt.s32.totalorder %s40, 1
        %s881 = scalar_select %p880, %s40, 1
        %s882 = smul.addr %s881, 8
        %s883 = smul.addr %s882, 8
        %s884 = scalar_lea.vmem %s21, %s883
        %v886 = vld [vmem:[#allocation2] sm:$0xf]
        %v887 = vld [vmem:[#allocation2 + $0x4] sm:$0xf]
        %v888 = vld [vmem:[%s864] sm:$0xf]
        %v889 = vld [vmem:[%s864 + $0x4] sm:$0xf]
        %v890 = vld [vmem:[%s864 + $0x8] sm:$0xf]
        %v891 = vld [vmem:[%s864 + $0xc] sm:$0xf]
        %v892 = vld [vmem:[%s2] sm:$0xff]
        %v893 = vld [vmem:[%s2 + $0x8] sm:$0xff]
        %895 = vset.pattern.permute.xlu0 0
        %896 = vperm.xlu0 %895, %v892
        %v897 = vpop.permute.xlu0 %896
        %900 = vset.pattern.permute.xlu0 0
        %901 = vperm.xlu0 %900, %v893
        %v902 = vpop.permute.xlu0 %901
        %v906 = vunpack.c.l.b16 %v886
        %v907 = vunpack.c.l.b16 %v887
        %v908 = vpack.c.b16 %v907, %v906
        %v913 = vunpack.c.l.b16 %v888
        %v914 = vunpack.c.l.b16 %v889
        %v915 = vunpack.c.l.b16 %v890
        %v916 = vunpack.c.l.b16 %v891
        %v917 = vpack.c.b16 %v914, %v913
        %v918 = vpack.c.b16 %v916, %v915
        %vm921 = vcmask 261120
        %v923 = vsel %vm921, %v908, 0
        %925 = vmatprep.subr.bf16.mxu0 0
        %926 = vmatpush1.bf16.msra.mxu0 %v917
        %927 = vmatprep.subr.bf16.mxu0 0
        %928 = vmatpush1.bf16.msra.mxu0 %v918
        %929 = vmatprep.subr.bf16.mxu0 0
        %930 = vmatpush1.bf16.msra.mxu0 0
        %931 = vmatprep.subr.bf16.mxu0 0
        %932 = vmatpush1.bf16.msra.mxu0 0
        %933 = vmatprep.subr.bf16.mxu0 0
        %934 = vmatpush1.bf16.msra.mxu0 0
        %935 = vmatprep.subr.bf16.mxu0 0
        %936 = vmatpush1.bf16.msra.mxu0 0
        %937 = vmatprep.subr.bf16.mxu0 0
        %938 = vmatpush1.bf16.msra.mxu0 0
        %939 = vmatprep.subr.bf16.mxu0 0
        %940 = vmatpush1.bf16.msra.mxu0 0
        %941 = vmatprep.subr.bf16.mxu0 0
        %942 = vmatpush1.bf16.msra.mxu0 0
        %943 = vmatprep.subr.bf16.mxu0 0
        %944 = vmatpush1.bf16.msra.mxu0 0
        %945 = vmatprep.subr.bf16.mxu0 0
        %946 = vmatpush1.bf16.msra.mxu0 0
        %947 = vmatprep.subr.bf16.mxu0 0
        %948 = vmatpush1.bf16.msra.mxu0 0
        %949 = vmatprep.subr.bf16.mxu0 0
        %950 = vmatpush1.bf16.msra.mxu0 0
        %951 = vmatprep.subr.bf16.mxu0 0
        %952 = vmatpush1.bf16.msra.mxu0 0
        %953 = vmatprep.subr.bf16.mxu0 0
        %954 = vmatpush1.bf16.msra.mxu0 0
        %955 = vmatprep.subr.bf16.mxu0 0
        %956 = vmatpush1.bf16.msra.mxu0 0
        %957 = vmatprep.mubr.bf16.mxu0 0
        %958 = vmatmul.mubr.bf16.gmra.mrb[0].mxu0 %v923
        %v959 = vpop.f32.mrb[0].mxu0
        %v960 = vadd.f32 %v897, %v959
        %v961 = vpop.f32.mrb[0].mxu0
        %v962 = vpop.f32.mrb[0].mxu0
        %v963 = vadd.f32 %v902, %v962
        %v964 = vpop.f32.mrb[0].mxu0
        %965 = vdwg.mxu0
        %v966 = vmax.f32 %v960, 0.0
        %v967 = vmax.f32 %v963, 0.0
        %v968 = vpack.c.bf16 %v967, %v966
        %v969 = vld [vmem:[#allocation6] sm:$0xf]
        %v970 = vld [vmem:[#allocation6 + $0x4] sm:$0xf]
        %v971 = vld [vmem:[#allocation6 + $0x8] sm:$0xf]
        %v972 = vld [vmem:[#allocation6 + $0xc] sm:$0xf]
        %v973 = vld [vmem:[#allocation6 + $0x10] sm:$0xf]
        %v974 = vld [vmem:[#allocation6 + $0x14] sm:$0xf]
        %v975 = vld [vmem:[#allocation6 + $0x18] sm:$0xf]
        %v976 = vld [vmem:[#allocation6 + $0x1c] sm:$0xf]
        %v977 = vld [vmem:[#allocation6 + $0x20] sm:$0xf]
        %v978 = vld [vmem:[#allocation6 + $0x24] sm:$0xf]
        %v979 = vld [vmem:[#allocation6 + $0x28] sm:$0xf]
        %v980 = vld [vmem:[#allocation6 + $0x2c] sm:$0xf]
        %v981 = vld [vmem:[#allocation6 + $0x30] sm:$0xf]
        %v982 = vld [vmem:[#allocation6 + $0x34] sm:$0xf]
        %v983 = vld [vmem:[#allocation6 + $0x38] sm:$0xf]
        %v984 = vld [vmem:[#allocation6 + $0x3c] sm:$0xf]
        %v1001 = vunpack.c.l.b16 %v969
        %v1002 = vunpack.c.l.b16 %v970
        %v1003 = vunpack.c.l.b16 %v971
        %v1004 = vunpack.c.l.b16 %v972
        %v1005 = vunpack.c.l.b16 %v973
        %v1006 = vunpack.c.l.b16 %v974
        %v1007 = vunpack.c.l.b16 %v975
        %v1008 = vunpack.c.l.b16 %v976
        %v1009 = vunpack.c.l.b16 %v977
        %v1010 = vunpack.c.l.b16 %v978
        %v1011 = vunpack.c.l.b16 %v979
        %v1012 = vunpack.c.l.b16 %v980
        %v1013 = vunpack.c.l.b16 %v981
        %v1014 = vunpack.c.l.b16 %v982
        %v1015 = vunpack.c.l.b16 %v983
        %v1016 = vunpack.c.l.b16 %v984
        %v1017 = vpack.c.b16 %v1002, %v1001
        %v1018 = vpack.c.b16 %v1004, %v1003
        %v1019 = vpack.c.b16 %v1006, %v1005
        %v1020 = vpack.c.b16 %v1008, %v1007
        %v1021 = vpack.c.b16 %v1010, %v1009
        %v1022 = vpack.c.b16 %v1012, %v1011
        %v1023 = vpack.c.b16 %v1014, %v1013
        %v1024 = vpack.c.b16 %v1016, %v1015
        %1033 = vmatprep.subr.bf16.mxu0 0
        %1034 = vmatpush1.bf16.msra.mxu0 %v1017
        %1035 = vmatprep.subr.bf16.mxu0 0
        %1036 = vmatpush1.bf16.msra.mxu0 %v1018
        %1037 = vmatprep.subr.bf16.mxu0 0
        %1038 = vmatpush1.bf16.msra.mxu0 %v1019
        %1039 = vmatprep.subr.bf16.mxu0 0
        %1040 = vmatpush1.bf16.msra.mxu0 %v1020
        %1041 = vmatprep.subr.bf16.mxu0 0
        %1042 = vmatpush1.bf16.msra.mxu0 %v1021
        %1043 = vmatprep.subr.bf16.mxu0 0
        %1044 = vmatpush1.bf16.msra.mxu0 %v1022
        %1045 = vmatprep.subr.bf16.mxu0 0
        %1046 = vmatpush1.bf16.msra.mxu0 %v1023
        %1047 = vmatprep.subr.bf16.mxu0 0
        %1048 = vmatpush1.bf16.msra.mxu0 %v1024
        %1049 = vmatprep.subr.bf16.mxu0 0
        %1050 = vmatpush1.bf16.msra.mxu0 0
        %1051 = vmatprep.subr.bf16.mxu0 0
        %1052 = vmatpush1.bf16.msra.mxu0 0
        %1053 = vmatprep.subr.bf16.mxu0 0
        %1054 = vmatpush1.bf16.msra.mxu0 0
        %1055 = vmatprep.subr.bf16.mxu0 0
        %1056 = vmatpush1.bf16.msra.mxu0 0
        %1057 = vmatprep.subr.bf16.mxu0 0
        %1058 = vmatpush1.bf16.msra.mxu0 0
        %1059 = vmatprep.subr.bf16.mxu0 0
        %1060 = vmatpush1.bf16.msra.mxu0 0
        %1061 = vmatprep.subr.bf16.mxu0 0
        %1062 = vmatpush1.bf16.msra.mxu0 0
        %1063 = vmatprep.subr.bf16.mxu0 0
        %1064 = vmatpush1.bf16.msra.mxu0 0
        %1065 = vmatprep.mubr.bf16.mxu0 0
        %1066 = vmatmul.mubr.bf16.gmra.mrb[0].mxu0 %v968
        %v1067 = vpop.f32.mrb[0].mxu0
        %v1068 = vadd.f32 0.0, %v1067
        %v1069 = vpop.f32.mrb[0].mxu0
        %v1070 = vpop.f32.mrb[0].mxu0
        %v1071 = vadd.f32 0.0, %v1070
        %v1072 = vpop.f32.mrb[0].mxu0
        %1073 = vdwg.mxu0
        %v1074 = vpack.c.bf16 %v1071, %v1068
        %v1075 = vld [vmem:[#allocation4] sm:$0xf]
        %v1076 = vld [vmem:[#allocation4 + $0x4] sm:$0xf]
        %s1077 = scalar_lea.vmem [#allocation6], 64
        %v1078 = vld [vmem:[%s1077] sm:$0xf]
        %v1079 = vld [vmem:[%s1077 + $0x4] sm:$0xf]
        %v1080 = vld [vmem:[%s1077 + $0x8] sm:$0xf]
        %v1081 = vld [vmem:[%s1077 + $0xc] sm:$0xf]
        %v1082 = vld [vmem:[%s1077 + $0x10] sm:$0xf]
        %v1083 = vld [vmem:[%s1077 + $0x14] sm:$0xf]
        %v1084 = vld [vmem:[%s1077 + $0x18] sm:$0xf]
        %v1085 = vld [vmem:[%s1077 + $0x1c] sm:$0xf]
        %v1086 = vld [vmem:[%s1077 + $0x20] sm:$0xf]
        %v1087 = vld [vmem:[%s1077 + $0x24] sm:$0xf]
        %v1088 = vld [vmem:[%s1077 + $0x28] sm:$0xf]
        %v1089 = vld [vmem:[%s1077 + $0x2c] sm:$0xf]
        %v1090 = vld [vmem:[%s1077 + $0x30] sm:$0xf]
        %v1091 = vld [vmem:[%s1077 + $0x34] sm:$0xf]
        %v1092 = vld [vmem:[%s1077 + $0x38] sm:$0xf]
        %v1093 = vld [vmem:[%s1077 + $0x3c] sm:$0xf]
        %v1110 = vunpack.c.l.b16 %v1078
        %v1111 = vunpack.c.l.b16 %v1079
        %v1112 = vunpack.c.l.b16 %v1080
        %v1113 = vunpack.c.l.b16 %v1081
        %v1114 = vunpack.c.l.b16 %v1082
        %v1115 = vunpack.c.l.b16 %v1083
        %v1116 = vunpack.c.l.b16 %v1084
        %v1117 = vunpack.c.l.b16 %v1085
        %v1118 = vunpack.c.l.b16 %v1086
        %v1119 = vunpack.c.l.b16 %v1087
        %v1120 = vunpack.c.l.b16 %v1088
        %v1121 = vunpack.c.l.b16 %v1089
        %v1122 = vunpack.c.l.b16 %v1090
        %v1123 = vunpack.c.l.b16 %v1091
        %v1124 = vunpack.c.l.b16 %v1092
        %v1125 = vunpack.c.l.b16 %v1093
        %v1126 = vpack.c.b16 %v1111, %v1110
        %v1127 = vpack.c.b16 %v1113, %v1112
        %v1128 = vpack.c.b16 %v1115, %v1114
        %v1129 = vpack.c.b16 %v1117, %v1116
        %v1130 = vpack.c.b16 %v1119, %v1118
        %v1131 = vpack.c.b16 %v1121, %v1120
        %v1132 = vpack.c.b16 %v1123, %v1122
        %v1133 = vpack.c.b16 %v1125, %v1124
        %1142 = vmatprep.subr.bf16.mxu0 0
        %1143 = vmatpush1.bf16.msra.mxu0 %v1126
        %1144 = vmatprep.subr.bf16.mxu0 0
        %1145 = vmatpush1.bf16.msra.mxu0 %v1127
        %1146 = vmatprep.subr.bf16.mxu0 0
        %1147 = vmatpush1.bf16.msra.mxu0 %v1128
        %1148 = vmatprep.subr.bf16.mxu0 0
        %1149 = vmatpush1.bf16.msra.mxu0 %v1129
        %1150 = vmatprep.subr.bf16.mxu0 0
        %1151 = vmatpush1.bf16.msra.mxu0 %v1130
        %1152 = vmatprep.subr.bf16.mxu0 0
        %1153 = vmatpush1.bf16.msra.mxu0 %v1131
        %1154 = vmatprep.subr.bf16.mxu0 0
        %1155 = vmatpush1.bf16.msra.mxu0 %v1132
        %1156 = vmatprep.subr.bf16.mxu0 0
        %1157 = vmatpush1.bf16.msra.mxu0 %v1133
        %1158 = vmatprep.subr.bf16.mxu0 0
        %1159 = vmatpush1.bf16.msra.mxu0 0
        %1160 = vmatprep.subr.bf16.mxu0 0
        %1161 = vmatpush1.bf16.msra.mxu0 0
        %1162 = vmatprep.subr.bf16.mxu0 0
        %1163 = vmatpush1.bf16.msra.mxu0 0
        %1164 = vmatprep.subr.bf16.mxu0 0
        %1165 = vmatpush1.bf16.msra.mxu0 0
        %1166 = vmatprep.subr.bf16.mxu0 0
        %1167 = vmatpush1.bf16.msra.mxu0 0
        %1168 = vmatprep.subr.bf16.mxu0 0
        %1169 = vmatpush1.bf16.msra.mxu0 0
        %1170 = vmatprep.subr.bf16.mxu0 0
        %1171 = vmatpush1.bf16.msra.mxu0 0
        %1172 = vmatprep.subr.bf16.mxu0 0
        %1173 = vmatpush1.bf16.msra.mxu0 0
        %1174 = vmatprep.mubr.bf16.mxu0 0
        %1175 = vmatmul.mubr.bf16.gmra.mrb[0].mxu0 %v968
        %v1176 = vpop.f32.mrb[0].mxu0
        %v1177 = vadd.f32 0.0, %v1176
        %v1178 = vpop.f32.mrb[0].mxu0
        %v1179 = vpop.f32.mrb[0].mxu0
        %v1180 = vadd.f32 0.0, %v1179
        %v1181 = vpop.f32.mrb[0].mxu0
        %1182 = vdwg.mxu0
        %v1183 = vpack.c.bf16 %v1180, %v1177
        %s1184 = scalar_lea.vmem [#allocation4], 8
        %v1185 = vld [vmem:[%s1184] sm:$0xf]
        %v1186 = vld [vmem:[%s1184 + $0x4] sm:$0xf]
        %v1189 = vunpack.c.l.b16 %v1185
        %v1190 = vunpack.c.l.b16 %v1186
        %v1191 = vpack.c.b16 %v1190, %v1189
        %vm1192 = vcmask 130048
        %v1194 = vsel %vm1192, %v1191, 0
        %1196 = vmatprep.subr.bf16.mxu0 0
        %1197 = vmatpush1.bf16.msra.mxu0 %v1183
        %1198 = vmatprep.subr.bf16.mxu0 0
        %1199 = vmatpush1.bf16.msra.mxu0 0
        %1200 = vmatprep.subr.bf16.mxu0 0
        %1201 = vmatpush1.bf16.msra.mxu0 0
        %1202 = vmatprep.subr.bf16.mxu0 0
        %1203 = vmatpush1.bf16.msra.mxu0 0
        %1204 = vmatprep.subr.bf16.mxu0 0
        %1205 = vmatpush1.bf16.msra.mxu0 0
        %1206 = vmatprep.subr.bf16.mxu0 0
        %1207 = vmatpush1.bf16.msra.mxu0 0
        %1208 = vmatprep.subr.bf16.mxu0 0
        %1209 = vmatpush1.bf16.msra.mxu0 0
        %1210 = vmatprep.subr.bf16.mxu0 0
        %1211 = vmatpush1.bf16.msra.mxu0 0
        %1212 = vmatprep.subr.bf16.mxu0 0
        %1213 = vmatpush1.bf16.msra.mxu0 0
        %1214 = vmatprep.subr.bf16.mxu0 0
        %1215 = vmatpush1.bf16.msra.mxu0 0
        %1216 = vmatprep.subr.bf16.mxu0 0
        %1217 = vmatpush1.bf16.msra.mxu0 0
        %1218 = vmatprep.subr.bf16.mxu0 0
        %1219 = vmatpush1.bf16.msra.mxu0 0
        %1220 = vmatprep.subr.bf16.mxu0 0
        %1221 = vmatpush1.bf16.msra.mxu0 0
        %1222 = vmatprep.subr.bf16.mxu0 0
        %1223 = vmatpush1.bf16.msra.mxu0 0
        %1224 = vmatprep.subr.bf16.mxu0 0
        %1225 = vmatpush1.bf16.msra.mxu0 0
        %1226 = vmatprep.subr.bf16.mxu0 0
        %1227 = vmatpush1.bf16.msra.mxu0 0
        %1228 = vmatprep.mubr.bf16.mxu0 0
        %1229 = vmatmul.mubr.bf16.gmra.mrb[0].mxu0 %v1194
        %v1230 = vpop.f32.mrb[0].mxu0
        %v1231 = vadd.f32 0.0, %v1230
        %v1232 = vpop.f32.mrb[0].mxu0
        %v1233 = vpop.f32.mrb[0].mxu0
        %v1234 = vadd.f32 0.0, %v1233
        %v1235 = vpop.f32.mrb[0].mxu0
        %1236 = vdwg.mxu0
        %v1239 = vunpack.c.l.b16 %v1075
        %v1240 = vunpack.c.l.b16 %v1076
        %v1241 = vpack.c.b16 %v1240, %v1239
        %v1243 = vsel %vm1192, %v1241, 0
        %1245 = vmatprep.subr.bf16.mxu0 0
        %1246 = vmatpush1.bf16.msra.mxu0 %v1074
        %1247 = vmatprep.subr.bf16.mxu0 0
        %1248 = vmatpush1.bf16.msra.mxu0 0
        %1249 = vmatprep.subr.bf16.mxu0 0
        %1250 = vmatpush1.bf16.msra.mxu0 0
        %1251 = vmatprep.subr.bf16.mxu0 0
        %1252 = vmatpush1.bf16.msra.mxu0 0
        %1253 = vmatprep.subr.bf16.mxu0 0
        %1254 = vmatpush1.bf16.msra.mxu0 0
        %1255 = vmatprep.subr.bf16.mxu0 0
        %1256 = vmatpush1.bf16.msra.mxu0 0
        %1257 = vmatprep.subr.bf16.mxu0 0
        %1258 = vmatpush1.bf16.msra.mxu0 0
        %1259 = vmatprep.subr.bf16.mxu0 0
        %1260 = vmatpush1.bf16.msra.mxu0 0
        %1261 = vmatprep.subr.bf16.mxu0 0
        %1262 = vmatpush1.bf16.msra.mxu0 0
        %1263 = vmatprep.subr.bf16.mxu0 0
        %1264 = vmatpush1.bf16.msra.mxu0 0
        %1265 = vmatprep.subr.bf16.mxu0 0
        %1266 = vmatpush1.bf16.msra.mxu0 0
        %1267 = vmatprep.subr.bf16.mxu0 0
        %1268 = vmatpush1.bf16.msra.mxu0 0
        %1269 = vmatprep.subr.bf16.mxu0 0
        %1270 = vmatpush1.bf16.msra.mxu0 0
        %1271 = vmatprep.subr.bf16.mxu0 0
        %1272 = vmatpush1.bf16.msra.mxu0 0
        %1273 = vmatprep.subr.bf16.mxu0 0
        %1274 = vmatpush1.bf16.msra.mxu0 0
        %1275 = vmatprep.subr.bf16.mxu0 0
        %1276 = vmatpush1.bf16.msra.mxu0 0
        %1277 = vmatprep.mubr.bf16.mxu0 0
        %1278 = vmatmul.mubr.bf16.gmra.mrb[0].mxu0 %v1243
        %v1279 = vpop.f32.mrb[0].mxu0
        %v1280 = vadd.f32 %v1231, %v1279
        %v1281 = vpop.f32.mrb[0].mxu0
        %v1282 = vpop.f32.mrb[0].mxu0
        %v1283 = vadd.f32 %v1234, %v1282
        %v1284 = vpop.f32.mrb[0].mxu0
        %1285 = vdwg.mxu0
        %s1286 = scalar_lea.vmem [#allocation6], 128
        %v1287 = vld [vmem:[%s1286] sm:$0xf]
        %v1288 = vld [vmem:[%s1286 + $0x4] sm:$0xf]
        %v1289 = vld [vmem:[%s1286 + $0x8] sm:$0xf]
        %v1290 = vld [vmem:[%s1286 + $0xc] sm:$0xf]
        %v1291 = vld [vmem:[%s1286 + $0x10] sm:$0xf]
        %v1292 = vld [vmem:[%s1286 + $0x14] sm:$0xf]
        %v1293 = vld [vmem:[%s1286 + $0x18] sm:$0xf]
        %v1294 = vld [vmem:[%s1286 + $0x1c] sm:$0xf]
        %v1295 = vld [vmem:[%s1286 + $0x20] sm:$0xf]
        %v1296 = vld [vmem:[%s1286 + $0x24] sm:$0xf]
        %v1297 = vld [vmem:[%s1286 + $0x28] sm:$0xf]
        %v1298 = vld [vmem:[%s1286 + $0x2c] sm:$0xf]
        %v1299 = vld [vmem:[%s1286 + $0x30] sm:$0xf]
        %v1300 = vld [vmem:[%s1286 + $0x34] sm:$0xf]
        %v1301 = vld [vmem:[%s1286 + $0x38] sm:$0xf]
        %v1302 = vld [vmem:[%s1286 + $0x3c] sm:$0xf]
        %v1319 = vunpack.c.l.b16 %v1287
        %v1320 = vunpack.c.l.b16 %v1288
        %v1321 = vunpack.c.l.b16 %v1289
        %v1322 = vunpack.c.l.b16 %v1290
        %v1323 = vunpack.c.l.b16 %v1291
        %v1324 = vunpack.c.l.b16 %v1292
        %v1325 = vunpack.c.l.b16 %v1293
        %v1326 = vunpack.c.l.b16 %v1294
        %v1327 = vunpack.c.l.b16 %v1295
        %v1328 = vunpack.c.l.b16 %v1296
        %v1329 = vunpack.c.l.b16 %v1297
        %v1330 = vunpack.c.l.b16 %v1298
        %v1331 = vunpack.c.l.b16 %v1299
        %v1332 = vunpack.c.l.b16 %v1300
        %v1333 = vunpack.c.l.b16 %v1301
        %v1334 = vunpack.c.l.b16 %v1302
        %v1335 = vpack.c.b16 %v1320, %v1319
        %v1336 = vpack.c.b16 %v1322, %v1321
        %v1337 = vpack.c.b16 %v1324, %v1323
        %v1338 = vpack.c.b16 %v1326, %v1325
        %v1339 = vpack.c.b16 %v1328, %v1327
        %v1340 = vpack.c.b16 %v1330, %v1329
        %v1341 = vpack.c.b16 %v1332, %v1331
        %v1342 = vpack.c.b16 %v1334, %v1333
        %1351 = vmatprep.subr.bf16.mxu0 0
        %1352 = vmatpush1.bf16.msra.mxu0 %v1335
        %1353 = vmatprep.subr.bf16.mxu0 0
        %1354 = vmatpush1.bf16.msra.mxu0 %v1336
        %1355 = vmatprep.subr.bf16.mxu0 0
        %1356 = vmatpush1.bf16.msra.mxu0 %v1337
        %1357 = vmatprep.subr.bf16.mxu0 0
        %1358 = vmatpush1.bf16.msra.mxu0 %v1338
        %1359 = vmatprep.subr.bf16.mxu0 0
        %1360 = vmatpush1.bf16.msra.mxu0 %v1339
        %1361 = vmatprep.subr.bf16.mxu0 0
        %1362 = vmatpush1.bf16.msra.mxu0 %v1340
        %1363 = vmatprep.subr.bf16.mxu0 0
        %1364 = vmatpush1.bf16.msra.mxu0 %v1341
        %1365 = vmatprep.subr.bf16.mxu0 0
        %1366 = vmatpush1.bf16.msra.mxu0 %v1342
        %1367 = vmatprep.subr.bf16.mxu0 0
        %1368 = vmatpush1.bf16.msra.mxu0 0
        %1369 = vmatprep.subr.bf16.mxu0 0
        %1370 = vmatpush1.bf16.msra.mxu0 0
        %1371 = vmatprep.subr.bf16.mxu0 0
        %1372 = vmatpush1.bf16.msra.mxu0 0
        %1373 = vmatprep.subr.bf16.mxu0 0
        %1374 = vmatpush1.bf16.msra.mxu0 0
        %1375 = vmatprep.subr.bf16.mxu0 0
        %1376 = vmatpush1.bf16.msra.mxu0 0
        %1377 = vmatprep.subr.bf16.mxu0 0
        %1378 = vmatpush1.bf16.msra.mxu0 0
        %1379 = vmatprep.subr.bf16.mxu0 0
        %1380 = vmatpush1.bf16.msra.mxu0 0
        %1381 = vmatprep.subr.bf16.mxu0 0
        %1382 = vmatpush1.bf16.msra.mxu0 0
        %1383 = vmatprep.mubr.bf16.mxu0 0
        %1384 = vmatmul.mubr.bf16.gmra.mrb[0].mxu0 %v968
        %v1385 = vpop.f32.mrb[0].mxu0
        %v1386 = vadd.f32 0.0, %v1385
        %v1387 = vpop.f32.mrb[0].mxu0
        %v1388 = vpop.f32.mrb[0].mxu0
        %v1389 = vadd.f32 0.0, %v1388
        %v1390 = vpop.f32.mrb[0].mxu0
        %1391 = vdwg.mxu0
        %v1392 = vpack.c.bf16 %v1389, %v1386
        %s1393 = scalar_lea.vmem [#allocation4], 16
        %v1394 = vld [vmem:[%s1393] sm:$0xf]
        %v1395 = vld [vmem:[%s1393 + $0x4] sm:$0xf]
        %v1398 = vunpack.c.l.b16 %v1394
        %v1399 = vunpack.c.l.b16 %v1395
        %v1400 = vpack.c.b16 %v1399, %v1398
        %v1402 = vsel %vm1192, %v1400, 0
        %1404 = vmatprep.subr.bf16.mxu0 0
        %1405 = vmatpush1.bf16.msra.mxu0 %v1392
        %1406 = vmatprep.subr.bf16.mxu0 0
        %1407 = vmatpush1.bf16.msra.mxu0 0
        %1408 = vmatprep.subr.bf16.mxu0 0
        %1409 = vmatpush1.bf16.msra.mxu0 0
        %1410 = vmatprep.subr.bf16.mxu0 0
        %1411 = vmatpush1.bf16.msra.mxu0 0
        %1412 = vmatprep.subr.bf16.mxu0 0
        %1413 = vmatpush1.bf16.msra.mxu0 0
        %1414 = vmatprep.subr.bf16.mxu0 0
        %1415 = vmatpush1.bf16.msra.mxu0 0
        %1416 = vmatprep.subr.bf16.mxu0 0
        %1417 = vmatpush1.bf16.msra.mxu0 0
        %1418 = vmatprep.subr.bf16.mxu0 0
        %1419 = vmatpush1.bf16.msra.mxu0 0
        %1420 = vmatprep.subr.bf16.mxu0 0
        %1421 = vmatpush1.bf16.msra.mxu0 0
        %1422 = vmatprep.subr.bf16.mxu0 0
        %1423 = vmatpush1.bf16.msra.mxu0 0
        %1424 = vmatprep.subr.bf16.mxu0 0
        %1425 = vmatpush1.bf16.msra.mxu0 0
        %1426 = vmatprep.subr.bf16.mxu0 0
        %1427 = vmatpush1.bf16.msra.mxu0 0
        %1428 = vmatprep.subr.bf16.mxu0 0
        %1429 = vmatpush1.bf16.msra.mxu0 0
        %1430 = vmatprep.subr.bf16.mxu0 0
        %1431 = vmatpush1.bf16.msra.mxu0 0
        %1432 = vmatprep.subr.bf16.mxu0 0
        %1433 = vmatpush1.bf16.msra.mxu0 0
        %1434 = vmatprep.subr.bf16.mxu0 0
        %1435 = vmatpush1.bf16.msra.mxu0 0
        %1436 = vmatprep.mubr.bf16.mxu0 0
        %1437 = vmatmul.mubr.bf16.gmra.mrb[0].mxu0 %v1402
        %v1438 = vpop.f32.mrb[0].mxu0
        %v1439 = vadd.f32 0.0, %v1438
        %v1440 = vpop.f32.mrb[0].mxu0
        %v1441 = vpop.f32.mrb[0].mxu0
        %v1442 = vadd.f32 0.0, %v1441
        %v1443 = vpop.f32.mrb[0].mxu0
        %1444 = vdwg.mxu0
        %v1445 = vadd.f32 %v1280, %v1439
        %v1446 = vadd.f32 %v1283, %v1442
        %s1447 = scalar_lea.vmem [#allocation6], 192
        %v1448 = vld [vmem:[%s1447] sm:$0xf]
        %v1449 = vld [vmem:[%s1447 + $0x4] sm:$0xf]
        %v1450 = vld [vmem:[%s1447 + $0x8] sm:$0xf]
        %v1451 = vld [vmem:[%s1447 + $0xc] sm:$0xf]
        %v1452 = vld [vmem:[%s1447 + $0x10] sm:$0xf]
        %v1453 = vld [vmem:[%s1447 + $0x14] sm:$0xf]
        %v1454 = vld [vmem:[%s1447 + $0x18] sm:$0xf]
        %v1455 = vld [vmem:[%s1447 + $0x1c] sm:$0xf]
        %v1456 = vld [vmem:[%s1447 + $0x20] sm:$0xf]
        %v1457 = vld [vmem:[%s1447 + $0x24] sm:$0xf]
        %v1458 = vld [vmem:[%s1447 + $0x28] sm:$0xf]
        %v1459 = vld [vmem:[%s1447 + $0x2c] sm:$0xf]
        %v1460 = vld [vmem:[%s1447 + $0x30] sm:$0xf]
        %v1461 = vld [vmem:[%s1447 + $0x34] sm:$0xf]
        %v1462 = vld [vmem:[%s1447 + $0x38] sm:$0xf]
        %v1463 = vld [vmem:[%s1447 + $0x3c] sm:$0xf]
        %v1480 = vunpack.c.l.b16 %v1448
        %v1481 = vunpack.c.l.b16 %v1449
        %v1482 = vunpack.c.l.b16 %v1450
        %v1483 = vunpack.c.l.b16 %v1451
        %v1484 = vunpack.c.l.b16 %v1452
        %v1485 = vunpack.c.l.b16 %v1453
        %v1486 = vunpack.c.l.b16 %v1454
        %v1487 = vunpack.c.l.b16 %v1455
        %v1488 = vunpack.c.l.b16 %v1456
        %v1489 = vunpack.c.l.b16 %v1457
        %v1490 = vunpack.c.l.b16 %v1458
        %v1491 = vunpack.c.l.b16 %v1459
        %v1492 = vunpack.c.l.b16 %v1460
        %v1493 = vunpack.c.l.b16 %v1461
        %v1494 = vunpack.c.l.b16 %v1462
        %v1495 = vunpack.c.l.b16 %v1463
        %v1496 = vpack.c.b16 %v1481, %v1480
        %v1497 = vpack.c.b16 %v1483, %v1482
        %v1498 = vpack.c.b16 %v1485, %v1484
        %v1499 = vpack.c.b16 %v1487, %v1486
        %v1500 = vpack.c.b16 %v1489, %v1488
        %v1501 = vpack.c.b16 %v1491, %v1490
        %v1502 = vpack.c.b16 %v1493, %v1492
        %v1503 = vpack.c.b16 %v1495, %v1494
        %1512 = vmatprep.subr.bf16.mxu0 0
        %1513 = vmatpush1.bf16.msra.mxu0 %v1496
        %1514 = vmatprep.subr.bf16.mxu0 0
        %1515 = vmatpush1.bf16.msra.mxu0 %v1497
        %1516 = vmatprep.subr.bf16.mxu0 0
        %1517 = vmatpush1.bf16.msra.mxu0 %v1498
        %1518 = vmatprep.subr.bf16.mxu0 0
        %1519 = vmatpush1.bf16.msra.mxu0 %v1499
        %1520 = vmatprep.subr.bf16.mxu0 0
        %1521 = vmatpush1.bf16.msra.mxu0 %v1500
        %1522 = vmatprep.subr.bf16.mxu0 0
        %1523 = vmatpush1.bf16.msra.mxu0 %v1501
        %1524 = vmatprep.subr.bf16.mxu0 0
        %1525 = vmatpush1.bf16.msra.mxu0 %v1502
        %1526 = vmatprep.subr.bf16.mxu0 0
        %1527 = vmatpush1.bf16.msra.mxu0 %v1503
        %1528 = vmatprep.subr.bf16.mxu0 0
        %1529 = vmatpush1.bf16.msra.mxu0 0
        %1530 = vmatprep.subr.bf16.mxu0 0
        %1531 = vmatpush1.bf16.msra.mxu0 0
        %1532 = vmatprep.subr.bf16.mxu0 0
        %1533 = vmatpush1.bf16.msra.mxu0 0
        %1534 = vmatprep.subr.bf16.mxu0 0
        %1535 = vmatpush1.bf16.msra.mxu0 0
        %1536 = vmatprep.subr.bf16.mxu0 0
        %1537 = vmatpush1.bf16.msra.mxu0 0
        %1538 = vmatprep.subr.bf16.mxu0 0
        %1539 = vmatpush1.bf16.msra.mxu0 0
        %1540 = vmatprep.subr.bf16.mxu0 0
        %1541 = vmatpush1.bf16.msra.mxu0 0
        %1542 = vmatprep.subr.bf16.mxu0 0
        %1543 = vmatpush1.bf16.msra.mxu0 0
        %1544 = vmatprep.mubr.bf16.mxu0 0
        %1545 = vmatmul.mubr.bf16.gmra.mrb[0].mxu0 %v968
        %v1546 = vpop.f32.mrb[0].mxu0
        %v1547 = vadd.f32 0.0, %v1546
        %v1548 = vpop.f32.mrb[0].mxu0
        %v1549 = vpop.f32.mrb[0].mxu0
        %v1550 = vadd.f32 0.0, %v1549
        %v1551 = vpop.f32.mrb[0].mxu0
        %1552 = vdwg.mxu0
        %v1553 = vpack.c.bf16 %v1550, %v1547
        %s1554 = scalar_lea.vmem [#allocation4], 24
        %v1555 = vld [vmem:[%s1554] sm:$0xf]
        %v1556 = vld [vmem:[%s1554 + $0x4] sm:$0xf]
        %v1559 = vunpack.c.l.b16 %v1555
        %v1560 = vunpack.c.l.b16 %v1556
        %v1561 = vpack.c.b16 %v1560, %v1559
        %v1563 = vsel %vm1192, %v1561, 0
        %1565 = vmatprep.subr.bf16.mxu0 0
        %1566 = vmatpush1.bf16.msra.mxu0 %v1553
        %1567 = vmatprep.subr.bf16.mxu0 0
        %1568 = vmatpush1.bf16.msra.mxu0 0
        %1569 = vmatprep.subr.bf16.mxu0 0
        %1570 = vmatpush1.bf16.msra.mxu0 0
        %1571 = vmatprep.subr.bf16.mxu0 0
        %1572 = vmatpush1.bf16.msra.mxu0 0
        %1573 = vmatprep.subr.bf16.mxu0 0
        %1574 = vmatpush1.bf16.msra.mxu0 0
        %1575 = vmatprep.subr.bf16.mxu0 0
        %1576 = vmatpush1.bf16.msra.mxu0 0
        %1577 = vmatprep.subr.bf16.mxu0 0
        %1578 = vmatpush1.bf16.msra.mxu0 0
        %1579 = vmatprep.subr.bf16.mxu0 0
        %1580 = vmatpush1.bf16.msra.mxu0 0
        %1581 = vmatprep.subr.bf16.mxu0 0
        %1582 = vmatpush1.bf16.msra.mxu0 0
        %1583 = vmatprep.subr.bf16.mxu0 0
        %1584 = vmatpush1.bf16.msra.mxu0 0
        %1585 = vmatprep.subr.bf16.mxu0 0
        %1586 = vmatpush1.bf16.msra.mxu0 0
        %1587 = vmatprep.subr.bf16.mxu0 0
        %1588 = vmatpush1.bf16.msra.mxu0 0
        %1589 = vmatprep.subr.bf16.mxu0 0
        %1590 = vmatpush1.bf16.msra.mxu0 0
        %1591 = vmatprep.subr.bf16.mxu0 0
        %1592 = vmatpush1.bf16.msra.mxu0 0
        %1593 = vmatprep.subr.bf16.mxu0 0
        %1594 = vmatpush1.bf16.msra.mxu0 0
        %1595 = vmatprep.subr.bf16.mxu0 0
        %1596 = vmatpush1.bf16.msra.mxu0 0
        %1597 = vmatprep.mubr.bf16.mxu0 0
        %1598 = vmatmul.mubr.bf16.gmra.mrb[0].mxu0 %v1563
        %v1599 = vpop.f32.mrb[0].mxu0
        %v1600 = vadd.f32 0.0, %v1599
        %v1601 = vpop.f32.mrb[0].mxu0
        %v1602 = vpop.f32.mrb[0].mxu0
        %v1603 = vadd.f32 0.0, %v1602
        %v1604 = vpop.f32.mrb[0].mxu0
        %1605 = vdwg.mxu0
        %v1606 = vadd.f32 %v1445, %v1600
        %v1607 = vadd.f32 %v1446, %v1603
        %s1608 = scalar_lea.vmem [#allocation6], 256
        %v1609 = vld [vmem:[%s1608] sm:$0xf]
        %v1610 = vld [vmem:[%s1608 + $0x4] sm:$0xf]
        %v1611 = vld [vmem:[%s1608 + $0x8] sm:$0xf]
        %v1612 = vld [vmem:[%s1608 + $0xc] sm:$0xf]
        %v1613 = vld [vmem:[%s1608 + $0x10] sm:$0xf]
        %v1614 = vld [vmem:[%s1608 + $0x14] sm:$0xf]
        %v1615 = vld [vmem:[%s1608 + $0x18] sm:$0xf]
        %v1616 = vld [vmem:[%s1608 + $0x1c] sm:$0xf]
        %v1617 = vld [vmem:[%s1608 + $0x20] sm:$0xf]
        %v1618 = vld [vmem:[%s1608 + $0x24] sm:$0xf]
        %v1619 = vld [vmem:[%s1608 + $0x28] sm:$0xf]
        %v1620 = vld [vmem:[%s1608 + $0x2c] sm:$0xf]
        %v1621 = vld [vmem:[%s1608 + $0x30] sm:$0xf]
        %v1622 = vld [vmem:[%s1608 + $0x34] sm:$0xf]
        %v1623 = vld [vmem:[%s1608 + $0x38] sm:$0xf]
        %v1624 = vld [vmem:[%s1608 + $0x3c] sm:$0xf]
        %v1641 = vunpack.c.l.b16 %v1609
        %v1642 = vunpack.c.l.b16 %v1610
        %v1643 = vunpack.c.l.b16 %v1611
        %v1644 = vunpack.c.l.b16 %v1612
        %v1645 = vunpack.c.l.b16 %v1613
        %v1646 = vunpack.c.l.b16 %v1614
        %v1647 = vunpack.c.l.b16 %v1615
        %v1648 = vunpack.c.l.b16 %v1616
        %v1649 = vunpack.c.l.b16 %v1617
        %v1650 = vunpack.c.l.b16 %v1618
        %v1651 = vunpack.c.l.b16 %v1619
        %v1652 = vunpack.c.l.b16 %v1620
        %v1653 = vunpack.c.l.b16 %v1621
        %v1654 = vunpack.c.l.b16 %v1622
        %v1655 = vunpack.c.l.b16 %v1623
        %v1656 = vunpack.c.l.b16 %v1624
        %v1657 = vpack.c.b16 %v1642, %v1641
        %v1658 = vpack.c.b16 %v1644, %v1643
        %v1659 = vpack.c.b16 %v1646, %v1645
        %v1660 = vpack.c.b16 %v1648, %v1647
        %v1661 = vpack.c.b16 %v1650, %v1649
        %v1662 = vpack.c.b16 %v1652, %v1651
        %v1663 = vpack.c.b16 %v1654, %v1653
        %v1664 = vpack.c.b16 %v1656, %v1655
        %1673 = vmatprep.subr.bf16.mxu0 0
        %1674 = vmatpush1.bf16.msra.mxu0 %v1657
        %1675 = vmatprep.subr.bf16.mxu0 0
        %1676 = vmatpush1.bf16.msra.mxu0 %v1658
        %1677 = vmatprep.subr.bf16.mxu0 0
        %1678 = vmatpush1.bf16.msra.mxu0 %v1659
        %1679 = vmatprep.subr.bf16.mxu0 0
        %1680 = vmatpush1.bf16.msra.mxu0 %v1660
        %1681 = vmatprep.subr.bf16.mxu0 0
        %1682 = vmatpush1.bf16.msra.mxu0 %v1661
        %1683 = vmatprep.subr.bf16.mxu0 0
        %1684 = vmatpush1.bf16.msra.mxu0 %v1662
        %1685 = vmatprep.subr.bf16.mxu0 0
        %1686 = vmatpush1.bf16.msra.mxu0 %v1663
        %1687 = vmatprep.subr.bf16.mxu0 0
        %1688 = vmatpush1.bf16.msra.mxu0 %v1664
        %1689 = vmatprep.subr.bf16.mxu0 0
        %1690 = vmatpush1.bf16.msra.mxu0 0
        %1691 = vmatprep.subr.bf16.mxu0 0
        %1692 = vmatpush1.bf16.msra.mxu0 0
        %1693 = vmatprep.subr.bf16.mxu0 0
        %1694 = vmatpush1.bf16.msra.mxu0 0
        %1695 = vmatprep.subr.bf16.mxu0 0
        %1696 = vmatpush1.bf16.msra.mxu0 0
        %1697 = vmatprep.subr.bf16.mxu0 0
        %1698 = vmatpush1.bf16.msra.mxu0 0
        %1699 = vmatprep.subr.bf16.mxu0 0
        %1700 = vmatpush1.bf16.msra.mxu0 0
        %1701 = vmatprep.subr.bf16.mxu0 0
        %1702 = vmatpush1.bf16.msra.mxu0 0
        %1703 = vmatprep.subr.bf16.mxu0 0
        %1704 = vmatpush1.bf16.msra.mxu0 0
        %1705 = vmatprep.mubr.bf16.mxu0 0
        %1706 = vmatmul.mubr.bf16.gmra.mrb[0].mxu0 %v968
        %v1707 = vpop.f32.mrb[0].mxu0
        %v1708 = vadd.f32 0.0, %v1707
        %v1709 = vpop.f32.mrb[0].mxu0
        %v1710 = vpop.f32.mrb[0].mxu0
        %v1711 = vadd.f32 0.0, %v1710
        %v1712 = vpop.f32.mrb[0].mxu0
        %1713 = vdwg.mxu0
        %v1714 = vpack.c.bf16 %v1711, %v1708
        %s1715 = scalar_lea.vmem [#allocation4], 32
        %v1716 = vld [vmem:[%s1715] sm:$0xf]
        %v1717 = vld [vmem:[%s1715 + $0x4] sm:$0xf]
        %v1720 = vunpack.c.l.b16 %v1716
        %v1721 = vunpack.c.l.b16 %v1717
        %v1722 = vpack.c.b16 %v1721, %v1720
        %v1724 = vsel %vm1192, %v1722, 0
        %1726 = vmatprep.subr.bf16.mxu0 0
        %1727 = vmatpush1.bf16.msra.mxu0 %v1714
        %1728 = vmatprep.subr.bf16.mxu0 0
        %1729 = vmatpush1.bf16.msra.mxu0 0
        %1730 = vmatprep.subr.bf16.mxu0 0
        %1731 = vmatpush1.bf16.msra.mxu0 0
        %1732 = vmatprep.subr.bf16.mxu0 0
        %1733 = vmatpush1.bf16.msra.mxu0 0
        %1734 = vmatprep.subr.bf16.mxu0 0
        %1735 = vmatpush1.bf16.msra.mxu0 0
        %1736 = vmatprep.subr.bf16.mxu0 0
        %1737 = vmatpush1.bf16.msra.mxu0 0
        %1738 = vmatprep.subr.bf16.mxu0 0
        %1739 = vmatpush1.bf16.msra.mxu0 0
        %1740 = vmatprep.subr.bf16.mxu0 0
        %1741 = vmatpush1.bf16.msra.mxu0 0
        %1742 = vmatprep.subr.bf16.mxu0 0
        %1743 = vmatpush1.bf16.msra.mxu0 0
        %1744 = vmatprep.subr.bf16.mxu0 0
        %1745 = vmatpush1.bf16.msra.mxu0 0
        %1746 = vmatprep.subr.bf16.mxu0 0
        %1747 = vmatpush1.bf16.msra.mxu0 0
        %1748 = vmatprep.subr.bf16.mxu0 0
        %1749 = vmatpush1.bf16.msra.mxu0 0
        %1750 = vmatprep.subr.bf16.mxu0 0
        %1751 = vmatpush1.bf16.msra.mxu0 0
        %1752 = vmatprep.subr.bf16.mxu0 0
        %1753 = vmatpush1.bf16.msra.mxu0 0
        %1754 = vmatprep.subr.bf16.mxu0 0
        %1755 = vmatpush1.bf16.msra.mxu0 0
        %1756 = vmatprep.subr.bf16.mxu0 0
        %1757 = vmatpush1.bf16.msra.mxu0 0
        %1758 = vmatprep.mubr.bf16.mxu0 0
        %1759 = vmatmul.mubr.bf16.gmra.mrb[0].mxu0 %v1724
        %v1760 = vpop.f32.mrb[0].mxu0
        %v1761 = vadd.f32 0.0, %v1760
        %v1762 = vpop.f32.mrb[0].mxu0
        %v1763 = vpop.f32.mrb[0].mxu0
        %v1764 = vadd.f32 0.0, %v1763
        %v1765 = vpop.f32.mrb[0].mxu0
        %1766 = vdwg.mxu0
        %v1767 = vadd.f32 %v1606, %v1761
        %v1768 = vadd.f32 %v1607, %v1764
        %s1769 = scalar_lea.vmem [#allocation6], 320
        %v1770 = vld [vmem:[%s1769] sm:$0xf]
        %v1771 = vld [vmem:[%s1769 + $0x4] sm:$0xf]
        %v1772 = vld [vmem:[%s1769 + $0x8] sm:$0xf]
        %v1773 = vld [vmem:[%s1769 + $0xc] sm:$0xf]
        %v1774 = vld [vmem:[%s1769 + $0x10] sm:$0xf]
        %v1775 = vld [vmem:[%s1769 + $0x14] sm:$0xf]
        %v1776 = vld [vmem:[%s1769 + $0x18] sm:$0xf]
        %v1777 = vld [vmem:[%s1769 + $0x1c] sm:$0xf]
        %v1778 = vld [vmem:[%s1769 + $0x20] sm:$0xf]
        %v1779 = vld [vmem:[%s1769 + $0x24] sm:$0xf]
        %v1780 = vld [vmem:[%s1769 + $0x28] sm:$0xf]
        %v1781 = vld [vmem:[%s1769 + $0x2c] sm:$0xf]
        %v1782 = vld [vmem:[%s1769 + $0x30] sm:$0xf]
        %v1783 = vld [vmem:[%s1769 + $0x34] sm:$0xf]
        %v1784 = vld [vmem:[%s1769 + $0x38] sm:$0xf]
        %v1785 = vld [vmem:[%s1769 + $0x3c] sm:$0xf]
        %v1802 = vunpack.c.l.b16 %v1770
        %v1803 = vunpack.c.l.b16 %v1771
        %v1804 = vunpack.c.l.b16 %v1772
        %v1805 = vunpack.c.l.b16 %v1773
        %v1806 = vunpack.c.l.b16 %v1774
        %v1807 = vunpack.c.l.b16 %v1775
        %v1808 = vunpack.c.l.b16 %v1776
        %v1809 = vunpack.c.l.b16 %v1777
        %v1810 = vunpack.c.l.b16 %v1778
        %v1811 = vunpack.c.l.b16 %v1779
        %v1812 = vunpack.c.l.b16 %v1780
        %v1813 = vunpack.c.l.b16 %v1781
        %v1814 = vunpack.c.l.b16 %v1782
        %v1815 = vunpack.c.l.b16 %v1783
        %v1816 = vunpack.c.l.b16 %v1784
        %v1817 = vunpack.c.l.b16 %v1785
        %v1818 = vpack.c.b16 %v1803, %v1802
        %v1819 = vpack.c.b16 %v1805, %v1804
        %v1820 = vpack.c.b16 %v1807, %v1806
        %v1821 = vpack.c.b16 %v1809, %v1808
        %v1822 = vpack.c.b16 %v1811, %v1810
        %v1823 = vpack.c.b16 %v1813, %v1812
        %v1824 = vpack.c.b16 %v1815, %v1814
        %v1825 = vpack.c.b16 %v1817, %v1816
        %1834 = vmatprep.subr.bf16.mxu0 0
        %1835 = vmatpush1.bf16.msra.mxu0 %v1818
        %1836 = vmatprep.subr.bf16.mxu0 0
        %1837 = vmatpush1.bf16.msra.mxu0 %v1819
        %1838 = vmatprep.subr.bf16.mxu0 0
        %1839 = vmatpush1.bf16.msra.mxu0 %v1820
        %1840 = vmatprep.subr.bf16.mxu0 0
        %1841 = vmatpush1.bf16.msra.mxu0 %v1821
        %1842 = vmatprep.subr.bf16.mxu0 0
        %1843 = vmatpush1.bf16.msra.mxu0 %v1822
        %1844 = vmatprep.subr.bf16.mxu0 0
        %1845 = vmatpush1.bf16.msra.mxu0 %v1823
        %1846 = vmatprep.subr.bf16.mxu0 0
        %1847 = vmatpush1.bf16.msra.mxu0 %v1824
        %1848 = vmatprep.subr.bf16.mxu0 0
        %1849 = vmatpush1.bf16.msra.mxu0 %v1825
        %1850 = vmatprep.subr.bf16.mxu0 0
        %1851 = vmatpush1.bf16.msra.mxu0 0
        %1852 = vmatprep.subr.bf16.mxu0 0
        %1853 = vmatpush1.bf16.msra.mxu0 0
        %1854 = vmatprep.subr.bf16.mxu0 0
        %1855 = vmatpush1.bf16.msra.mxu0 0
        %1856 = vmatprep.subr.bf16.mxu0 0
        %1857 = vmatpush1.bf16.msra.mxu0 0
        %1858 = vmatprep.subr.bf16.mxu0 0
        %1859 = vmatpush1.bf16.msra.mxu0 0
        %1860 = vmatprep.subr.bf16.mxu0 0
        %1861 = vmatpush1.bf16.msra.mxu0 0
        %1862 = vmatprep.subr.bf16.mxu0 0
        %1863 = vmatpush1.bf16.msra.mxu0 0
        %1864 = vmatprep.subr.bf16.mxu0 0
        %1865 = vmatpush1.bf16.msra.mxu0 0
        %1866 = vmatprep.mubr.bf16.mxu0 0
        %1867 = vmatmul.mubr.bf16.gmra.mrb[0].mxu0 %v968
        %v1868 = vpop.f32.mrb[0].mxu0
        %v1869 = vadd.f32 0.0, %v1868
        %v1870 = vpop.f32.mrb[0].mxu0
        %v1871 = vpop.f32.mrb[0].mxu0
        %v1872 = vadd.f32 0.0, %v1871
        %v1873 = vpop.f32.mrb[0].mxu0
        %1874 = vdwg.mxu0
        %v1875 = vpack.c.bf16 %v1872, %v1869
        %s1876 = scalar_lea.vmem [#allocation4], 40
        %v1877 = vld [vmem:[%s1876] sm:$0xf]
        %v1878 = vld [vmem:[%s1876 + $0x4] sm:$0xf]
        %v1881 = vunpack.c.l.b16 %v1877
        %v1882 = vunpack.c.l.b16 %v1878
        %v1883 = vpack.c.b16 %v1882, %v1881
        %v1885 = vsel %vm1192, %v1883, 0
        %1887 = vmatprep.subr.bf16.mxu0 0
        %1888 = vmatpush1.bf16.msra.mxu0 %v1875
        %1889 = vmatprep.subr.bf16.mxu0 0
        %1890 = vmatpush1.bf16.msra.mxu0 0
        %1891 = vmatprep.subr.bf16.mxu0 0
        %1892 = vmatpush1.bf16.msra.mxu0 0
        %1893 = vmatprep.subr.bf16.mxu0 0
        %1894 = vmatpush1.bf16.msra.mxu0 0
        %1895 = vmatprep.subr.bf16.mxu0 0
        %1896 = vmatpush1.bf16.msra.mxu0 0
        %1897 = vmatprep.subr.bf16.mxu0 0
        %1898 = vmatpush1.bf16.msra.mxu0 0
        %1899 = vmatprep.subr.bf16.mxu0 0
        %1900 = vmatpush1.bf16.msra.mxu0 0
        %1901 = vmatprep.subr.bf16.mxu0 0
        %1902 = vmatpush1.bf16.msra.mxu0 0
        %1903 = vmatprep.subr.bf16.mxu0 0
        %1904 = vmatpush1.bf16.msra.mxu0 0
        %1905 = vmatprep.subr.bf16.mxu0 0
        %1906 = vmatpush1.bf16.msra.mxu0 0
        %1907 = vmatprep.subr.bf16.mxu0 0
        %1908 = vmatpush1.bf16.msra.mxu0 0
        %1909 = vmatprep.subr.bf16.mxu0 0
        %1910 = vmatpush1.bf16.msra.mxu0 0
        %1911 = vmatprep.subr.bf16.mxu0 0
        %1912 = vmatpush1.bf16.msra.mxu0 0
        %1913 = vmatprep.subr.bf16.mxu0 0
        %1914 = vmatpush1.bf16.msra.mxu0 0
        %1915 = vmatprep.subr.bf16.mxu0 0
        %1916 = vmatpush1.bf16.msra.mxu0 0
        %1917 = vmatprep.subr.bf16.mxu0 0
        %1918 = vmatpush1.bf16.msra.mxu0 0
        %1919 = vmatprep.mubr.bf16.mxu0 0
        %1920 = vmatmul.mubr.bf16.gmra.mrb[0].mxu0 %v1885
        %v1921 = vpop.f32.mrb[0].mxu0
        %v1922 = vadd.f32 0.0, %v1921
        %v1923 = vpop.f32.mrb[0].mxu0
        %v1924 = vpop.f32.mrb[0].mxu0
        %v1925 = vadd.f32 0.0, %v1924
        %v1926 = vpop.f32.mrb[0].mxu0
        %1927 = vdwg.mxu0
        %v1928 = vadd.f32 %v1767, %v1922
        %v1929 = vadd.f32 %v1768, %v1925
        %s1930 = scalar_lea.vmem [#allocation6], 384
        %v1931 = vld [vmem:[%s1930] sm:$0xf]
        %v1932 = vld [vmem:[%s1930 + $0x4] sm:$0xf]
        %v1933 = vld [vmem:[%s1930 + $0x8] sm:$0xf]
        %v1934 = vld [vmem:[%s1930 + $0xc] sm:$0xf]
        %v1935 = vld [vmem:[%s1930 + $0x10] sm:$0xf]
        %v1936 = vld [vmem:[%s1930 + $0x14] sm:$0xf]
        %v1937 = vld [vmem:[%s1930 + $0x18] sm:$0xf]
        %v1938 = vld [vmem:[%s1930 + $0x1c] sm:$0xf]
        %v1939 = vld [vmem:[%s1930 + $0x20] sm:$0xf]
        %v1940 = vld [vmem:[%s1930 + $0x24] sm:$0xf]
        %v1941 = vld [vmem:[%s1930 + $0x28] sm:$0xf]
        %v1942 = vld [vmem:[%s1930 + $0x2c] sm:$0xf]
        %v1943 = vld [vmem:[%s1930 + $0x30] sm:$0xf]
        %v1944 = vld [vmem:[%s1930 + $0x34] sm:$0xf]
        %v1945 = vld [vmem:[%s1930 + $0x38] sm:$0xf]
        %v1946 = vld [vmem:[%s1930 + $0x3c] sm:$0xf]
        %v1963 = vunpack.c.l.b16 %v1931
        %v1964 = vunpack.c.l.b16 %v1932
        %v1965 = vunpack.c.l.b16 %v1933
        %v1966 = vunpack.c.l.b16 %v1934
        %v1967 = vunpack.c.l.b16 %v1935
        %v1968 = vunpack.c.l.b16 %v1936
        %v1969 = vunpack.c.l.b16 %v1937
        %v1970 = vunpack.c.l.b16 %v1938
        %v1971 = vunpack.c.l.b16 %v1939
        %v1972 = vunpack.c.l.b16 %v1940
        %v1973 = vunpack.c.l.b16 %v1941
        %v1974 = vunpack.c.l.b16 %v1942
        %v1975 = vunpack.c.l.b16 %v1943
        %v1976 = vunpack.c.l.b16 %v1944
        %v1977 = vunpack.c.l.b16 %v1945
        %v1978 = vunpack.c.l.b16 %v1946
        %v1979 = vpack.c.b16 %v1964, %v1963
        %v1980 = vpack.c.b16 %v1966, %v1965
        %v1981 = vpack.c.b16 %v1968, %v1967
        %v1982 = vpack.c.b16 %v1970, %v1969
        %v1983 = vpack.c.b16 %v1972, %v1971
        %v1984 = vpack.c.b16 %v1974, %v1973
        %v1985 = vpack.c.b16 %v1976, %v1975
        %v1986 = vpack.c.b16 %v1978, %v1977
        %1995 = vmatprep.subr.bf16.mxu0 0
        %1996 = vmatpush1.bf16.msra.mxu0 %v1979
        %1997 = vmatprep.subr.bf16.mxu0 0
        %1998 = vmatpush1.bf16.msra.mxu0 %v1980
        %1999 = vmatprep.subr.bf16.mxu0 0
        %2000 = vmatpush1.bf16.msra.mxu0 %v1981
        %2001 = vmatprep.subr.bf16.mxu0 0
        %2002 = vmatpush1.bf16.msra.mxu0 %v1982
        %2003 = vmatprep.subr.bf16.mxu0 0
        %2004 = vmatpush1.bf16.msra.mxu0 %v1983
        %2005 = vmatprep.subr.bf16.mxu0 0
        %2006 = vmatpush1.bf16.msra.mxu0 %v1984
        %2007 = vmatprep.subr.bf16.mxu0 0
        %2008 = vmatpush1.bf16.msra.mxu0 %v1985
        %2009 = vmatprep.subr.bf16.mxu0 0
        %2010 = vmatpush1.bf16.msra.mxu0 %v1986
        %2011 = vmatprep.subr.bf16.mxu0 0
        %2012 = vmatpush1.bf16.msra.mxu0 0
        %2013 = vmatprep.subr.bf16.mxu0 0
        %2014 = vmatpush1.bf16.msra.mxu0 0
        %2015 = vmatprep.subr.bf16.mxu0 0
        %2016 = vmatpush1.bf16.msra.mxu0 0
        %2017 = vmatprep.subr.bf16.mxu0 0
        %2018 = vmatpush1.bf16.msra.mxu0 0
        %2019 = vmatprep.subr.bf16.mxu0 0
        %2020 = vmatpush1.bf16.msra.mxu0 0
        %2021 = vmatprep.subr.bf16.mxu0 0
        %2022 = vmatpush1.bf16.msra.mxu0 0
        %2023 = vmatprep.subr.bf16.mxu0 0
        %2024 = vmatpush1.bf16.msra.mxu0 0
        %2025 = vmatprep.subr.bf16.mxu0 0
        %2026 = vmatpush1.bf16.msra.mxu0 0
        %2027 = vmatprep.mubr.bf16.mxu0 0
        %2028 = vmatmul.mubr.bf16.gmra.mrb[0].mxu0 %v968
        %v2029 = vpop.f32.mrb[0].mxu0
        %v2030 = vadd.f32 0.0, %v2029
        %v2031 = vpop.f32.mrb[0].mxu0
        %v2032 = vpop.f32.mrb[0].mxu0
        %v2033 = vadd.f32 0.0, %v2032
        %v2034 = vpop.f32.mrb[0].mxu0
        %2035 = vdwg.mxu0
        %v2036 = vpack.c.bf16 %v2033, %v2030
        %s2037 = scalar_lea.vmem [#allocation4], 48
        %v2038 = vld [vmem:[%s2037] sm:$0xf]
        %v2039 = vld [vmem:[%s2037 + $0x4] sm:$0xf]
        %v2042 = vunpack.c.l.b16 %v2038
        %v2043 = vunpack.c.l.b16 %v2039
        %v2044 = vpack.c.b16 %v2043, %v2042
        %v2046 = vsel %vm1192, %v2044, 0
        %2048 = vmatprep.subr.bf16.mxu0 0
        %2049 = vmatpush1.bf16.msra.mxu0 %v2036
        %2050 = vmatprep.subr.bf16.mxu0 0
        %2051 = vmatpush1.bf16.msra.mxu0 0
        %2052 = vmatprep.subr.bf16.mxu0 0
        %2053 = vmatpush1.bf16.msra.mxu0 0
        %2054 = vmatprep.subr.bf16.mxu0 0
        %2055 = vmatpush1.bf16.msra.mxu0 0
        %2056 = vmatprep.subr.bf16.mxu0 0
        %2057 = vmatpush1.bf16.msra.mxu0 0
        %2058 = vmatprep.subr.bf16.mxu0 0
        %2059 = vmatpush1.bf16.msra.mxu0 0
        %2060 = vmatprep.subr.bf16.mxu0 0
        %2061 = vmatpush1.bf16.msra.mxu0 0
        %2062 = vmatprep.subr.bf16.mxu0 0
        %2063 = vmatpush1.bf16.msra.mxu0 0
        %2064 = vmatprep.subr.bf16.mxu0 0
        %2065 = vmatpush1.bf16.msra.mxu0 0
        %2066 = vmatprep.subr.bf16.mxu0 0
        %2067 = vmatpush1.bf16.msra.mxu0 0
        %2068 = vmatprep.subr.bf16.mxu0 0
        %2069 = vmatpush1.bf16.msra.mxu0 0
        %2070 = vmatprep.subr.bf16.mxu0 0
        %2071 = vmatpush1.bf16.msra.mxu0 0
        %2072 = vmatprep.subr.bf16.mxu0 0
        %2073 = vmatpush1.bf16.msra.mxu0 0
        %2074 = vmatprep.subr.bf16.mxu0 0
        %2075 = vmatpush1.bf16.msra.mxu0 0
        %2076 = vmatprep.subr.bf16.mxu0 0
        %2077 = vmatpush1.bf16.msra.mxu0 0
        %2078 = vmatprep.subr.bf16.mxu0 0
        %2079 = vmatpush1.bf16.msra.mxu0 0
        %2080 = vmatprep.mubr.bf16.mxu0 0
        %2081 = vmatmul.mubr.bf16.gmra.mrb[0].mxu0 %v2046
        %v2082 = vpop.f32.mrb[0].mxu0
        %v2083 = vadd.f32 0.0, %v2082
        %v2084 = vpop.f32.mrb[0].mxu0
        %v2085 = vpop.f32.mrb[0].mxu0
        %v2086 = vadd.f32 0.0, %v2085
        %v2087 = vpop.f32.mrb[0].mxu0
        %2088 = vdwg.mxu0
        %v2089 = vadd.f32 %v1928, %v2083
        %v2090 = vadd.f32 %v1929, %v2086
        %s2091 = scalar_lea.vmem [#allocation6], 448
        %v2092 = vld [vmem:[%s2091] sm:$0xf]
        %v2093 = vld [vmem:[%s2091 + $0x4] sm:$0xf]
        %v2094 = vld [vmem:[%s2091 + $0x8] sm:$0xf]
        %v2095 = vld [vmem:[%s2091 + $0xc] sm:$0xf]
        %v2096 = vld [vmem:[%s2091 + $0x10] sm:$0xf]
        %v2097 = vld [vmem:[%s2091 + $0x14] sm:$0xf]
        %v2098 = vld [vmem:[%s2091 + $0x18] sm:$0xf]
        %v2099 = vld [vmem:[%s2091 + $0x1c] sm:$0xf]
        %v2100 = vld [vmem:[%s2091 + $0x20] sm:$0xf]
        %v2101 = vld [vmem:[%s2091 + $0x24] sm:$0xf]
        %v2102 = vld [vmem:[%s2091 + $0x28] sm:$0xf]
        %v2103 = vld [vmem:[%s2091 + $0x2c] sm:$0xf]
        %v2104 = vld [vmem:[%s2091 + $0x30] sm:$0xf]
        %v2105 = vld [vmem:[%s2091 + $0x34] sm:$0xf]
        %v2106 = vld [vmem:[%s2091 + $0x38] sm:$0xf]
        %v2107 = vld [vmem:[%s2091 + $0x3c] sm:$0xf]
        %v2124 = vunpack.c.l.b16 %v2092
        %v2125 = vunpack.c.l.b16 %v2093
        %v2126 = vunpack.c.l.b16 %v2094
        %v2127 = vunpack.c.l.b16 %v2095
        %v2128 = vunpack.c.l.b16 %v2096
        %v2129 = vunpack.c.l.b16 %v2097
        %v2130 = vunpack.c.l.b16 %v2098
        %v2131 = vunpack.c.l.b16 %v2099
        %v2132 = vunpack.c.l.b16 %v2100
        %v2133 = vunpack.c.l.b16 %v2101
        %v2134 = vunpack.c.l.b16 %v2102
        %v2135 = vunpack.c.l.b16 %v2103
        %v2136 = vunpack.c.l.b16 %v2104
        %v2137 = vunpack.c.l.b16 %v2105
        %v2138 = vunpack.c.l.b16 %v2106
        %v2139 = vunpack.c.l.b16 %v2107
        %v2140 = vpack.c.b16 %v2125, %v2124
        %v2141 = vpack.c.b16 %v2127, %v2126
        %v2142 = vpack.c.b16 %v2129, %v2128
        %v2143 = vpack.c.b16 %v2131, %v2130
        %v2144 = vpack.c.b16 %v2133, %v2132
        %v2145 = vpack.c.b16 %v2135, %v2134
        %v2146 = vpack.c.b16 %v2137, %v2136
        %v2147 = vpack.c.b16 %v2139, %v2138
        %2156 = vmatprep.subr.bf16.mxu0 0
        %2157 = vmatpush1.bf16.msra.mxu0 %v2140
        %2158 = vmatprep.subr.bf16.mxu0 0
        %2159 = vmatpush1.bf16.msra.mxu0 %v2141
        %2160 = vmatprep.subr.bf16.mxu0 0
        %2161 = vmatpush1.bf16.msra.mxu0 %v2142
        %2162 = vmatprep.subr.bf16.mxu0 0
        %2163 = vmatpush1.bf16.msra.mxu0 %v2143
        %2164 = vmatprep.subr.bf16.mxu0 0
        %2165 = vmatpush1.bf16.msra.mxu0 %v2144
        %2166 = vmatprep.subr.bf16.mxu0 0
        %2167 = vmatpush1.bf16.msra.mxu0 %v2145
        %2168 = vmatprep.subr.bf16.mxu0 0
        %2169 = vmatpush1.bf16.msra.mxu0 %v2146
        %2170 = vmatprep.subr.bf16.mxu0 0
        %2171 = vmatpush1.bf16.msra.mxu0 %v2147
        %2172 = vmatprep.subr.bf16.mxu0 0
        %2173 = vmatpush1.bf16.msra.mxu0 0
        %2174 = vmatprep.subr.bf16.mxu0 0
        %2175 = vmatpush1.bf16.msra.mxu0 0
        %2176 = vmatprep.subr.bf16.mxu0 0
        %2177 = vmatpush1.bf16.msra.mxu0 0
        %2178 = vmatprep.subr.bf16.mxu0 0
        %2179 = vmatpush1.bf16.msra.mxu0 0
        %2180 = vmatprep.subr.bf16.mxu0 0
        %2181 = vmatpush1.bf16.msra.mxu0 0
        %2182 = vmatprep.subr.bf16.mxu0 0
        %2183 = vmatpush1.bf16.msra.mxu0 0
        %2184 = vmatprep.subr.bf16.mxu0 0
        %2185 = vmatpush1.bf16.msra.mxu0 0
        %2186 = vmatprep.subr.bf16.mxu0 0
        %2187 = vmatpush1.bf16.msra.mxu0 0
        %2188 = vmatprep.mubr.bf16.mxu0 0
        %2189 = vmatmul.mubr.bf16.gmra.mrb[0].mxu0 %v968
        %v2190 = vpop.f32.mrb[0].mxu0
        %v2191 = vadd.f32 0.0, %v2190
        %v2192 = vpop.f32.mrb[0].mxu0
        %v2193 = vpop.f32.mrb[0].mxu0
        %v2194 = vadd.f32 0.0, %v2193
        %v2195 = vpop.f32.mrb[0].mxu0
        %2196 = vdwg.mxu0
        %v2197 = vpack.c.bf16 %v2194, %v2191
        %s2198 = scalar_lea.vmem [#allocation4], 56
        %v2199 = vld [vmem:[%s2198] sm:$0xf]
        %v2200 = vld [vmem:[%s2198 + $0x4] sm:$0xf]
        %v2203 = vunpack.c.l.b16 %v2199
        %v2204 = vunpack.c.l.b16 %v2200
        %v2205 = vpack.c.b16 %v2204, %v2203
        %v2207 = vsel %vm1192, %v2205, 0
        %2209 = vmatprep.subr.bf16.mxu0 0
        %2210 = vmatpush1.bf16.msra.mxu0 %v2197
        %2211 = vmatprep.subr.bf16.mxu0 0
        %2212 = vmatpush1.bf16.msra.mxu0 0
        %2213 = vmatprep.subr.bf16.mxu0 0
        %2214 = vmatpush1.bf16.msra.mxu0 0
        %2215 = vmatprep.subr.bf16.mxu0 0
        %2216 = vmatpush1.bf16.msra.mxu0 0
        %2217 = vmatprep.subr.bf16.mxu0 0
        %2218 = vmatpush1.bf16.msra.mxu0 0
        %2219 = vmatprep.subr.bf16.mxu0 0
        %2220 = vmatpush1.bf16.msra.mxu0 0
        %2221 = vmatprep.subr.bf16.mxu0 0
        %2222 = vmatpush1.bf16.msra.mxu0 0
        %2223 = vmatprep.subr.bf16.mxu0 0
        %2224 = vmatpush1.bf16.msra.mxu0 0
        %2225 = vmatprep.subr.bf16.mxu0 0
        %2226 = vmatpush1.bf16.msra.mxu0 0
        %2227 = vmatprep.subr.bf16.mxu0 0
        %2228 = vmatpush1.bf16.msra.mxu0 0
        %2229 = vmatprep.subr.bf16.mxu0 0
        %2230 = vmatpush1.bf16.msra.mxu0 0
        %2231 = vmatprep.subr.bf16.mxu0 0
        %2232 = vmatpush1.bf16.msra.mxu0 0
        %2233 = vmatprep.subr.bf16.mxu0 0
        %2234 = vmatpush1.bf16.msra.mxu0 0
        %2235 = vmatprep.subr.bf16.mxu0 0
        %2236 = vmatpush1.bf16.msra.mxu0 0
        %2237 = vmatprep.subr.bf16.mxu0 0
        %2238 = vmatpush1.bf16.msra.mxu0 0
        %2239 = vmatprep.subr.bf16.mxu0 0
        %2240 = vmatpush1.bf16.msra.mxu0 0
        %2241 = vmatprep.mubr.bf16.mxu0 0
        %2242 = vmatmul.mubr.bf16.gmra.mrb[0].mxu0 %v2207
        %v2243 = vpop.f32.mrb[0].mxu0
        %v2244 = vadd.f32 0.0, %v2243
        %v2245 = vpop.f32.mrb[0].mxu0
        %v2246 = vpop.f32.mrb[0].mxu0
        %v2247 = vadd.f32 0.0, %v2246
        %v2248 = vpop.f32.mrb[0].mxu0
        %2249 = vdwg.mxu0
        %v2250 = vadd.f32 %v2089, %v2244
        %v2251 = vadd.f32 %v2090, %v2247
        %s2252 = scalar_lea.vmem [#allocation6], 512
        %v2253 = vld [vmem:[%s2252] sm:$0xf]
        %v2254 = vld [vmem:[%s2252 + $0x4] sm:$0xf]
        %v2255 = vld [vmem:[%s2252 + $0x8] sm:$0xf]
        %v2256 = vld [vmem:[%s2252 + $0xc] sm:$0xf]
        %v2257 = vld [vmem:[%s2252 + $0x10] sm:$0xf]
        %v2258 = vld [vmem:[%s2252 + $0x14] sm:$0xf]
        %v2259 = vld [vmem:[%s2252 + $0x18] sm:$0xf]
        %v2260 = vld [vmem:[%s2252 + $0x1c] sm:$0xf]
        %v2261 = vld [vmem:[%s2252 + $0x20] sm:$0xf]
        %v2262 = vld [vmem:[%s2252 + $0x24] sm:$0xf]
        %v2263 = vld [vmem:[%s2252 + $0x28] sm:$0xf]
        %v2264 = vld [vmem:[%s2252 + $0x2c] sm:$0xf]
        %v2265 = vld [vmem:[%s2252 + $0x30] sm:$0xf]
        %v2266 = vld [vmem:[%s2252 + $0x34] sm:$0xf]
        %v2267 = vld [vmem:[%s2252 + $0x38] sm:$0xf]
        %v2268 = vld [vmem:[%s2252 + $0x3c] sm:$0xf]
        %v2285 = vunpack.c.l.b16 %v2253
        %v2286 = vunpack.c.l.b16 %v2254
        %v2287 = vunpack.c.l.b16 %v2255
        %v2288 = vunpack.c.l.b16 %v2256
        %v2289 = vunpack.c.l.b16 %v2257
        %v2290 = vunpack.c.l.b16 %v2258
        %v2291 = vunpack.c.l.b16 %v2259
        %v2292 = vunpack.c.l.b16 %v2260
        %v2293 = vunpack.c.l.b16 %v2261
        %v2294 = vunpack.c.l.b16 %v2262
        %v2295 = vunpack.c.l.b16 %v2263
        %v2296 = vunpack.c.l.b16 %v2264
        %v2297 = vunpack.c.l.b16 %v2265
        %v2298 = vunpack.c.l.b16 %v2266
        %v2299 = vunpack.c.l.b16 %v2267
        %v2300 = vunpack.c.l.b16 %v2268
        %v2301 = vpack.c.b16 %v2286, %v2285
        %v2302 = vpack.c.b16 %v2288, %v2287
        %v2303 = vpack.c.b16 %v2290, %v2289
        %v2304 = vpack.c.b16 %v2292, %v2291
        %v2305 = vpack.c.b16 %v2294, %v2293
        %v2306 = vpack.c.b16 %v2296, %v2295
        %v2307 = vpack.c.b16 %v2298, %v2297
        %v2308 = vpack.c.b16 %v2300, %v2299
        %2317 = vmatprep.subr.bf16.mxu0 0
        %2318 = vmatpush1.bf16.msra.mxu0 %v2301
        %2319 = vmatprep.subr.bf16.mxu0 0
        %2320 = vmatpush1.bf16.msra.mxu0 %v2302
        %2321 = vmatprep.subr.bf16.mxu0 0
        %2322 = vmatpush1.bf16.msra.mxu0 %v2303
        %2323 = vmatprep.subr.bf16.mxu0 0
        %2324 = vmatpush1.bf16.msra.mxu0 %v2304
        %2325 = vmatprep.subr.bf16.mxu0 0
        %2326 = vmatpush1.bf16.msra.mxu0 %v2305
        %2327 = vmatprep.subr.bf16.mxu0 0
        %2328 = vmatpush1.bf16.msra.mxu0 %v2306
        %2329 = vmatprep.subr.bf16.mxu0 0
        %2330 = vmatpush1.bf16.msra.mxu0 %v2307
        %2331 = vmatprep.subr.bf16.mxu0 0
        %2332 = vmatpush1.bf16.msra.mxu0 %v2308
        %2333 = vmatprep.subr.bf16.mxu0 0
        %2334 = vmatpush1.bf16.msra.mxu0 0
        %2335 = vmatprep.subr.bf16.mxu0 0
        %2336 = vmatpush1.bf16.msra.mxu0 0
        %2337 = vmatprep.subr.bf16.mxu0 0
        %2338 = vmatpush1.bf16.msra.mxu0 0
        %2339 = vmatprep.subr.bf16.mxu0 0
        %2340 = vmatpush1.bf16.msra.mxu0 0
        %2341 = vmatprep.subr.bf16.mxu0 0
        %2342 = vmatpush1.bf16.msra.mxu0 0
        %2343 = vmatprep.subr.bf16.mxu0 0
        %2344 = vmatpush1.bf16.msra.mxu0 0
        %2345 = vmatprep.subr.bf16.mxu0 0
        %2346 = vmatpush1.bf16.msra.mxu0 0
        %2347 = vmatprep.subr.bf16.mxu0 0
        %2348 = vmatpush1.bf16.msra.mxu0 0
        %2349 = vmatprep.mubr.bf16.mxu0 0
        %2350 = vmatmul.mubr.bf16.gmra.mrb[0].mxu0 %v968
        %v2351 = vpop.f32.mrb[0].mxu0
        %v2352 = vadd.f32 0.0, %v2351
        %v2353 = vpop.f32.mrb[0].mxu0
        %v2354 = vpop.f32.mrb[0].mxu0
        %v2355 = vadd.f32 0.0, %v2354
        %v2356 = vpop.f32.mrb[0].mxu0
        %2357 = vdwg.mxu0
        %v2358 = vpack.c.bf16 %v2355, %v2352
        %s2359 = scalar_lea.vmem [#allocation4], 64
        %v2360 = vld [vmem:[%s2359] sm:$0xf]
        %v2361 = vld [vmem:[%s2359 + $0x4] sm:$0xf]
        %v2364 = vunpack.c.l.b16 %v2360
        %v2365 = vunpack.c.l.b16 %v2361
        %v2366 = vpack.c.b16 %v2365, %v2364
        %v2368 = vsel %vm1192, %v2366, 0
        %2370 = vmatprep.subr.bf16.mxu0 0
        %2371 = vmatpush1.bf16.msra.mxu0 %v2358
        %2372 = vmatprep.subr.bf16.mxu0 0
        %2373 = vmatpush1.bf16.msra.mxu0 0
        %2374 = vmatprep.subr.bf16.mxu0 0
        %2375 = vmatpush1.bf16.msra.mxu0 0
        %2376 = vmatprep.subr.bf16.mxu0 0
        %2377 = vmatpush1.bf16.msra.mxu0 0
        %2378 = vmatprep.subr.bf16.mxu0 0
        %2379 = vmatpush1.bf16.msra.mxu0 0
        %2380 = vmatprep.subr.bf16.mxu0 0
        %2381 = vmatpush1.bf16.msra.mxu0 0
        %2382 = vmatprep.subr.bf16.mxu0 0
        %2383 = vmatpush1.bf16.msra.mxu0 0
        %2384 = vmatprep.subr.bf16.mxu0 0
        %2385 = vmatpush1.bf16.msra.mxu0 0
        %2386 = vmatprep.subr.bf16.mxu0 0
        %2387 = vmatpush1.bf16.msra.mxu0 0
        %2388 = vmatprep.subr.bf16.mxu0 0
        %2389 = vmatpush1.bf16.msra.mxu0 0
        %2390 = vmatprep.subr.bf16.mxu0 0
        %2391 = vmatpush1.bf16.msra.mxu0 0
        %2392 = vmatprep.subr.bf16.mxu0 0
        %2393 = vmatpush1.bf16.msra.mxu0 0
        %2394 = vmatprep.subr.bf16.mxu0 0
        %2395 = vmatpush1.bf16.msra.mxu0 0
        %2396 = vmatprep.subr.bf16.mxu0 0
        %2397 = vmatpush1.bf16.msra.mxu0 0
        %2398 = vmatprep.subr.bf16.mxu0 0
        %2399 = vmatpush1.bf16.msra.mxu0 0
        %2400 = vmatprep.subr.bf16.mxu0 0
        %2401 = vmatpush1.bf16.msra.mxu0 0
        %2402 = vmatprep.mubr.bf16.mxu0 0
        %2403 = vmatmul.mubr.bf16.gmra.mrb[0].mxu0 %v2368
        %v2404 = vpop.f32.mrb[0].mxu0
        %v2405 = vadd.f32 0.0, %v2404
        %v2406 = vpop.f32.mrb[0].mxu0
        %v2407 = vpop.f32.mrb[0].mxu0
        %v2408 = vadd.f32 0.0, %v2407
        %v2409 = vpop.f32.mrb[0].mxu0
        %2410 = vdwg.mxu0
        %v2411 = vadd.f32 %v2250, %v2405
        %v2412 = vadd.f32 %v2251, %v2408
        %v2413 = vld [vmem:[%s4] sm:$0xff]
        %v2414 = vld [vmem:[%s4 + $0x8] sm:$0xff]
        %2416 = vset.pattern.permute.xlu0 0
        %2417 = vperm.xlu0 %2416, %v2413
        %v2418 = vpop.permute.xlu0 %2417
        %2421 = vset.pattern.permute.xlu0 0
        %2422 = vperm.xlu0 %2421, %v2414
        %v2423 = vpop.permute.xlu0 %2422
        %v2425 = vadd.f32 %v2411, %v2418
        %v2426 = vadd.f32 %v2412, %v2423
        %v2427 = vmax.f32 %v2425, 0.0
        %v2428 = vmax.f32 %v2426, 0.0
        %v2429 = vpack.c.bf16 %v2428, %v2427
        %v2430 = vld [vmem:[#allocation7] sm:$0xf]
        %v2431 = vld [vmem:[#allocation7 + $0x4] sm:$0xf]
        %v2432 = vld [vmem:[#allocation7 + $0x8] sm:$0xf]
        %v2433 = vld [vmem:[#allocation7 + $0xc] sm:$0xf]
        %v2434 = vld [vmem:[#allocation7 + $0x10] sm:$0xf]
        %v2435 = vld [vmem:[#allocation7 + $0x14] sm:$0xf]
        %v2436 = vld [vmem:[#allocation7 + $0x18] sm:$0xf]
        %v2437 = vld [vmem:[#allocation7 + $0x1c] sm:$0xf]
        %v2438 = vld [vmem:[#allocation7 + $0x20] sm:$0xf]
        %v2439 = vld [vmem:[#allocation7 + $0x24] sm:$0xf]
        %v2440 = vld [vmem:[#allocation7 + $0x28] sm:$0xf]
        %v2441 = vld [vmem:[#allocation7 + $0x2c] sm:$0xf]
        %v2442 = vld [vmem:[#allocation7 + $0x30] sm:$0xf]
        %v2443 = vld [vmem:[#allocation7 + $0x34] sm:$0xf]
        %v2444 = vld [vmem:[#allocation7 + $0x38] sm:$0xf]
        %v2445 = vld [vmem:[#allocation7 + $0x3c] sm:$0xf]
        %v2446 = vld [vmem:[#allocation9] sm:$0x1]
        %v2448 = vlaneseq
        %v2449 = vshrl.u32 %v2448, 7
        %v2450 = vsub.s32 0, %v2449
        %v2451 = vrot.slane %v2446, %v2450
        %v2469 = vunpack.c.l.b16 %v2430
        %v2470 = vunpack.c.l.b16 %v2431
        %v2471 = vunpack.c.l.b16 %v2432
        %v2472 = vunpack.c.l.b16 %v2433
        %v2473 = vunpack.c.l.b16 %v2434
        %v2474 = vunpack.c.l.b16 %v2435
        %v2475 = vunpack.c.l.b16 %v2436
        %v2476 = vunpack.c.l.b16 %v2437
        %v2477 = vunpack.c.l.b16 %v2438
        %v2478 = vunpack.c.l.b16 %v2439
        %v2479 = vunpack.c.l.b16 %v2440
        %v2480 = vunpack.c.l.b16 %v2441
        %v2481 = vunpack.c.l.b16 %v2442
        %v2482 = vunpack.c.l.b16 %v2443
        %v2483 = vunpack.c.l.b16 %v2444
        %v2484 = vunpack.c.l.b16 %v2445
        %v2485 = vpack.c.b16 %v2470, %v2469
        %v2486 = vpack.c.b16 %v2472, %v2471
        %v2487 = vpack.c.b16 %v2474, %v2473
        %v2488 = vpack.c.b16 %v2476, %v2475
        %v2489 = vpack.c.b16 %v2478, %v2477
        %v2490 = vpack.c.b16 %v2480, %v2479
        %v2491 = vpack.c.b16 %v2482, %v2481
        %v2492 = vpack.c.b16 %v2484, %v2483
        %2501 = vmatprep.subr.bf16.mxu0 0
        %2502 = vmatpush1.bf16.msra.mxu0 %v2485
        %2503 = vmatprep.subr.bf16.mxu0 0
        %2504 = vmatpush1.bf16.msra.mxu0 %v2486
        %2505 = vmatprep.subr.bf16.mxu0 0
        %2506 = vmatpush1.bf16.msra.mxu0 %v2487
        %2507 = vmatprep.subr.bf16.mxu0 0
        %2508 = vmatpush1.bf16.msra.mxu0 %v2488
        %2509 = vmatprep.subr.bf16.mxu0 0
        %2510 = vmatpush1.bf16.msra.mxu0 %v2489
        %2511 = vmatprep.subr.bf16.mxu0 0
        %2512 = vmatpush1.bf16.msra.mxu0 %v2490
        %2513 = vmatprep.subr.bf16.mxu0 0
        %2514 = vmatpush1.bf16.msra.mxu0 %v2491
        %2515 = vmatprep.subr.bf16.mxu0 0
        %2516 = vmatpush1.bf16.msra.mxu0 %v2492
        %2517 = vmatprep.subr.bf16.mxu0 0
        %2518 = vmatpush1.bf16.msra.mxu0 0
        %2519 = vmatprep.subr.bf16.mxu0 0
        %2520 = vmatpush1.bf16.msra.mxu0 0
        %2521 = vmatprep.subr.bf16.mxu0 0
        %2522 = vmatpush1.bf16.msra.mxu0 0
        %2523 = vmatprep.subr.bf16.mxu0 0
        %2524 = vmatpush1.bf16.msra.mxu0 0
        %2525 = vmatprep.subr.bf16.mxu0 0
        %2526 = vmatpush1.bf16.msra.mxu0 0
        %2527 = vmatprep.subr.bf16.mxu0 0
        %2528 = vmatpush1.bf16.msra.mxu0 0
        %2529 = vmatprep.subr.bf16.mxu0 0
        %2530 = vmatpush1.bf16.msra.mxu0 0
        %2531 = vmatprep.subr.bf16.mxu0 0
        %2532 = vmatpush1.bf16.msra.mxu0 0
        %2533 = vmatprep.mubr.bf16.mxu0 0
        %2534 = vmatmul.mubr.bf16.gmra.mrb[0].mxu0 %v2429
        %v2535 = vpop.f32.mrb[0].mxu0
        %v2536 = vadd.f32 %v2451, %v2535
        %v2537 = vpop.f32.mrb[0].mxu0
        %v2538 = vpop.f32.mrb[0].mxu0
        %v2539 = vadd.f32 %v2451, %v2538
        %v2540 = vpop.f32.mrb[0].mxu0
        %2541 = vdwg.mxu0
        %v2542 = vld [vmem:[#allocation10] sm:$0xf]
        %v2543 = vld [vmem:[#allocation10 + $0x4] sm:$0xf]
        %v2544 = vld [vmem:[#allocation10 + $0x8] sm:$0xf]
        %v2545 = vld [vmem:[#allocation10 + $0xc] sm:$0xf]
        %v2546 = vld [vmem:[#allocation10 + $0x10] sm:$0xf]
        %v2547 = vld [vmem:[#allocation10 + $0x14] sm:$0xf]
        %v2548 = vld [vmem:[#allocation10 + $0x18] sm:$0xf]
        %v2549 = vld [vmem:[#allocation10 + $0x1c] sm:$0xf]
        %v2550 = vld [vmem:[#allocation10 + $0x20] sm:$0xf]
        %v2551 = vld [vmem:[#allocation10 + $0x24] sm:$0xf]
        %v2552 = vld [vmem:[#allocation10 + $0x28] sm:$0xf]
        %v2553 = vld [vmem:[#allocation10 + $0x2c] sm:$0xf]
        %v2554 = vld [vmem:[#allocation10 + $0x30] sm:$0xf]
        %v2555 = vld [vmem:[#allocation10 + $0x34] sm:$0xf]
        %v2556 = vld [vmem:[#allocation10 + $0x38] sm:$0xf]
        %v2557 = vld [vmem:[#allocation10 + $0x3c] sm:$0xf]
        %v2558 = vld [vmem:[#allocation12] sm:$0x1]
        %v2560 = vlaneseq
        %v2561 = vshrl.u32 %v2560, 7
        %v2562 = vsub.s32 0, %v2561
        %v2563 = vrot.slane %v2558, %v2562
        %v2581 = vunpack.c.l.b16 %v2542
        %v2582 = vunpack.c.l.b16 %v2543
        %v2583 = vunpack.c.l.b16 %v2544
        %v2584 = vunpack.c.l.b16 %v2545
        %v2585 = vunpack.c.l.b16 %v2546
        %v2586 = vunpack.c.l.b16 %v2547
        %v2587 = vunpack.c.l.b16 %v2548
        %v2588 = vunpack.c.l.b16 %v2549
        %v2589 = vunpack.c.l.b16 %v2550
        %v2590 = vunpack.c.l.b16 %v2551
        %v2591 = vunpack.c.l.b16 %v2552
        %v2592 = vunpack.c.l.b16 %v2553
        %v2593 = vunpack.c.l.b16 %v2554
        %v2594 = vunpack.c.l.b16 %v2555
        %v2595 = vunpack.c.l.b16 %v2556
        %v2596 = vunpack.c.l.b16 %v2557
        %v2597 = vpack.c.b16 %v2582, %v2581
        %v2598 = vpack.c.b16 %v2584, %v2583
        %v2599 = vpack.c.b16 %v2586, %v2585
        %v2600 = vpack.c.b16 %v2588, %v2587
        %v2601 = vpack.c.b16 %v2590, %v2589
        %v2602 = vpack.c.b16 %v2592, %v2591
        %v2603 = vpack.c.b16 %v2594, %v2593
        %v2604 = vpack.c.b16 %v2596, %v2595
        %2613 = vmatprep.subr.bf16.mxu0 0
        %2614 = vmatpush1.bf16.msra.mxu0 %v2597
        %2615 = vmatprep.subr.bf16.mxu0 0
        %2616 = vmatpush1.bf16.msra.mxu0 %v2598
        %2617 = vmatprep.subr.bf16.mxu0 0
        %2618 = vmatpush1.bf16.msra.mxu0 %v2599
        %2619 = vmatprep.subr.bf16.mxu0 0
        %2620 = vmatpush1.bf16.msra.mxu0 %v2600
        %2621 = vmatprep.subr.bf16.mxu0 0
        %2622 = vmatpush1.bf16.msra.mxu0 %v2601
        %2623 = vmatprep.subr.bf16.mxu0 0
        %2624 = vmatpush1.bf16.msra.mxu0 %v2602
        %2625 = vmatprep.subr.bf16.mxu0 0
        %2626 = vmatpush1.bf16.msra.mxu0 %v2603
        %2627 = vmatprep.subr.bf16.mxu0 0
        %2628 = vmatpush1.bf16.msra.mxu0 %v2604
        %2629 = vmatprep.subr.bf16.mxu0 0
        %2630 = vmatpush1.bf16.msra.mxu0 0
        %2631 = vmatprep.subr.bf16.mxu0 0
        %2632 = vmatpush1.bf16.msra.mxu0 0
        %2633 = vmatprep.subr.bf16.mxu0 0
        %2634 = vmatpush1.bf16.msra.mxu0 0
        %2635 = vmatprep.subr.bf16.mxu0 0
        %2636 = vmatpush1.bf16.msra.mxu0 0
        %2637 = vmatprep.subr.bf16.mxu0 0
        %2638 = vmatpush1.bf16.msra.mxu0 0
        %2639 = vmatprep.subr.bf16.mxu0 0
        %2640 = vmatpush1.bf16.msra.mxu0 0
        %2641 = vmatprep.subr.bf16.mxu0 0
        %2642 = vmatpush1.bf16.msra.mxu0 0
        %2643 = vmatprep.subr.bf16.mxu0 0
        %2644 = vmatpush1.bf16.msra.mxu0 0
        %2645 = vmatprep.mubr.bf16.mxu0 0
        %2646 = vmatmul.mubr.bf16.gmra.mrb[0].mxu0 %v2429
        %v2647 = vpop.f32.mrb[0].mxu0
        %v2648 = vadd.f32 %v2563, %v2647
        %v2649 = vpop.f32.mrb[0].mxu0
        %v2650 = vpop.f32.mrb[0].mxu0
        %v2651 = vadd.f32 %v2563, %v2650
        %v2652 = vpop.f32.mrb[0].mxu0
        %2653 = vdwg.mxu0
        %v2654 = vmax.f32 %v2648, -30.0
        %v2655 = vmax.f32 %v2651, -30.0
        %v2656 = vmin.f32 %v2654, 20.0
        %v2657 = vmin.f32 %v2655, 20.0
        %v2658 = vmul.f32 %v2656, 0.5
        %v2659 = vmul.f32 %v2657, 0.5
        %v2660 = vmul.f32 %v2658, 1.442695
        %v2661 = vpow.pop %v2660
        %v2662 = vmul.f32 %v2659, 1.442695
        %v2663 = vpow.pop %v2662
        %v2664 = vld [vmem:[%s869] sm:$0xff]
        %v2665 = vld [vmem:[%s869 + $0x8] sm:$0xff]
        %v2666 = vmul.f32 %v2664, %v2661
        %v2667 = vmul.f32 %v2665, %v2663
        %v2668 = vadd.f32 %v2536, %v2666
        %v2669 = vadd.f32 %v2539, %v2667
        %v2670 = vpack.c.bf16 %v2669, %v2668
        %v2671 = vld [vmem:[#allocation13] sm:$0xf]
        %v2672 = vld [vmem:[#allocation13 + $0x4] sm:$0xf]
        %v2673 = vld [vmem:[#allocation13 + $0x8] sm:$0xf]
        %v2674 = vld [vmem:[#allocation13 + $0xc] sm:$0xf]
        %v2675 = vld [vmem:[#allocation13 + $0x10] sm:$0xf]
        %v2676 = vld [vmem:[#allocation13 + $0x14] sm:$0xf]
        %v2677 = vld [vmem:[#allocation13 + $0x18] sm:$0xf]
        %v2678 = vld [vmem:[#allocation13 + $0x1c] sm:$0xf]
        %v2679 = vld [vmem:[#allocation13 + $0x20] sm:$0xf]
        %v2680 = vld [vmem:[#allocation13 + $0x24] sm:$0xf]
        %v2681 = vld [vmem:[#allocation13 + $0x28] sm:$0xf]
        %v2682 = vld [vmem:[#allocation13 + $0x2c] sm:$0xf]
        %v2683 = vld [vmem:[#allocation13 + $0x30] sm:$0xf]
        %v2684 = vld [vmem:[#allocation13 + $0x34] sm:$0xf]
        %v2685 = vld [vmem:[#allocation13 + $0x38] sm:$0xf]
        %v2686 = vld [vmem:[#allocation13 + $0x3c] sm:$0xf]
        %v2687 = vld [vmem:[#allocation15] sm:$0x1]
        %v2689 = vlaneseq
        %v2690 = vshrl.u32 %v2689, 7
        %v2691 = vsub.s32 0, %v2690
        %v2692 = vrot.slane %v2687, %v2691
        %v2710 = vunpack.c.l.b16 %v2671
        %v2711 = vunpack.c.l.b16 %v2672
        %v2712 = vunpack.c.l.b16 %v2673
        %v2713 = vunpack.c.l.b16 %v2674
        %v2714 = vunpack.c.l.b16 %v2675
        %v2715 = vunpack.c.l.b16 %v2676
        %v2716 = vunpack.c.l.b16 %v2677
        %v2717 = vunpack.c.l.b16 %v2678
        %v2718 = vunpack.c.l.b16 %v2679
        %v2719 = vunpack.c.l.b16 %v2680
        %v2720 = vunpack.c.l.b16 %v2681
        %v2721 = vunpack.c.l.b16 %v2682
        %v2722 = vunpack.c.l.b16 %v2683
        %v2723 = vunpack.c.l.b16 %v2684
        %v2724 = vunpack.c.l.b16 %v2685
        %v2725 = vunpack.c.l.b16 %v2686
        %v2726 = vpack.c.b16 %v2711, %v2710
        %v2727 = vpack.c.b16 %v2713, %v2712
        %v2728 = vpack.c.b16 %v2715, %v2714
        %v2729 = vpack.c.b16 %v2717, %v2716
        %v2730 = vpack.c.b16 %v2719, %v2718
        %v2731 = vpack.c.b16 %v2721, %v2720
        %v2732 = vpack.c.b16 %v2723, %v2722
        %v2733 = vpack.c.b16 %v2725, %v2724
        %2742 = vmatprep.subr.bf16.mxu0 0
        %2743 = vmatpush1.bf16.msra.mxu0 %v2726
        %2744 = vmatprep.subr.bf16.mxu0 0
        %2745 = vmatpush1.bf16.msra.mxu0 %v2727
        %2746 = vmatprep.subr.bf16.mxu0 0
        %2747 = vmatpush1.bf16.msra.mxu0 %v2728
        %2748 = vmatprep.subr.bf16.mxu0 0
        %2749 = vmatpush1.bf16.msra.mxu0 %v2729
        %2750 = vmatprep.subr.bf16.mxu0 0
        %2751 = vmatpush1.bf16.msra.mxu0 %v2730
        %2752 = vmatprep.subr.bf16.mxu0 0
        %2753 = vmatpush1.bf16.msra.mxu0 %v2731
        %2754 = vmatprep.subr.bf16.mxu0 0
        %2755 = vmatpush1.bf16.msra.mxu0 %v2732
        %2756 = vmatprep.subr.bf16.mxu0 0
        %2757 = vmatpush1.bf16.msra.mxu0 %v2733
        %2758 = vmatprep.subr.bf16.mxu0 0
        %2759 = vmatpush1.bf16.msra.mxu0 0
        %2760 = vmatprep.subr.bf16.mxu0 0
        %2761 = vmatpush1.bf16.msra.mxu0 0
        %2762 = vmatprep.subr.bf16.mxu0 0
        %2763 = vmatpush1.bf16.msra.mxu0 0
        %2764 = vmatprep.subr.bf16.mxu0 0
        %2765 = vmatpush1.bf16.msra.mxu0 0
        %2766 = vmatprep.subr.bf16.mxu0 0
        %2767 = vmatpush1.bf16.msra.mxu0 0
        %2768 = vmatprep.subr.bf16.mxu0 0
        %2769 = vmatpush1.bf16.msra.mxu0 0
        %2770 = vmatprep.subr.bf16.mxu0 0
        %2771 = vmatpush1.bf16.msra.mxu0 0
        %2772 = vmatprep.subr.bf16.mxu0 0
        %2773 = vmatpush1.bf16.msra.mxu0 0
        %2774 = vmatprep.mubr.bf16.mxu0 0
        %2775 = vmatmul.mubr.bf16.gmra.mrb[0].mxu0 %v2670
        %v2776 = vpop.f32.mrb[0].mxu0
        %v2777 = vadd.f32 %v2692, %v2776
        %v2778 = vpop.f32.mrb[0].mxu0
        %v2779 = vpop.f32.mrb[0].mxu0
        %v2780 = vadd.f32 %v2692, %v2779
        %v2781 = vpop.f32.mrb[0].mxu0
        %2782 = vdwg.mxu0
        %v2783 = vpack.c.bf16 %v2780, %v2777
        %v2784 = vld [vmem:[#allocation18] sm:$0xf]
        %v2785 = vld [vmem:[#allocation18 + $0x4] sm:$0xf]
        %v2786 = vld [vmem:[#allocation18 + $0x8] sm:$0xf]
        %v2787 = vld [vmem:[#allocation18 + $0xc] sm:$0xf]
        %v2788 = vld [vmem:[#allocation18 + $0x10] sm:$0xf]
        %v2789 = vld [vmem:[#allocation18 + $0x14] sm:$0xf]
        %v2790 = vld [vmem:[#allocation18 + $0x18] sm:$0xf]
        %v2791 = vld [vmem:[#allocation18 + $0x1c] sm:$0xf]
        %v2792 = vld [vmem:[#allocation18 + $0x20] sm:$0xf]
        %v2793 = vld [vmem:[#allocation18 + $0x24] sm:$0xf]
        %v2794 = vld [vmem:[#allocation18 + $0x28] sm:$0xf]
        %v2795 = vld [vmem:[#allocation18 + $0x2c] sm:$0xf]
        %v2796 = vld [vmem:[#allocation18 + $0x30] sm:$0xf]
        %v2797 = vld [vmem:[#allocation18 + $0x34] sm:$0xf]
        %v2798 = vld [vmem:[#allocation18 + $0x38] sm:$0xf]
        %v2799 = vld [vmem:[#allocation18 + $0x3c] sm:$0xf]
        %v2816 = vunpack.c.l.b16 %v2784
        %v2817 = vunpack.c.l.b16 %v2785
        %v2818 = vunpack.c.l.b16 %v2786
        %v2819 = vunpack.c.l.b16 %v2787
        %v2820 = vunpack.c.l.b16 %v2788
        %v2821 = vunpack.c.l.b16 %v2789
        %v2822 = vunpack.c.l.b16 %v2790
        %v2823 = vunpack.c.l.b16 %v2791
        %v2824 = vunpack.c.l.b16 %v2792
        %v2825 = vunpack.c.l.b16 %v2793
        %v2826 = vunpack.c.l.b16 %v2794
        %v2827 = vunpack.c.l.b16 %v2795
        %v2828 = vunpack.c.l.b16 %v2796
        %v2829 = vunpack.c.l.b16 %v2797
        %v2830 = vunpack.c.l.b16 %v2798
        %v2831 = vunpack.c.l.b16 %v2799
        %v2832 = vpack.c.b16 %v2817, %v2816
        %v2833 = vpack.c.b16 %v2819, %v2818
        %v2834 = vpack.c.b16 %v2821, %v2820
        %v2835 = vpack.c.b16 %v2823, %v2822
        %v2836 = vpack.c.b16 %v2825, %v2824
        %v2837 = vpack.c.b16 %v2827, %v2826
        %v2838 = vpack.c.b16 %v2829, %v2828
        %v2839 = vpack.c.b16 %v2831, %v2830
        %2848 = vmatprep.subr.bf16.mxu0 0
        %2849 = vmatpush1.bf16.msra.mxu0 %v2832
        %2850 = vmatprep.subr.bf16.mxu0 0
        %2851 = vmatpush1.bf16.msra.mxu0 %v2833
        %2852 = vmatprep.subr.bf16.mxu0 0
        %2853 = vmatpush1.bf16.msra.mxu0 %v2834
        %2854 = vmatprep.subr.bf16.mxu0 0
        %2855 = vmatpush1.bf16.msra.mxu0 %v2835
        %2856 = vmatprep.subr.bf16.mxu0 0
        %2857 = vmatpush1.bf16.msra.mxu0 %v2836
        %2858 = vmatprep.subr.bf16.mxu0 0
        %2859 = vmatpush1.bf16.msra.mxu0 %v2837
        %2860 = vmatprep.subr.bf16.mxu0 0
        %2861 = vmatpush1.bf16.msra.mxu0 %v2838
        %2862 = vmatprep.subr.bf16.mxu0 0
        %2863 = vmatpush1.bf16.msra.mxu0 %v2839
        %2864 = vmatprep.subr.bf16.mxu0 0
        %2865 = vmatpush1.bf16.msra.mxu0 0
        %2866 = vmatprep.subr.bf16.mxu0 0
        %2867 = vmatpush1.bf16.msra.mxu0 0
        %2868 = vmatprep.subr.bf16.mxu0 0
        %2869 = vmatpush1.bf16.msra.mxu0 0
        %2870 = vmatprep.subr.bf16.mxu0 0
        %2871 = vmatpush1.bf16.msra.mxu0 0
        %2872 = vmatprep.subr.bf16.mxu0 0
        %2873 = vmatpush1.bf16.msra.mxu0 0
        %2874 = vmatprep.subr.bf16.mxu0 0
        %2875 = vmatpush1.bf16.msra.mxu0 0
        %2876 = vmatprep.subr.bf16.mxu0 0
        %2877 = vmatpush1.bf16.msra.mxu0 0
        %2878 = vmatprep.subr.bf16.mxu0 0
        %2879 = vmatpush1.bf16.msra.mxu0 0
        %2880 = vmatprep.mubr.bf16.mxu0 0
        %2881 = vmatmul.mubr.bf16.gmra.mrb[0].mxu0 %v2783
        %v2882 = vpop.f32.mrb[0].mxu0
        %v2883 = vadd.f32 0.0, %v2882
        %v2884 = vpop.f32.mrb[0].mxu0
        %v2885 = vpop.f32.mrb[0].mxu0
        %v2886 = vadd.f32 0.0, %v2885
        %v2887 = vpop.f32.mrb[0].mxu0
        %2888 = vdwg.mxu0
        %v2889 = vpack.c.bf16 %v2886, %v2883
        %v2890 = vld [vmem:[#allocation16] sm:$0xf]
        %v2891 = vld [vmem:[#allocation16 + $0x4] sm:$0xf]
        %s2892 = scalar_lea.vmem [#allocation18], 64
        %v2893 = vld [vmem:[%s2892] sm:$0xf]
        %v2894 = vld [vmem:[%s2892 + $0x4] sm:$0xf]
        %v2895 = vld [vmem:[%s2892 + $0x8] sm:$0xf]
        %v2896 = vld [vmem:[%s2892 + $0xc] sm:$0xf]
        %v2897 = vld [vmem:[%s2892 + $0x10] sm:$0xf]
        %v2898 = vld [vmem:[%s2892 + $0x14] sm:$0xf]
        %v2899 = vld [vmem:[%s2892 + $0x18] sm:$0xf]
        %v2900 = vld [vmem:[%s2892 + $0x1c] sm:$0xf]
        %v2901 = vld [vmem:[%s2892 + $0x20] sm:$0xf]
        %v2902 = vld [vmem:[%s2892 + $0x24] sm:$0xf]
        %v2903 = vld [vmem:[%s2892 + $0x28] sm:$0xf]
        %v2904 = vld [vmem:[%s2892 + $0x2c] sm:$0xf]
        %v2905 = vld [vmem:[%s2892 + $0x30] sm:$0xf]
        %v2906 = vld [vmem:[%s2892 + $0x34] sm:$0xf]
        %v2907 = vld [vmem:[%s2892 + $0x38] sm:$0xf]
        %v2908 = vld [vmem:[%s2892 + $0x3c] sm:$0xf]
        %v2925 = vunpack.c.l.b16 %v2893
        %v2926 = vunpack.c.l.b16 %v2894
        %v2927 = vunpack.c.l.b16 %v2895
        %v2928 = vunpack.c.l.b16 %v2896
        %v2929 = vunpack.c.l.b16 %v2897
        %v2930 = vunpack.c.l.b16 %v2898
        %v2931 = vunpack.c.l.b16 %v2899
        %v2932 = vunpack.c.l.b16 %v2900
        %v2933 = vunpack.c.l.b16 %v2901
        %v2934 = vunpack.c.l.b16 %v2902
        %v2935 = vunpack.c.l.b16 %v2903
        %v2936 = vunpack.c.l.b16 %v2904
        %v2937 = vunpack.c.l.b16 %v2905
        %v2938 = vunpack.c.l.b16 %v2906
        %v2939 = vunpack.c.l.b16 %v2907
        %v2940 = vunpack.c.l.b16 %v2908
        %v2941 = vpack.c.b16 %v2926, %v2925
        %v2942 = vpack.c.b16 %v2928, %v2927
        %v2943 = vpack.c.b16 %v2930, %v2929
        %v2944 = vpack.c.b16 %v2932, %v2931
        %v2945 = vpack.c.b16 %v2934, %v2933
        %v2946 = vpack.c.b16 %v2936, %v2935
        %v2947 = vpack.c.b16 %v2938, %v2937
        %v2948 = vpack.c.b16 %v2940, %v2939
        %2957 = vmatprep.subr.bf16.mxu0 0
        %2958 = vmatpush1.bf16.msra.mxu0 %v2941
        %2959 = vmatprep.subr.bf16.mxu0 0
        %2960 = vmatpush1.bf16.msra.mxu0 %v2942
        %2961 = vmatprep.subr.bf16.mxu0 0
        %2962 = vmatpush1.bf16.msra.mxu0 %v2943
        %2963 = vmatprep.subr.bf16.mxu0 0
        %2964 = vmatpush1.bf16.msra.mxu0 %v2944
        %2965 = vmatprep.subr.bf16.mxu0 0
        %2966 = vmatpush1.bf16.msra.mxu0 %v2945
        %2967 = vmatprep.subr.bf16.mxu0 0
        %2968 = vmatpush1.bf16.msra.mxu0 %v2946
        %2969 = vmatprep.subr.bf16.mxu0 0
        %2970 = vmatpush1.bf16.msra.mxu0 %v2947
        %2971 = vmatprep.subr.bf16.mxu0 0
        %2972 = vmatpush1.bf16.msra.mxu0 %v2948
        %2973 = vmatprep.subr.bf16.mxu0 0
        %2974 = vmatpush1.bf16.msra.mxu0 0
        %2975 = vmatprep.subr.bf16.mxu0 0
        %2976 = vmatpush1.bf16.msra.mxu0 0
        %2977 = vmatprep.subr.bf16.mxu0 0
        %2978 = vmatpush1.bf16.msra.mxu0 0
        %2979 = vmatprep.subr.bf16.mxu0 0
        %2980 = vmatpush1.bf16.msra.mxu0 0
        %2981 = vmatprep.subr.bf16.mxu0 0
        %2982 = vmatpush1.bf16.msra.mxu0 0
        %2983 = vmatprep.subr.bf16.mxu0 0
        %2984 = vmatpush1.bf16.msra.mxu0 0
        %2985 = vmatprep.subr.bf16.mxu0 0
        %2986 = vmatpush1.bf16.msra.mxu0 0
        %2987 = vmatprep.subr.bf16.mxu0 0
        %2988 = vmatpush1.bf16.msra.mxu0 0
        %2989 = vmatprep.mubr.bf16.mxu0 0
        %2990 = vmatmul.mubr.bf16.gmra.mrb[0].mxu0 %v2783
        %v2991 = vpop.f32.mrb[0].mxu0
        %v2992 = vadd.f32 0.0, %v2991
        %v2993 = vpop.f32.mrb[0].mxu0
        %v2994 = vpop.f32.mrb[0].mxu0
        %v2995 = vadd.f32 0.0, %v2994
        %v2996 = vpop.f32.mrb[0].mxu0
        %2997 = vdwg.mxu0
        %v2998 = vpack.c.bf16 %v2995, %v2992
        %s2999 = scalar_lea.vmem [#allocation16], 8
        %v3000 = vld [vmem:[%s2999] sm:$0xf]
        %v3001 = vld [vmem:[%s2999 + $0x4] sm:$0xf]
        %v3004 = vunpack.c.l.b16 %v3000
        %v3005 = vunpack.c.l.b16 %v3001
        %v3006 = vpack.c.b16 %v3005, %v3004
        %v3008 = vsel %vm1192, %v3006, 0
        %3010 = vmatprep.subr.bf16.mxu0 0
        %3011 = vmatpush1.bf16.msra.mxu0 %v2998
        %3012 = vmatprep.subr.bf16.mxu0 0
        %3013 = vmatpush1.bf16.msra.mxu0 0
        %3014 = vmatprep.subr.bf16.mxu0 0
        %3015 = vmatpush1.bf16.msra.mxu0 0
        %3016 = vmatprep.subr.bf16.mxu0 0
        %3017 = vmatpush1.bf16.msra.mxu0 0
        %3018 = vmatprep.subr.bf16.mxu0 0
        %3019 = vmatpush1.bf16.msra.mxu0 0
        %3020 = vmatprep.subr.bf16.mxu0 0
        %3021 = vmatpush1.bf16.msra.mxu0 0
        %3022 = vmatprep.subr.bf16.mxu0 0
        %3023 = vmatpush1.bf16.msra.mxu0 0
        %3024 = vmatprep.subr.bf16.mxu0 0
        %3025 = vmatpush1.bf16.msra.mxu0 0
        %3026 = vmatprep.subr.bf16.mxu0 0
        %3027 = vmatpush1.bf16.msra.mxu0 0
        %3028 = vmatprep.subr.bf16.mxu0 0
        %3029 = vmatpush1.bf16.msra.mxu0 0
        %3030 = vmatprep.subr.bf16.mxu0 0
        %3031 = vmatpush1.bf16.msra.mxu0 0
        %3032 = vmatprep.subr.bf16.mxu0 0
        %3033 = vmatpush1.bf16.msra.mxu0 0
        %3034 = vmatprep.subr.bf16.mxu0 0
        %3035 = vmatpush1.bf16.msra.mxu0 0
        %3036 = vmatprep.subr.bf16.mxu0 0
        %3037 = vmatpush1.bf16.msra.mxu0 0
        %3038 = vmatprep.subr.bf16.mxu0 0
        %3039 = vmatpush1.bf16.msra.mxu0 0
        %3040 = vmatprep.subr.bf16.mxu0 0
        %3041 = vmatpush1.bf16.msra.mxu0 0
        %3042 = vmatprep.mubr.bf16.mxu0 0
        %3043 = vmatmul.mubr.bf16.gmra.mrb[0].mxu0 %v3008
        %v3044 = vpop.f32.mrb[0].mxu0
        %v3045 = vadd.f32 0.0, %v3044
        %v3046 = vpop.f32.mrb[0].mxu0
        %v3047 = vpop.f32.mrb[0].mxu0
        %v3048 = vadd.f32 0.0, %v3047
        %v3049 = vpop.f32.mrb[0].mxu0
        %3050 = vdwg.mxu0
        %v3053 = vunpack.c.l.b16 %v2890
        %v3054 = vunpack.c.l.b16 %v2891
        %v3055 = vpack.c.b16 %v3054, %v3053
        %v3057 = vsel %vm1192, %v3055, 0
        %3059 = vmatprep.subr.bf16.mxu0 0
        %3060 = vmatpush1.bf16.msra.mxu0 %v2889
        %3061 = vmatprep.subr.bf16.mxu0 0
        %3062 = vmatpush1.bf16.msra.mxu0 0
        %3063 = vmatprep.subr.bf16.mxu0 0
        %3064 = vmatpush1.bf16.msra.mxu0 0
        %3065 = vmatprep.subr.bf16.mxu0 0
        %3066 = vmatpush1.bf16.msra.mxu0 0
        %3067 = vmatprep.subr.bf16.mxu0 0
        %3068 = vmatpush1.bf16.msra.mxu0 0
        %3069 = vmatprep.subr.bf16.mxu0 0
        %3070 = vmatpush1.bf16.msra.mxu0 0
        %3071 = vmatprep.subr.bf16.mxu0 0
        %3072 = vmatpush1.bf16.msra.mxu0 0
        %3073 = vmatprep.subr.bf16.mxu0 0
        %3074 = vmatpush1.bf16.msra.mxu0 0
        %3075 = vmatprep.subr.bf16.mxu0 0
        %3076 = vmatpush1.bf16.msra.mxu0 0
        %3077 = vmatprep.subr.bf16.mxu0 0
        %3078 = vmatpush1.bf16.msra.mxu0 0
        %3079 = vmatprep.subr.bf16.mxu0 0
        %3080 = vmatpush1.bf16.msra.mxu0 0
        %3081 = vmatprep.subr.bf16.mxu0 0
        %3082 = vmatpush1.bf16.msra.mxu0 0
        %3083 = vmatprep.subr.bf16.mxu0 0
        %3084 = vmatpush1.bf16.msra.mxu0 0
        %3085 = vmatprep.subr.bf16.mxu0 0
        %3086 = vmatpush1.bf16.msra.mxu0 0
        %3087 = vmatprep.subr.bf16.mxu0 0
        %3088 = vmatpush1.bf16.msra.mxu0 0
        %3089 = vmatprep.subr.bf16.mxu0 0
        %3090 = vmatpush1.bf16.msra.mxu0 0
        %3091 = vmatprep.mubr.bf16.mxu0 0
        %3092 = vmatmul.mubr.bf16.gmra.mrb[0].mxu0 %v3057
        %v3093 = vpop.f32.mrb[0].mxu0
        %v3094 = vadd.f32 %v3045, %v3093
        %v3095 = vpop.f32.mrb[0].mxu0
        %v3096 = vpop.f32.mrb[0].mxu0
        %v3097 = vadd.f32 %v3048, %v3096
        %v3098 = vpop.f32.mrb[0].mxu0
        %3099 = vdwg.mxu0
        %s3100 = scalar_lea.vmem [#allocation18], 128
        %v3101 = vld [vmem:[%s3100] sm:$0xf]
        %v3102 = vld [vmem:[%s3100 + $0x4] sm:$0xf]
        %v3103 = vld [vmem:[%s3100 + $0x8] sm:$0xf]
        %v3104 = vld [vmem:[%s3100 + $0xc] sm:$0xf]
        %v3105 = vld [vmem:[%s3100 + $0x10] sm:$0xf]
        %v3106 = vld [vmem:[%s3100 + $0x14] sm:$0xf]
        %v3107 = vld [vmem:[%s3100 + $0x18] sm:$0xf]
        %v3108 = vld [vmem:[%s3100 + $0x1c] sm:$0xf]
        %v3109 = vld [vmem:[%s3100 + $0x20] sm:$0xf]
        %v3110 = vld [vmem:[%s3100 + $0x24] sm:$0xf]
        %v3111 = vld [vmem:[%s3100 + $0x28] sm:$0xf]
        %v3112 = vld [vmem:[%s3100 + $0x2c] sm:$0xf]
        %v3113 = vld [vmem:[%s3100 + $0x30] sm:$0xf]
        %v3114 = vld [vmem:[%s3100 + $0x34] sm:$0xf]
        %v3115 = vld [vmem:[%s3100 + $0x38] sm:$0xf]
        %v3116 = vld [vmem:[%s3100 + $0x3c] sm:$0xf]
        %v3133 = vunpack.c.l.b16 %v3101
        %v3134 = vunpack.c.l.b16 %v3102
        %v3135 = vunpack.c.l.b16 %v3103
        %v3136 = vunpack.c.l.b16 %v3104
        %v3137 = vunpack.c.l.b16 %v3105
        %v3138 = vunpack.c.l.b16 %v3106
        %v3139 = vunpack.c.l.b16 %v3107
        %v3140 = vunpack.c.l.b16 %v3108
        %v3141 = vunpack.c.l.b16 %v3109
        %v3142 = vunpack.c.l.b16 %v3110
        %v3143 = vunpack.c.l.b16 %v3111
        %v3144 = vunpack.c.l.b16 %v3112
        %v3145 = vunpack.c.l.b16 %v3113
        %v3146 = vunpack.c.l.b16 %v3114
        %v3147 = vunpack.c.l.b16 %v3115
        %v3148 = vunpack.c.l.b16 %v3116
        %v3149 = vpack.c.b16 %v3134, %v3133
        %v3150 = vpack.c.b16 %v3136, %v3135
        %v3151 = vpack.c.b16 %v3138, %v3137
        %v3152 = vpack.c.b16 %v3140, %v3139
        %v3153 = vpack.c.b16 %v3142, %v3141
        %v3154 = vpack.c.b16 %v3144, %v3143
        %v3155 = vpack.c.b16 %v3146, %v3145
        %v3156 = vpack.c.b16 %v3148, %v3147
        %3165 = vmatprep.subr.bf16.mxu0 0
        %3166 = vmatpush1.bf16.msra.mxu0 %v3149
        %3167 = vmatprep.subr.bf16.mxu0 0
        %3168 = vmatpush1.bf16.msra.mxu0 %v3150
        %3169 = vmatprep.subr.bf16.mxu0 0
        %3170 = vmatpush1.bf16.msra.mxu0 %v3151
        %3171 = vmatprep.subr.bf16.mxu0 0
        %3172 = vmatpush1.bf16.msra.mxu0 %v3152
        %3173 = vmatprep.subr.bf16.mxu0 0
        %3174 = vmatpush1.bf16.msra.mxu0 %v3153
        %3175 = vmatprep.subr.bf16.mxu0 0
        %3176 = vmatpush1.bf16.msra.mxu0 %v3154
        %3177 = vmatprep.subr.bf16.mxu0 0
        %3178 = vmatpush1.bf16.msra.mxu0 %v3155
        %3179 = vmatprep.subr.bf16.mxu0 0
        %3180 = vmatpush1.bf16.msra.mxu0 %v3156
        %3181 = vmatprep.subr.bf16.mxu0 0
        %3182 = vmatpush1.bf16.msra.mxu0 0
        %3183 = vmatprep.subr.bf16.mxu0 0
        %3184 = vmatpush1.bf16.msra.mxu0 0
        %3185 = vmatprep.subr.bf16.mxu0 0
        %3186 = vmatpush1.bf16.msra.mxu0 0
        %3187 = vmatprep.subr.bf16.mxu0 0
        %3188 = vmatpush1.bf16.msra.mxu0 0
        %3189 = vmatprep.subr.bf16.mxu0 0
        %3190 = vmatpush1.bf16.msra.mxu0 0
        %3191 = vmatprep.subr.bf16.mxu0 0
        %3192 = vmatpush1.bf16.msra.mxu0 0
        %3193 = vmatprep.subr.bf16.mxu0 0
        %3194 = vmatpush1.bf16.msra.mxu0 0
        %3195 = vmatprep.subr.bf16.mxu0 0
        %3196 = vmatpush1.bf16.msra.mxu0 0
        %3197 = vmatprep.mubr.bf16.mxu0 0
        %3198 = vmatmul.mubr.bf16.gmra.mrb[0].mxu0 %v2783
        %v3199 = vpop.f32.mrb[0].mxu0
        %v3200 = vadd.f32 0.0, %v3199
        %v3201 = vpop.f32.mrb[0].mxu0
        %v3202 = vpop.f32.mrb[0].mxu0
        %v3203 = vadd.f32 0.0, %v3202
        %v3204 = vpop.f32.mrb[0].mxu0
        %3205 = vdwg.mxu0
        %v3206 = vpack.c.bf16 %v3203, %v3200
        %s3207 = scalar_lea.vmem [#allocation16], 16
        %v3208 = vld [vmem:[%s3207] sm:$0xf]
        %v3209 = vld [vmem:[%s3207 + $0x4] sm:$0xf]
        %v3212 = vunpack.c.l.b16 %v3208
        %v3213 = vunpack.c.l.b16 %v3209
        %v3214 = vpack.c.b16 %v3213, %v3212
        %v3216 = vsel %vm1192, %v3214, 0
        %3218 = vmatprep.subr.bf16.mxu0 0
        %3219 = vmatpush1.bf16.msra.mxu0 %v3206
        %3220 = vmatprep.subr.bf16.mxu0 0
        %3221 = vmatpush1.bf16.msra.mxu0 0
        %3222 = vmatprep.subr.bf16.mxu0 0
        %3223 = vmatpush1.bf16.msra.mxu0 0
        %3224 = vmatprep.subr.bf16.mxu0 0
        %3225 = vmatpush1.bf16.msra.mxu0 0
        %3226 = vmatprep.subr.bf16.mxu0 0
        %3227 = vmatpush1.bf16.msra.mxu0 0
        %3228 = vmatprep.subr.bf16.mxu0 0
        %3229 = vmatpush1.bf16.msra.mxu0 0
        %3230 = vmatprep.subr.bf16.mxu0 0
        %3231 = vmatpush1.bf16.msra.mxu0 0
        %3232 = vmatprep.subr.bf16.mxu0 0
        %3233 = vmatpush1.bf16.msra.mxu0 0
        %3234 = vmatprep.subr.bf16.mxu0 0
        %3235 = vmatpush1.bf16.msra.mxu0 0
        %3236 = vmatprep.subr.bf16.mxu0 0
        %3237 = vmatpush1.bf16.msra.mxu0 0
        %3238 = vmatprep.subr.bf16.mxu0 0
        %3239 = vmatpush1.bf16.msra.mxu0 0
        %3240 = vmatprep.subr.bf16.mxu0 0
        %3241 = vmatpush1.bf16.msra.mxu0 0
        %3242 = vmatprep.subr.bf16.mxu0 0
        %3243 = vmatpush1.bf16.msra.mxu0 0
        %3244 = vmatprep.subr.bf16.mxu0 0
        %3245 = vmatpush1.bf16.msra.mxu0 0
        %3246 = vmatprep.subr.bf16.mxu0 0
        %3247 = vmatpush1.bf16.msra.mxu0 0
        %3248 = vmatprep.subr.bf16.mxu0 0
        %3249 = vmatpush1.bf16.msra.mxu0 0
        %3250 = vmatprep.mubr.bf16.mxu0 0
        %3251 = vmatmul.mubr.bf16.gmra.mrb[0].mxu0 %v3216
        %v3252 = vpop.f32.mrb[0].mxu0
        %v3253 = vadd.f32 0.0, %v3252
        %v3254 = vpop.f32.mrb[0].mxu0
        %v3255 = vpop.f32.mrb[0].mxu0
        %v3256 = vadd.f32 0.0, %v3255
        %v3257 = vpop.f32.mrb[0].mxu0
        %3258 = vdwg.mxu0
        %v3259 = vadd.f32 %v3094, %v3253
        %v3260 = vadd.f32 %v3097, %v3256
        %s3261 = scalar_lea.vmem [#allocation18], 192
        %v3262 = vld [vmem:[%s3261] sm:$0xf]
        %v3263 = vld [vmem:[%s3261 + $0x4] sm:$0xf]
        %v3264 = vld [vmem:[%s3261 + $0x8] sm:$0xf]
        %v3265 = vld [vmem:[%s3261 + $0xc] sm:$0xf]
        %v3266 = vld [vmem:[%s3261 + $0x10] sm:$0xf]
        %v3267 = vld [vmem:[%s3261 + $0x14] sm:$0xf]
        %v3268 = vld [vmem:[%s3261 + $0x18] sm:$0xf]
        %v3269 = vld [vmem:[%s3261 + $0x1c] sm:$0xf]
        %v3270 = vld [vmem:[%s3261 + $0x20] sm:$0xf]
        %v3271 = vld [vmem:[%s3261 + $0x24] sm:$0xf]
        %v3272 = vld [vmem:[%s3261 + $0x28] sm:$0xf]
        %v3273 = vld [vmem:[%s3261 + $0x2c] sm:$0xf]
        %v3274 = vld [vmem:[%s3261 + $0x30] sm:$0xf]
        %v3275 = vld [vmem:[%s3261 + $0x34] sm:$0xf]
        %v3276 = vld [vmem:[%s3261 + $0x38] sm:$0xf]
        %v3277 = vld [vmem:[%s3261 + $0x3c] sm:$0xf]
        %v3294 = vunpack.c.l.b16 %v3262
        %v3295 = vunpack.c.l.b16 %v3263
        %v3296 = vunpack.c.l.b16 %v3264
        %v3297 = vunpack.c.l.b16 %v3265
        %v3298 = vunpack.c.l.b16 %v3266
        %v3299 = vunpack.c.l.b16 %v3267
        %v3300 = vunpack.c.l.b16 %v3268
        %v3301 = vunpack.c.l.b16 %v3269
        %v3302 = vunpack.c.l.b16 %v3270
        %v3303 = vunpack.c.l.b16 %v3271
        %v3304 = vunpack.c.l.b16 %v3272
        %v3305 = vunpack.c.l.b16 %v3273
        %v3306 = vunpack.c.l.b16 %v3274
        %v3307 = vunpack.c.l.b16 %v3275
        %v3308 = vunpack.c.l.b16 %v3276
        %v3309 = vunpack.c.l.b16 %v3277
        %v3310 = vpack.c.b16 %v3295, %v3294
        %v3311 = vpack.c.b16 %v3297, %v3296
        %v3312 = vpack.c.b16 %v3299, %v3298
        %v3313 = vpack.c.b16 %v3301, %v3300
        %v3314 = vpack.c.b16 %v3303, %v3302
        %v3315 = vpack.c.b16 %v3305, %v3304
        %v3316 = vpack.c.b16 %v3307, %v3306
        %v3317 = vpack.c.b16 %v3309, %v3308
        %3326 = vmatprep.subr.bf16.mxu0 0
        %3327 = vmatpush1.bf16.msra.mxu0 %v3310
        %3328 = vmatprep.subr.bf16.mxu0 0
        %3329 = vmatpush1.bf16.msra.mxu0 %v3311
        %3330 = vmatprep.subr.bf16.mxu0 0
        %3331 = vmatpush1.bf16.msra.mxu0 %v3312
        %3332 = vmatprep.subr.bf16.mxu0 0
        %3333 = vmatpush1.bf16.msra.mxu0 %v3313
        %3334 = vmatprep.subr.bf16.mxu0 0
        %3335 = vmatpush1.bf16.msra.mxu0 %v3314
        %3336 = vmatprep.subr.bf16.mxu0 0
        %3337 = vmatpush1.bf16.msra.mxu0 %v3315
        %3338 = vmatprep.subr.bf16.mxu0 0
        %3339 = vmatpush1.bf16.msra.mxu0 %v3316
        %3340 = vmatprep.subr.bf16.mxu0 0
        %3341 = vmatpush1.bf16.msra.mxu0 %v3317
        %3342 = vmatprep.subr.bf16.mxu0 0
        %3343 = vmatpush1.bf16.msra.mxu0 0
        %3344 = vmatprep.subr.bf16.mxu0 0
        %3345 = vmatpush1.bf16.msra.mxu0 0
        %3346 = vmatprep.subr.bf16.mxu0 0
        %3347 = vmatpush1.bf16.msra.mxu0 0
        %3348 = vmatprep.subr.bf16.mxu0 0
        %3349 = vmatpush1.bf16.msra.mxu0 0
        %3350 = vmatprep.subr.bf16.mxu0 0
        %3351 = vmatpush1.bf16.msra.mxu0 0
        %3352 = vmatprep.subr.bf16.mxu0 0
        %3353 = vmatpush1.bf16.msra.mxu0 0
        %3354 = vmatprep.subr.bf16.mxu0 0
        %3355 = vmatpush1.bf16.msra.mxu0 0
        %3356 = vmatprep.subr.bf16.mxu0 0
        %3357 = vmatpush1.bf16.msra.mxu0 0
        %3358 = vmatprep.mubr.bf16.mxu0 0
        %3359 = vmatmul.mubr.bf16.gmra.mrb[0].mxu0 %v2783
        %v3360 = vpop.f32.mrb[0].mxu0
        %v3361 = vadd.f32 0.0, %v3360
        %v3362 = vpop.f32.mrb[0].mxu0
        %v3363 = vpop.f32.mrb[0].mxu0
        %v3364 = vadd.f32 0.0, %v3363
        %v3365 = vpop.f32.mrb[0].mxu0
        %3366 = vdwg.mxu0
        %v3367 = vpack.c.bf16 %v3364, %v3361
        %s3368 = scalar_lea.vmem [#allocation16], 24
        %v3369 = vld [vmem:[%s3368] sm:$0xf]
        %v3370 = vld [vmem:[%s3368 + $0x4] sm:$0xf]
        %v3373 = vunpack.c.l.b16 %v3369
        %v3374 = vunpack.c.l.b16 %v3370
        %v3375 = vpack.c.b16 %v3374, %v3373
        %v3377 = vsel %vm1192, %v3375, 0
        %3379 = vmatprep.subr.bf16.mxu0 0
        %3380 = vmatpush1.bf16.msra.mxu0 %v3367
        %3381 = vmatprep.subr.bf16.mxu0 0
        %3382 = vmatpush1.bf16.msra.mxu0 0
        %3383 = vmatprep.subr.bf16.mxu0 0
        %3384 = vmatpush1.bf16.msra.mxu0 0
        %3385 = vmatprep.subr.bf16.mxu0 0
        %3386 = vmatpush1.bf16.msra.mxu0 0
        %3387 = vmatprep.subr.bf16.mxu0 0
        %3388 = vmatpush1.bf16.msra.mxu0 0
        %3389 = vmatprep.subr.bf16.mxu0 0
        %3390 = vmatpush1.bf16.msra.mxu0 0
        %3391 = vmatprep.subr.bf16.mxu0 0
        %3392 = vmatpush1.bf16.msra.mxu0 0
        %3393 = vmatprep.subr.bf16.mxu0 0
        %3394 = vmatpush1.bf16.msra.mxu0 0
        %3395 = vmatprep.subr.bf16.mxu0 0
        %3396 = vmatpush1.bf16.msra.mxu0 0
        %3397 = vmatprep.subr.bf16.mxu0 0
        %3398 = vmatpush1.bf16.msra.mxu0 0
        %3399 = vmatprep.subr.bf16.mxu0 0
        %3400 = vmatpush1.bf16.msra.mxu0 0
        %3401 = vmatprep.subr.bf16.mxu0 0
        %3402 = vmatpush1.bf16.msra.mxu0 0
        %3403 = vmatprep.subr.bf16.mxu0 0
        %3404 = vmatpush1.bf16.msra.mxu0 0
        %3405 = vmatprep.subr.bf16.mxu0 0
        %3406 = vmatpush1.bf16.msra.mxu0 0
        %3407 = vmatprep.subr.bf16.mxu0 0
        %3408 = vmatpush1.bf16.msra.mxu0 0
        %3409 = vmatprep.subr.bf16.mxu0 0
        %3410 = vmatpush1.bf16.msra.mxu0 0
        %3411 = vmatprep.mubr.bf16.mxu0 0
        %3412 = vmatmul.mubr.bf16.gmra.mrb[0].mxu0 %v3377
        %v3413 = vpop.f32.mrb[0].mxu0
        %v3414 = vadd.f32 0.0, %v3413
        %v3415 = vpop.f32.mrb[0].mxu0
        %v3416 = vpop.f32.mrb[0].mxu0
        %v3417 = vadd.f32 0.0, %v3416
        %v3418 = vpop.f32.mrb[0].mxu0
        %3419 = vdwg.mxu0
        %v3420 = vadd.f32 %v3259, %v3414
        %v3421 = vadd.f32 %v3260, %v3417
        %s3422 = scalar_lea.vmem [#allocation18], 256
        %v3423 = vld [vmem:[%s3422] sm:$0xf]
        %v3424 = vld [vmem:[%s3422 + $0x4] sm:$0xf]
        %v3425 = vld [vmem:[%s3422 + $0x8] sm:$0xf]
        %v3426 = vld [vmem:[%s3422 + $0xc] sm:$0xf]
        %v3427 = vld [vmem:[%s3422 + $0x10] sm:$0xf]
        %v3428 = vld [vmem:[%s3422 + $0x14] sm:$0xf]
        %v3429 = vld [vmem:[%s3422 + $0x18] sm:$0xf]
        %v3430 = vld [vmem:[%s3422 + $0x1c] sm:$0xf]
        %v3431 = vld [vmem:[%s3422 + $0x20] sm:$0xf]
        %v3432 = vld [vmem:[%s3422 + $0x24] sm:$0xf]
        %v3433 = vld [vmem:[%s3422 + $0x28] sm:$0xf]
        %v3434 = vld [vmem:[%s3422 + $0x2c] sm:$0xf]
        %v3435 = vld [vmem:[%s3422 + $0x30] sm:$0xf]
        %v3436 = vld [vmem:[%s3422 + $0x34] sm:$0xf]
        %v3437 = vld [vmem:[%s3422 + $0x38] sm:$0xf]
        %v3438 = vld [vmem:[%s3422 + $0x3c] sm:$0xf]
        %v3455 = vunpack.c.l.b16 %v3423
        %v3456 = vunpack.c.l.b16 %v3424
        %v3457 = vunpack.c.l.b16 %v3425
        %v3458 = vunpack.c.l.b16 %v3426
        %v3459 = vunpack.c.l.b16 %v3427
        %v3460 = vunpack.c.l.b16 %v3428
        %v3461 = vunpack.c.l.b16 %v3429
        %v3462 = vunpack.c.l.b16 %v3430
        %v3463 = vunpack.c.l.b16 %v3431
        %v3464 = vunpack.c.l.b16 %v3432
        %v3465 = vunpack.c.l.b16 %v3433
        %v3466 = vunpack.c.l.b16 %v3434
        %v3467 = vunpack.c.l.b16 %v3435
        %v3468 = vunpack.c.l.b16 %v3436
        %v3469 = vunpack.c.l.b16 %v3437
        %v3470 = vunpack.c.l.b16 %v3438
        %v3471 = vpack.c.b16 %v3456, %v3455
        %v3472 = vpack.c.b16 %v3458, %v3457
        %v3473 = vpack.c.b16 %v3460, %v3459
        %v3474 = vpack.c.b16 %v3462, %v3461
        %v3475 = vpack.c.b16 %v3464, %v3463
        %v3476 = vpack.c.b16 %v3466, %v3465
        %v3477 = vpack.c.b16 %v3468, %v3467
        %v3478 = vpack.c.b16 %v3470, %v3469
        %3487 = vmatprep.subr.bf16.mxu0 0
        %3488 = vmatpush1.bf16.msra.mxu0 %v3471
        %3489 = vmatprep.subr.bf16.mxu0 0
        %3490 = vmatpush1.bf16.msra.mxu0 %v3472
        %3491 = vmatprep.subr.bf16.mxu0 0
        %3492 = vmatpush1.bf16.msra.mxu0 %v3473
        %3493 = vmatprep.subr.bf16.mxu0 0
        %3494 = vmatpush1.bf16.msra.mxu0 %v3474
        %3495 = vmatprep.subr.bf16.mxu0 0
        %3496 = vmatpush1.bf16.msra.mxu0 %v3475
        %3497 = vmatprep.subr.bf16.mxu0 0
        %3498 = vmatpush1.bf16.msra.mxu0 %v3476
        %3499 = vmatprep.subr.bf16.mxu0 0
        %3500 = vmatpush1.bf16.msra.mxu0 %v3477
        %3501 = vmatprep.subr.bf16.mxu0 0
        %3502 = vmatpush1.bf16.msra.mxu0 %v3478
        %3503 = vmatprep.subr.bf16.mxu0 0
        %3504 = vmatpush1.bf16.msra.mxu0 0
        %3505 = vmatprep.subr.bf16.mxu0 0
        %3506 = vmatpush1.bf16.msra.mxu0 0
        %3507 = vmatprep.subr.bf16.mxu0 0
        %3508 = vmatpush1.bf16.msra.mxu0 0
        %3509 = vmatprep.subr.bf16.mxu0 0
        %3510 = vmatpush1.bf16.msra.mxu0 0
        %3511 = vmatprep.subr.bf16.mxu0 0
        %3512 = vmatpush1.bf16.msra.mxu0 0
        %3513 = vmatprep.subr.bf16.mxu0 0
        %3514 = vmatpush1.bf16.msra.mxu0 0
        %3515 = vmatprep.subr.bf16.mxu0 0
        %3516 = vmatpush1.bf16.msra.mxu0 0
        %3517 = vmatprep.subr.bf16.mxu0 0
        %3518 = vmatpush1.bf16.msra.mxu0 0
        %3519 = vmatprep.mubr.bf16.mxu0 0
        %3520 = vmatmul.mubr.bf16.gmra.mrb[0].mxu0 %v2783
        %v3521 = vpop.f32.mrb[0].mxu0
        %v3522 = vadd.f32 0.0, %v3521
        %v3523 = vpop.f32.mrb[0].mxu0
        %v3524 = vpop.f32.mrb[0].mxu0
        %v3525 = vadd.f32 0.0, %v3524
        %v3526 = vpop.f32.mrb[0].mxu0
        %3527 = vdwg.mxu0
        %v3528 = vpack.c.bf16 %v3525, %v3522
        %s3529 = scalar_lea.vmem [#allocation16], 32
        %v3530 = vld [vmem:[%s3529] sm:$0xf]
        %v3531 = vld [vmem:[%s3529 + $0x4] sm:$0xf]
        %v3534 = vunpack.c.l.b16 %v3530
        %v3535 = vunpack.c.l.b16 %v3531
        %v3536 = vpack.c.b16 %v3535, %v3534
        %v3538 = vsel %vm1192, %v3536, 0
        %3540 = vmatprep.subr.bf16.mxu0 0
        %3541 = vmatpush1.bf16.msra.mxu0 %v3528
        %3542 = vmatprep.subr.bf16.mxu0 0
        %3543 = vmatpush1.bf16.msra.mxu0 0
        %3544 = vmatprep.subr.bf16.mxu0 0
        %3545 = vmatpush1.bf16.msra.mxu0 0
        %3546 = vmatprep.subr.bf16.mxu0 0
        %3547 = vmatpush1.bf16.msra.mxu0 0
        %3548 = vmatprep.subr.bf16.mxu0 0
        %3549 = vmatpush1.bf16.msra.mxu0 0
        %3550 = vmatprep.subr.bf16.mxu0 0
        %3551 = vmatpush1.bf16.msra.mxu0 0
        %3552 = vmatprep.subr.bf16.mxu0 0
        %3553 = vmatpush1.bf16.msra.mxu0 0
        %3554 = vmatprep.subr.bf16.mxu0 0
        %3555 = vmatpush1.bf16.msra.mxu0 0
        %3556 = vmatprep.subr.bf16.mxu0 0
        %3557 = vmatpush1.bf16.msra.mxu0 0
        %3558 = vmatprep.subr.bf16.mxu0 0
        %3559 = vmatpush1.bf16.msra.mxu0 0
        %3560 = vmatprep.subr.bf16.mxu0 0
        %3561 = vmatpush1.bf16.msra.mxu0 0
        %3562 = vmatprep.subr.bf16.mxu0 0
        %3563 = vmatpush1.bf16.msra.mxu0 0
        %3564 = vmatprep.subr.bf16.mxu0 0
        %3565 = vmatpush1.bf16.msra.mxu0 0
        %3566 = vmatprep.subr.bf16.mxu0 0
        %3567 = vmatpush1.bf16.msra.mxu0 0
        %3568 = vmatprep.subr.bf16.mxu0 0
        %3569 = vmatpush1.bf16.msra.mxu0 0
        %3570 = vmatprep.subr.bf16.mxu0 0
        %3571 = vmatpush1.bf16.msra.mxu0 0
        %3572 = vmatprep.mubr.bf16.mxu0 0
        %3573 = vmatmul.mubr.bf16.gmra.mrb[0].mxu0 %v3538
        %v3574 = vpop.f32.mrb[0].mxu0
        %v3575 = vadd.f32 0.0, %v3574
        %v3576 = vpop.f32.mrb[0].mxu0
        %v3577 = vpop.f32.mrb[0].mxu0
        %v3578 = vadd.f32 0.0, %v3577
        %v3579 = vpop.f32.mrb[0].mxu0
        %3580 = vdwg.mxu0
        %v3581 = vadd.f32 %v3420, %v3575
        %v3582 = vadd.f32 %v3421, %v3578
        %s3583 = scalar_lea.vmem [#allocation18], 320
        %v3584 = vld [vmem:[%s3583] sm:$0xf]
        %v3585 = vld [vmem:[%s3583 + $0x4] sm:$0xf]
        %v3586 = vld [vmem:[%s3583 + $0x8] sm:$0xf]
        %v3587 = vld [vmem:[%s3583 + $0xc] sm:$0xf]
        %v3588 = vld [vmem:[%s3583 + $0x10] sm:$0xf]
        %v3589 = vld [vmem:[%s3583 + $0x14] sm:$0xf]
        %v3590 = vld [vmem:[%s3583 + $0x18] sm:$0xf]
        %v3591 = vld [vmem:[%s3583 + $0x1c] sm:$0xf]
        %v3592 = vld [vmem:[%s3583 + $0x20] sm:$0xf]
        %v3593 = vld [vmem:[%s3583 + $0x24] sm:$0xf]
        %v3594 = vld [vmem:[%s3583 + $0x28] sm:$0xf]
        %v3595 = vld [vmem:[%s3583 + $0x2c] sm:$0xf]
        %v3596 = vld [vmem:[%s3583 + $0x30] sm:$0xf]
        %v3597 = vld [vmem:[%s3583 + $0x34] sm:$0xf]
        %v3598 = vld [vmem:[%s3583 + $0x38] sm:$0xf]
        %v3599 = vld [vmem:[%s3583 + $0x3c] sm:$0xf]
        %v3616 = vunpack.c.l.b16 %v3584
        %v3617 = vunpack.c.l.b16 %v3585
        %v3618 = vunpack.c.l.b16 %v3586
        %v3619 = vunpack.c.l.b16 %v3587
        %v3620 = vunpack.c.l.b16 %v3588
        %v3621 = vunpack.c.l.b16 %v3589
        %v3622 = vunpack.c.l.b16 %v3590
        %v3623 = vunpack.c.l.b16 %v3591
        %v3624 = vunpack.c.l.b16 %v3592
        %v3625 = vunpack.c.l.b16 %v3593
        %v3626 = vunpack.c.l.b16 %v3594
        %v3627 = vunpack.c.l.b16 %v3595
        %v3628 = vunpack.c.l.b16 %v3596
        %v3629 = vunpack.c.l.b16 %v3597
        %v3630 = vunpack.c.l.b16 %v3598
        %v3631 = vunpack.c.l.b16 %v3599
        %v3632 = vpack.c.b16 %v3617, %v3616
        %v3633 = vpack.c.b16 %v3619, %v3618
        %v3634 = vpack.c.b16 %v3621, %v3620
        %v3635 = vpack.c.b16 %v3623, %v3622
        %v3636 = vpack.c.b16 %v3625, %v3624
        %v3637 = vpack.c.b16 %v3627, %v3626
        %v3638 = vpack.c.b16 %v3629, %v3628
        %v3639 = vpack.c.b16 %v3631, %v3630
        %3648 = vmatprep.subr.bf16.mxu0 0
        %3649 = vmatpush1.bf16.msra.mxu0 %v3632
        %3650 = vmatprep.subr.bf16.mxu0 0
        %3651 = vmatpush1.bf16.msra.mxu0 %v3633
        %3652 = vmatprep.subr.bf16.mxu0 0
        %3653 = vmatpush1.bf16.msra.mxu0 %v3634
        %3654 = vmatprep.subr.bf16.mxu0 0
        %3655 = vmatpush1.bf16.msra.mxu0 %v3635
        %3656 = vmatprep.subr.bf16.mxu0 0
        %3657 = vmatpush1.bf16.msra.mxu0 %v3636
        %3658 = vmatprep.subr.bf16.mxu0 0
        %3659 = vmatpush1.bf16.msra.mxu0 %v3637
        %3660 = vmatprep.subr.bf16.mxu0 0
        %3661 = vmatpush1.bf16.msra.mxu0 %v3638
        %3662 = vmatprep.subr.bf16.mxu0 0
        %3663 = vmatpush1.bf16.msra.mxu0 %v3639
        %3664 = vmatprep.subr.bf16.mxu0 0
        %3665 = vmatpush1.bf16.msra.mxu0 0
        %3666 = vmatprep.subr.bf16.mxu0 0
        %3667 = vmatpush1.bf16.msra.mxu0 0
        %3668 = vmatprep.subr.bf16.mxu0 0
        %3669 = vmatpush1.bf16.msra.mxu0 0
        %3670 = vmatprep.subr.bf16.mxu0 0
        %3671 = vmatpush1.bf16.msra.mxu0 0
        %3672 = vmatprep.subr.bf16.mxu0 0
        %3673 = vmatpush1.bf16.msra.mxu0 0
        %3674 = vmatprep.subr.bf16.mxu0 0
        %3675 = vmatpush1.bf16.msra.mxu0 0
        %3676 = vmatprep.subr.bf16.mxu0 0
        %3677 = vmatpush1.bf16.msra.mxu0 0
        %3678 = vmatprep.subr.bf16.mxu0 0
        %3679 = vmatpush1.bf16.msra.mxu0 0
        %3680 = vmatprep.mubr.bf16.mxu0 0
        %3681 = vmatmul.mubr.bf16.gmra.mrb[0].mxu0 %v2783
        %v3682 = vpop.f32.mrb[0].mxu0
        %v3683 = vadd.f32 0.0, %v3682
        %v3684 = vpop.f32.mrb[0].mxu0
        %v3685 = vpop.f32.mrb[0].mxu0
        %v3686 = vadd.f32 0.0, %v3685
        %v3687 = vpop.f32.mrb[0].mxu0
        %3688 = vdwg.mxu0
        %v3689 = vpack.c.bf16 %v3686, %v3683
        %s3690 = scalar_lea.vmem [#allocation16], 40
        %v3691 = vld [vmem:[%s3690] sm:$0xf]
        %v3692 = vld [vmem:[%s3690 + $0x4] sm:$0xf]
        %v3695 = vunpack.c.l.b16 %v3691
        %v3696 = vunpack.c.l.b16 %v3692
        %v3697 = vpack.c.b16 %v3696, %v3695
        %v3699 = vsel %vm1192, %v3697, 0
        %3701 = vmatprep.subr.bf16.mxu0 0
        %3702 = vmatpush1.bf16.msra.mxu0 %v3689
        %3703 = vmatprep.subr.bf16.mxu0 0
        %3704 = vmatpush1.bf16.msra.mxu0 0
        %3705 = vmatprep.subr.bf16.mxu0 0
        %3706 = vmatpush1.bf16.msra.mxu0 0
        %3707 = vmatprep.subr.bf16.mxu0 0
        %3708 = vmatpush1.bf16.msra.mxu0 0
        %3709 = vmatprep.subr.bf16.mxu0 0
        %3710 = vmatpush1.bf16.msra.mxu0 0
        %3711 = vmatprep.subr.bf16.mxu0 0
        %3712 = vmatpush1.bf16.msra.mxu0 0
        %3713 = vmatprep.subr.bf16.mxu0 0
        %3714 = vmatpush1.bf16.msra.mxu0 0
        %3715 = vmatprep.subr.bf16.mxu0 0
        %3716 = vmatpush1.bf16.msra.mxu0 0
        %3717 = vmatprep.subr.bf16.mxu0 0
        %3718 = vmatpush1.bf16.msra.mxu0 0
        %3719 = vmatprep.subr.bf16.mxu0 0
        %3720 = vmatpush1.bf16.msra.mxu0 0
        %3721 = vmatprep.subr.bf16.mxu0 0
        %3722 = vmatpush1.bf16.msra.mxu0 0
        %3723 = vmatprep.subr.bf16.mxu0 0
        %3724 = vmatpush1.bf16.msra.mxu0 0
        %3725 = vmatprep.subr.bf16.mxu0 0
        %3726 = vmatpush1.bf16.msra.mxu0 0
        %3727 = vmatprep.subr.bf16.mxu0 0
        %3728 = vmatpush1.bf16.msra.mxu0 0
        %3729 = vmatprep.subr.bf16.mxu0 0
        %3730 = vmatpush1.bf16.msra.mxu0 0
        %3731 = vmatprep.subr.bf16.mxu0 0
        %3732 = vmatpush1.bf16.msra.mxu0 0
        %3733 = vmatprep.mubr.bf16.mxu0 0
        %3734 = vmatmul.mubr.bf16.gmra.mrb[0].mxu0 %v3699
        %v3735 = vpop.f32.mrb[0].mxu0
        %v3736 = vadd.f32 0.0, %v3735
        %v3737 = vpop.f32.mrb[0].mxu0
        %v3738 = vpop.f32.mrb[0].mxu0
        %v3739 = vadd.f32 0.0, %v3738
        %v3740 = vpop.f32.mrb[0].mxu0
        %3741 = vdwg.mxu0
        %v3742 = vadd.f32 %v3581, %v3736
        %v3743 = vadd.f32 %v3582, %v3739
        %s3744 = scalar_lea.vmem [#allocation18], 384
        %v3745 = vld [vmem:[%s3744] sm:$0xf]
        %v3746 = vld [vmem:[%s3744 + $0x4] sm:$0xf]
        %v3747 = vld [vmem:[%s3744 + $0x8] sm:$0xf]
        %v3748 = vld [vmem:[%s3744 + $0xc] sm:$0xf]
        %v3749 = vld [vmem:[%s3744 + $0x10] sm:$0xf]
        %v3750 = vld [vmem:[%s3744 + $0x14] sm:$0xf]
        %v3751 = vld [vmem:[%s3744 + $0x18] sm:$0xf]
        %v3752 = vld [vmem:[%s3744 + $0x1c] sm:$0xf]
        %v3753 = vld [vmem:[%s3744 + $0x20] sm:$0xf]
        %v3754 = vld [vmem:[%s3744 + $0x24] sm:$0xf]
        %v3755 = vld [vmem:[%s3744 + $0x28] sm:$0xf]
        %v3756 = vld [vmem:[%s3744 + $0x2c] sm:$0xf]
        %v3757 = vld [vmem:[%s3744 + $0x30] sm:$0xf]
        %v3758 = vld [vmem:[%s3744 + $0x34] sm:$0xf]
        %v3759 = vld [vmem:[%s3744 + $0x38] sm:$0xf]
        %v3760 = vld [vmem:[%s3744 + $0x3c] sm:$0xf]
        %v3777 = vunpack.c.l.b16 %v3745
        %v3778 = vunpack.c.l.b16 %v3746
        %v3779 = vunpack.c.l.b16 %v3747
        %v3780 = vunpack.c.l.b16 %v3748
        %v3781 = vunpack.c.l.b16 %v3749
        %v3782 = vunpack.c.l.b16 %v3750
        %v3783 = vunpack.c.l.b16 %v3751
        %v3784 = vunpack.c.l.b16 %v3752
        %v3785 = vunpack.c.l.b16 %v3753
        %v3786 = vunpack.c.l.b16 %v3754
        %v3787 = vunpack.c.l.b16 %v3755
        %v3788 = vunpack.c.l.b16 %v3756
        %v3789 = vunpack.c.l.b16 %v3757
        %v3790 = vunpack.c.l.b16 %v3758
        %v3791 = vunpack.c.l.b16 %v3759
        %v3792 = vunpack.c.l.b16 %v3760
        %v3793 = vpack.c.b16 %v3778, %v3777
        %v3794 = vpack.c.b16 %v3780, %v3779
        %v3795 = vpack.c.b16 %v3782, %v3781
        %v3796 = vpack.c.b16 %v3784, %v3783
        %v3797 = vpack.c.b16 %v3786, %v3785
        %v3798 = vpack.c.b16 %v3788, %v3787
        %v3799 = vpack.c.b16 %v3790, %v3789
        %v3800 = vpack.c.b16 %v3792, %v3791
        %3809 = vmatprep.subr.bf16.mxu0 0
        %3810 = vmatpush1.bf16.msra.mxu0 %v3793
        %3811 = vmatprep.subr.bf16.mxu0 0
        %3812 = vmatpush1.bf16.msra.mxu0 %v3794
        %3813 = vmatprep.subr.bf16.mxu0 0
        %3814 = vmatpush1.bf16.msra.mxu0 %v3795
        %3815 = vmatprep.subr.bf16.mxu0 0
        %3816 = vmatpush1.bf16.msra.mxu0 %v3796
        %3817 = vmatprep.subr.bf16.mxu0 0
        %3818 = vmatpush1.bf16.msra.mxu0 %v3797
        %3819 = vmatprep.subr.bf16.mxu0 0
        %3820 = vmatpush1.bf16.msra.mxu0 %v3798
        %3821 = vmatprep.subr.bf16.mxu0 0
        %3822 = vmatpush1.bf16.msra.mxu0 %v3799
        %3823 = vmatprep.subr.bf16.mxu0 0
        %3824 = vmatpush1.bf16.msra.mxu0 %v3800
        %3825 = vmatprep.subr.bf16.mxu0 0
        %3826 = vmatpush1.bf16.msra.mxu0 0
        %3827 = vmatprep.subr.bf16.mxu0 0
        %3828 = vmatpush1.bf16.msra.mxu0 0
        %3829 = vmatprep.subr.bf16.mxu0 0
        %3830 = vmatpush1.bf16.msra.mxu0 0
        %3831 = vmatprep.subr.bf16.mxu0 0
        %3832 = vmatpush1.bf16.msra.mxu0 0
        %3833 = vmatprep.subr.bf16.mxu0 0
        %3834 = vmatpush1.bf16.msra.mxu0 0
        %3835 = vmatprep.subr.bf16.mxu0 0
        %3836 = vmatpush1.bf16.msra.mxu0 0
        %3837 = vmatprep.subr.bf16.mxu0 0
        %3838 = vmatpush1.bf16.msra.mxu0 0
        %3839 = vmatprep.subr.bf16.mxu0 0
        %3840 = vmatpush1.bf16.msra.mxu0 0
        %3841 = vmatprep.mubr.bf16.mxu0 0
        %3842 = vmatmul.mubr.bf16.gmra.mrb[0].mxu0 %v2783
        %v3843 = vpop.f32.mrb[0].mxu0
        %v3844 = vadd.f32 0.0, %v3843
        %v3845 = vpop.f32.mrb[0].mxu0
        %v3846 = vpop.f32.mrb[0].mxu0
        %v3847 = vadd.f32 0.0, %v3846
        %v3848 = vpop.f32.mrb[0].mxu0
        %3849 = vdwg.mxu0
        %v3850 = vpack.c.bf16 %v3847, %v3844
        %s3851 = scalar_lea.vmem [#allocation16], 48
        %v3852 = vld [vmem:[%s3851] sm:$0xf]
        %v3853 = vld [vmem:[%s3851 + $0x4] sm:$0xf]
        %v3856 = vunpack.c.l.b16 %v3852
        %v3857 = vunpack.c.l.b16 %v3853
        %v3858 = vpack.c.b16 %v3857, %v3856
        %v3860 = vsel %vm1192, %v3858, 0
        %3862 = vmatprep.subr.bf16.mxu0 0
        %3863 = vmatpush1.bf16.msra.mxu0 %v3850
        %3864 = vmatprep.subr.bf16.mxu0 0
        %3865 = vmatpush1.bf16.msra.mxu0 0
        %3866 = vmatprep.subr.bf16.mxu0 0
        %3867 = vmatpush1.bf16.msra.mxu0 0
        %3868 = vmatprep.subr.bf16.mxu0 0
        %3869 = vmatpush1.bf16.msra.mxu0 0
        %3870 = vmatprep.subr.bf16.mxu0 0
        %3871 = vmatpush1.bf16.msra.mxu0 0
        %3872 = vmatprep.subr.bf16.mxu0 0
        %3873 = vmatpush1.bf16.msra.mxu0 0
        %3874 = vmatprep.subr.bf16.mxu0 0
        %3875 = vmatpush1.bf16.msra.mxu0 0
        %3876 = vmatprep.subr.bf16.mxu0 0
        %3877 = vmatpush1.bf16.msra.mxu0 0
        %3878 = vmatprep.subr.bf16.mxu0 0
        %3879 = vmatpush1.bf16.msra.mxu0 0
        %3880 = vmatprep.subr.bf16.mxu0 0
        %3881 = vmatpush1.bf16.msra.mxu0 0
        %3882 = vmatprep.subr.bf16.mxu0 0
        %3883 = vmatpush1.bf16.msra.mxu0 0
        %3884 = vmatprep.subr.bf16.mxu0 0
        %3885 = vmatpush1.bf16.msra.mxu0 0
        %3886 = vmatprep.subr.bf16.mxu0 0
        %3887 = vmatpush1.bf16.msra.mxu0 0
        %3888 = vmatprep.subr.bf16.mxu0 0
        %3889 = vmatpush1.bf16.msra.mxu0 0
        %3890 = vmatprep.subr.bf16.mxu0 0
        %3891 = vmatpush1.bf16.msra.mxu0 0
        %3892 = vmatprep.subr.bf16.mxu0 0
        %3893 = vmatpush1.bf16.msra.mxu0 0
        %3894 = vmatprep.mubr.bf16.mxu0 0
        %3895 = vmatmul.mubr.bf16.gmra.mrb[0].mxu0 %v3860
        %v3896 = vpop.f32.mrb[0].mxu0
        %v3897 = vadd.f32 0.0, %v3896
        %v3898 = vpop.f32.mrb[0].mxu0
        %v3899 = vpop.f32.mrb[0].mxu0
        %v3900 = vadd.f32 0.0, %v3899
        %v3901 = vpop.f32.mrb[0].mxu0
        %3902 = vdwg.mxu0
        %v3903 = vadd.f32 %v3742, %v3897
        %v3904 = vadd.f32 %v3743, %v3900
        %s3905 = scalar_lea.vmem [#allocation18], 448
        %v3906 = vld [vmem:[%s3905] sm:$0xf]
        %v3907 = vld [vmem:[%s3905 + $0x4] sm:$0xf]
        %v3908 = vld [vmem:[%s3905 + $0x8] sm:$0xf]
        %v3909 = vld [vmem:[%s3905 + $0xc] sm:$0xf]
        %v3910 = vld [vmem:[%s3905 + $0x10] sm:$0xf]
        %v3911 = vld [vmem:[%s3905 + $0x14] sm:$0xf]
        %v3912 = vld [vmem:[%s3905 + $0x18] sm:$0xf]
        %v3913 = vld [vmem:[%s3905 + $0x1c] sm:$0xf]
        %v3914 = vld [vmem:[%s3905 + $0x20] sm:$0xf]
        %v3915 = vld [vmem:[%s3905 + $0x24] sm:$0xf]
        %v3916 = vld [vmem:[%s3905 + $0x28] sm:$0xf]
        %v3917 = vld [vmem:[%s3905 + $0x2c] sm:$0xf]
        %v3918 = vld [vmem:[%s3905 + $0x30] sm:$0xf]
        %v3919 = vld [vmem:[%s3905 + $0x34] sm:$0xf]
        %v3920 = vld [vmem:[%s3905 + $0x38] sm:$0xf]
        %v3921 = vld [vmem:[%s3905 + $0x3c] sm:$0xf]
        %v3938 = vunpack.c.l.b16 %v3906
        %v3939 = vunpack.c.l.b16 %v3907
        %v3940 = vunpack.c.l.b16 %v3908
        %v3941 = vunpack.c.l.b16 %v3909
        %v3942 = vunpack.c.l.b16 %v3910
        %v3943 = vunpack.c.l.b16 %v3911
        %v3944 = vunpack.c.l.b16 %v3912
        %v3945 = vunpack.c.l.b16 %v3913
        %v3946 = vunpack.c.l.b16 %v3914
        %v3947 = vunpack.c.l.b16 %v3915
        %v3948 = vunpack.c.l.b16 %v3916
        %v3949 = vunpack.c.l.b16 %v3917
        %v3950 = vunpack.c.l.b16 %v3918
        %v3951 = vunpack.c.l.b16 %v3919
        %v3952 = vunpack.c.l.b16 %v3920
        %v3953 = vunpack.c.l.b16 %v3921
        %v3954 = vpack.c.b16 %v3939, %v3938
        %v3955 = vpack.c.b16 %v3941, %v3940
        %v3956 = vpack.c.b16 %v3943, %v3942
        %v3957 = vpack.c.b16 %v3945, %v3944
        %v3958 = vpack.c.b16 %v3947, %v3946
        %v3959 = vpack.c.b16 %v3949, %v3948
        %v3960 = vpack.c.b16 %v3951, %v3950
        %v3961 = vpack.c.b16 %v3953, %v3952
        %3970 = vmatprep.subr.bf16.mxu0 0
        %3971 = vmatpush1.bf16.msra.mxu0 %v3954
        %3972 = vmatprep.subr.bf16.mxu0 0
        %3973 = vmatpush1.bf16.msra.mxu0 %v3955
        %3974 = vmatprep.subr.bf16.mxu0 0
        %3975 = vmatpush1.bf16.msra.mxu0 %v3956
        %3976 = vmatprep.subr.bf16.mxu0 0
        %3977 = vmatpush1.bf16.msra.mxu0 %v3957
        %3978 = vmatprep.subr.bf16.mxu0 0
        %3979 = vmatpush1.bf16.msra.mxu0 %v3958
        %3980 = vmatprep.subr.bf16.mxu0 0
        %3981 = vmatpush1.bf16.msra.mxu0 %v3959
        %3982 = vmatprep.subr.bf16.mxu0 0
        %3983 = vmatpush1.bf16.msra.mxu0 %v3960
        %3984 = vmatprep.subr.bf16.mxu0 0
        %3985 = vmatpush1.bf16.msra.mxu0 %v3961
        %3986 = vmatprep.subr.bf16.mxu0 0
        %3987 = vmatpush1.bf16.msra.mxu0 0
        %3988 = vmatprep.subr.bf16.mxu0 0
        %3989 = vmatpush1.bf16.msra.mxu0 0
        %3990 = vmatprep.subr.bf16.mxu0 0
        %3991 = vmatpush1.bf16.msra.mxu0 0
        %3992 = vmatprep.subr.bf16.mxu0 0
        %3993 = vmatpush1.bf16.msra.mxu0 0
        %3994 = vmatprep.subr.bf16.mxu0 0
        %3995 = vmatpush1.bf16.msra.mxu0 0
        %3996 = vmatprep.subr.bf16.mxu0 0
        %3997 = vmatpush1.bf16.msra.mxu0 0
        %3998 = vmatprep.subr.bf16.mxu0 0
        %3999 = vmatpush1.bf16.msra.mxu0 0
        %4000 = vmatprep.subr.bf16.mxu0 0
        %4001 = vmatpush1.bf16.msra.mxu0 0
        %4002 = vmatprep.mubr.bf16.mxu0 0
        %4003 = vmatmul.mubr.bf16.gmra.mrb[0].mxu0 %v2783
        %v4004 = vpop.f32.mrb[0].mxu0
        %v4005 = vadd.f32 0.0, %v4004
        %v4006 = vpop.f32.mrb[0].mxu0
        %v4007 = vpop.f32.mrb[0].mxu0
        %v4008 = vadd.f32 0.0, %v4007
        %v4009 = vpop.f32.mrb[0].mxu0
        %4010 = vdwg.mxu0
        %v4011 = vpack.c.bf16 %v4008, %v4005
        %s4012 = scalar_lea.vmem [#allocation16], 56
        %v4013 = vld [vmem:[%s4012] sm:$0xf]
        %v4014 = vld [vmem:[%s4012 + $0x4] sm:$0xf]
        %v4017 = vunpack.c.l.b16 %v4013
        %v4018 = vunpack.c.l.b16 %v4014
        %v4019 = vpack.c.b16 %v4018, %v4017
        %v4021 = vsel %vm1192, %v4019, 0
        %4023 = vmatprep.subr.bf16.mxu0 0
        %4024 = vmatpush1.bf16.msra.mxu0 %v4011
        %4025 = vmatprep.subr.bf16.mxu0 0
        %4026 = vmatpush1.bf16.msra.mxu0 0
        %4027 = vmatprep.subr.bf16.mxu0 0
        %4028 = vmatpush1.bf16.msra.mxu0 0
        %4029 = vmatprep.subr.bf16.mxu0 0
        %4030 = vmatpush1.bf16.msra.mxu0 0
        %4031 = vmatprep.subr.bf16.mxu0 0
        %4032 = vmatpush1.bf16.msra.mxu0 0
        %4033 = vmatprep.subr.bf16.mxu0 0
        %4034 = vmatpush1.bf16.msra.mxu0 0
        %4035 = vmatprep.subr.bf16.mxu0 0
        %4036 = vmatpush1.bf16.msra.mxu0 0
        %4037 = vmatprep.subr.bf16.mxu0 0
        %4038 = vmatpush1.bf16.msra.mxu0 0
        %4039 = vmatprep.subr.bf16.mxu0 0
        %4040 = vmatpush1.bf16.msra.mxu0 0
        %4041 = vmatprep.subr.bf16.mxu0 0
        %4042 = vmatpush1.bf16.msra.mxu0 0
        %4043 = vmatprep.subr.bf16.mxu0 0
        %4044 = vmatpush1.bf16.msra.mxu0 0
        %4045 = vmatprep.subr.bf16.mxu0 0
        %4046 = vmatpush1.bf16.msra.mxu0 0
        %4047 = vmatprep.subr.bf16.mxu0 0
        %4048 = vmatpush1.bf16.msra.mxu0 0
        %4049 = vmatprep.subr.bf16.mxu0 0
        %4050 = vmatpush1.bf16.msra.mxu0 0
        %4051 = vmatprep.subr.bf16.mxu0 0
        %4052 = vmatpush1.bf16.msra.mxu0 0
        %4053 = vmatprep.subr.bf16.mxu0 0
        %4054 = vmatpush1.bf16.msra.mxu0 0
        %4055 = vmatprep.mubr.bf16.mxu0 0
        %4056 = vmatmul.mubr.bf16.gmra.mrb[0].mxu0 %v4021
        %v4057 = vpop.f32.mrb[0].mxu0
        %v4058 = vadd.f32 0.0, %v4057
        %v4059 = vpop.f32.mrb[0].mxu0
        %v4060 = vpop.f32.mrb[0].mxu0
        %v4061 = vadd.f32 0.0, %v4060
        %v4062 = vpop.f32.mrb[0].mxu0
        %4063 = vdwg.mxu0
        %v4064 = vadd.f32 %v3903, %v4058
        %v4065 = vadd.f32 %v3904, %v4061
        %s4066 = scalar_lea.vmem [#allocation18], 512
        %v4067 = vld [vmem:[%s4066] sm:$0xf]
        %v4068 = vld [vmem:[%s4066 + $0x4] sm:$0xf]
        %v4069 = vld [vmem:[%s4066 + $0x8] sm:$0xf]
        %v4070 = vld [vmem:[%s4066 + $0xc] sm:$0xf]
        %v4071 = vld [vmem:[%s4066 + $0x10] sm:$0xf]
        %v4072 = vld [vmem:[%s4066 + $0x14] sm:$0xf]
        %v4073 = vld [vmem:[%s4066 + $0x18] sm:$0xf]
        %v4074 = vld [vmem:[%s4066 + $0x1c] sm:$0xf]
        %v4075 = vld [vmem:[%s4066 + $0x20] sm:$0xf]
        %v4076 = vld [vmem:[%s4066 + $0x24] sm:$0xf]
        %v4077 = vld [vmem:[%s4066 + $0x28] sm:$0xf]
        %v4078 = vld [vmem:[%s4066 + $0x2c] sm:$0xf]
        %v4079 = vld [vmem:[%s4066 + $0x30] sm:$0xf]
        %v4080 = vld [vmem:[%s4066 + $0x34] sm:$0xf]
        %v4081 = vld [vmem:[%s4066 + $0x38] sm:$0xf]
        %v4082 = vld [vmem:[%s4066 + $0x3c] sm:$0xf]
        %v4099 = vunpack.c.l.b16 %v4067
        %v4100 = vunpack.c.l.b16 %v4068
        %v4101 = vunpack.c.l.b16 %v4069
        %v4102 = vunpack.c.l.b16 %v4070
        %v4103 = vunpack.c.l.b16 %v4071
        %v4104 = vunpack.c.l.b16 %v4072
        %v4105 = vunpack.c.l.b16 %v4073
        %v4106 = vunpack.c.l.b16 %v4074
        %v4107 = vunpack.c.l.b16 %v4075
        %v4108 = vunpack.c.l.b16 %v4076
        %v4109 = vunpack.c.l.b16 %v4077
        %v4110 = vunpack.c.l.b16 %v4078
        %v4111 = vunpack.c.l.b16 %v4079
        %v4112 = vunpack.c.l.b16 %v4080
        %v4113 = vunpack.c.l.b16 %v4081
        %v4114 = vunpack.c.l.b16 %v4082
        %v4115 = vpack.c.b16 %v4100, %v4099
        %v4116 = vpack.c.b16 %v4102, %v4101
        %v4117 = vpack.c.b16 %v4104, %v4103
        %v4118 = vpack.c.b16 %v4106, %v4105
        %v4119 = vpack.c.b16 %v4108, %v4107
        %v4120 = vpack.c.b16 %v4110, %v4109
        %v4121 = vpack.c.b16 %v4112, %v4111
        %v4122 = vpack.c.b16 %v4114, %v4113
        %4131 = vmatprep.subr.bf16.mxu0 0
        %4132 = vmatpush1.bf16.msra.mxu0 %v4115
        %4133 = vmatprep.subr.bf16.mxu0 0
        %4134 = vmatpush1.bf16.msra.mxu0 %v4116
        %4135 = vmatprep.subr.bf16.mxu0 0
        %4136 = vmatpush1.bf16.msra.mxu0 %v4117
        %4137 = vmatprep.subr.bf16.mxu0 0
        %4138 = vmatpush1.bf16.msra.mxu0 %v4118
        %4139 = vmatprep.subr.bf16.mxu0 0
        %4140 = vmatpush1.bf16.msra.mxu0 %v4119
        %4141 = vmatprep.subr.bf16.mxu0 0
        %4142 = vmatpush1.bf16.msra.mxu0 %v4120
        %4143 = vmatprep.subr.bf16.mxu0 0
        %4144 = vmatpush1.bf16.msra.mxu0 %v4121
        %4145 = vmatprep.subr.bf16.mxu0 0
        %4146 = vmatpush1.bf16.msra.mxu0 %v4122
        %4147 = vmatprep.subr.bf16.mxu0 0
        %4148 = vmatpush1.bf16.msra.mxu0 0
        %4149 = vmatprep.subr.bf16.mxu0 0
        %4150 = vmatpush1.bf16.msra.mxu0 0
        %4151 = vmatprep.subr.bf16.mxu0 0
        %4152 = vmatpush1.bf16.msra.mxu0 0
        %4153 = vmatprep.subr.bf16.mxu0 0
        %4154 = vmatpush1.bf16.msra.mxu0 0
        %4155 = vmatprep.subr.bf16.mxu0 0
        %4156 = vmatpush1.bf16.msra.mxu0 0
        %4157 = vmatprep.subr.bf16.mxu0 0
        %4158 = vmatpush1.bf16.msra.mxu0 0
        %4159 = vmatprep.subr.bf16.mxu0 0
        %4160 = vmatpush1.bf16.msra.mxu0 0
        %4161 = vmatprep.subr.bf16.mxu0 0
        %4162 = vmatpush1.bf16.msra.mxu0 0
        %4163 = vmatprep.mubr.bf16.mxu0 0
        %4164 = vmatmul.mubr.bf16.gmra.mrb[0].mxu0 %v2783
        %v4165 = vpop.f32.mrb[0].mxu0
        %v4166 = vadd.f32 0.0, %v4165
        %v4167 = vpop.f32.mrb[0].mxu0
        %v4168 = vpop.f32.mrb[0].mxu0
        %v4169 = vadd.f32 0.0, %v4168
        %v4170 = vpop.f32.mrb[0].mxu0
        %4171 = vdwg.mxu0
        %v4172 = vpack.c.bf16 %v4169, %v4166
        %s4173 = scalar_lea.vmem [#allocation16], 64
        %v4174 = vld [vmem:[%s4173] sm:$0xf]
        %v4175 = vld [vmem:[%s4173 + $0x4] sm:$0xf]
        %v4178 = vunpack.c.l.b16 %v4174
        %v4179 = vunpack.c.l.b16 %v4175
        %v4180 = vpack.c.b16 %v4179, %v4178
        %v4182 = vsel %vm1192, %v4180, 0
        %4184 = vmatprep.subr.bf16.mxu0 0
        %4185 = vmatpush1.bf16.msra.mxu0 %v4172
        %4186 = vmatprep.subr.bf16.mxu0 0
        %4187 = vmatpush1.bf16.msra.mxu0 0
        %4188 = vmatprep.subr.bf16.mxu0 0
        %4189 = vmatpush1.bf16.msra.mxu0 0
        %4190 = vmatprep.subr.bf16.mxu0 0
        %4191 = vmatpush1.bf16.msra.mxu0 0
        %4192 = vmatprep.subr.bf16.mxu0 0
        %4193 = vmatpush1.bf16.msra.mxu0 0
        %4194 = vmatprep.subr.bf16.mxu0 0
        %4195 = vmatpush1.bf16.msra.mxu0 0
        %4196 = vmatprep.subr.bf16.mxu0 0
        %4197 = vmatpush1.bf16.msra.mxu0 0
        %4198 = vmatprep.subr.bf16.mxu0 0
        %4199 = vmatpush1.bf16.msra.mxu0 0
        %4200 = vmatprep.subr.bf16.mxu0 0
        %4201 = vmatpush1.bf16.msra.mxu0 0
        %4202 = vmatprep.subr.bf16.mxu0 0
        %4203 = vmatpush1.bf16.msra.mxu0 0
        %4204 = vmatprep.subr.bf16.mxu0 0
        %4205 = vmatpush1.bf16.msra.mxu0 0
        %4206 = vmatprep.subr.bf16.mxu0 0
        %4207 = vmatpush1.bf16.msra.mxu0 0
        %4208 = vmatprep.subr.bf16.mxu0 0
        %4209 = vmatpush1.bf16.msra.mxu0 0
        %4210 = vmatprep.subr.bf16.mxu0 0
        %4211 = vmatpush1.bf16.msra.mxu0 0
        %4212 = vmatprep.subr.bf16.mxu0 0
        %4213 = vmatpush1.bf16.msra.mxu0 0
        %4214 = vmatprep.subr.bf16.mxu0 0
        %4215 = vmatpush1.bf16.msra.mxu0 0
        %4216 = vmatprep.mubr.bf16.mxu0 0
        %4217 = vmatmul.mubr.bf16.gmra.mrb[0].mxu0 %v4182
        %v4218 = vpop.f32.mrb[0].mxu0
        %v4219 = vadd.f32 0.0, %v4218
        %v4220 = vpop.f32.mrb[0].mxu0
        %v4221 = vpop.f32.mrb[0].mxu0
        %v4222 = vadd.f32 0.0, %v4221
        %v4223 = vpop.f32.mrb[0].mxu0
        %4224 = vdwg.mxu0
        %v4225 = vadd.f32 %v4064, %v4219
        %v4226 = vadd.f32 %v4065, %v4222
        %v4227 = vld [vmem:[%s14] sm:$0xff]
        %v4228 = vld [vmem:[%s14 + $0x8] sm:$0xff]
        %4230 = vset.pattern.permute.xlu0 0
        %4231 = vperm.xlu0 %4230, %v4227
        %v4232 = vpop.permute.xlu0 %4231
        %4235 = vset.pattern.permute.xlu0 0
        %4236 = vperm.xlu0 %4235, %v4228
        %v4237 = vpop.permute.xlu0 %4236
        %v4239 = vadd.f32 %v4225, %v4232
        %v4240 = vadd.f32 %v4226, %v4237
        %v4241 = vmax.f32 %v4239, 0.0
        %v4242 = vmax.f32 %v4240, 0.0
        %v4243 = vpack.c.bf16 %v4242, %v4241
        %v4244 = vld [vmem:[#allocation21] sm:$0xff]
        %v4245 = vld [vmem:[#allocation21 + $0x8] sm:$0xff]
        %v4246 = vld [vmem:[#allocation21 + $0x10] sm:$0xff]
        %v4247 = vld [vmem:[#allocation21 + $0x18] sm:$0xff]
        %v4248 = vld [vmem:[#allocation21 + $0x20] sm:$0xff]
        %v4249 = vld [vmem:[#allocation21 + $0x28] sm:$0xff]
        %v4250 = vld [vmem:[#allocation21 + $0x30] sm:$0xff]
        %v4251 = vld [vmem:[#allocation21 + $0x38] sm:$0xff]
        %v4252 = vld [vmem:[#allocation21 + $0x40] sm:$0xff]
        %v4253 = vld [vmem:[#allocation21 + $0x48] sm:$0xff]
        %v4254 = vld [vmem:[#allocation21 + $0x50] sm:$0xff]
        %v4255 = vld [vmem:[#allocation21 + $0x58] sm:$0xff]
        %v4256 = vld [vmem:[#allocation21 + $0x60] sm:$0xff]
        %v4257 = vld [vmem:[#allocation21 + $0x68] sm:$0xff]
        %v4258 = vld [vmem:[#allocation21 + $0x70] sm:$0xff]
        %v4259 = vld [vmem:[#allocation21 + $0x78] sm:$0xff]
        %v4260 = vld [vmem:[#allocation21 + $0x80] sm:$0xff]
        %v4261 = vld [vmem:[#allocation21 + $0x88] sm:$0xff]
        %v4262 = vld [vmem:[#allocation21 + $0x90] sm:$0xff]
        %v4263 = vld [vmem:[#allocation21 + $0x98] sm:$0xff]
        %v4264 = vld [vmem:[#allocation21 + $0xa0] sm:$0xff]
        %v4265 = vld [vmem:[#allocation21 + $0xa8] sm:$0xff]
        %v4266 = vld [vmem:[#allocation21 + $0xb0] sm:$0xff]
        %v4267 = vld [vmem:[#allocation21 + $0xb8] sm:$0xff]
        %v4268 = vld [vmem:[#allocation21 + $0xc0] sm:$0xff]
        %v4269 = vld [vmem:[#allocation21 + $0xc8] sm:$0xff]
        %v4270 = vld [vmem:[#allocation21 + $0xd0] sm:$0xff]
        %v4271 = vld [vmem:[#allocation21 + $0xd8] sm:$0xff]
        %v4272 = vld [vmem:[#allocation21 + $0xe0] sm:$0xff]
        %v4273 = vld [vmem:[#allocation21 + $0xe8] sm:$0xff]
        %v4274 = vld [vmem:[#allocation21 + $0xf0] sm:$0xff]
        %v4275 = vld [vmem:[#allocation21 + $0xf8] sm:$0xff]
        %v4308 = vunpack.c.l.b16 %v4244
        %v4309 = vunpack.c.h.b16 %v4244
        %v4310 = vunpack.c.l.b16 %v4245
        %v4311 = vunpack.c.h.b16 %v4245
        %v4312 = vunpack.c.l.b16 %v4246
        %v4313 = vunpack.c.h.b16 %v4246
        %v4314 = vunpack.c.l.b16 %v4247
        %v4315 = vunpack.c.h.b16 %v4247
        %v4316 = vunpack.c.l.b16 %v4248
        %v4317 = vunpack.c.h.b16 %v4248
        %v4318 = vunpack.c.l.b16 %v4249
        %v4319 = vunpack.c.h.b16 %v4249
        %v4320 = vunpack.c.l.b16 %v4250
        %v4321 = vunpack.c.h.b16 %v4250
        %v4322 = vunpack.c.l.b16 %v4251
        %v4323 = vunpack.c.h.b16 %v4251
        %v4324 = vunpack.c.l.b16 %v4252
        %v4325 = vunpack.c.h.b16 %v4252
        %v4326 = vunpack.c.l.b16 %v4253
        %v4327 = vunpack.c.h.b16 %v4253
        %v4328 = vunpack.c.l.b16 %v4254
        %v4329 = vunpack.c.h.b16 %v4254
        %v4330 = vunpack.c.l.b16 %v4255
        %v4331 = vunpack.c.h.b16 %v4255
        %v4332 = vunpack.c.l.b16 %v4256
        %v4333 = vunpack.c.h.b16 %v4256
        %v4334 = vunpack.c.l.b16 %v4257
        %v4335 = vunpack.c.h.b16 %v4257
        %v4336 = vunpack.c.l.b16 %v4258
        %v4337 = vunpack.c.h.b16 %v4258
        %v4338 = vunpack.c.l.b16 %v4259
        %v4339 = vunpack.c.h.b16 %v4259
        %v4340 = vunpack.c.l.b16 %v4260
        %v4341 = vunpack.c.h.b16 %v4260
        %v4342 = vunpack.c.l.b16 %v4261
        %v4343 = vunpack.c.h.b16 %v4261
        %v4344 = vunpack.c.l.b16 %v4262
        %v4345 = vunpack.c.h.b16 %v4262
        %v4346 = vunpack.c.l.b16 %v4263
        %v4347 = vunpack.c.h.b16 %v4263
        %v4348 = vunpack.c.l.b16 %v4264
        %v4349 = vunpack.c.h.b16 %v4264
        %v4350 = vunpack.c.l.b16 %v4265
        %v4351 = vunpack.c.h.b16 %v4265
        %v4352 = vunpack.c.l.b16 %v4266
        %v4353 = vunpack.c.h.b16 %v4266
        %v4354 = vunpack.c.l.b16 %v4267
        %v4355 = vunpack.c.h.b16 %v4267
        %v4356 = vunpack.c.l.b16 %v4268
        %v4357 = vunpack.c.h.b16 %v4268
        %v4358 = vunpack.c.l.b16 %v4269
        %v4359 = vunpack.c.h.b16 %v4269
        %v4360 = vunpack.c.l.b16 %v4270
        %v4361 = vunpack.c.h.b16 %v4270
        %v4362 = vunpack.c.l.b16 %v4271
        %v4363 = vunpack.c.h.b16 %v4271
        %v4364 = vunpack.c.l.b16 %v4272
        %v4365 = vunpack.c.h.b16 %v4272
        %v4366 = vunpack.c.l.b16 %v4273
        %v4367 = vunpack.c.h.b16 %v4273
        %v4368 = vunpack.c.l.b16 %v4274
        %v4369 = vunpack.c.h.b16 %v4274
        %v4370 = vunpack.c.l.b16 %v4275
        %v4371 = vunpack.c.h.b16 %v4275
        %v4372 = vpack.c.b16 %v4312, %v4308
        %v4373 = vpack.c.b16 %v4313, %v4309
        %v4374 = vpack.c.b16 %v4314, %v4310
        %v4375 = vpack.c.b16 %v4315, %v4311
        %v4376 = vpack.c.b16 %v4320, %v4316
        %v4377 = vpack.c.b16 %v4321, %v4317
        %v4378 = vpack.c.b16 %v4322, %v4318
        %v4379 = vpack.c.b16 %v4323, %v4319
        %v4380 = vpack.c.b16 %v4328, %v4324
        %v4381 = vpack.c.b16 %v4329, %v4325
        %v4382 = vpack.c.b16 %v4330, %v4326
        %v4383 = vpack.c.b16 %v4331, %v4327
        %v4384 = vpack.c.b16 %v4336, %v4332
        %v4385 = vpack.c.b16 %v4337, %v4333
        %v4386 = vpack.c.b16 %v4338, %v4334
        %v4387 = vpack.c.b16 %v4339, %v4335
        %v4388 = vpack.c.b16 %v4344, %v4340
        %v4389 = vpack.c.b16 %v4345, %v4341
        %v4390 = vpack.c.b16 %v4346, %v4342
        %v4391 = vpack.c.b16 %v4347, %v4343
        %v4392 = vpack.c.b16 %v4352, %v4348
        %v4393 = vpack.c.b16 %v4353, %v4349
        %v4394 = vpack.c.b16 %v4354, %v4350
        %v4395 = vpack.c.b16 %v4355, %v4351
        %v4396 = vpack.c.b16 %v4360, %v4356
        %v4397 = vpack.c.b16 %v4361, %v4357
        %v4398 = vpack.c.b16 %v4362, %v4358
        %v4399 = vpack.c.b16 %v4363, %v4359
        %v4400 = vpack.c.b16 %v4368, %v4364
        %v4401 = vpack.c.b16 %v4369, %v4365
        %v4402 = vpack.c.b16 %v4370, %v4366
        %v4403 = vpack.c.b16 %v4371, %v4367
        %4436 = vmatprep.subr.bf16.mxu0 %v4373
        %4437 = vmatpush1.bf16.msra.mxu0 %v4372
        %4438 = vmatprep.subr.bf16.mxu0 %v4377
        %4439 = vmatpush1.bf16.msra.mxu0 %v4376
        %4440 = vmatprep.subr.bf16.mxu0 %v4381
        %4441 = vmatpush1.bf16.msra.mxu0 %v4380
        %4442 = vmatprep.subr.bf16.mxu0 %v4385
        %4443 = vmatpush1.bf16.msra.mxu0 %v4384
        %4444 = vmatprep.subr.bf16.mxu0 %v4389
        %4445 = vmatpush1.bf16.msra.mxu0 %v4388
        %4446 = vmatprep.subr.bf16.mxu0 %v4393
        %4447 = vmatpush1.bf16.msra.mxu0 %v4392
        %4448 = vmatprep.subr.bf16.mxu0 %v4397
        %4449 = vmatpush1.bf16.msra.mxu0 %v4396
        %4450 = vmatprep.subr.bf16.mxu0 %v4401
        %4451 = vmatpush1.bf16.msra.mxu0 %v4400
        %4452 = vmatprep.subr.bf16.mxu0 0
        %4453 = vmatpush1.bf16.msra.mxu0 0
        %4454 = vmatprep.subr.bf16.mxu0 0
        %4455 = vmatpush1.bf16.msra.mxu0 0
        %4456 = vmatprep.subr.bf16.mxu0 0
        %4457 = vmatpush1.bf16.msra.mxu0 0
        %4458 = vmatprep.subr.bf16.mxu0 0
        %4459 = vmatpush1.bf16.msra.mxu0 0
        %4460 = vmatprep.subr.bf16.mxu0 0
        %4461 = vmatpush1.bf16.msra.mxu0 0
        %4462 = vmatprep.subr.bf16.mxu0 0
        %4463 = vmatpush1.bf16.msra.mxu0 0
        %4464 = vmatprep.subr.bf16.mxu0 0
        %4465 = vmatpush1.bf16.msra.mxu0 0
        %4466 = vmatprep.subr.bf16.mxu0 0
        %4467 = vmatpush1.bf16.msra.mxu0 0
        %4468 = vmatprep.mubr.bf16.mxu0 0
        %4469 = vmatmul.mubr.bf16.gmra.mrb[0].mxu0 %v4243
        %v4470 = vpop.f32.mrb[0].mxu0
        %v4471 = vadd.f32 0.0, %v4470
        %v4472 = vpop.f32.mrb[0].mxu0
        %v4473 = vadd.f32 0.0, %v4472
        %v4474 = vpop.f32.mrb[0].mxu0
        %v4475 = vadd.f32 0.0, %v4474
        %v4476 = vpop.f32.mrb[0].mxu0
        %v4477 = vadd.f32 0.0, %v4476
        %4478 = vdwg.mxu0
        %4479 = vmatprep.subr.bf16.mxu0 %v4375
        %4480 = vmatpush1.bf16.msra.mxu0 %v4374
        %4481 = vmatprep.subr.bf16.mxu0 %v4379
        %4482 = vmatpush1.bf16.msra.mxu0 %v4378
        %4483 = vmatprep.subr.bf16.mxu0 %v4383
        %4484 = vmatpush1.bf16.msra.mxu0 %v4382
        %4485 = vmatprep.subr.bf16.mxu0 %v4387
        %4486 = vmatpush1.bf16.msra.mxu0 %v4386
        %4487 = vmatprep.subr.bf16.mxu0 %v4391
        %4488 = vmatpush1.bf16.msra.mxu0 %v4390
        %4489 = vmatprep.subr.bf16.mxu0 %v4395
        %4490 = vmatpush1.bf16.msra.mxu0 %v4394
        %4491 = vmatprep.subr.bf16.mxu0 %v4399
        %4492 = vmatpush1.bf16.msra.mxu0 %v4398
        %4493 = vmatprep.subr.bf16.mxu0 %v4403
        %4494 = vmatpush1.bf16.msra.mxu0 %v4402
        %4495 = vmatprep.subr.bf16.mxu0 0
        %4496 = vmatpush1.bf16.msra.mxu0 0
        %4497 = vmatprep.subr.bf16.mxu0 0
        %4498 = vmatpush1.bf16.msra.mxu0 0
        %4499 = vmatprep.subr.bf16.mxu0 0
        %4500 = vmatpush1.bf16.msra.mxu0 0
        %4501 = vmatprep.subr.bf16.mxu0 0
        %4502 = vmatpush1.bf16.msra.mxu0 0
        %4503 = vmatprep.subr.bf16.mxu0 0
        %4504 = vmatpush1.bf16.msra.mxu0 0
        %4505 = vmatprep.subr.bf16.mxu0 0
        %4506 = vmatpush1.bf16.msra.mxu0 0
        %4507 = vmatprep.subr.bf16.mxu0 0
        %4508 = vmatpush1.bf16.msra.mxu0 0
        %4509 = vmatprep.subr.bf16.mxu0 0
        %4510 = vmatpush1.bf16.msra.mxu0 0
        %4511 = vmatprep.mubr.bf16.mxu0 0
        %4512 = vmatmul.mubr.bf16.gmra.mrb[0].mxu0 %v4243
        %v4513 = vpop.f32.mrb[0].mxu0
        %v4514 = vadd.f32 0.0, %v4513
        %v4515 = vpop.f32.mrb[0].mxu0
        %v4516 = vadd.f32 0.0, %v4515
        %v4517 = vpop.f32.mrb[0].mxu0
        %v4518 = vadd.f32 0.0, %v4517
        %v4519 = vpop.f32.mrb[0].mxu0
        %v4520 = vadd.f32 0.0, %v4519
        %4521 = vdwg.mxu0
        %v4522 = vpack.c.bf16 %v4475, %v4471
        %v4523 = vpack.c.bf16 %v4477, %v4473
        %v4524 = vpack.c.bf16 %v4518, %v4514
        %v4525 = vpack.c.bf16 %v4520, %v4516
        %v4526 = vld [vmem:[#allocation19] sm:$0xf]
        %v4527 = vld [vmem:[#allocation19 + $0x4] sm:$0xf]
        %s4528 = scalar_lea.vmem [#allocation21], 256
        %v4529 = vld [vmem:[%s4528] sm:$0xff]
        %v4530 = vld [vmem:[%s4528 + $0x8] sm:$0xff]
        %v4531 = vld [vmem:[%s4528 + $0x10] sm:$0xff]
        %v4532 = vld [vmem:[%s4528 + $0x18] sm:$0xff]
        %v4533 = vld [vmem:[%s4528 + $0x20] sm:$0xff]
        %v4534 = vld [vmem:[%s4528 + $0x28] sm:$0xff]
        %v4535 = vld [vmem:[%s4528 + $0x30] sm:$0xff]
        %v4536 = vld [vmem:[%s4528 + $0x38] sm:$0xff]
        %v4537 = vld [vmem:[%s4528 + $0x40] sm:$0xff]
        %v4538 = vld [vmem:[%s4528 + $0x48] sm:$0xff]
        %v4539 = vld [vmem:[%s4528 + $0x50] sm:$0xff]
        %v4540 = vld [vmem:[%s4528 + $0x58] sm:$0xff]
        %v4541 = vld [vmem:[%s4528 + $0x60] sm:$0xff]
        %v4542 = vld [vmem:[%s4528 + $0x68] sm:$0xff]
        %v4543 = vld [vmem:[%s4528 + $0x70] sm:$0xff]
        %v4544 = vld [vmem:[%s4528 + $0x78] sm:$0xff]
        %v4545 = vld [vmem:[%s4528 + $0x80] sm:$0xff]
        %v4546 = vld [vmem:[%s4528 + $0x88] sm:$0xff]
        %v4547 = vld [vmem:[%s4528 + $0x90] sm:$0xff]
        %v4548 = vld [vmem:[%s4528 + $0x98] sm:$0xff]
        %v4549 = vld [vmem:[%s4528 + $0xa0] sm:$0xff]
        %v4550 = vld [vmem:[%s4528 + $0xa8] sm:$0xff]
        %v4551 = vld [vmem:[%s4528 + $0xb0] sm:$0xff]
        %v4552 = vld [vmem:[%s4528 + $0xb8] sm:$0xff]
        %v4553 = vld [vmem:[%s4528 + $0xc0] sm:$0xff]
        %v4554 = vld [vmem:[%s4528 + $0xc8] sm:$0xff]
        %v4555 = vld [vmem:[%s4528 + $0xd0] sm:$0xff]
        %v4556 = vld [vmem:[%s4528 + $0xd8] sm:$0xff]
        %v4557 = vld [vmem:[%s4528 + $0xe0] sm:$0xff]
        %v4558 = vld [vmem:[%s4528 + $0xe8] sm:$0xff]
        %v4559 = vld [vmem:[%s4528 + $0xf0] sm:$0xff]
        %v4560 = vld [vmem:[%s4528 + $0xf8] sm:$0xff]
        %v4593 = vunpack.c.l.b16 %v4529
        %v4594 = vunpack.c.h.b16 %v4529
        %v4595 = vunpack.c.l.b16 %v4530
        %v4596 = vunpack.c.h.b16 %v4530
        %v4597 = vunpack.c.l.b16 %v4531
        %v4598 = vunpack.c.h.b16 %v4531
        %v4599 = vunpack.c.l.b16 %v4532
        %v4600 = vunpack.c.h.b16 %v4532
        %v4601 = vunpack.c.l.b16 %v4533
        %v4602 = vunpack.c.h.b16 %v4533
        %v4603 = vunpack.c.l.b16 %v4534
        %v4604 = vunpack.c.h.b16 %v4534
        %v4605 = vunpack.c.l.b16 %v4535
        %v4606 = vunpack.c.h.b16 %v4535
        %v4607 = vunpack.c.l.b16 %v4536
        %v4608 = vunpack.c.h.b16 %v4536
        %v4609 = vunpack.c.l.b16 %v4537
        %v4610 = vunpack.c.h.b16 %v4537
        %v4611 = vunpack.c.l.b16 %v4538
        %v4612 = vunpack.c.h.b16 %v4538
        %v4613 = vunpack.c.l.b16 %v4539
        %v4614 = vunpack.c.h.b16 %v4539
        %v4615 = vunpack.c.l.b16 %v4540
        %v4616 = vunpack.c.h.b16 %v4540
        %v4617 = vunpack.c.l.b16 %v4541
        %v4618 = vunpack.c.h.b16 %v4541
        %v4619 = vunpack.c.l.b16 %v4542
        %v4620 = vunpack.c.h.b16 %v4542
        %v4621 = vunpack.c.l.b16 %v4543
        %v4622 = vunpack.c.h.b16 %v4543
        %v4623 = vunpack.c.l.b16 %v4544
        %v4624 = vunpack.c.h.b16 %v4544
        %v4625 = vunpack.c.l.b16 %v4545
        %v4626 = vunpack.c.h.b16 %v4545
        %v4627 = vunpack.c.l.b16 %v4546
        %v4628 = vunpack.c.h.b16 %v4546
        %v4629 = vunpack.c.l.b16 %v4547
        %v4630 = vunpack.c.h.b16 %v4547
        %v4631 = vunpack.c.l.b16 %v4548
        %v4632 = vunpack.c.h.b16 %v4548
        %v4633 = vunpack.c.l.b16 %v4549
        %v4634 = vunpack.c.h.b16 %v4549
        %v4635 = vunpack.c.l.b16 %v4550
        %v4636 = vunpack.c.h.b16 %v4550
        %v4637 = vunpack.c.l.b16 %v4551
        %v4638 = vunpack.c.h.b16 %v4551
        %v4639 = vunpack.c.l.b16 %v4552
        %v4640 = vunpack.c.h.b16 %v4552
        %v4641 = vunpack.c.l.b16 %v4553
        %v4642 = vunpack.c.h.b16 %v4553
        %v4643 = vunpack.c.l.b16 %v4554
        %v4644 = vunpack.c.h.b16 %v4554
        %v4645 = vunpack.c.l.b16 %v4555
        %v4646 = vunpack.c.h.b16 %v4555
        %v4647 = vunpack.c.l.b16 %v4556
        %v4648 = vunpack.c.h.b16 %v4556
        %v4649 = vunpack.c.l.b16 %v4557
        %v4650 = vunpack.c.h.b16 %v4557
        %v4651 = vunpack.c.l.b16 %v4558
        %v4652 = vunpack.c.h.b16 %v4558
        %v4653 = vunpack.c.l.b16 %v4559
        %v4654 = vunpack.c.h.b16 %v4559
        %v4655 = vunpack.c.l.b16 %v4560
        %v4656 = vunpack.c.h.b16 %v4560
        %v4657 = vpack.c.b16 %v4597, %v4593
        %v4658 = vpack.c.b16 %v4598, %v4594
        %v4659 = vpack.c.b16 %v4599, %v4595
        %v4660 = vpack.c.b16 %v4600, %v4596
        %v4661 = vpack.c.b16 %v4605, %v4601
        %v4662 = vpack.c.b16 %v4606, %v4602
        %v4663 = vpack.c.b16 %v4607, %v4603
        %v4664 = vpack.c.b16 %v4608, %v4604
        %v4665 = vpack.c.b16 %v4613, %v4609
        %v4666 = vpack.c.b16 %v4614, %v4610
        %v4667 = vpack.c.b16 %v4615, %v4611
        %v4668 = vpack.c.b16 %v4616, %v4612
        %v4669 = vpack.c.b16 %v4621, %v4617
        %v4670 = vpack.c.b16 %v4622, %v4618
        %v4671 = vpack.c.b16 %v4623, %v4619
        %v4672 = vpack.c.b16 %v4624, %v4620
        %v4673 = vpack.c.b16 %v4629, %v4625
        %v4674 = vpack.c.b16 %v4630, %v4626
        %v4675 = vpack.c.b16 %v4631, %v4627
        %v4676 = vpack.c.b16 %v4632, %v4628
        %v4677 = vpack.c.b16 %v4637, %v4633
        %v4678 = vpack.c.b16 %v4638, %v4634
        %v4679 = vpack.c.b16 %v4639, %v4635
        %v4680 = vpack.c.b16 %v4640, %v4636
        %v4681 = vpack.c.b16 %v4645, %v4641
        %v4682 = vpack.c.b16 %v4646, %v4642
        %v4683 = vpack.c.b16 %v4647, %v4643
        %v4684 = vpack.c.b16 %v4648, %v4644
        %v4685 = vpack.c.b16 %v4653, %v4649
        %v4686 = vpack.c.b16 %v4654, %v4650
        %v4687 = vpack.c.b16 %v4655, %v4651
        %v4688 = vpack.c.b16 %v4656, %v4652
        %4721 = vmatprep.subr.bf16.mxu0 %v4658
        %4722 = vmatpush1.bf16.msra.mxu0 %v4657
        %4723 = vmatprep.subr.bf16.mxu0 %v4662
        %4724 = vmatpush1.bf16.msra.mxu0 %v4661
        %4725 = vmatprep.subr.bf16.mxu0 %v4666
        %4726 = vmatpush1.bf16.msra.mxu0 %v4665
        %4727 = vmatprep.subr.bf16.mxu0 %v4670
        %4728 = vmatpush1.bf16.msra.mxu0 %v4669
        %4729 = vmatprep.subr.bf16.mxu0 %v4674
        %4730 = vmatpush1.bf16.msra.mxu0 %v4673
        %4731 = vmatprep.subr.bf16.mxu0 %v4678
        %4732 = vmatpush1.bf16.msra.mxu0 %v4677
        %4733 = vmatprep.subr.bf16.mxu0 %v4682
        %4734 = vmatpush1.bf16.msra.mxu0 %v4681
        %4735 = vmatprep.subr.bf16.mxu0 %v4686
        %4736 = vmatpush1.bf16.msra.mxu0 %v4685
        %4737 = vmatprep.subr.bf16.mxu0 0
        %4738 = vmatpush1.bf16.msra.mxu0 0
        %4739 = vmatprep.subr.bf16.mxu0 0
        %4740 = vmatpush1.bf16.msra.mxu0 0
        %4741 = vmatprep.subr.bf16.mxu0 0
        %4742 = vmatpush1.bf16.msra.mxu0 0
        %4743 = vmatprep.subr.bf16.mxu0 0
        %4744 = vmatpush1.bf16.msra.mxu0 0
        %4745 = vmatprep.subr.bf16.mxu0 0
        %4746 = vmatpush1.bf16.msra.mxu0 0
        %4747 = vmatprep.subr.bf16.mxu0 0
        %4748 = vmatpush1.bf16.msra.mxu0 0
        %4749 = vmatprep.subr.bf16.mxu0 0
        %4750 = vmatpush1.bf16.msra.mxu0 0
        %4751 = vmatprep.subr.bf16.mxu0 0
        %4752 = vmatpush1.bf16.msra.mxu0 0
        %4753 = vmatprep.mubr.bf16.mxu0 0
        %4754 = vmatmul.mubr.bf16.gmra.mrb[0].mxu0 %v4243
        %v4755 = vpop.f32.mrb[0].mxu0
        %v4756 = vadd.f32 0.0, %v4755
        %v4757 = vpop.f32.mrb[0].mxu0
        %v4758 = vadd.f32 0.0, %v4757
        %v4759 = vpop.f32.mrb[0].mxu0
        %v4760 = vadd.f32 0.0, %v4759
        %v4761 = vpop.f32.mrb[0].mxu0
        %v4762 = vadd.f32 0.0, %v4761
        %4763 = vdwg.mxu0
        %4764 = vmatprep.subr.bf16.mxu0 %v4660
        %4765 = vmatpush1.bf16.msra.mxu0 %v4659
        %4766 = vmatprep.subr.bf16.mxu0 %v4664
        %4767 = vmatpush1.bf16.msra.mxu0 %v4663
        %4768 = vmatprep.subr.bf16.mxu0 %v4668
        %4769 = vmatpush1.bf16.msra.mxu0 %v4667
        %4770 = vmatprep.subr.bf16.mxu0 %v4672
        %4771 = vmatpush1.bf16.msra.mxu0 %v4671
        %4772 = vmatprep.subr.bf16.mxu0 %v4676
        %4773 = vmatpush1.bf16.msra.mxu0 %v4675
        %4774 = vmatprep.subr.bf16.mxu0 %v4680
        %4775 = vmatpush1.bf16.msra.mxu0 %v4679
        %4776 = vmatprep.subr.bf16.mxu0 %v4684
        %4777 = vmatpush1.bf16.msra.mxu0 %v4683
        %4778 = vmatprep.subr.bf16.mxu0 %v4688
        %4779 = vmatpush1.bf16.msra.mxu0 %v4687
        %4780 = vmatprep.subr.bf16.mxu0 0
        %4781 = vmatpush1.bf16.msra.mxu0 0
        %4782 = vmatprep.subr.bf16.mxu0 0
        %4783 = vmatpush1.bf16.msra.mxu0 0
        %4784 = vmatprep.subr.bf16.mxu0 0
        %4785 = vmatpush1.bf16.msra.mxu0 0
        %4786 = vmatprep.subr.bf16.mxu0 0
        %4787 = vmatpush1.bf16.msra.mxu0 0
        %4788 = vmatprep.subr.bf16.mxu0 0
        %4789 = vmatpush1.bf16.msra.mxu0 0
        %4790 = vmatprep.subr.bf16.mxu0 0
        %4791 = vmatpush1.bf16.msra.mxu0 0
        %4792 = vmatprep.subr.bf16.mxu0 0
        %4793 = vmatpush1.bf16.msra.mxu0 0
        %4794 = vmatprep.subr.bf16.mxu0 0
        %4795 = vmatpush1.bf16.msra.mxu0 0
        %4796 = vmatprep.mubr.bf16.mxu0 0
        %4797 = vmatmul.mubr.bf16.gmra.mrb[0].mxu0 %v4243
        %v4798 = vpop.f32.mrb[0].mxu0
        %v4799 = vadd.f32 0.0, %v4798
        %v4800 = vpop.f32.mrb[0].mxu0
        %v4801 = vadd.f32 0.0, %v4800
        %v4802 = vpop.f32.mrb[0].mxu0
        %v4803 = vadd.f32 0.0, %v4802
        %v4804 = vpop.f32.mrb[0].mxu0
        %v4805 = vadd.f32 0.0, %v4804
        %4806 = vdwg.mxu0
        %v4807 = vpack.c.bf16 %v4760, %v4756
        %v4808 = vpack.c.bf16 %v4762, %v4758
        %v4809 = vpack.c.bf16 %v4803, %v4799
        %v4810 = vpack.c.bf16 %v4805, %v4801
        %s4811 = scalar_lea.vmem [#allocation19], 8
        %v4812 = vld [vmem:[%s4811] sm:$0xf]
        %v4813 = vld [vmem:[%s4811 + $0x4] sm:$0xf]
        %v4816 = vunpack.c.l.b16 %v4812
        %v4817 = vunpack.c.l.b16 %v4813
        %v4818 = vpack.c.b16 %v4817, %v4816
        %v4820 = vsel %vm1192, %v4818, 0
        %4822 = vmatprep.subr.bf16.mxu0 %v4808
        %4823 = vmatpush1.bf16.msra.mxu0 %v4807
        %4824 = vmatprep.subr.bf16.mxu0 0
        %4825 = vmatpush1.bf16.msra.mxu0 0
        %4826 = vmatprep.subr.bf16.mxu0 0
        %4827 = vmatpush1.bf16.msra.mxu0 0
        %4828 = vmatprep.subr.bf16.mxu0 0
        %4829 = vmatpush1.bf16.msra.mxu0 0
        %4830 = vmatprep.subr.bf16.mxu0 0
        %4831 = vmatpush1.bf16.msra.mxu0 0
        %4832 = vmatprep.subr.bf16.mxu0 0
        %4833 = vmatpush1.bf16.msra.mxu0 0
        %4834 = vmatprep.subr.bf16.mxu0 0
        %4835 = vmatpush1.bf16.msra.mxu0 0
        %4836 = vmatprep.subr.bf16.mxu0 0
        %4837 = vmatpush1.bf16.msra.mxu0 0
        %4838 = vmatprep.subr.bf16.mxu0 0
        %4839 = vmatpush1.bf16.msra.mxu0 0
        %4840 = vmatprep.subr.bf16.mxu0 0
        %4841 = vmatpush1.bf16.msra.mxu0 0
        %4842 = vmatprep.subr.bf16.mxu0 0
        %4843 = vmatpush1.bf16.msra.mxu0 0
        %4844 = vmatprep.subr.bf16.mxu0 0
        %4845 = vmatpush1.bf16.msra.mxu0 0
        %4846 = vmatprep.subr.bf16.mxu0 0
        %4847 = vmatpush1.bf16.msra.mxu0 0
        %4848 = vmatprep.subr.bf16.mxu0 0
        %4849 = vmatpush1.bf16.msra.mxu0 0
        %4850 = vmatprep.subr.bf16.mxu0 0
        %4851 = vmatpush1.bf16.msra.mxu0 0
        %4852 = vmatprep.subr.bf16.mxu0 0
        %4853 = vmatpush1.bf16.msra.mxu0 0
        %4854 = vmatprep.mubr.bf16.mxu0 0
        %4855 = vmatmul.mubr.bf16.gmra.mrb[0].mxu0 %v4820
        %v4856 = vpop.f32.mrb[0].mxu0
        %v4857 = vadd.f32 0.0, %v4856
        %v4858 = vpop.f32.mrb[0].mxu0
        %v4859 = vadd.f32 0.0, %v4858
        %v4860 = vpop.f32.mrb[0].mxu0
        %v4861 = vadd.f32 0.0, %v4860
        %v4862 = vpop.f32.mrb[0].mxu0
        %v4863 = vadd.f32 0.0, %v4862
        %4864 = vdwg.mxu0
        %4865 = vmatprep.subr.bf16.mxu0 %v4810
        %4866 = vmatpush1.bf16.msra.mxu0 %v4809
        %4867 = vmatprep.subr.bf16.mxu0 0
        %4868 = vmatpush1.bf16.msra.mxu0 0
        %4869 = vmatprep.subr.bf16.mxu0 0
        %4870 = vmatpush1.bf16.msra.mxu0 0
        %4871 = vmatprep.subr.bf16.mxu0 0
        %4872 = vmatpush1.bf16.msra.mxu0 0
        %4873 = vmatprep.subr.bf16.mxu0 0
        %4874 = vmatpush1.bf16.msra.mxu0 0
        %4875 = vmatprep.subr.bf16.mxu0 0
        %4876 = vmatpush1.bf16.msra.mxu0 0
        %4877 = vmatprep.subr.bf16.mxu0 0
        %4878 = vmatpush1.bf16.msra.mxu0 0
        %4879 = vmatprep.subr.bf16.mxu0 0
        %4880 = vmatpush1.bf16.msra.mxu0 0
        %4881 = vmatprep.subr.bf16.mxu0 0
        %4882 = vmatpush1.bf16.msra.mxu0 0
        %4883 = vmatprep.subr.bf16.mxu0 0
        %4884 = vmatpush1.bf16.msra.mxu0 0
        %4885 = vmatprep.subr.bf16.mxu0 0
        %4886 = vmatpush1.bf16.msra.mxu0 0
        %4887 = vmatprep.subr.bf16.mxu0 0
        %4888 = vmatpush1.bf16.msra.mxu0 0
        %4889 = vmatprep.subr.bf16.mxu0 0
        %4890 = vmatpush1.bf16.msra.mxu0 0
        %4891 = vmatprep.subr.bf16.mxu0 0
        %4892 = vmatpush1.bf16.msra.mxu0 0
        %4893 = vmatprep.subr.bf16.mxu0 0
        %4894 = vmatpush1.bf16.msra.mxu0 0
        %4895 = vmatprep.subr.bf16.mxu0 0
        %4896 = vmatpush1.bf16.msra.mxu0 0
        %4897 = vmatprep.mubr.bf16.mxu0 0
        %4898 = vmatmul.mubr.bf16.gmra.mrb[0].mxu0 %v4820
        %v4899 = vpop.f32.mrb[0].mxu0
        %v4900 = vadd.f32 0.0, %v4899
        %v4901 = vpop.f32.mrb[0].mxu0
        %v4902 = vadd.f32 0.0, %v4901
        %v4903 = vpop.f32.mrb[0].mxu0
        %v4904 = vadd.f32 0.0, %v4903
        %v4905 = vpop.f32.mrb[0].mxu0
        %v4906 = vadd.f32 0.0, %v4905
        %4907 = vdwg.mxu0
        %v4910 = vunpack.c.l.b16 %v4526
        %v4911 = vunpack.c.l.b16 %v4527
        %v4912 = vpack.c.b16 %v4911, %v4910
        %v4914 = vsel %vm1192, %v4912, 0
        %4916 = vmatprep.subr.bf16.mxu0 %v4523
        %4917 = vmatpush1.bf16.msra.mxu0 %v4522
        %4918 = vmatprep.subr.bf16.mxu0 0
        %4919 = vmatpush1.bf16.msra.mxu0 0
        %4920 = vmatprep.subr.bf16.mxu0 0
        %4921 = vmatpush1.bf16.msra.mxu0 0
        %4922 = vmatprep.subr.bf16.mxu0 0
        %4923 = vmatpush1.bf16.msra.mxu0 0
        %4924 = vmatprep.subr.bf16.mxu0 0
        %4925 = vmatpush1.bf16.msra.mxu0 0
        %4926 = vmatprep.subr.bf16.mxu0 0
        %4927 = vmatpush1.bf16.msra.mxu0 0
        %4928 = vmatprep.subr.bf16.mxu0 0
        %4929 = vmatpush1.bf16.msra.mxu0 0
        %4930 = vmatprep.subr.bf16.mxu0 0
        %4931 = vmatpush1.bf16.msra.mxu0 0
        %4932 = vmatprep.subr.bf16.mxu0 0
        %4933 = vmatpush1.bf16.msra.mxu0 0
        %4934 = vmatprep.subr.bf16.mxu0 0
        %4935 = vmatpush1.bf16.msra.mxu0 0
        %4936 = vmatprep.subr.bf16.mxu0 0
        %4937 = vmatpush1.bf16.msra.mxu0 0
        %4938 = vmatprep.subr.bf16.mxu0 0
        %4939 = vmatpush1.bf16.msra.mxu0 0
        %4940 = vmatprep.subr.bf16.mxu0 0
        %4941 = vmatpush1.bf16.msra.mxu0 0
        %4942 = vmatprep.subr.bf16.mxu0 0
        %4943 = vmatpush1.bf16.msra.mxu0 0
        %4944 = vmatprep.subr.bf16.mxu0 0
        %4945 = vmatpush1.bf16.msra.mxu0 0
        %4946 = vmatprep.subr.bf16.mxu0 0
        %4947 = vmatpush1.bf16.msra.mxu0 0
        %4948 = vmatprep.mubr.bf16.mxu0 0
        %4949 = vmatmul.mubr.bf16.gmra.mrb[0].mxu0 %v4914
        %v4950 = vpop.f32.mrb[0].mxu0
        %v4951 = vadd.f32 %v4857, %v4950
        %v4952 = vpop.f32.mrb[0].mxu0
        %v4953 = vadd.f32 %v4859, %v4952
        %v4954 = vpop.f32.mrb[0].mxu0
        %v4955 = vadd.f32 %v4861, %v4954
        %v4956 = vpop.f32.mrb[0].mxu0
        %v4957 = vadd.f32 %v4863, %v4956
        %4958 = vdwg.mxu0
        %4959 = vmatprep.subr.bf16.mxu0 %v4525
        %4960 = vmatpush1.bf16.msra.mxu0 %v4524
        %4961 = vmatprep.subr.bf16.mxu0 0
        %4962 = vmatpush1.bf16.msra.mxu0 0
        %4963 = vmatprep.subr.bf16.mxu0 0
        %4964 = vmatpush1.bf16.msra.mxu0 0
        %4965 = vmatprep.subr.bf16.mxu0 0
        %4966 = vmatpush1.bf16.msra.mxu0 0
        %4967 = vmatprep.subr.bf16.mxu0 0
        %4968 = vmatpush1.bf16.msra.mxu0 0
        %4969 = vmatprep.subr.bf16.mxu0 0
        %4970 = vmatpush1.bf16.msra.mxu0 0
        %4971 = vmatprep.subr.bf16.mxu0 0
        %4972 = vmatpush1.bf16.msra.mxu0 0
        %4973 = vmatprep.subr.bf16.mxu0 0
        %4974 = vmatpush1.bf16.msra.mxu0 0
        %4975 = vmatprep.subr.bf16.mxu0 0
        %4976 = vmatpush1.bf16.msra.mxu0 0
        %4977 = vmatprep.subr.bf16.mxu0 0
        %4978 = vmatpush1.bf16.msra.mxu0 0
        %4979 = vmatprep.subr.bf16.mxu0 0
        %4980 = vmatpush1.bf16.msra.mxu0 0
        %4981 = vmatprep.subr.bf16.mxu0 0
        %4982 = vmatpush1.bf16.msra.mxu0 0
        %4983 = vmatprep.subr.bf16.mxu0 0
        %4984 = vmatpush1.bf16.msra.mxu0 0
        %4985 = vmatprep.subr.bf16.mxu0 0
        %4986 = vmatpush1.bf16.msra.mxu0 0
        %4987 = vmatprep.subr.bf16.mxu0 0
        %4988 = vmatpush1.bf16.msra.mxu0 0
        %4989 = vmatprep.subr.bf16.mxu0 0
        %4990 = vmatpush1.bf16.msra.mxu0 0
        %4991 = vmatprep.mubr.bf16.mxu0 0
        %4992 = vmatmul.mubr.bf16.gmra.mrb[0].mxu0 %v4914
        %v4993 = vpop.f32.mrb[0].mxu0
        %v4994 = vadd.f32 %v4900, %v4993
        %v4995 = vpop.f32.mrb[0].mxu0
        %v4996 = vadd.f32 %v4902, %v4995
        %v4997 = vpop.f32.mrb[0].mxu0
        %v4998 = vadd.f32 %v4904, %v4997
        %v4999 = vpop.f32.mrb[0].mxu0
        %v5000 = vadd.f32 %v4906, %v4999
        %5001 = vdwg.mxu0
        %s5002 = scalar_lea.vmem [#allocation21], 512
        %v5003 = vld [vmem:[%s5002] sm:$0xff]
        %v5004 = vld [vmem:[%s5002 + $0x8] sm:$0xff]
        %v5005 = vld [vmem:[%s5002 + $0x10] sm:$0xff]
        %v5006 = vld [vmem:[%s5002 + $0x18] sm:$0xff]
        %v5007 = vld [vmem:[%s5002 + $0x20] sm:$0xff]
        %v5008 = vld [vmem:[%s5002 + $0x28] sm:$0xff]
        %v5009 = vld [vmem:[%s5002 + $0x30] sm:$0xff]
        %v5010 = vld [vmem:[%s5002 + $0x38] sm:$0xff]
        %v5011 = vld [vmem:[%s5002 + $0x40] sm:$0xff]
        %v5012 = vld [vmem:[%s5002 + $0x48] sm:$0xff]
        %v5013 = vld [vmem:[%s5002 + $0x50] sm:$0xff]
        %v5014 = vld [vmem:[%s5002 + $0x58] sm:$0xff]
        %v5015 = vld [vmem:[%s5002 + $0x60] sm:$0xff]
        %v5016 = vld [vmem:[%s5002 + $0x68] sm:$0xff]
        %v5017 = vld [vmem:[%s5002 + $0x70] sm:$0xff]
        %v5018 = vld [vmem:[%s5002 + $0x78] sm:$0xff]
        %v5019 = vld [vmem:[%s5002 + $0x80] sm:$0xff]
        %v5020 = vld [vmem:[%s5002 + $0x88] sm:$0xff]
        %v5021 = vld [vmem:[%s5002 + $0x90] sm:$0xff]
        %v5022 = vld [vmem:[%s5002 + $0x98] sm:$0xff]
        %v5023 = vld [vmem:[%s5002 + $0xa0] sm:$0xff]
        %v5024 = vld [vmem:[%s5002 + $0xa8] sm:$0xff]
        %v5025 = vld [vmem:[%s5002 + $0xb0] sm:$0xff]
        %v5026 = vld [vmem:[%s5002 + $0xb8] sm:$0xff]
        %v5027 = vld [vmem:[%s5002 + $0xc0] sm:$0xff]
        %v5028 = vld [vmem:[%s5002 + $0xc8] sm:$0xff]
        %v5029 = vld [vmem:[%s5002 + $0xd0] sm:$0xff]
        %v5030 = vld [vmem:[%s5002 + $0xd8] sm:$0xff]
        %v5031 = vld [vmem:[%s5002 + $0xe0] sm:$0xff]
        %v5032 = vld [vmem:[%s5002 + $0xe8] sm:$0xff]
        %v5033 = vld [vmem:[%s5002 + $0xf0] sm:$0xff]
        %v5034 = vld [vmem:[%s5002 + $0xf8] sm:$0xff]
        %v5067 = vunpack.c.l.b16 %v5003
        %v5068 = vunpack.c.h.b16 %v5003
        %v5069 = vunpack.c.l.b16 %v5004
        %v5070 = vunpack.c.h.b16 %v5004
        %v5071 = vunpack.c.l.b16 %v5005
        %v5072 = vunpack.c.h.b16 %v5005
        %v5073 = vunpack.c.l.b16 %v5006
        %v5074 = vunpack.c.h.b16 %v5006
        %v5075 = vunpack.c.l.b16 %v5007
        %v5076 = vunpack.c.h.b16 %v5007
        %v5077 = vunpack.c.l.b16 %v5008
        %v5078 = vunpack.c.h.b16 %v5008
        %v5079 = vunpack.c.l.b16 %v5009
        %v5080 = vunpack.c.h.b16 %v5009
        %v5081 = vunpack.c.l.b16 %v5010
        %v5082 = vunpack.c.h.b16 %v5010
        %v5083 = vunpack.c.l.b16 %v5011
        %v5084 = vunpack.c.h.b16 %v5011
        %v5085 = vunpack.c.l.b16 %v5012
        %v5086 = vunpack.c.h.b16 %v5012
        %v5087 = vunpack.c.l.b16 %v5013
        %v5088 = vunpack.c.h.b16 %v5013
        %v5089 = vunpack.c.l.b16 %v5014
        %v5090 = vunpack.c.h.b16 %v5014
        %v5091 = vunpack.c.l.b16 %v5015
        %v5092 = vunpack.c.h.b16 %v5015
        %v5093 = vunpack.c.l.b16 %v5016
        %v5094 = vunpack.c.h.b16 %v5016
        %v5095 = vunpack.c.l.b16 %v5017
        %v5096 = vunpack.c.h.b16 %v5017
        %v5097 = vunpack.c.l.b16 %v5018
        %v5098 = vunpack.c.h.b16 %v5018
        %v5099 = vunpack.c.l.b16 %v5019
        %v5100 = vunpack.c.h.b16 %v5019
        %v5101 = vunpack.c.l.b16 %v5020
        %v5102 = vunpack.c.h.b16 %v5020
        %v5103 = vunpack.c.l.b16 %v5021
        %v5104 = vunpack.c.h.b16 %v5021
        %v5105 = vunpack.c.l.b16 %v5022
        %v5106 = vunpack.c.h.b16 %v5022
        %v5107 = vunpack.c.l.b16 %v5023
        %v5108 = vunpack.c.h.b16 %v5023
        %v5109 = vunpack.c.l.b16 %v5024
        %v5110 = vunpack.c.h.b16 %v5024
        %v5111 = vunpack.c.l.b16 %v5025
        %v5112 = vunpack.c.h.b16 %v5025
        %v5113 = vunpack.c.l.b16 %v5026
        %v5114 = vunpack.c.h.b16 %v5026
        %v5115 = vunpack.c.l.b16 %v5027
        %v5116 = vunpack.c.h.b16 %v5027
        %v5117 = vunpack.c.l.b16 %v5028
        %v5118 = vunpack.c.h.b16 %v5028
        %v5119 = vunpack.c.l.b16 %v5029
        %v5120 = vunpack.c.h.b16 %v5029
        %v5121 = vunpack.c.l.b16 %v5030
        %v5122 = vunpack.c.h.b16 %v5030
        %v5123 = vunpack.c.l.b16 %v5031
        %v5124 = vunpack.c.h.b16 %v5031
        %v5125 = vunpack.c.l.b16 %v5032
        %v5126 = vunpack.c.h.b16 %v5032
        %v5127 = vunpack.c.l.b16 %v5033
        %v5128 = vunpack.c.h.b16 %v5033
        %v5129 = vunpack.c.l.b16 %v5034
        %v5130 = vunpack.c.h.b16 %v5034
        %v5131 = vpack.c.b16 %v5071, %v5067
        %v5132 = vpack.c.b16 %v5072, %v5068
        %v5133 = vpack.c.b16 %v5073, %v5069
        %v5134 = vpack.c.b16 %v5074, %v5070
        %v5135 = vpack.c.b16 %v5079, %v5075
        %v5136 = vpack.c.b16 %v5080, %v5076
        %v5137 = vpack.c.b16 %v5081, %v5077
        %v5138 = vpack.c.b16 %v5082, %v5078
        %v5139 = vpack.c.b16 %v5087, %v5083
        %v5140 = vpack.c.b16 %v5088, %v5084
        %v5141 = vpack.c.b16 %v5089, %v5085
        %v5142 = vpack.c.b16 %v5090, %v5086
        %v5143 = vpack.c.b16 %v5095, %v5091
        %v5144 = vpack.c.b16 %v5096, %v5092
        %v5145 = vpack.c.b16 %v5097, %v5093
        %v5146 = vpack.c.b16 %v5098, %v5094
        %v5147 = vpack.c.b16 %v5103, %v5099
        %v5148 = vpack.c.b16 %v5104, %v5100
        %v5149 = vpack.c.b16 %v5105, %v5101
        %v5150 = vpack.c.b16 %v5106, %v5102
        %v5151 = vpack.c.b16 %v5111, %v5107
        %v5152 = vpack.c.b16 %v5112, %v5108
        %v5153 = vpack.c.b16 %v5113, %v5109
        %v5154 = vpack.c.b16 %v5114, %v5110
        %v5155 = vpack.c.b16 %v5119, %v5115
        %v5156 = vpack.c.b16 %v5120, %v5116
        %v5157 = vpack.c.b16 %v5121, %v5117
        %v5158 = vpack.c.b16 %v5122, %v5118
        %v5159 = vpack.c.b16 %v5127, %v5123
        %v5160 = vpack.c.b16 %v5128, %v5124
        %v5161 = vpack.c.b16 %v5129, %v5125
        %v5162 = vpack.c.b16 %v5130, %v5126
        %5195 = vmatprep.subr.bf16.mxu0 %v5132
        %5196 = vmatpush1.bf16.msra.mxu0 %v5131
        %5197 = vmatprep.subr.bf16.mxu0 %v5136
        %5198 = vmatpush1.bf16.msra.mxu0 %v5135
        %5199 = vmatprep.subr.bf16.mxu0 %v5140
        %5200 = vmatpush1.bf16.msra.mxu0 %v5139
        %5201 = vmatprep.subr.bf16.mxu0 %v5144
        %5202 = vmatpush1.bf16.msra.mxu0 %v5143
        %5203 = vmatprep.subr.bf16.mxu0 %v5148
        %5204 = vmatpush1.bf16.msra.mxu0 %v5147
        %5205 = vmatprep.subr.bf16.mxu0 %v5152
        %5206 = vmatpush1.bf16.msra.mxu0 %v5151
        %5207 = vmatprep.subr.bf16.mxu0 %v5156
        %5208 = vmatpush1.bf16.msra.mxu0 %v5155
        %5209 = vmatprep.subr.bf16.mxu0 %v5160
        %5210 = vmatpush1.bf16.msra.mxu0 %v5159
        %5211 = vmatprep.subr.bf16.mxu0 0
        %5212 = vmatpush1.bf16.msra.mxu0 0
        %5213 = vmatprep.subr.bf16.mxu0 0
        %5214 = vmatpush1.bf16.msra.mxu0 0
        %5215 = vmatprep.subr.bf16.mxu0 0
        %5216 = vmatpush1.bf16.msra.mxu0 0
        %5217 = vmatprep.subr.bf16.mxu0 0
        %5218 = vmatpush1.bf16.msra.mxu0 0
        %5219 = vmatprep.subr.bf16.mxu0 0
        %5220 = vmatpush1.bf16.msra.mxu0 0
        %5221 = vmatprep.subr.bf16.mxu0 0
        %5222 = vmatpush1.bf16.msra.mxu0 0
        %5223 = vmatprep.subr.bf16.mxu0 0
        %5224 = vmatpush1.bf16.msra.mxu0 0
        %5225 = vmatprep.subr.bf16.mxu0 0
        %5226 = vmatpush1.bf16.msra.mxu0 0
        %5227 = vmatprep.mubr.bf16.mxu0 0
        %5228 = vmatmul.mubr.bf16.gmra.mrb[0].mxu0 %v4243
        %v5229 = vpop.f32.mrb[0].mxu0
        %v5230 = vadd.f32 0.0, %v5229
        %v5231 = vpop.f32.mrb[0].mxu0
        %v5232 = vadd.f32 0.0, %v5231
        %v5233 = vpop.f32.mrb[0].mxu0
        %v5234 = vadd.f32 0.0, %v5233
        %v5235 = vpop.f32.mrb[0].mxu0
        %v5236 = vadd.f32 0.0, %v5235
        %5237 = vdwg.mxu0
        %5238 = vmatprep.subr.bf16.mxu0 %v5134
        %5239 = vmatpush1.bf16.msra.mxu0 %v5133
        %5240 = vmatprep.subr.bf16.mxu0 %v5138
        %5241 = vmatpush1.bf16.msra.mxu0 %v5137
        %5242 = vmatprep.subr.bf16.mxu0 %v5142
        %5243 = vmatpush1.bf16.msra.mxu0 %v5141
        %5244 = vmatprep.subr.bf16.mxu0 %v5146
        %5245 = vmatpush1.bf16.msra.mxu0 %v5145
        %5246 = vmatprep.subr.bf16.mxu0 %v5150
        %5247 = vmatpush1.bf16.msra.mxu0 %v5149
        %5248 = vmatprep.subr.bf16.mxu0 %v5154
        %5249 = vmatpush1.bf16.msra.mxu0 %v5153
        %5250 = vmatprep.subr.bf16.mxu0 %v5158
        %5251 = vmatpush1.bf16.msra.mxu0 %v5157
        %5252 = vmatprep.subr.bf16.mxu0 %v5162
        %5253 = vmatpush1.bf16.msra.mxu0 %v5161
        %5254 = vmatprep.subr.bf16.mxu0 0
        %5255 = vmatpush1.bf16.msra.mxu0 0
        %5256 = vmatprep.subr.bf16.mxu0 0
        %5257 = vmatpush1.bf16.msra.mxu0 0
        %5258 = vmatprep.subr.bf16.mxu0 0
        %5259 = vmatpush1.bf16.msra.mxu0 0
        %5260 = vmatprep.subr.bf16.mxu0 0
        %5261 = vmatpush1.bf16.msra.mxu0 0
        %5262 = vmatprep.subr.bf16.mxu0 0
        %5263 = vmatpush1.bf16.msra.mxu0 0
        %5264 = vmatprep.subr.bf16.mxu0 0
        %5265 = vmatpush1.bf16.msra.mxu0 0
        %5266 = vmatprep.subr.bf16.mxu0 0
        %5267 = vmatpush1.bf16.msra.mxu0 0
        %5268 = vmatprep.subr.bf16.mxu0 0
        %5269 = vmatpush1.bf16.msra.mxu0 0
        %5270 = vmatprep.mubr.bf16.mxu0 0
        %5271 = vmatmul.mubr.bf16.gmra.mrb[0].mxu0 %v4243
        %v5272 = vpop.f32.mrb[0].mxu0
        %v5273 = vadd.f32 0.0, %v5272
        %v5274 = vpop.f32.mrb[0].mxu0
        %v5275 = vadd.f32 0.0, %v5274
        %v5276 = vpop.f32.mrb[0].mxu0
        %v5277 = vadd.f32 0.0, %v5276
        %v5278 = vpop.f32.mrb[0].mxu0
        %v5279 = vadd.f32 0.0, %v5278
        %5280 = vdwg.mxu0
        %v5281 = vpack.c.bf16 %v5234, %v5230
        %v5282 = vpack.c.bf16 %v5236, %v5232
        %v5283 = vpack.c.bf16 %v5277, %v5273
        %v5284 = vpack.c.bf16 %v5279, %v5275
        %s5285 = scalar_lea.vmem [#allocation19], 16
        %v5286 = vld [vmem:[%s5285] sm:$0xf]
        %v5287 = vld [vmem:[%s5285 + $0x4] sm:$0xf]
        %v5290 = vunpack.c.l.b16 %v5286
        %v5291 = vunpack.c.l.b16 %v5287
        %v5292 = vpack.c.b16 %v5291, %v5290
        %v5294 = vsel %vm1192, %v5292, 0
        %5296 = vmatprep.subr.bf16.mxu0 %v5282
        %5297 = vmatpush1.bf16.msra.mxu0 %v5281
        %5298 = vmatprep.subr.bf16.mxu0 0
        %5299 = vmatpush1.bf16.msra.mxu0 0
        %5300 = vmatprep.subr.bf16.mxu0 0
        %5301 = vmatpush1.bf16.msra.mxu0 0
        %5302 = vmatprep.subr.bf16.mxu0 0
        %5303 = vmatpush1.bf16.msra.mxu0 0
        %5304 = vmatprep.subr.bf16.mxu0 0
        %5305 = vmatpush1.bf16.msra.mxu0 0
        %5306 = vmatprep.subr.bf16.mxu0 0
        %5307 = vmatpush1.bf16.msra.mxu0 0
        %5308 = vmatprep.subr.bf16.mxu0 0
        %5309 = vmatpush1.bf16.msra.mxu0 0
        %5310 = vmatprep.subr.bf16.mxu0 0
        %5311 = vmatpush1.bf16.msra.mxu0 0
        %5312 = vmatprep.subr.bf16.mxu0 0
        %5313 = vmatpush1.bf16.msra.mxu0 0
        %5314 = vmatprep.subr.bf16.mxu0 0
        %5315 = vmatpush1.bf16.msra.mxu0 0
        %5316 = vmatprep.subr.bf16.mxu0 0
        %5317 = vmatpush1.bf16.msra.mxu0 0
        %5318 = vmatprep.subr.bf16.mxu0 0
        %5319 = vmatpush1.bf16.msra.mxu0 0
        %5320 = vmatprep.subr.bf16.mxu0 0
        %5321 = vmatpush1.bf16.msra.mxu0 0
        %5322 = vmatprep.subr.bf16.mxu0 0
        %5323 = vmatpush1.bf16.msra.mxu0 0
        %5324 = vmatprep.subr.bf16.mxu0 0
        %5325 = vmatpush1.bf16.msra.mxu0 0
        %5326 = vmatprep.subr.bf16.mxu0 0
        %5327 = vmatpush1.bf16.msra.mxu0 0
        %5328 = vmatprep.mubr.bf16.mxu0 0
        %5329 = vmatmul.mubr.bf16.gmra.mrb[0].mxu0 %v5294
        %v5330 = vpop.f32.mrb[0].mxu0
        %v5331 = vadd.f32 0.0, %v5330
        %v5332 = vpop.f32.mrb[0].mxu0
        %v5333 = vadd.f32 0.0, %v5332
        %v5334 = vpop.f32.mrb[0].mxu0
        %v5335 = vadd.f32 0.0, %v5334
        %v5336 = vpop.f32.mrb[0].mxu0
        %v5337 = vadd.f32 0.0, %v5336
        %5338 = vdwg.mxu0
        %5339 = vmatprep.subr.bf16.mxu0 %v5284
        %5340 = vmatpush1.bf16.msra.mxu0 %v5283
        %5341 = vmatprep.subr.bf16.mxu0 0
        %5342 = vmatpush1.bf16.msra.mxu0 0
        %5343 = vmatprep.subr.bf16.mxu0 0
        %5344 = vmatpush1.bf16.msra.mxu0 0
        %5345 = vmatprep.subr.bf16.mxu0 0
        %5346 = vmatpush1.bf16.msra.mxu0 0
        %5347 = vmatprep.subr.bf16.mxu0 0
        %5348 = vmatpush1.bf16.msra.mxu0 0
        %5349 = vmatprep.subr.bf16.mxu0 0
        %5350 = vmatpush1.bf16.msra.mxu0 0
        %5351 = vmatprep.subr.bf16.mxu0 0
        %5352 = vmatpush1.bf16.msra.mxu0 0
        %5353 = vmatprep.subr.bf16.mxu0 0
        %5354 = vmatpush1.bf16.msra.mxu0 0
        %5355 = vmatprep.subr.bf16.mxu0 0
        %5356 = vmatpush1.bf16.msra.mxu0 0
        %5357 = vmatprep.subr.bf16.mxu0 0
        %5358 = vmatpush1.bf16.msra.mxu0 0
        %5359 = vmatprep.subr.bf16.mxu0 0
        %5360 = vmatpush1.bf16.msra.mxu0 0
        %5361 = vmatprep.subr.bf16.mxu0 0
        %5362 = vmatpush1.bf16.msra.mxu0 0
        %5363 = vmatprep.subr.bf16.mxu0 0
        %5364 = vmatpush1.bf16.msra.mxu0 0
        %5365 = vmatprep.subr.bf16.mxu0 0
        %5366 = vmatpush1.bf16.msra.mxu0 0
        %5367 = vmatprep.subr.bf16.mxu0 0
        %5368 = vmatpush1.bf16.msra.mxu0 0
        %5369 = vmatprep.subr.bf16.mxu0 0
        %5370 = vmatpush1.bf16.msra.mxu0 0
        %5371 = vmatprep.mubr.bf16.mxu0 0
        %5372 = vmatmul.mubr.bf16.gmra.mrb[0].mxu0 %v5294
        %v5373 = vpop.f32.mrb[0].mxu0
        %v5374 = vadd.f32 0.0, %v5373
        %v5375 = vpop.f32.mrb[0].mxu0
        %v5376 = vadd.f32 0.0, %v5375
        %v5377 = vpop.f32.mrb[0].mxu0
        %v5378 = vadd.f32 0.0, %v5377
        %v5379 = vpop.f32.mrb[0].mxu0
        %v5380 = vadd.f32 0.0, %v5379
        %5381 = vdwg.mxu0
        %v5382 = vadd.f32 %v4951, %v5331
        %v5383 = vadd.f32 %v4953, %v5333
        %v5384 = vadd.f32 %v4994, %v5374
        %v5385 = vadd.f32 %v4996, %v5376
        %v5386 = vadd.f32 %v4955, %v5335
        %v5387 = vadd.f32 %v4957, %v5337
        %v5388 = vadd.f32 %v4998, %v5378
        %v5389 = vadd.f32 %v5000, %v5380
        %s5390 = scalar_lea.vmem [#allocation21], 768
        %v5391 = vld [vmem:[%s5390] sm:$0xff]
        %v5392 = vld [vmem:[%s5390 + $0x8] sm:$0xff]
        %v5393 = vld [vmem:[%s5390 + $0x10] sm:$0xff]
        %v5394 = vld [vmem:[%s5390 + $0x18] sm:$0xff]
        %v5395 = vld [vmem:[%s5390 + $0x20] sm:$0xff]
        %v5396 = vld [vmem:[%s5390 + $0x28] sm:$0xff]
        %v5397 = vld [vmem:[%s5390 + $0x30] sm:$0xff]
        %v5398 = vld [vmem:[%s5390 + $0x38] sm:$0xff]
        %v5399 = vld [vmem:[%s5390 + $0x40] sm:$0xff]
        %v5400 = vld [vmem:[%s5390 + $0x48] sm:$0xff]
        %v5401 = vld [vmem:[%s5390 + $0x50] sm:$0xff]
        %v5402 = vld [vmem:[%s5390 + $0x58] sm:$0xff]
        %v5403 = vld [vmem:[%s5390 + $0x60] sm:$0xff]
        %v5404 = vld [vmem:[%s5390 + $0x68] sm:$0xff]
        %v5405 = vld [vmem:[%s5390 + $0x70] sm:$0xff]
        %v5406 = vld [vmem:[%s5390 + $0x78] sm:$0xff]
        %v5407 = vld [vmem:[%s5390 + $0x80] sm:$0xff]
        %v5408 = vld [vmem:[%s5390 + $0x88] sm:$0xff]
        %v5409 = vld [vmem:[%s5390 + $0x90] sm:$0xff]
        %v5410 = vld [vmem:[%s5390 + $0x98] sm:$0xff]
        %v5411 = vld [vmem:[%s5390 + $0xa0] sm:$0xff]
        %v5412 = vld [vmem:[%s5390 + $0xa8] sm:$0xff]
        %v5413 = vld [vmem:[%s5390 + $0xb0] sm:$0xff]
        %v5414 = vld [vmem:[%s5390 + $0xb8] sm:$0xff]
        %v5415 = vld [vmem:[%s5390 + $0xc0] sm:$0xff]
        %v5416 = vld [vmem:[%s5390 + $0xc8] sm:$0xff]
        %v5417 = vld [vmem:[%s5390 + $0xd0] sm:$0xff]
        %v5418 = vld [vmem:[%s5390 + $0xd8] sm:$0xff]
        %v5419 = vld [vmem:[%s5390 + $0xe0] sm:$0xff]
        %v5420 = vld [vmem:[%s5390 + $0xe8] sm:$0xff]
        %v5421 = vld [vmem:[%s5390 + $0xf0] sm:$0xff]
        %v5422 = vld [vmem:[%s5390 + $0xf8] sm:$0xff]
        %v5455 = vunpack.c.l.b16 %v5391
        %v5456 = vunpack.c.h.b16 %v5391
        %v5457 = vunpack.c.l.b16 %v5392
        %v5458 = vunpack.c.h.b16 %v5392
        %v5459 = vunpack.c.l.b16 %v5393
        %v5460 = vunpack.c.h.b16 %v5393
        %v5461 = vunpack.c.l.b16 %v5394
        %v5462 = vunpack.c.h.b16 %v5394
        %v5463 = vunpack.c.l.b16 %v5395
        %v5464 = vunpack.c.h.b16 %v5395
        %v5465 = vunpack.c.l.b16 %v5396
        %v5466 = vunpack.c.h.b16 %v5396
        %v5467 = vunpack.c.l.b16 %v5397
        %v5468 = vunpack.c.h.b16 %v5397
        %v5469 = vunpack.c.l.b16 %v5398
        %v5470 = vunpack.c.h.b16 %v5398
        %v5471 = vunpack.c.l.b16 %v5399
        %v5472 = vunpack.c.h.b16 %v5399
        %v5473 = vunpack.c.l.b16 %v5400
        %v5474 = vunpack.c.h.b16 %v5400
        %v5475 = vunpack.c.l.b16 %v5401
        %v5476 = vunpack.c.h.b16 %v5401
        %v5477 = vunpack.c.l.b16 %v5402
        %v5478 = vunpack.c.h.b16 %v5402
        %v5479 = vunpack.c.l.b16 %v5403
        %v5480 = vunpack.c.h.b16 %v5403
        %v5481 = vunpack.c.l.b16 %v5404
        %v5482 = vunpack.c.h.b16 %v5404
        %v5483 = vunpack.c.l.b16 %v5405
        %v5484 = vunpack.c.h.b16 %v5405
        %v5485 = vunpack.c.l.b16 %v5406
        %v5486 = vunpack.c.h.b16 %v5406
        %v5487 = vunpack.c.l.b16 %v5407
        %v5488 = vunpack.c.h.b16 %v5407
        %v5489 = vunpack.c.l.b16 %v5408
        %v5490 = vunpack.c.h.b16 %v5408
        %v5491 = vunpack.c.l.b16 %v5409
        %v5492 = vunpack.c.h.b16 %v5409
        %v5493 = vunpack.c.l.b16 %v5410
        %v5494 = vunpack.c.h.b16 %v5410
        %v5495 = vunpack.c.l.b16 %v5411
        %v5496 = vunpack.c.h.b16 %v5411
        %v5497 = vunpack.c.l.b16 %v5412
        %v5498 = vunpack.c.h.b16 %v5412
        %v5499 = vunpack.c.l.b16 %v5413
        %v5500 = vunpack.c.h.b16 %v5413
        %v5501 = vunpack.c.l.b16 %v5414
        %v5502 = vunpack.c.h.b16 %v5414
        %v5503 = vunpack.c.l.b16 %v5415
        %v5504 = vunpack.c.h.b16 %v5415
        %v5505 = vunpack.c.l.b16 %v5416
        %v5506 = vunpack.c.h.b16 %v5416
        %v5507 = vunpack.c.l.b16 %v5417
        %v5508 = vunpack.c.h.b16 %v5417
        %v5509 = vunpack.c.l.b16 %v5418
        %v5510 = vunpack.c.h.b16 %v5418
        %v5511 = vunpack.c.l.b16 %v5419
        %v5512 = vunpack.c.h.b16 %v5419
        %v5513 = vunpack.c.l.b16 %v5420
        %v5514 = vunpack.c.h.b16 %v5420
        %v5515 = vunpack.c.l.b16 %v5421
        %v5516 = vunpack.c.h.b16 %v5421
        %v5517 = vunpack.c.l.b16 %v5422
        %v5518 = vunpack.c.h.b16 %v5422
        %v5519 = vpack.c.b16 %v5459, %v5455
        %v5520 = vpack.c.b16 %v5460, %v5456
        %v5521 = vpack.c.b16 %v5461, %v5457
        %v5522 = vpack.c.b16 %v5462, %v5458
        %v5523 = vpack.c.b16 %v5467, %v5463
        %v5524 = vpack.c.b16 %v5468, %v5464
        %v5525 = vpack.c.b16 %v5469, %v5465
        %v5526 = vpack.c.b16 %v5470, %v5466
        %v5527 = vpack.c.b16 %v5475, %v5471
        %v5528 = vpack.c.b16 %v5476, %v5472
        %v5529 = vpack.c.b16 %v5477, %v5473
        %v5530 = vpack.c.b16 %v5478, %v5474
        %v5531 = vpack.c.b16 %v5483, %v5479
        %v5532 = vpack.c.b16 %v5484, %v5480
        %v5533 = vpack.c.b16 %v5485, %v5481
        %v5534 = vpack.c.b16 %v5486, %v5482
        %v5535 = vpack.c.b16 %v5491, %v5487
        %v5536 = vpack.c.b16 %v5492, %v5488
        %v5537 = vpack.c.b16 %v5493, %v5489
        %v5538 = vpack.c.b16 %v5494, %v5490
        %v5539 = vpack.c.b16 %v5499, %v5495
        %v5540 = vpack.c.b16 %v5500, %v5496
        %v5541 = vpack.c.b16 %v5501, %v5497
        %v5542 = vpack.c.b16 %v5502, %v5498
        %v5543 = vpack.c.b16 %v5507, %v5503
        %v5544 = vpack.c.b16 %v5508, %v5504
        %v5545 = vpack.c.b16 %v5509, %v5505
        %v5546 = vpack.c.b16 %v5510, %v5506
        %v5547 = vpack.c.b16 %v5515, %v5511
        %v5548 = vpack.c.b16 %v5516, %v5512
        %v5549 = vpack.c.b16 %v5517, %v5513
        %v5550 = vpack.c.b16 %v5518, %v5514
        %5583 = vmatprep.subr.bf16.mxu0 %v5520
        %5584 = vmatpush1.bf16.msra.mxu0 %v5519
        %5585 = vmatprep.subr.bf16.mxu0 %v5524
        %5586 = vmatpush1.bf16.msra.mxu0 %v5523
        %5587 = vmatprep.subr.bf16.mxu0 %v5528
        %5588 = vmatpush1.bf16.msra.mxu0 %v5527
        %5589 = vmatprep.subr.bf16.mxu0 %v5532
        %5590 = vmatpush1.bf16.msra.mxu0 %v5531
        %5591 = vmatprep.subr.bf16.mxu0 %v5536
        %5592 = vmatpush1.bf16.msra.mxu0 %v5535
        %5593 = vmatprep.subr.bf16.mxu0 %v5540
        %5594 = vmatpush1.bf16.msra.mxu0 %v5539
        %5595 = vmatprep.subr.bf16.mxu0 %v5544
        %5596 = vmatpush1.bf16.msra.mxu0 %v5543
        %5597 = vmatprep.subr.bf16.mxu0 %v5548
        %5598 = vmatpush1.bf16.msra.mxu0 %v5547
        %5599 = vmatprep.subr.bf16.mxu0 0
        %5600 = vmatpush1.bf16.msra.mxu0 0
        %5601 = vmatprep.subr.bf16.mxu0 0
        %5602 = vmatpush1.bf16.msra.mxu0 0
        %5603 = vmatprep.subr.bf16.mxu0 0
        %5604 = vmatpush1.bf16.msra.mxu0 0
        %5605 = vmatprep.subr.bf16.mxu0 0
        %5606 = vmatpush1.bf16.msra.mxu0 0
        %5607 = vmatprep.subr.bf16.mxu0 0
        %5608 = vmatpush1.bf16.msra.mxu0 0
        %5609 = vmatprep.subr.bf16.mxu0 0
        %5610 = vmatpush1.bf16.msra.mxu0 0
        %5611 = vmatprep.subr.bf16.mxu0 0
        %5612 = vmatpush1.bf16.msra.mxu0 0
        %5613 = vmatprep.subr.bf16.mxu0 0
        %5614 = vmatpush1.bf16.msra.mxu0 0
        %5615 = vmatprep.mubr.bf16.mxu0 0
        %5616 = vmatmul.mubr.bf16.gmra.mrb[0].mxu0 %v4243
        %v5617 = vpop.f32.mrb[0].mxu0
        %v5618 = vadd.f32 0.0, %v5617
        %v5619 = vpop.f32.mrb[0].mxu0
        %v5620 = vadd.f32 0.0, %v5619
        %v5621 = vpop.f32.mrb[0].mxu0
        %v5622 = vadd.f32 0.0, %v5621
        %v5623 = vpop.f32.mrb[0].mxu0
        %v5624 = vadd.f32 0.0, %v5623
        %5625 = vdwg.mxu0
        %5626 = vmatprep.subr.bf16.mxu0 %v5522
        %5627 = vmatpush1.bf16.msra.mxu0 %v5521
        %5628 = vmatprep.subr.bf16.mxu0 %v5526
        %5629 = vmatpush1.bf16.msra.mxu0 %v5525
        %5630 = vmatprep.subr.bf16.mxu0 %v5530
        %5631 = vmatpush1.bf16.msra.mxu0 %v5529
        %5632 = vmatprep.subr.bf16.mxu0 %v5534
        %5633 = vmatpush1.bf16.msra.mxu0 %v5533
        %5634 = vmatprep.subr.bf16.mxu0 %v5538
        %5635 = vmatpush1.bf16.msra.mxu0 %v5537
        %5636 = vmatprep.subr.bf16.mxu0 %v5542
        %5637 = vmatpush1.bf16.msra.mxu0 %v5541
        %5638 = vmatprep.subr.bf16.mxu0 %v5546
        %5639 = vmatpush1.bf16.msra.mxu0 %v5545
        %5640 = vmatprep.subr.bf16.mxu0 %v5550
        %5641 = vmatpush1.bf16.msra.mxu0 %v5549
        %5642 = vmatprep.subr.bf16.mxu0 0
        %5643 = vmatpush1.bf16.msra.mxu0 0
        %5644 = vmatprep.subr.bf16.mxu0 0
        %5645 = vmatpush1.bf16.msra.mxu0 0
        %5646 = vmatprep.subr.bf16.mxu0 0
        %5647 = vmatpush1.bf16.msra.mxu0 0
        %5648 = vmatprep.subr.bf16.mxu0 0
        %5649 = vmatpush1.bf16.msra.mxu0 0
        %5650 = vmatprep.subr.bf16.mxu0 0
        %5651 = vmatpush1.bf16.msra.mxu0 0
        %5652 = vmatprep.subr.bf16.mxu0 0
        %5653 = vmatpush1.bf16.msra.mxu0 0
        %5654 = vmatprep.subr.bf16.mxu0 0
        %5655 = vmatpush1.bf16.msra.mxu0 0
        %5656 = vmatprep.subr.bf16.mxu0 0
        %5657 = vmatpush1.bf16.msra.mxu0 0
        %5658 = vmatprep.mubr.bf16.mxu0 0
        %5659 = vmatmul.mubr.bf16.gmra.mrb[0].mxu0 %v4243
        %v5660 = vpop.f32.mrb[0].mxu0
        %v5661 = vadd.f32 0.0, %v5660
        %v5662 = vpop.f32.mrb[0].mxu0
        %v5663 = vadd.f32 0.0, %v5662
        %v5664 = vpop.f32.mrb[0].mxu0
        %v5665 = vadd.f32 0.0, %v5664
        %v5666 = vpop.f32.mrb[0].mxu0
        %v5667 = vadd.f32 0.0, %v5666
        %5668 = vdwg.mxu0
        %v5669 = vpack.c.bf16 %v5622, %v5618
        %v5670 = vpack.c.bf16 %v5624, %v5620
        %v5671 = vpack.c.bf16 %v5665, %v5661
        %v5672 = vpack.c.bf16 %v5667, %v5663
        %s5673 = scalar_lea.vmem [#allocation19], 24
        %v5674 = vld [vmem:[%s5673] sm:$0xf]
        %v5675 = vld [vmem:[%s5673 + $0x4] sm:$0xf]
        %v5678 = vunpack.c.l.b16 %v5674
        %v5679 = vunpack.c.l.b16 %v5675
        %v5680 = vpack.c.b16 %v5679, %v5678
        %v5682 = vsel %vm1192, %v5680, 0
        %5684 = vmatprep.subr.bf16.mxu0 %v5670
        %5685 = vmatpush1.bf16.msra.mxu0 %v5669
        %5686 = vmatprep.subr.bf16.mxu0 0
        %5687 = vmatpush1.bf16.msra.mxu0 0
        %5688 = vmatprep.subr.bf16.mxu0 0
        %5689 = vmatpush1.bf16.msra.mxu0 0
        %5690 = vmatprep.subr.bf16.mxu0 0
        %5691 = vmatpush1.bf16.msra.mxu0 0
        %5692 = vmatprep.subr.bf16.mxu0 0
        %5693 = vmatpush1.bf16.msra.mxu0 0
        %5694 = vmatprep.subr.bf16.mxu0 0
        %5695 = vmatpush1.bf16.msra.mxu0 0
        %5696 = vmatprep.subr.bf16.mxu0 0
        %5697 = vmatpush1.bf16.msra.mxu0 0
        %5698 = vmatprep.subr.bf16.mxu0 0
        %5699 = vmatpush1.bf16.msra.mxu0 0
        %5700 = vmatprep.subr.bf16.mxu0 0
        %5701 = vmatpush1.bf16.msra.mxu0 0
        %5702 = vmatprep.subr.bf16.mxu0 0
        %5703 = vmatpush1.bf16.msra.mxu0 0
        %5704 = vmatprep.subr.bf16.mxu0 0
        %5705 = vmatpush1.bf16.msra.mxu0 0
        %5706 = vmatprep.subr.bf16.mxu0 0
        %5707 = vmatpush1.bf16.msra.mxu0 0
        %5708 = vmatprep.subr.bf16.mxu0 0
        %5709 = vmatpush1.bf16.msra.mxu0 0
        %5710 = vmatprep.subr.bf16.mxu0 0
        %5711 = vmatpush1.bf16.msra.mxu0 0
        %5712 = vmatprep.subr.bf16.mxu0 0
        %5713 = vmatpush1.bf16.msra.mxu0 0
        %5714 = vmatprep.subr.bf16.mxu0 0
        %5715 = vmatpush1.bf16.msra.mxu0 0
        %5716 = vmatprep.mubr.bf16.mxu0 0
        %5717 = vmatmul.mubr.bf16.gmra.mrb[0].mxu0 %v5682
        %v5718 = vpop.f32.mrb[0].mxu0
        %v5719 = vadd.f32 0.0, %v5718
        %v5720 = vpop.f32.mrb[0].mxu0
        %v5721 = vadd.f32 0.0, %v5720
        %v5722 = vpop.f32.mrb[0].mxu0
        %v5723 = vadd.f32 0.0, %v5722
        %v5724 = vpop.f32.mrb[0].mxu0
        %v5725 = vadd.f32 0.0, %v5724
        %5726 = vdwg.mxu0
        %5727 = vmatprep.subr.bf16.mxu0 %v5672
        %5728 = vmatpush1.bf16.msra.mxu0 %v5671
        %5729 = vmatprep.subr.bf16.mxu0 0
        %5730 = vmatpush1.bf16.msra.mxu0 0
        %5731 = vmatprep.subr.bf16.mxu0 0
        %5732 = vmatpush1.bf16.msra.mxu0 0
        %5733 = vmatprep.subr.bf16.mxu0 0
        %5734 = vmatpush1.bf16.msra.mxu0 0
        %5735 = vmatprep.subr.bf16.mxu0 0
        %5736 = vmatpush1.bf16.msra.mxu0 0
        %5737 = vmatprep.subr.bf16.mxu0 0
        %5738 = vmatpush1.bf16.msra.mxu0 0
        %5739 = vmatprep.subr.bf16.mxu0 0
        %5740 = vmatpush1.bf16.msra.mxu0 0
        %5741 = vmatprep.subr.bf16.mxu0 0
        %5742 = vmatpush1.bf16.msra.mxu0 0
        %5743 = vmatprep.subr.bf16.mxu0 0
        %5744 = vmatpush1.bf16.msra.mxu0 0
        %5745 = vmatprep.subr.bf16.mxu0 0
        %5746 = vmatpush1.bf16.msra.mxu0 0
        %5747 = vmatprep.subr.bf16.mxu0 0
        %5748 = vmatpush1.bf16.msra.mxu0 0
        %5749 = vmatprep.subr.bf16.mxu0 0
        %5750 = vmatpush1.bf16.msra.mxu0 0
        %5751 = vmatprep.subr.bf16.mxu0 0
        %5752 = vmatpush1.bf16.msra.mxu0 0
        %5753 = vmatprep.subr.bf16.mxu0 0
        %5754 = vmatpush1.bf16.msra.mxu0 0
        %5755 = vmatprep.subr.bf16.mxu0 0
        %5756 = vmatpush1.bf16.msra.mxu0 0
        %5757 = vmatprep.subr.bf16.mxu0 0
        %5758 = vmatpush1.bf16.msra.mxu0 0
        %5759 = vmatprep.mubr.bf16.mxu0 0
        %5760 = vmatmul.mubr.bf16.gmra.mrb[0].mxu0 %v5682
        %v5761 = vpop.f32.mrb[0].mxu0
        %v5762 = vadd.f32 0.0, %v5761
        %v5763 = vpop.f32.mrb[0].mxu0
        %v5764 = vadd.f32 0.0, %v5763
        %v5765 = vpop.f32.mrb[0].mxu0
        %v5766 = vadd.f32 0.0, %v5765
        %v5767 = vpop.f32.mrb[0].mxu0
        %v5768 = vadd.f32 0.0, %v5767
        %5769 = vdwg.mxu0
        %v5770 = vadd.f32 %v5382, %v5719
        %v5771 = vadd.f32 %v5383, %v5721
        %v5772 = vadd.f32 %v5384, %v5762
        %v5773 = vadd.f32 %v5385, %v5764
        %v5774 = vadd.f32 %v5386, %v5723
        %v5775 = vadd.f32 %v5387, %v5725
        %v5776 = vadd.f32 %v5388, %v5766
        %v5777 = vadd.f32 %v5389, %v5768
        %s5778 = scalar_lea.vmem [#allocation21], 1024
        %v5779 = vld [vmem:[%s5778] sm:$0xff]
        %v5780 = vld [vmem:[%s5778 + $0x8] sm:$0xff]
        %v5781 = vld [vmem:[%s5778 + $0x10] sm:$0xff]
        %v5782 = vld [vmem:[%s5778 + $0x18] sm:$0xff]
        %v5783 = vld [vmem:[%s5778 + $0x20] sm:$0xff]
        %v5784 = vld [vmem:[%s5778 + $0x28] sm:$0xff]
        %v5785 = vld [vmem:[%s5778 + $0x30] sm:$0xff]
        %v5786 = vld [vmem:[%s5778 + $0x38] sm:$0xff]
        %v5787 = vld [vmem:[%s5778 + $0x40] sm:$0xff]
        %v5788 = vld [vmem:[%s5778 + $0x48] sm:$0xff]
        %v5789 = vld [vmem:[%s5778 + $0x50] sm:$0xff]
        %v5790 = vld [vmem:[%s5778 + $0x58] sm:$0xff]
        %v5791 = vld [vmem:[%s5778 + $0x60] sm:$0xff]
        %v5792 = vld [vmem:[%s5778 + $0x68] sm:$0xff]
        %v5793 = vld [vmem:[%s5778 + $0x70] sm:$0xff]
        %v5794 = vld [vmem:[%s5778 + $0x78] sm:$0xff]
        %v5795 = vld [vmem:[%s5778 + $0x80] sm:$0xff]
        %v5796 = vld [vmem:[%s5778 + $0x88] sm:$0xff]
        %v5797 = vld [vmem:[%s5778 + $0x90] sm:$0xff]
        %v5798 = vld [vmem:[%s5778 + $0x98] sm:$0xff]
        %v5799 = vld [vmem:[%s5778 + $0xa0] sm:$0xff]
        %v5800 = vld [vmem:[%s5778 + $0xa8] sm:$0xff]
        %v5801 = vld [vmem:[%s5778 + $0xb0] sm:$0xff]
        %v5802 = vld [vmem:[%s5778 + $0xb8] sm:$0xff]
        %v5803 = vld [vmem:[%s5778 + $0xc0] sm:$0xff]
        %v5804 = vld [vmem:[%s5778 + $0xc8] sm:$0xff]
        %v5805 = vld [vmem:[%s5778 + $0xd0] sm:$0xff]
        %v5806 = vld [vmem:[%s5778 + $0xd8] sm:$0xff]
        %v5807 = vld [vmem:[%s5778 + $0xe0] sm:$0xff]
        %v5808 = vld [vmem:[%s5778 + $0xe8] sm:$0xff]
        %v5809 = vld [vmem:[%s5778 + $0xf0] sm:$0xff]
        %v5810 = vld [vmem:[%s5778 + $0xf8] sm:$0xff]
        %v5843 = vunpack.c.l.b16 %v5779
        %v5844 = vunpack.c.h.b16 %v5779
        %v5845 = vunpack.c.l.b16 %v5780
        %v5846 = vunpack.c.h.b16 %v5780
        %v5847 = vunpack.c.l.b16 %v5781
        %v5848 = vunpack.c.h.b16 %v5781
        %v5849 = vunpack.c.l.b16 %v5782
        %v5850 = vunpack.c.h.b16 %v5782
        %v5851 = vunpack.c.l.b16 %v5783
        %v5852 = vunpack.c.h.b16 %v5783
        %v5853 = vunpack.c.l.b16 %v5784
        %v5854 = vunpack.c.h.b16 %v5784
        %v5855 = vunpack.c.l.b16 %v5785
        %v5856 = vunpack.c.h.b16 %v5785
        %v5857 = vunpack.c.l.b16 %v5786
        %v5858 = vunpack.c.h.b16 %v5786
        %v5859 = vunpack.c.l.b16 %v5787
        %v5860 = vunpack.c.h.b16 %v5787
        %v5861 = vunpack.c.l.b16 %v5788
        %v5862 = vunpack.c.h.b16 %v5788
        %v5863 = vunpack.c.l.b16 %v5789
        %v5864 = vunpack.c.h.b16 %v5789
        %v5865 = vunpack.c.l.b16 %v5790
        %v5866 = vunpack.c.h.b16 %v5790
        %v5867 = vunpack.c.l.b16 %v5791
        %v5868 = vunpack.c.h.b16 %v5791
        %v5869 = vunpack.c.l.b16 %v5792
        %v5870 = vunpack.c.h.b16 %v5792
        %v5871 = vunpack.c.l.b16 %v5793
        %v5872 = vunpack.c.h.b16 %v5793
        %v5873 = vunpack.c.l.b16 %v5794
        %v5874 = vunpack.c.h.b16 %v5794
        %v5875 = vunpack.c.l.b16 %v5795
        %v5876 = vunpack.c.h.b16 %v5795
        %v5877 = vunpack.c.l.b16 %v5796
        %v5878 = vunpack.c.h.b16 %v5796
        %v5879 = vunpack.c.l.b16 %v5797
        %v5880 = vunpack.c.h.b16 %v5797
        %v5881 = vunpack.c.l.b16 %v5798
        %v5882 = vunpack.c.h.b16 %v5798
        %v5883 = vunpack.c.l.b16 %v5799
        %v5884 = vunpack.c.h.b16 %v5799
        %v5885 = vunpack.c.l.b16 %v5800
        %v5886 = vunpack.c.h.b16 %v5800
        %v5887 = vunpack.c.l.b16 %v5801
        %v5888 = vunpack.c.h.b16 %v5801
        %v5889 = vunpack.c.l.b16 %v5802
        %v5890 = vunpack.c.h.b16 %v5802
        %v5891 = vunpack.c.l.b16 %v5803
        %v5892 = vunpack.c.h.b16 %v5803
        %v5893 = vunpack.c.l.b16 %v5804
        %v5894 = vunpack.c.h.b16 %v5804
        %v5895 = vunpack.c.l.b16 %v5805
        %v5896 = vunpack.c.h.b16 %v5805
        %v5897 = vunpack.c.l.b16 %v5806
        %v5898 = vunpack.c.h.b16 %v5806
        %v5899 = vunpack.c.l.b16 %v5807
        %v5900 = vunpack.c.h.b16 %v5807
        %v5901 = vunpack.c.l.b16 %v5808
        %v5902 = vunpack.c.h.b16 %v5808
        %v5903 = vunpack.c.l.b16 %v5809
        %v5904 = vunpack.c.h.b16 %v5809
        %v5905 = vunpack.c.l.b16 %v5810
        %v5906 = vunpack.c.h.b16 %v5810
        %v5907 = vpack.c.b16 %v5847, %v5843
        %v5908 = vpack.c.b16 %v5848, %v5844
        %v5909 = vpack.c.b16 %v5849, %v5845
        %v5910 = vpack.c.b16 %v5850, %v5846
        %v5911 = vpack.c.b16 %v5855, %v5851
        %v5912 = vpack.c.b16 %v5856, %v5852
        %v5913 = vpack.c.b16 %v5857, %v5853
        %v5914 = vpack.c.b16 %v5858, %v5854
        %v5915 = vpack.c.b16 %v5863, %v5859
        %v5916 = vpack.c.b16 %v5864, %v5860
        %v5917 = vpack.c.b16 %v5865, %v5861
        %v5918 = vpack.c.b16 %v5866, %v5862
        %v5919 = vpack.c.b16 %v5871, %v5867
        %v5920 = vpack.c.b16 %v5872, %v5868
        %v5921 = vpack.c.b16 %v5873, %v5869
        %v5922 = vpack.c.b16 %v5874, %v5870
        %v5923 = vpack.c.b16 %v5879, %v5875
        %v5924 = vpack.c.b16 %v5880, %v5876
        %v5925 = vpack.c.b16 %v5881, %v5877
        %v5926 = vpack.c.b16 %v5882, %v5878
        %v5927 = vpack.c.b16 %v5887, %v5883
        %v5928 = vpack.c.b16 %v5888, %v5884
        %v5929 = vpack.c.b16 %v5889, %v5885
        %v5930 = vpack.c.b16 %v5890, %v5886
        %v5931 = vpack.c.b16 %v5895, %v5891
        %v5932 = vpack.c.b16 %v5896, %v5892
        %v5933 = vpack.c.b16 %v5897, %v5893
        %v5934 = vpack.c.b16 %v5898, %v5894
        %v5935 = vpack.c.b16 %v5903, %v5899
        %v5936 = vpack.c.b16 %v5904, %v5900
        %v5937 = vpack.c.b16 %v5905, %v5901
        %v5938 = vpack.c.b16 %v5906, %v5902
        %5971 = vmatprep.subr.bf16.mxu0 %v5908
        %5972 = vmatpush1.bf16.msra.mxu0 %v5907
        %5973 = vmatprep.subr.bf16.mxu0 %v5912
        %5974 = vmatpush1.bf16.msra.mxu0 %v5911
        %5975 = vmatprep.subr.bf16.mxu0 %v5916
        %5976 = vmatpush1.bf16.msra.mxu0 %v5915
        %5977 = vmatprep.subr.bf16.mxu0 %v5920
        %5978 = vmatpush1.bf16.msra.mxu0 %v5919
        %5979 = vmatprep.subr.bf16.mxu0 %v5924
        %5980 = vmatpush1.bf16.msra.mxu0 %v5923
        %5981 = vmatprep.subr.bf16.mxu0 %v5928
        %5982 = vmatpush1.bf16.msra.mxu0 %v5927
        %5983 = vmatprep.subr.bf16.mxu0 %v5932
        %5984 = vmatpush1.bf16.msra.mxu0 %v5931
        %5985 = vmatprep.subr.bf16.mxu0 %v5936
        %5986 = vmatpush1.bf16.msra.mxu0 %v5935
        %5987 = vmatprep.subr.bf16.mxu0 0
        %5988 = vmatpush1.bf16.msra.mxu0 0
        %5989 = vmatprep.subr.bf16.mxu0 0
        %5990 = vmatpush1.bf16.msra.mxu0 0
        %5991 = vmatprep.subr.bf16.mxu0 0
        %5992 = vmatpush1.bf16.msra.mxu0 0
        %5993 = vmatprep.subr.bf16.mxu0 0
        %5994 = vmatpush1.bf16.msra.mxu0 0
        %5995 = vmatprep.subr.bf16.mxu0 0
        %5996 = vmatpush1.bf16.msra.mxu0 0
        %5997 = vmatprep.subr.bf16.mxu0 0
        %5998 = vmatpush1.bf16.msra.mxu0 0
        %5999 = vmatprep.subr.bf16.mxu0 0
        %6000 = vmatpush1.bf16.msra.mxu0 0
        %6001 = vmatprep.subr.bf16.mxu0 0
        %6002 = vmatpush1.bf16.msra.mxu0 0
        %6003 = vmatprep.mubr.bf16.mxu0 0
        %6004 = vmatmul.mubr.bf16.gmra.mrb[0].mxu0 %v4243
        %v6005 = vpop.f32.mrb[0].mxu0
        %v6006 = vadd.f32 0.0, %v6005
        %v6007 = vpop.f32.mrb[0].mxu0
        %v6008 = vadd.f32 0.0, %v6007
        %v6009 = vpop.f32.mrb[0].mxu0
        %v6010 = vadd.f32 0.0, %v6009
        %v6011 = vpop.f32.mrb[0].mxu0
        %v6012 = vadd.f32 0.0, %v6011
        %6013 = vdwg.mxu0
        %6014 = vmatprep.subr.bf16.mxu0 %v5910
        %6015 = vmatpush1.bf16.msra.mxu0 %v5909
        %6016 = vmatprep.subr.bf16.mxu0 %v5914
        %6017 = vmatpush1.bf16.msra.mxu0 %v5913
        %6018 = vmatprep.subr.bf16.mxu0 %v5918
        %6019 = vmatpush1.bf16.msra.mxu0 %v5917
        %6020 = vmatprep.subr.bf16.mxu0 %v5922
        %6021 = vmatpush1.bf16.msra.mxu0 %v5921
        %6022 = vmatprep.subr.bf16.mxu0 %v5926
        %6023 = vmatpush1.bf16.msra.mxu0 %v5925
        %6024 = vmatprep.subr.bf16.mxu0 %v5930
        %6025 = vmatpush1.bf16.msra.mxu0 %v5929
        %6026 = vmatprep.subr.bf16.mxu0 %v5934
        %6027 = vmatpush1.bf16.msra.mxu0 %v5933
        %6028 = vmatprep.subr.bf16.mxu0 %v5938
        %6029 = vmatpush1.bf16.msra.mxu0 %v5937
        %6030 = vmatprep.subr.bf16.mxu0 0
        %6031 = vmatpush1.bf16.msra.mxu0 0
        %6032 = vmatprep.subr.bf16.mxu0 0
        %6033 = vmatpush1.bf16.msra.mxu0 0
        %6034 = vmatprep.subr.bf16.mxu0 0
        %6035 = vmatpush1.bf16.msra.mxu0 0
        %6036 = vmatprep.subr.bf16.mxu0 0
        %6037 = vmatpush1.bf16.msra.mxu0 0
        %6038 = vmatprep.subr.bf16.mxu0 0
        %6039 = vmatpush1.bf16.msra.mxu0 0
        %6040 = vmatprep.subr.bf16.mxu0 0
        %6041 = vmatpush1.bf16.msra.mxu0 0
        %6042 = vmatprep.subr.bf16.mxu0 0
        %6043 = vmatpush1.bf16.msra.mxu0 0
        %6044 = vmatprep.subr.bf16.mxu0 0
        %6045 = vmatpush1.bf16.msra.mxu0 0
        %6046 = vmatprep.mubr.bf16.mxu0 0
        %6047 = vmatmul.mubr.bf16.gmra.mrb[0].mxu0 %v4243
        %v6048 = vpop.f32.mrb[0].mxu0
        %v6049 = vadd.f32 0.0, %v6048
        %v6050 = vpop.f32.mrb[0].mxu0
        %v6051 = vadd.f32 0.0, %v6050
        %v6052 = vpop.f32.mrb[0].mxu0
        %v6053 = vadd.f32 0.0, %v6052
        %v6054 = vpop.f32.mrb[0].mxu0
        %v6055 = vadd.f32 0.0, %v6054
        %6056 = vdwg.mxu0
        %v6057 = vpack.c.bf16 %v6010, %v6006
        %v6058 = vpack.c.bf16 %v6012, %v6008
        %v6059 = vpack.c.bf16 %v6053, %v6049
        %v6060 = vpack.c.bf16 %v6055, %v6051
        %s6061 = scalar_lea.vmem [#allocation19], 32
        %v6062 = vld [vmem:[%s6061] sm:$0xf]
        %v6063 = vld [vmem:[%s6061 + $0x4] sm:$0xf]
        %v6066 = vunpack.c.l.b16 %v6062
        %v6067 = vunpack.c.l.b16 %v6063
        %v6068 = vpack.c.b16 %v6067, %v6066
        %v6070 = vsel %vm1192, %v6068, 0
        %6072 = vmatprep.subr.bf16.mxu0 %v6058
        %6073 = vmatpush1.bf16.msra.mxu0 %v6057
        %6074 = vmatprep.subr.bf16.mxu0 0
        %6075 = vmatpush1.bf16.msra.mxu0 0
        %6076 = vmatprep.subr.bf16.mxu0 0
        %6077 = vmatpush1.bf16.msra.mxu0 0
        %6078 = vmatprep.subr.bf16.mxu0 0
        %6079 = vmatpush1.bf16.msra.mxu0 0
        %6080 = vmatprep.subr.bf16.mxu0 0
        %6081 = vmatpush1.bf16.msra.mxu0 0
        %6082 = vmatprep.subr.bf16.mxu0 0
        %6083 = vmatpush1.bf16.msra.mxu0 0
        %6084 = vmatprep.subr.bf16.mxu0 0
        %6085 = vmatpush1.bf16.msra.mxu0 0
        %6086 = vmatprep.subr.bf16.mxu0 0
        %6087 = vmatpush1.bf16.msra.mxu0 0
        %6088 = vmatprep.subr.bf16.mxu0 0
        %6089 = vmatpush1.bf16.msra.mxu0 0
        %6090 = vmatprep.subr.bf16.mxu0 0
        %6091 = vmatpush1.bf16.msra.mxu0 0
        %6092 = vmatprep.subr.bf16.mxu0 0
        %6093 = vmatpush1.bf16.msra.mxu0 0
        %6094 = vmatprep.subr.bf16.mxu0 0
        %6095 = vmatpush1.bf16.msra.mxu0 0
        %6096 = vmatprep.subr.bf16.mxu0 0
        %6097 = vmatpush1.bf16.msra.mxu0 0
        %6098 = vmatprep.subr.bf16.mxu0 0
        %6099 = vmatpush1.bf16.msra.mxu0 0
        %6100 = vmatprep.subr.bf16.mxu0 0
        %6101 = vmatpush1.bf16.msra.mxu0 0
        %6102 = vmatprep.subr.bf16.mxu0 0
        %6103 = vmatpush1.bf16.msra.mxu0 0
        %6104 = vmatprep.mubr.bf16.mxu0 0
        %6105 = vmatmul.mubr.bf16.gmra.mrb[0].mxu0 %v6070
        %v6106 = vpop.f32.mrb[0].mxu0
        %v6107 = vadd.f32 0.0, %v6106
        %v6108 = vpop.f32.mrb[0].mxu0
        %v6109 = vadd.f32 0.0, %v6108
        %v6110 = vpop.f32.mrb[0].mxu0
        %v6111 = vadd.f32 0.0, %v6110
        %v6112 = vpop.f32.mrb[0].mxu0
        %v6113 = vadd.f32 0.0, %v6112
        %6114 = vdwg.mxu0
        %6115 = vmatprep.subr.bf16.mxu0 %v6060
        %6116 = vmatpush1.bf16.msra.mxu0 %v6059
        %6117 = vmatprep.subr.bf16.mxu0 0
        %6118 = vmatpush1.bf16.msra.mxu0 0
        %6119 = vmatprep.subr.bf16.mxu0 0
        %6120 = vmatpush1.bf16.msra.mxu0 0
        %6121 = vmatprep.subr.bf16.mxu0 0
        %6122 = vmatpush1.bf16.msra.mxu0 0
        %6123 = vmatprep.subr.bf16.mxu0 0
        %6124 = vmatpush1.bf16.msra.mxu0 0
        %6125 = vmatprep.subr.bf16.mxu0 0
        %6126 = vmatpush1.bf16.msra.mxu0 0
        %6127 = vmatprep.subr.bf16.mxu0 0
        %6128 = vmatpush1.bf16.msra.mxu0 0
        %6129 = vmatprep.subr.bf16.mxu0 0
        %6130 = vmatpush1.bf16.msra.mxu0 0
        %6131 = vmatprep.subr.bf16.mxu0 0
        %6132 = vmatpush1.bf16.msra.mxu0 0
        %6133 = vmatprep.subr.bf16.mxu0 0
        %6134 = vmatpush1.bf16.msra.mxu0 0
        %6135 = vmatprep.subr.bf16.mxu0 0
        %6136 = vmatpush1.bf16.msra.mxu0 0
        %6137 = vmatprep.subr.bf16.mxu0 0
        %6138 = vmatpush1.bf16.msra.mxu0 0
        %6139 = vmatprep.subr.bf16.mxu0 0
        %6140 = vmatpush1.bf16.msra.mxu0 0
        %6141 = vmatprep.subr.bf16.mxu0 0
        %6142 = vmatpush1.bf16.msra.mxu0 0
        %6143 = vmatprep.subr.bf16.mxu0 0
        %6144 = vmatpush1.bf16.msra.mxu0 0
        %6145 = vmatprep.subr.bf16.mxu0 0
        %6146 = vmatpush1.bf16.msra.mxu0 0
        %6147 = vmatprep.mubr.bf16.mxu0 0
        %6148 = vmatmul.mubr.bf16.gmra.mrb[0].mxu0 %v6070
        %v6149 = vpop.f32.mrb[0].mxu0
        %v6150 = vadd.f32 0.0, %v6149
        %v6151 = vpop.f32.mrb[0].mxu0
        %v6152 = vadd.f32 0.0, %v6151
        %v6153 = vpop.f32.mrb[0].mxu0
        %v6154 = vadd.f32 0.0, %v6153
        %v6155 = vpop.f32.mrb[0].mxu0
        %v6156 = vadd.f32 0.0, %v6155
        %6157 = vdwg.mxu0
        %v6158 = vadd.f32 %v5770, %v6107
        %v6159 = vadd.f32 %v5771, %v6109
        %v6160 = vadd.f32 %v5772, %v6150
        %v6161 = vadd.f32 %v5773, %v6152
        %v6162 = vadd.f32 %v5774, %v6111
        %v6163 = vadd.f32 %v5775, %v6113
        %v6164 = vadd.f32 %v5776, %v6154
        %v6165 = vadd.f32 %v5777, %v6156
        %s6166 = scalar_lea.vmem [#allocation21], 1280
        %v6167 = vld [vmem:[%s6166] sm:$0xff]
        %v6168 = vld [vmem:[%s6166 + $0x8] sm:$0xff]
        %v6169 = vld [vmem:[%s6166 + $0x10] sm:$0xff]
        %v6170 = vld [vmem:[%s6166 + $0x18] sm:$0xff]
        %v6171 = vld [vmem:[%s6166 + $0x20] sm:$0xff]
        %v6172 = vld [vmem:[%s6166 + $0x28] sm:$0xff]
        %v6173 = vld [vmem:[%s6166 + $0x30] sm:$0xff]
        %v6174 = vld [vmem:[%s6166 + $0x38] sm:$0xff]
        %v6175 = vld [vmem:[%s6166 + $0x40] sm:$0xff]
        %v6176 = vld [vmem:[%s6166 + $0x48] sm:$0xff]
        %v6177 = vld [vmem:[%s6166 + $0x50] sm:$0xff]
        %v6178 = vld [vmem:[%s6166 + $0x58] sm:$0xff]
        %v6179 = vld [vmem:[%s6166 + $0x60] sm:$0xff]
        %v6180 = vld [vmem:[%s6166 + $0x68] sm:$0xff]
        %v6181 = vld [vmem:[%s6166 + $0x70] sm:$0xff]
        %v6182 = vld [vmem:[%s6166 + $0x78] sm:$0xff]
        %v6183 = vld [vmem:[%s6166 + $0x80] sm:$0xff]
        %v6184 = vld [vmem:[%s6166 + $0x88] sm:$0xff]
        %v6185 = vld [vmem:[%s6166 + $0x90] sm:$0xff]
        %v6186 = vld [vmem:[%s6166 + $0x98] sm:$0xff]
        %v6187 = vld [vmem:[%s6166 + $0xa0] sm:$0xff]
        %v6188 = vld [vmem:[%s6166 + $0xa8] sm:$0xff]
        %v6189 = vld [vmem:[%s6166 + $0xb0] sm:$0xff]
        %v6190 = vld [vmem:[%s6166 + $0xb8] sm:$0xff]
        %v6191 = vld [vmem:[%s6166 + $0xc0] sm:$0xff]
        %v6192 = vld [vmem:[%s6166 + $0xc8] sm:$0xff]
        %v6193 = vld [vmem:[%s6166 + $0xd0] sm:$0xff]
        %v6194 = vld [vmem:[%s6166 + $0xd8] sm:$0xff]
        %v6195 = vld [vmem:[%s6166 + $0xe0] sm:$0xff]
        %v6196 = vld [vmem:[%s6166 + $0xe8] sm:$0xff]
        %v6197 = vld [vmem:[%s6166 + $0xf0] sm:$0xff]
        %v6198 = vld [vmem:[%s6166 + $0xf8] sm:$0xff]
        %v6231 = vunpack.c.l.b16 %v6167
        %v6232 = vunpack.c.h.b16 %v6167
        %v6233 = vunpack.c.l.b16 %v6168
        %v6234 = vunpack.c.h.b16 %v6168
        %v6235 = vunpack.c.l.b16 %v6169
        %v6236 = vunpack.c.h.b16 %v6169
        %v6237 = vunpack.c.l.b16 %v6170
        %v6238 = vunpack.c.h.b16 %v6170
        %v6239 = vunpack.c.l.b16 %v6171
        %v6240 = vunpack.c.h.b16 %v6171
        %v6241 = vunpack.c.l.b16 %v6172
        %v6242 = vunpack.c.h.b16 %v6172
        %v6243 = vunpack.c.l.b16 %v6173
        %v6244 = vunpack.c.h.b16 %v6173
        %v6245 = vunpack.c.l.b16 %v6174
        %v6246 = vunpack.c.h.b16 %v6174
        %v6247 = vunpack.c.l.b16 %v6175
        %v6248 = vunpack.c.h.b16 %v6175
        %v6249 = vunpack.c.l.b16 %v6176
        %v6250 = vunpack.c.h.b16 %v6176
        %v6251 = vunpack.c.l.b16 %v6177
        %v6252 = vunpack.c.h.b16 %v6177
        %v6253 = vunpack.c.l.b16 %v6178
        %v6254 = vunpack.c.h.b16 %v6178
        %v6255 = vunpack.c.l.b16 %v6179
        %v6256 = vunpack.c.h.b16 %v6179
        %v6257 = vunpack.c.l.b16 %v6180
        %v6258 = vunpack.c.h.b16 %v6180
        %v6259 = vunpack.c.l.b16 %v6181
        %v6260 = vunpack.c.h.b16 %v6181
        %v6261 = vunpack.c.l.b16 %v6182
        %v6262 = vunpack.c.h.b16 %v6182
        %v6263 = vunpack.c.l.b16 %v6183
        %v6264 = vunpack.c.h.b16 %v6183
        %v6265 = vunpack.c.l.b16 %v6184
        %v6266 = vunpack.c.h.b16 %v6184
        %v6267 = vunpack.c.l.b16 %v6185
        %v6268 = vunpack.c.h.b16 %v6185
        %v6269 = vunpack.c.l.b16 %v6186
        %v6270 = vunpack.c.h.b16 %v6186
        %v6271 = vunpack.c.l.b16 %v6187
        %v6272 = vunpack.c.h.b16 %v6187
        %v6273 = vunpack.c.l.b16 %v6188
        %v6274 = vunpack.c.h.b16 %v6188
        %v6275 = vunpack.c.l.b16 %v6189
        %v6276 = vunpack.c.h.b16 %v6189
        %v6277 = vunpack.c.l.b16 %v6190
        %v6278 = vunpack.c.h.b16 %v6190
        %v6279 = vunpack.c.l.b16 %v6191
        %v6280 = vunpack.c.h.b16 %v6191
        %v6281 = vunpack.c.l.b16 %v6192
        %v6282 = vunpack.c.h.b16 %v6192
        %v6283 = vunpack.c.l.b16 %v6193
        %v6284 = vunpack.c.h.b16 %v6193
        %v6285 = vunpack.c.l.b16 %v6194
        %v6286 = vunpack.c.h.b16 %v6194
        %v6287 = vunpack.c.l.b16 %v6195
        %v6288 = vunpack.c.h.b16 %v6195
        %v6289 = vunpack.c.l.b16 %v6196
        %v6290 = vunpack.c.h.b16 %v6196
        %v6291 = vunpack.c.l.b16 %v6197
        %v6292 = vunpack.c.h.b16 %v6197
        %v6293 = vunpack.c.l.b16 %v6198
        %v6294 = vunpack.c.h.b16 %v6198
        %v6295 = vpack.c.b16 %v6235, %v6231
        %v6296 = vpack.c.b16 %v6236, %v6232
        %v6297 = vpack.c.b16 %v6237, %v6233
        %v6298 = vpack.c.b16 %v6238, %v6234
        %v6299 = vpack.c.b16 %v6243, %v6239
        %v6300 = vpack.c.b16 %v6244, %v6240
        %v6301 = vpack.c.b16 %v6245, %v6241
        %v6302 = vpack.c.b16 %v6246, %v6242
        %v6303 = vpack.c.b16 %v6251, %v6247
        %v6304 = vpack.c.b16 %v6252, %v6248
        %v6305 = vpack.c.b16 %v6253, %v6249
        %v6306 = vpack.c.b16 %v6254, %v6250
        %v6307 = vpack.c.b16 %v6259, %v6255
        %v6308 = vpack.c.b16 %v6260, %v6256
        %v6309 = vpack.c.b16 %v6261, %v6257
        %v6310 = vpack.c.b16 %v6262, %v6258
        %v6311 = vpack.c.b16 %v6267, %v6263
        %v6312 = vpack.c.b16 %v6268, %v6264
        %v6313 = vpack.c.b16 %v6269, %v6265
        %v6314 = vpack.c.b16 %v6270, %v6266
        %v6315 = vpack.c.b16 %v6275, %v6271
        %v6316 = vpack.c.b16 %v6276, %v6272
        %v6317 = vpack.c.b16 %v6277, %v6273
        %v6318 = vpack.c.b16 %v6278, %v6274
        %v6319 = vpack.c.b16 %v6283, %v6279
        %v6320 = vpack.c.b16 %v6284, %v6280
        %v6321 = vpack.c.b16 %v6285, %v6281
        %v6322 = vpack.c.b16 %v6286, %v6282
        %v6323 = vpack.c.b16 %v6291, %v6287
        %v6324 = vpack.c.b16 %v6292, %v6288
        %v6325 = vpack.c.b16 %v6293, %v6289
        %v6326 = vpack.c.b16 %v6294, %v6290
        %6359 = vmatprep.subr.bf16.mxu0 %v6296
        %6360 = vmatpush1.bf16.msra.mxu0 %v6295
        %6361 = vmatprep.subr.bf16.mxu0 %v6300
        %6362 = vmatpush1.bf16.msra.mxu0 %v6299
        %6363 = vmatprep.subr.bf16.mxu0 %v6304
        %6364 = vmatpush1.bf16.msra.mxu0 %v6303
        %6365 = vmatprep.subr.bf16.mxu0 %v6308
        %6366 = vmatpush1.bf16.msra.mxu0 %v6307
        %6367 = vmatprep.subr.bf16.mxu0 %v6312
        %6368 = vmatpush1.bf16.msra.mxu0 %v6311
        %6369 = vmatprep.subr.bf16.mxu0 %v6316
        %6370 = vmatpush1.bf16.msra.mxu0 %v6315
        %6371 = vmatprep.subr.bf16.mxu0 %v6320
        %6372 = vmatpush1.bf16.msra.mxu0 %v6319
        %6373 = vmatprep.subr.bf16.mxu0 %v6324
        %6374 = vmatpush1.bf16.msra.mxu0 %v6323
        %6375 = vmatprep.subr.bf16.mxu0 0
        %6376 = vmatpush1.bf16.msra.mxu0 0
        %6377 = vmatprep.subr.bf16.mxu0 0
        %6378 = vmatpush1.bf16.msra.mxu0 0
        %6379 = vmatprep.subr.bf16.mxu0 0
        %6380 = vmatpush1.bf16.msra.mxu0 0
        %6381 = vmatprep.subr.bf16.mxu0 0
        %6382 = vmatpush1.bf16.msra.mxu0 0
        %6383 = vmatprep.subr.bf16.mxu0 0
        %6384 = vmatpush1.bf16.msra.mxu0 0
        %6385 = vmatprep.subr.bf16.mxu0 0
        %6386 = vmatpush1.bf16.msra.mxu0 0
        %6387 = vmatprep.subr.bf16.mxu0 0
        %6388 = vmatpush1.bf16.msra.mxu0 0
        %6389 = vmatprep.subr.bf16.mxu0 0
        %6390 = vmatpush1.bf16.msra.mxu0 0
        %6391 = vmatprep.mubr.bf16.mxu0 0
        %6392 = vmatmul.mubr.bf16.gmra.mrb[0].mxu0 %v4243
        %v6393 = vpop.f32.mrb[0].mxu0
        %v6394 = vadd.f32 0.0, %v6393
        %v6395 = vpop.f32.mrb[0].mxu0
        %v6396 = vadd.f32 0.0, %v6395
        %v6397 = vpop.f32.mrb[0].mxu0
        %v6398 = vadd.f32 0.0, %v6397
        %v6399 = vpop.f32.mrb[0].mxu0
        %v6400 = vadd.f32 0.0, %v6399
        %6401 = vdwg.mxu0
        %6402 = vmatprep.subr.bf16.mxu0 %v6298
        %6403 = vmatpush1.bf16.msra.mxu0 %v6297
        %6404 = vmatprep.subr.bf16.mxu0 %v6302
        %6405 = vmatpush1.bf16.msra.mxu0 %v6301
        %6406 = vmatprep.subr.bf16.mxu0 %v6306
        %6407 = vmatpush1.bf16.msra.mxu0 %v6305
        %6408 = vmatprep.subr.bf16.mxu0 %v6310
        %6409 = vmatpush1.bf16.msra.mxu0 %v6309
        %6410 = vmatprep.subr.bf16.mxu0 %v6314
        %6411 = vmatpush1.bf16.msra.mxu0 %v6313
        %6412 = vmatprep.subr.bf16.mxu0 %v6318
        %6413 = vmatpush1.bf16.msra.mxu0 %v6317
        %6414 = vmatprep.subr.bf16.mxu0 %v6322
        %6415 = vmatpush1.bf16.msra.mxu0 %v6321
        %6416 = vmatprep.subr.bf16.mxu0 %v6326
        %6417 = vmatpush1.bf16.msra.mxu0 %v6325
        %6418 = vmatprep.subr.bf16.mxu0 0
        %6419 = vmatpush1.bf16.msra.mxu0 0
        %6420 = vmatprep.subr.bf16.mxu0 0
        %6421 = vmatpush1.bf16.msra.mxu0 0
        %6422 = vmatprep.subr.bf16.mxu0 0
        %6423 = vmatpush1.bf16.msra.mxu0 0
        %6424 = vmatprep.subr.bf16.mxu0 0
        %6425 = vmatpush1.bf16.msra.mxu0 0
        %6426 = vmatprep.subr.bf16.mxu0 0
        %6427 = vmatpush1.bf16.msra.mxu0 0
        %6428 = vmatprep.subr.bf16.mxu0 0
        %6429 = vmatpush1.bf16.msra.mxu0 0
        %6430 = vmatprep.subr.bf16.mxu0 0
        %6431 = vmatpush1.bf16.msra.mxu0 0
        %6432 = vmatprep.subr.bf16.mxu0 0
        %6433 = vmatpush1.bf16.msra.mxu0 0
        %6434 = vmatprep.mubr.bf16.mxu0 0
        %6435 = vmatmul.mubr.bf16.gmra.mrb[0].mxu0 %v4243
        %v6436 = vpop.f32.mrb[0].mxu0
        %v6437 = vadd.f32 0.0, %v6436
        %v6438 = vpop.f32.mrb[0].mxu0
        %v6439 = vadd.f32 0.0, %v6438
        %v6440 = vpop.f32.mrb[0].mxu0
        %v6441 = vadd.f32 0.0, %v6440
        %v6442 = vpop.f32.mrb[0].mxu0
        %v6443 = vadd.f32 0.0, %v6442
        %6444 = vdwg.mxu0
        %v6445 = vpack.c.bf16 %v6398, %v6394
        %v6446 = vpack.c.bf16 %v6400, %v6396
        %v6447 = vpack.c.bf16 %v6441, %v6437
        %v6448 = vpack.c.bf16 %v6443, %v6439
        %s6449 = scalar_lea.vmem [#allocation19], 40
        %v6450 = vld [vmem:[%s6449] sm:$0xf]
        %v6451 = vld [vmem:[%s6449 + $0x4] sm:$0xf]
        %v6454 = vunpack.c.l.b16 %v6450
        %v6455 = vunpack.c.l.b16 %v6451
        %v6456 = vpack.c.b16 %v6455, %v6454
        %v6458 = vsel %vm1192, %v6456, 0
        %6460 = vmatprep.subr.bf16.mxu0 %v6446
        %6461 = vmatpush1.bf16.msra.mxu0 %v6445
        %6462 = vmatprep.subr.bf16.mxu0 0
        %6463 = vmatpush1.bf16.msra.mxu0 0
        %6464 = vmatprep.subr.bf16.mxu0 0
        %6465 = vmatpush1.bf16.msra.mxu0 0
        %6466 = vmatprep.subr.bf16.mxu0 0
        %6467 = vmatpush1.bf16.msra.mxu0 0
        %6468 = vmatprep.subr.bf16.mxu0 0
        %6469 = vmatpush1.bf16.msra.mxu0 0
        %6470 = vmatprep.subr.bf16.mxu0 0
        %6471 = vmatpush1.bf16.msra.mxu0 0
        %6472 = vmatprep.subr.bf16.mxu0 0
        %6473 = vmatpush1.bf16.msra.mxu0 0
        %6474 = vmatprep.subr.bf16.mxu0 0
        %6475 = vmatpush1.bf16.msra.mxu0 0
        %6476 = vmatprep.subr.bf16.mxu0 0
        %6477 = vmatpush1.bf16.msra.mxu0 0
        %6478 = vmatprep.subr.bf16.mxu0 0
        %6479 = vmatpush1.bf16.msra.mxu0 0
        %6480 = vmatprep.subr.bf16.mxu0 0
        %6481 = vmatpush1.bf16.msra.mxu0 0
        %6482 = vmatprep.subr.bf16.mxu0 0
        %6483 = vmatpush1.bf16.msra.mxu0 0
        %6484 = vmatprep.subr.bf16.mxu0 0
        %6485 = vmatpush1.bf16.msra.mxu0 0
        %6486 = vmatprep.subr.bf16.mxu0 0
        %6487 = vmatpush1.bf16.msra.mxu0 0
        %6488 = vmatprep.subr.bf16.mxu0 0
        %6489 = vmatpush1.bf16.msra.mxu0 0
        %6490 = vmatprep.subr.bf16.mxu0 0
        %6491 = vmatpush1.bf16.msra.mxu0 0
        %6492 = vmatprep.mubr.bf16.mxu0 0
        %6493 = vmatmul.mubr.bf16.gmra.mrb[0].mxu0 %v6458
        %v6494 = vpop.f32.mrb[0].mxu0
        %v6495 = vadd.f32 0.0, %v6494
        %v6496 = vpop.f32.mrb[0].mxu0
        %v6497 = vadd.f32 0.0, %v6496
        %v6498 = vpop.f32.mrb[0].mxu0
        %v6499 = vadd.f32 0.0, %v6498
        %v6500 = vpop.f32.mrb[0].mxu0
        %v6501 = vadd.f32 0.0, %v6500
        %6502 = vdwg.mxu0
        %6503 = vmatprep.subr.bf16.mxu0 %v6448
        %6504 = vmatpush1.bf16.msra.mxu0 %v6447
        %6505 = vmatprep.subr.bf16.mxu0 0
        %6506 = vmatpush1.bf16.msra.mxu0 0
        %6507 = vmatprep.subr.bf16.mxu0 0
        %6508 = vmatpush1.bf16.msra.mxu0 0
        %6509 = vmatprep.subr.bf16.mxu0 0
        %6510 = vmatpush1.bf16.msra.mxu0 0
        %6511 = vmatprep.subr.bf16.mxu0 0
        %6512 = vmatpush1.bf16.msra.mxu0 0
        %6513 = vmatprep.subr.bf16.mxu0 0
        %6514 = vmatpush1.bf16.msra.mxu0 0
        %6515 = vmatprep.subr.bf16.mxu0 0
        %6516 = vmatpush1.bf16.msra.mxu0 0
        %6517 = vmatprep.subr.bf16.mxu0 0
        %6518 = vmatpush1.bf16.msra.mxu0 0
        %6519 = vmatprep.subr.bf16.mxu0 0
        %6520 = vmatpush1.bf16.msra.mxu0 0
        %6521 = vmatprep.subr.bf16.mxu0 0
        %6522 = vmatpush1.bf16.msra.mxu0 0
        %6523 = vmatprep.subr.bf16.mxu0 0
        %6524 = vmatpush1.bf16.msra.mxu0 0
        %6525 = vmatprep.subr.bf16.mxu0 0
        %6526 = vmatpush1.bf16.msra.mxu0 0
        %6527 = vmatprep.subr.bf16.mxu0 0
        %6528 = vmatpush1.bf16.msra.mxu0 0
        %6529 = vmatprep.subr.bf16.mxu0 0
        %6530 = vmatpush1.bf16.msra.mxu0 0
        %6531 = vmatprep.subr.bf16.mxu0 0
        %6532 = vmatpush1.bf16.msra.mxu0 0
        %6533 = vmatprep.subr.bf16.mxu0 0
        %6534 = vmatpush1.bf16.msra.mxu0 0
        %6535 = vmatprep.mubr.bf16.mxu0 0
        %6536 = vmatmul.mubr.bf16.gmra.mrb[0].mxu0 %v6458
        %v6537 = vpop.f32.mrb[0].mxu0
        %v6538 = vadd.f32 0.0, %v6537
        %v6539 = vpop.f32.mrb[0].mxu0
        %v6540 = vadd.f32 0.0, %v6539
        %v6541 = vpop.f32.mrb[0].mxu0
        %v6542 = vadd.f32 0.0, %v6541
        %v6543 = vpop.f32.mrb[0].mxu0
        %v6544 = vadd.f32 0.0, %v6543
        %6545 = vdwg.mxu0
        %v6546 = vadd.f32 %v6158, %v6495
        %v6547 = vadd.f32 %v6159, %v6497
        %v6548 = vadd.f32 %v6160, %v6538
        %v6549 = vadd.f32 %v6161, %v6540
        %v6550 = vadd.f32 %v6162, %v6499
        %v6551 = vadd.f32 %v6163, %v6501
        %v6552 = vadd.f32 %v6164, %v6542
        %v6553 = vadd.f32 %v6165, %v6544
        %s6554 = scalar_lea.vmem [#allocation21], 1536
        %v6555 = vld [vmem:[%s6554] sm:$0xff]
        %v6556 = vld [vmem:[%s6554 + $0x8] sm:$0xff]
        %v6557 = vld [vmem:[%s6554 + $0x10] sm:$0xff]
        %v6558 = vld [vmem:[%s6554 + $0x18] sm:$0xff]
        %v6559 = vld [vmem:[%s6554 + $0x20] sm:$0xff]
        %v6560 = vld [vmem:[%s6554 + $0x28] sm:$0xff]
        %v6561 = vld [vmem:[%s6554 + $0x30] sm:$0xff]
        %v6562 = vld [vmem:[%s6554 + $0x38] sm:$0xff]
        %v6563 = vld [vmem:[%s6554 + $0x40] sm:$0xff]
        %v6564 = vld [vmem:[%s6554 + $0x48] sm:$0xff]
        %v6565 = vld [vmem:[%s6554 + $0x50] sm:$0xff]
        %v6566 = vld [vmem:[%s6554 + $0x58] sm:$0xff]
        %v6567 = vld [vmem:[%s6554 + $0x60] sm:$0xff]
        %v6568 = vld [vmem:[%s6554 + $0x68] sm:$0xff]
        %v6569 = vld [vmem:[%s6554 + $0x70] sm:$0xff]
        %v6570 = vld [vmem:[%s6554 + $0x78] sm:$0xff]
        %v6571 = vld [vmem:[%s6554 + $0x80] sm:$0xff]
        %v6572 = vld [vmem:[%s6554 + $0x88] sm:$0xff]
        %v6573 = vld [vmem:[%s6554 + $0x90] sm:$0xff]
        %v6574 = vld [vmem:[%s6554 + $0x98] sm:$0xff]
        %v6575 = vld [vmem:[%s6554 + $0xa0] sm:$0xff]
        %v6576 = vld [vmem:[%s6554 + $0xa8] sm:$0xff]
        %v6577 = vld [vmem:[%s6554 + $0xb0] sm:$0xff]
        %v6578 = vld [vmem:[%s6554 + $0xb8] sm:$0xff]
        %v6579 = vld [vmem:[%s6554 + $0xc0] sm:$0xff]
        %v6580 = vld [vmem:[%s6554 + $0xc8] sm:$0xff]
        %v6581 = vld [vmem:[%s6554 + $0xd0] sm:$0xff]
        %v6582 = vld [vmem:[%s6554 + $0xd8] sm:$0xff]
        %v6583 = vld [vmem:[%s6554 + $0xe0] sm:$0xff]
        %v6584 = vld [vmem:[%s6554 + $0xe8] sm:$0xff]
        %v6585 = vld [vmem:[%s6554 + $0xf0] sm:$0xff]
        %v6586 = vld [vmem:[%s6554 + $0xf8] sm:$0xff]
        %v6619 = vunpack.c.l.b16 %v6555
        %v6620 = vunpack.c.h.b16 %v6555
        %v6621 = vunpack.c.l.b16 %v6556
        %v6622 = vunpack.c.h.b16 %v6556
        %v6623 = vunpack.c.l.b16 %v6557
        %v6624 = vunpack.c.h.b16 %v6557
        %v6625 = vunpack.c.l.b16 %v6558
        %v6626 = vunpack.c.h.b16 %v6558
        %v6627 = vunpack.c.l.b16 %v6559
        %v6628 = vunpack.c.h.b16 %v6559
        %v6629 = vunpack.c.l.b16 %v6560
        %v6630 = vunpack.c.h.b16 %v6560
        %v6631 = vunpack.c.l.b16 %v6561
        %v6632 = vunpack.c.h.b16 %v6561
        %v6633 = vunpack.c.l.b16 %v6562
        %v6634 = vunpack.c.h.b16 %v6562
        %v6635 = vunpack.c.l.b16 %v6563
        %v6636 = vunpack.c.h.b16 %v6563
        %v6637 = vunpack.c.l.b16 %v6564
        %v6638 = vunpack.c.h.b16 %v6564
        %v6639 = vunpack.c.l.b16 %v6565
        %v6640 = vunpack.c.h.b16 %v6565
        %v6641 = vunpack.c.l.b16 %v6566
        %v6642 = vunpack.c.h.b16 %v6566
        %v6643 = vunpack.c.l.b16 %v6567
        %v6644 = vunpack.c.h.b16 %v6567
        %v6645 = vunpack.c.l.b16 %v6568
        %v6646 = vunpack.c.h.b16 %v6568
        %v6647 = vunpack.c.l.b16 %v6569
        %v6648 = vunpack.c.h.b16 %v6569
        %v6649 = vunpack.c.l.b16 %v6570
        %v6650 = vunpack.c.h.b16 %v6570
        %v6651 = vunpack.c.l.b16 %v6571
        %v6652 = vunpack.c.h.b16 %v6571
        %v6653 = vunpack.c.l.b16 %v6572
        %v6654 = vunpack.c.h.b16 %v6572
        %v6655 = vunpack.c.l.b16 %v6573
        %v6656 = vunpack.c.h.b16 %v6573
        %v6657 = vunpack.c.l.b16 %v6574
        %v6658 = vunpack.c.h.b16 %v6574
        %v6659 = vunpack.c.l.b16 %v6575
        %v6660 = vunpack.c.h.b16 %v6575
        %v6661 = vunpack.c.l.b16 %v6576
        %v6662 = vunpack.c.h.b16 %v6576
        %v6663 = vunpack.c.l.b16 %v6577
        %v6664 = vunpack.c.h.b16 %v6577
        %v6665 = vunpack.c.l.b16 %v6578
        %v6666 = vunpack.c.h.b16 %v6578
        %v6667 = vunpack.c.l.b16 %v6579
        %v6668 = vunpack.c.h.b16 %v6579
        %v6669 = vunpack.c.l.b16 %v6580
        %v6670 = vunpack.c.h.b16 %v6580
        %v6671 = vunpack.c.l.b16 %v6581
        %v6672 = vunpack.c.h.b16 %v6581
        %v6673 = vunpack.c.l.b16 %v6582
        %v6674 = vunpack.c.h.b16 %v6582
        %v6675 = vunpack.c.l.b16 %v6583
        %v6676 = vunpack.c.h.b16 %v6583
        %v6677 = vunpack.c.l.b16 %v6584
        %v6678 = vunpack.c.h.b16 %v6584
        %v6679 = vunpack.c.l.b16 %v6585
        %v6680 = vunpack.c.h.b16 %v6585
        %v6681 = vunpack.c.l.b16 %v6586
        %v6682 = vunpack.c.h.b16 %v6586
        %v6683 = vpack.c.b16 %v6623, %v6619
        %v6684 = vpack.c.b16 %v6624, %v6620
        %v6685 = vpack.c.b16 %v6625, %v6621
        %v6686 = vpack.c.b16 %v6626, %v6622
        %v6687 = vpack.c.b16 %v6631, %v6627
        %v6688 = vpack.c.b16 %v6632, %v6628
        %v6689 = vpack.c.b16 %v6633, %v6629
        %v6690 = vpack.c.b16 %v6634, %v6630
        %v6691 = vpack.c.b16 %v6639, %v6635
        %v6692 = vpack.c.b16 %v6640, %v6636
        %v6693 = vpack.c.b16 %v6641, %v6637
        %v6694 = vpack.c.b16 %v6642, %v6638
        %v6695 = vpack.c.b16 %v6647, %v6643
        %v6696 = vpack.c.b16 %v6648, %v6644
        %v6697 = vpack.c.b16 %v6649, %v6645
        %v6698 = vpack.c.b16 %v6650, %v6646
        %v6699 = vpack.c.b16 %v6655, %v6651
        %v6700 = vpack.c.b16 %v6656, %v6652
        %v6701 = vpack.c.b16 %v6657, %v6653
        %v6702 = vpack.c.b16 %v6658, %v6654
        %v6703 = vpack.c.b16 %v6663, %v6659
        %v6704 = vpack.c.b16 %v6664, %v6660
        %v6705 = vpack.c.b16 %v6665, %v6661
        %v6706 = vpack.c.b16 %v6666, %v6662
        %v6707 = vpack.c.b16 %v6671, %v6667
        %v6708 = vpack.c.b16 %v6672, %v6668
        %v6709 = vpack.c.b16 %v6673, %v6669
        %v6710 = vpack.c.b16 %v6674, %v6670
        %v6711 = vpack.c.b16 %v6679, %v6675
        %v6712 = vpack.c.b16 %v6680, %v6676
        %v6713 = vpack.c.b16 %v6681, %v6677
        %v6714 = vpack.c.b16 %v6682, %v6678
        %6747 = vmatprep.subr.bf16.mxu0 %v6684
        %6748 = vmatpush1.bf16.msra.mxu0 %v6683
        %6749 = vmatprep.subr.bf16.mxu0 %v6688
        %6750 = vmatpush1.bf16.msra.mxu0 %v6687
        %6751 = vmatprep.subr.bf16.mxu0 %v6692
        %6752 = vmatpush1.bf16.msra.mxu0 %v6691
        %6753 = vmatprep.subr.bf16.mxu0 %v6696
        %6754 = vmatpush1.bf16.msra.mxu0 %v6695
        %6755 = vmatprep.subr.bf16.mxu0 %v6700
        %6756 = vmatpush1.bf16.msra.mxu0 %v6699
        %6757 = vmatprep.subr.bf16.mxu0 %v6704
        %6758 = vmatpush1.bf16.msra.mxu0 %v6703
        %6759 = vmatprep.subr.bf16.mxu0 %v6708
        %6760 = vmatpush1.bf16.msra.mxu0 %v6707
        %6761 = vmatprep.subr.bf16.mxu0 %v6712
        %6762 = vmatpush1.bf16.msra.mxu0 %v6711
        %6763 = vmatprep.subr.bf16.mxu0 0
        %6764 = vmatpush1.bf16.msra.mxu0 0
        %6765 = vmatprep.subr.bf16.mxu0 0
        %6766 = vmatpush1.bf16.msra.mxu0 0
        %6767 = vmatprep.subr.bf16.mxu0 0
        %6768 = vmatpush1.bf16.msra.mxu0 0
        %6769 = vmatprep.subr.bf16.mxu0 0
        %6770 = vmatpush1.bf16.msra.mxu0 0
        %6771 = vmatprep.subr.bf16.mxu0 0
        %6772 = vmatpush1.bf16.msra.mxu0 0
        %6773 = vmatprep.subr.bf16.mxu0 0
        %6774 = vmatpush1.bf16.msra.mxu0 0
        %6775 = vmatprep.subr.bf16.mxu0 0
        %6776 = vmatpush1.bf16.msra.mxu0 0
        %6777 = vmatprep.subr.bf16.mxu0 0
        %6778 = vmatpush1.bf16.msra.mxu0 0
        %6779 = vmatprep.mubr.bf16.mxu0 0
        %6780 = vmatmul.mubr.bf16.gmra.mrb[0].mxu0 %v4243
        %v6781 = vpop.f32.mrb[0].mxu0
        %v6782 = vadd.f32 0.0, %v6781
        %v6783 = vpop.f32.mrb[0].mxu0
        %v6784 = vadd.f32 0.0, %v6783
        %v6785 = vpop.f32.mrb[0].mxu0
        %v6786 = vadd.f32 0.0, %v6785
        %v6787 = vpop.f32.mrb[0].mxu0
        %v6788 = vadd.f32 0.0, %v6787
        %6789 = vdwg.mxu0
        %6790 = vmatprep.subr.bf16.mxu0 %v6686
        %6791 = vmatpush1.bf16.msra.mxu0 %v6685
        %6792 = vmatprep.subr.bf16.mxu0 %v6690
        %6793 = vmatpush1.bf16.msra.mxu0 %v6689
        %6794 = vmatprep.subr.bf16.mxu0 %v6694
        %6795 = vmatpush1.bf16.msra.mxu0 %v6693
        %6796 = vmatprep.subr.bf16.mxu0 %v6698
        %6797 = vmatpush1.bf16.msra.mxu0 %v6697
        %6798 = vmatprep.subr.bf16.mxu0 %v6702
        %6799 = vmatpush1.bf16.msra.mxu0 %v6701
        %6800 = vmatprep.subr.bf16.mxu0 %v6706
        %6801 = vmatpush1.bf16.msra.mxu0 %v6705
        %6802 = vmatprep.subr.bf16.mxu0 %v6710
        %6803 = vmatpush1.bf16.msra.mxu0 %v6709
        %6804 = vmatprep.subr.bf16.mxu0 %v6714
        %6805 = vmatpush1.bf16.msra.mxu0 %v6713
        %6806 = vmatprep.subr.bf16.mxu0 0
        %6807 = vmatpush1.bf16.msra.mxu0 0
        %6808 = vmatprep.subr.bf16.mxu0 0
        %6809 = vmatpush1.bf16.msra.mxu0 0
        %6810 = vmatprep.subr.bf16.mxu0 0
        %6811 = vmatpush1.bf16.msra.mxu0 0
        %6812 = vmatprep.subr.bf16.mxu0 0
        %6813 = vmatpush1.bf16.msra.mxu0 0
        %6814 = vmatprep.subr.bf16.mxu0 0
        %6815 = vmatpush1.bf16.msra.mxu0 0
        %6816 = vmatprep.subr.bf16.mxu0 0
        %6817 = vmatpush1.bf16.msra.mxu0 0
        %6818 = vmatprep.subr.bf16.mxu0 0
        %6819 = vmatpush1.bf16.msra.mxu0 0
        %6820 = vmatprep.subr.bf16.mxu0 0
        %6821 = vmatpush1.bf16.msra.mxu0 0
        %6822 = vmatprep.mubr.bf16.mxu0 0
        %6823 = vmatmul.mubr.bf16.gmra.mrb[0].mxu0 %v4243
        %v6824 = vpop.f32.mrb[0].mxu0
        %v6825 = vadd.f32 0.0, %v6824
        %v6826 = vpop.f32.mrb[0].mxu0
        %v6827 = vadd.f32 0.0, %v6826
        %v6828 = vpop.f32.mrb[0].mxu0
        %v6829 = vadd.f32 0.0, %v6828
        %v6830 = vpop.f32.mrb[0].mxu0
        %v6831 = vadd.f32 0.0, %v6830
        %6832 = vdwg.mxu0
        %v6833 = vpack.c.bf16 %v6786, %v6782
        %v6834 = vpack.c.bf16 %v6788, %v6784
        %v6835 = vpack.c.bf16 %v6829, %v6825
        %v6836 = vpack.c.bf16 %v6831, %v6827
        %s6837 = scalar_lea.vmem [#allocation19], 48
        %v6838 = vld [vmem:[%s6837] sm:$0xf]
        %v6839 = vld [vmem:[%s6837 + $0x4] sm:$0xf]
        %v6842 = vunpack.c.l.b16 %v6838
        %v6843 = vunpack.c.l.b16 %v6839
        %v6844 = vpack.c.b16 %v6843, %v6842
        %v6846 = vsel %vm1192, %v6844, 0
        %6848 = vmatprep.subr.bf16.mxu0 %v6834
        %6849 = vmatpush1.bf16.msra.mxu0 %v6833
        %6850 = vmatprep.subr.bf16.mxu0 0
        %6851 = vmatpush1.bf16.msra.mxu0 0
        %6852 = vmatprep.subr.bf16.mxu0 0
        %6853 = vmatpush1.bf16.msra.mxu0 0
        %6854 = vmatprep.subr.bf16.mxu0 0
        %6855 = vmatpush1.bf16.msra.mxu0 0
        %6856 = vmatprep.subr.bf16.mxu0 0
        %6857 = vmatpush1.bf16.msra.mxu0 0
        %6858 = vmatprep.subr.bf16.mxu0 0
        %6859 = vmatpush1.bf16.msra.mxu0 0
        %6860 = vmatprep.subr.bf16.mxu0 0
        %6861 = vmatpush1.bf16.msra.mxu0 0
        %6862 = vmatprep.subr.bf16.mxu0 0
        %6863 = vmatpush1.bf16.msra.mxu0 0
        %6864 = vmatprep.subr.bf16.mxu0 0
        %6865 = vmatpush1.bf16.msra.mxu0 0
        %6866 = vmatprep.subr.bf16.mxu0 0
        %6867 = vmatpush1.bf16.msra.mxu0 0
        %6868 = vmatprep.subr.bf16.mxu0 0
        %6869 = vmatpush1.bf16.msra.mxu0 0
        %6870 = vmatprep.subr.bf16.mxu0 0
        %6871 = vmatpush1.bf16.msra.mxu0 0
        %6872 = vmatprep.subr.bf16.mxu0 0
        %6873 = vmatpush1.bf16.msra.mxu0 0
        %6874 = vmatprep.subr.bf16.mxu0 0
        %6875 = vmatpush1.bf16.msra.mxu0 0
        %6876 = vmatprep.subr.bf16.mxu0 0
        %6877 = vmatpush1.bf16.msra.mxu0 0
        %6878 = vmatprep.subr.bf16.mxu0 0
        %6879 = vmatpush1.bf16.msra.mxu0 0
        %6880 = vmatprep.mubr.bf16.mxu0 0
        %6881 = vmatmul.mubr.bf16.gmra.mrb[0].mxu0 %v6846
        %v6882 = vpop.f32.mrb[0].mxu0
        %v6883 = vadd.f32 0.0, %v6882
        %v6884 = vpop.f32.mrb[0].mxu0
        %v6885 = vadd.f32 0.0, %v6884
        %v6886 = vpop.f32.mrb[0].mxu0
        %v6887 = vadd.f32 0.0, %v6886
        %v6888 = vpop.f32.mrb[0].mxu0
        %v6889 = vadd.f32 0.0, %v6888
        %6890 = vdwg.mxu0
        %6891 = vmatprep.subr.bf16.mxu0 %v6836
        %6892 = vmatpush1.bf16.msra.mxu0 %v6835
        %6893 = vmatprep.subr.bf16.mxu0 0
        %6894 = vmatpush1.bf16.msra.mxu0 0
        %6895 = vmatprep.subr.bf16.mxu0 0
        %6896 = vmatpush1.bf16.msra.mxu0 0
        %6897 = vmatprep.subr.bf16.mxu0 0
        %6898 = vmatpush1.bf16.msra.mxu0 0
        %6899 = vmatprep.subr.bf16.mxu0 0
        %6900 = vmatpush1.bf16.msra.mxu0 0
        %6901 = vmatprep.subr.bf16.mxu0 0
        %6902 = vmatpush1.bf16.msra.mxu0 0
        %6903 = vmatprep.subr.bf16.mxu0 0
        %6904 = vmatpush1.bf16.msra.mxu0 0
        %6905 = vmatprep.subr.bf16.mxu0 0
        %6906 = vmatpush1.bf16.msra.mxu0 0
        %6907 = vmatprep.subr.bf16.mxu0 0
        %6908 = vmatpush1.bf16.msra.mxu0 0
        %6909 = vmatprep.subr.bf16.mxu0 0
        %6910 = vmatpush1.bf16.msra.mxu0 0
        %6911 = vmatprep.subr.bf16.mxu0 0
        %6912 = vmatpush1.bf16.msra.mxu0 0
        %6913 = vmatprep.subr.bf16.mxu0 0
        %6914 = vmatpush1.bf16.msra.mxu0 0
        %6915 = vmatprep.subr.bf16.mxu0 0
        %6916 = vmatpush1.bf16.msra.mxu0 0
        %6917 = vmatprep.subr.bf16.mxu0 0
        %6918 = vmatpush1.bf16.msra.mxu0 0
        %6919 = vmatprep.subr.bf16.mxu0 0
        %6920 = vmatpush1.bf16.msra.mxu0 0
        %6921 = vmatprep.subr.bf16.mxu0 0
        %6922 = vmatpush1.bf16.msra.mxu0 0
        %6923 = vmatprep.mubr.bf16.mxu0 0
        %6924 = vmatmul.mubr.bf16.gmra.mrb[0].mxu0 %v6846
        %v6925 = vpop.f32.mrb[0].mxu0
        %v6926 = vadd.f32 0.0, %v6925
        %v6927 = vpop.f32.mrb[0].mxu0
        %v6928 = vadd.f32 0.0, %v6927
        %v6929 = vpop.f32.mrb[0].mxu0
        %v6930 = vadd.f32 0.0, %v6929
        %v6931 = vpop.f32.mrb[0].mxu0
        %v6932 = vadd.f32 0.0, %v6931
        %6933 = vdwg.mxu0
        %v6934 = vadd.f32 %v6546, %v6883
        %v6935 = vadd.f32 %v6547, %v6885
        %v6936 = vadd.f32 %v6548, %v6926
        %v6937 = vadd.f32 %v6549, %v6928
        %v6938 = vadd.f32 %v6550, %v6887
        %v6939 = vadd.f32 %v6551, %v6889
        %v6940 = vadd.f32 %v6552, %v6930
        %v6941 = vadd.f32 %v6553, %v6932
        %s6942 = scalar_lea.vmem [#allocation21], 1792
        %v6943 = vld [vmem:[%s6942] sm:$0xff]
        %v6944 = vld [vmem:[%s6942 + $0x8] sm:$0xff]
        %v6945 = vld [vmem:[%s6942 + $0x10] sm:$0xff]
        %v6946 = vld [vmem:[%s6942 + $0x18] sm:$0xff]
        %v6947 = vld [vmem:[%s6942 + $0x20] sm:$0xff]
        %v6948 = vld [vmem:[%s6942 + $0x28] sm:$0xff]
        %v6949 = vld [vmem:[%s6942 + $0x30] sm:$0xff]
        %v6950 = vld [vmem:[%s6942 + $0x38] sm:$0xff]
        %v6951 = vld [vmem:[%s6942 + $0x40] sm:$0xff]
        %v6952 = vld [vmem:[%s6942 + $0x48] sm:$0xff]
        %v6953 = vld [vmem:[%s6942 + $0x50] sm:$0xff]
        %v6954 = vld [vmem:[%s6942 + $0x58] sm:$0xff]
        %v6955 = vld [vmem:[%s6942 + $0x60] sm:$0xff]
        %v6956 = vld [vmem:[%s6942 + $0x68] sm:$0xff]
        %v6957 = vld [vmem:[%s6942 + $0x70] sm:$0xff]
        %v6958 = vld [vmem:[%s6942 + $0x78] sm:$0xff]
        %v6959 = vld [vmem:[%s6942 + $0x80] sm:$0xff]
        %v6960 = vld [vmem:[%s6942 + $0x88] sm:$0xff]
        %v6961 = vld [vmem:[%s6942 + $0x90] sm:$0xff]
        %v6962 = vld [vmem:[%s6942 + $0x98] sm:$0xff]
        %v6963 = vld [vmem:[%s6942 + $0xa0] sm:$0xff]
        %v6964 = vld [vmem:[%s6942 + $0xa8] sm:$0xff]
        %v6965 = vld [vmem:[%s6942 + $0xb0] sm:$0xff]
        %v6966 = vld [vmem:[%s6942 + $0xb8] sm:$0xff]
        %v6967 = vld [vmem:[%s6942 + $0xc0] sm:$0xff]
        %v6968 = vld [vmem:[%s6942 + $0xc8] sm:$0xff]
        %v6969 = vld [vmem:[%s6942 + $0xd0] sm:$0xff]
        %v6970 = vld [vmem:[%s6942 + $0xd8] sm:$0xff]
        %v6971 = vld [vmem:[%s6942 + $0xe0] sm:$0xff]
        %v6972 = vld [vmem:[%s6942 + $0xe8] sm:$0xff]
        %v6973 = vld [vmem:[%s6942 + $0xf0] sm:$0xff]
        %v6974 = vld [vmem:[%s6942 + $0xf8] sm:$0xff]
        %v7007 = vunpack.c.l.b16 %v6943
        %v7008 = vunpack.c.h.b16 %v6943
        %v7009 = vunpack.c.l.b16 %v6944
        %v7010 = vunpack.c.h.b16 %v6944
        %v7011 = vunpack.c.l.b16 %v6945
        %v7012 = vunpack.c.h.b16 %v6945
        %v7013 = vunpack.c.l.b16 %v6946
        %v7014 = vunpack.c.h.b16 %v6946
        %v7015 = vunpack.c.l.b16 %v6947
        %v7016 = vunpack.c.h.b16 %v6947
        %v7017 = vunpack.c.l.b16 %v6948
        %v7018 = vunpack.c.h.b16 %v6948
        %v7019 = vunpack.c.l.b16 %v6949
        %v7020 = vunpack.c.h.b16 %v6949
        %v7021 = vunpack.c.l.b16 %v6950
        %v7022 = vunpack.c.h.b16 %v6950
        %v7023 = vunpack.c.l.b16 %v6951
        %v7024 = vunpack.c.h.b16 %v6951
        %v7025 = vunpack.c.l.b16 %v6952
        %v7026 = vunpack.c.h.b16 %v6952
        %v7027 = vunpack.c.l.b16 %v6953
        %v7028 = vunpack.c.h.b16 %v6953
        %v7029 = vunpack.c.l.b16 %v6954
        %v7030 = vunpack.c.h.b16 %v6954
        %v7031 = vunpack.c.l.b16 %v6955
        %v7032 = vunpack.c.h.b16 %v6955
        %v7033 = vunpack.c.l.b16 %v6956
        %v7034 = vunpack.c.h.b16 %v6956
        %v7035 = vunpack.c.l.b16 %v6957
        %v7036 = vunpack.c.h.b16 %v6957
        %v7037 = vunpack.c.l.b16 %v6958
        %v7038 = vunpack.c.h.b16 %v6958
        %v7039 = vunpack.c.l.b16 %v6959
        %v7040 = vunpack.c.h.b16 %v6959
        %v7041 = vunpack.c.l.b16 %v6960
        %v7042 = vunpack.c.h.b16 %v6960
        %v7043 = vunpack.c.l.b16 %v6961
        %v7044 = vunpack.c.h.b16 %v6961
        %v7045 = vunpack.c.l.b16 %v6962
        %v7046 = vunpack.c.h.b16 %v6962
        %v7047 = vunpack.c.l.b16 %v6963
        %v7048 = vunpack.c.h.b16 %v6963
        %v7049 = vunpack.c.l.b16 %v6964
        %v7050 = vunpack.c.h.b16 %v6964
        %v7051 = vunpack.c.l.b16 %v6965
        %v7052 = vunpack.c.h.b16 %v6965
        %v7053 = vunpack.c.l.b16 %v6966
        %v7054 = vunpack.c.h.b16 %v6966
        %v7055 = vunpack.c.l.b16 %v6967
        %v7056 = vunpack.c.h.b16 %v6967
        %v7057 = vunpack.c.l.b16 %v6968
        %v7058 = vunpack.c.h.b16 %v6968
        %v7059 = vunpack.c.l.b16 %v6969
        %v7060 = vunpack.c.h.b16 %v6969
        %v7061 = vunpack.c.l.b16 %v6970
        %v7062 = vunpack.c.h.b16 %v6970
        %v7063 = vunpack.c.l.b16 %v6971
        %v7064 = vunpack.c.h.b16 %v6971
        %v7065 = vunpack.c.l.b16 %v6972
        %v7066 = vunpack.c.h.b16 %v6972
        %v7067 = vunpack.c.l.b16 %v6973
        %v7068 = vunpack.c.h.b16 %v6973
        %v7069 = vunpack.c.l.b16 %v6974
        %v7070 = vunpack.c.h.b16 %v6974
        %v7071 = vpack.c.b16 %v7011, %v7007
        %v7072 = vpack.c.b16 %v7012, %v7008
        %v7073 = vpack.c.b16 %v7013, %v7009
        %v7074 = vpack.c.b16 %v7014, %v7010
        %v7075 = vpack.c.b16 %v7019, %v7015
        %v7076 = vpack.c.b16 %v7020, %v7016
        %v7077 = vpack.c.b16 %v7021, %v7017
        %v7078 = vpack.c.b16 %v7022, %v7018
        %v7079 = vpack.c.b16 %v7027, %v7023
        %v7080 = vpack.c.b16 %v7028, %v7024
        %v7081 = vpack.c.b16 %v7029, %v7025
        %v7082 = vpack.c.b16 %v7030, %v7026
        %v7083 = vpack.c.b16 %v7035, %v7031
        %v7084 = vpack.c.b16 %v7036, %v7032
        %v7085 = vpack.c.b16 %v7037, %v7033
        %v7086 = vpack.c.b16 %v7038, %v7034
        %v7087 = vpack.c.b16 %v7043, %v7039
        %v7088 = vpack.c.b16 %v7044, %v7040
        %v7089 = vpack.c.b16 %v7045, %v7041
        %v7090 = vpack.c.b16 %v7046, %v7042
        %v7091 = vpack.c.b16 %v7051, %v7047
        %v7092 = vpack.c.b16 %v7052, %v7048
        %v7093 = vpack.c.b16 %v7053, %v7049
        %v7094 = vpack.c.b16 %v7054, %v7050
        %v7095 = vpack.c.b16 %v7059, %v7055
        %v7096 = vpack.c.b16 %v7060, %v7056
        %v7097 = vpack.c.b16 %v7061, %v7057
        %v7098 = vpack.c.b16 %v7062, %v7058
        %v7099 = vpack.c.b16 %v7067, %v7063
        %v7100 = vpack.c.b16 %v7068, %v7064
        %v7101 = vpack.c.b16 %v7069, %v7065
        %v7102 = vpack.c.b16 %v7070, %v7066
        %7135 = vmatprep.subr.bf16.mxu0 %v7072
        %7136 = vmatpush1.bf16.msra.mxu0 %v7071
        %7137 = vmatprep.subr.bf16.mxu0 %v7076
        %7138 = vmatpush1.bf16.msra.mxu0 %v7075
        %7139 = vmatprep.subr.bf16.mxu0 %v7080
        %7140 = vmatpush1.bf16.msra.mxu0 %v7079
        %7141 = vmatprep.subr.bf16.mxu0 %v7084
        %7142 = vmatpush1.bf16.msra.mxu0 %v7083
        %7143 = vmatprep.subr.bf16.mxu0 %v7088
        %7144 = vmatpush1.bf16.msra.mxu0 %v7087
        %7145 = vmatprep.subr.bf16.mxu0 %v7092
        %7146 = vmatpush1.bf16.msra.mxu0 %v7091
        %7147 = vmatprep.subr.bf16.mxu0 %v7096
        %7148 = vmatpush1.bf16.msra.mxu0 %v7095
        %7149 = vmatprep.subr.bf16.mxu0 %v7100
        %7150 = vmatpush1.bf16.msra.mxu0 %v7099
        %7151 = vmatprep.subr.bf16.mxu0 0
        %7152 = vmatpush1.bf16.msra.mxu0 0
        %7153 = vmatprep.subr.bf16.mxu0 0
        %7154 = vmatpush1.bf16.msra.mxu0 0
        %7155 = vmatprep.subr.bf16.mxu0 0
        %7156 = vmatpush1.bf16.msra.mxu0 0
        %7157 = vmatprep.subr.bf16.mxu0 0
        %7158 = vmatpush1.bf16.msra.mxu0 0
        %7159 = vmatprep.subr.bf16.mxu0 0
        %7160 = vmatpush1.bf16.msra.mxu0 0
        %7161 = vmatprep.subr.bf16.mxu0 0
        %7162 = vmatpush1.bf16.msra.mxu0 0
        %7163 = vmatprep.subr.bf16.mxu0 0
        %7164 = vmatpush1.bf16.msra.mxu0 0
        %7165 = vmatprep.subr.bf16.mxu0 0
        %7166 = vmatpush1.bf16.msra.mxu0 0
        %7167 = vmatprep.mubr.bf16.mxu0 0
        %7168 = vmatmul.mubr.bf16.gmra.mrb[0].mxu0 %v4243
        %v7169 = vpop.f32.mrb[0].mxu0
        %v7170 = vadd.f32 0.0, %v7169
        %v7171 = vpop.f32.mrb[0].mxu0
        %v7172 = vadd.f32 0.0, %v7171
        %v7173 = vpop.f32.mrb[0].mxu0
        %v7174 = vadd.f32 0.0, %v7173
        %v7175 = vpop.f32.mrb[0].mxu0
        %v7176 = vadd.f32 0.0, %v7175
        %7177 = vdwg.mxu0
        %7178 = vmatprep.subr.bf16.mxu0 %v7074
        %7179 = vmatpush1.bf16.msra.mxu0 %v7073
        %7180 = vmatprep.subr.bf16.mxu0 %v7078
        %7181 = vmatpush1.bf16.msra.mxu0 %v7077
        %7182 = vmatprep.subr.bf16.mxu0 %v7082
        %7183 = vmatpush1.bf16.msra.mxu0 %v7081
        %7184 = vmatprep.subr.bf16.mxu0 %v7086
        %7185 = vmatpush1.bf16.msra.mxu0 %v7085
        %7186 = vmatprep.subr.bf16.mxu0 %v7090
        %7187 = vmatpush1.bf16.msra.mxu0 %v7089
        %7188 = vmatprep.subr.bf16.mxu0 %v7094
        %7189 = vmatpush1.bf16.msra.mxu0 %v7093
        %7190 = vmatprep.subr.bf16.mxu0 %v7098
        %7191 = vmatpush1.bf16.msra.mxu0 %v7097
        %7192 = vmatprep.subr.bf16.mxu0 %v7102
        %7193 = vmatpush1.bf16.msra.mxu0 %v7101
        %7194 = vmatprep.subr.bf16.mxu0 0
        %7195 = vmatpush1.bf16.msra.mxu0 0
        %7196 = vmatprep.subr.bf16.mxu0 0
        %7197 = vmatpush1.bf16.msra.mxu0 0
        %7198 = vmatprep.subr.bf16.mxu0 0
        %7199 = vmatpush1.bf16.msra.mxu0 0
        %7200 = vmatprep.subr.bf16.mxu0 0
        %7201 = vmatpush1.bf16.msra.mxu0 0
        %7202 = vmatprep.subr.bf16.mxu0 0
        %7203 = vmatpush1.bf16.msra.mxu0 0
        %7204 = vmatprep.subr.bf16.mxu0 0
        %7205 = vmatpush1.bf16.msra.mxu0 0
        %7206 = vmatprep.subr.bf16.mxu0 0
        %7207 = vmatpush1.bf16.msra.mxu0 0
        %7208 = vmatprep.subr.bf16.mxu0 0
        %7209 = vmatpush1.bf16.msra.mxu0 0
        %7210 = vmatprep.mubr.bf16.mxu0 0
        %7211 = vmatmul.mubr.bf16.gmra.mrb[0].mxu0 %v4243
        %v7212 = vpop.f32.mrb[0].mxu0
        %v7213 = vadd.f32 0.0, %v7212
        %v7214 = vpop.f32.mrb[0].mxu0
        %v7215 = vadd.f32 0.0, %v7214
        %v7216 = vpop.f32.mrb[0].mxu0
        %v7217 = vadd.f32 0.0, %v7216
        %v7218 = vpop.f32.mrb[0].mxu0
        %v7219 = vadd.f32 0.0, %v7218
        %7220 = vdwg.mxu0
        %v7221 = vpack.c.bf16 %v7174, %v7170
        %v7222 = vpack.c.bf16 %v7176, %v7172
        %v7223 = vpack.c.bf16 %v7217, %v7213
        %v7224 = vpack.c.bf16 %v7219, %v7215
        %s7225 = scalar_lea.vmem [#allocation19], 56
        %v7226 = vld [vmem:[%s7225] sm:$0xf]
        %v7227 = vld [vmem:[%s7225 + $0x4] sm:$0xf]
        %v7230 = vunpack.c.l.b16 %v7226
        %v7231 = vunpack.c.l.b16 %v7227
        %v7232 = vpack.c.b16 %v7231, %v7230
        %v7234 = vsel %vm1192, %v7232, 0
        %7236 = vmatprep.subr.bf16.mxu0 %v7222
        %7237 = vmatpush1.bf16.msra.mxu0 %v7221
        %7238 = vmatprep.subr.bf16.mxu0 0
        %7239 = vmatpush1.bf16.msra.mxu0 0
        %7240 = vmatprep.subr.bf16.mxu0 0
        %7241 = vmatpush1.bf16.msra.mxu0 0
        %7242 = vmatprep.subr.bf16.mxu0 0
        %7243 = vmatpush1.bf16.msra.mxu0 0
        %7244 = vmatprep.subr.bf16.mxu0 0
        %7245 = vmatpush1.bf16.msra.mxu0 0
        %7246 = vmatprep.subr.bf16.mxu0 0
        %7247 = vmatpush1.bf16.msra.mxu0 0
        %7248 = vmatprep.subr.bf16.mxu0 0
        %7249 = vmatpush1.bf16.msra.mxu0 0
        %7250 = vmatprep.subr.bf16.mxu0 0
        %7251 = vmatpush1.bf16.msra.mxu0 0
        %7252 = vmatprep.subr.bf16.mxu0 0
        %7253 = vmatpush1.bf16.msra.mxu0 0
        %7254 = vmatprep.subr.bf16.mxu0 0
        %7255 = vmatpush1.bf16.msra.mxu0 0
        %7256 = vmatprep.subr.bf16.mxu0 0
        %7257 = vmatpush1.bf16.msra.mxu0 0
        %7258 = vmatprep.subr.bf16.mxu0 0
        %7259 = vmatpush1.bf16.msra.mxu0 0
        %7260 = vmatprep.subr.bf16.mxu0 0
        %7261 = vmatpush1.bf16.msra.mxu0 0
        %7262 = vmatprep.subr.bf16.mxu0 0
        %7263 = vmatpush1.bf16.msra.mxu0 0
        %7264 = vmatprep.subr.bf16.mxu0 0
        %7265 = vmatpush1.bf16.msra.mxu0 0
        %7266 = vmatprep.subr.bf16.mxu0 0
        %7267 = vmatpush1.bf16.msra.mxu0 0
        %7268 = vmatprep.mubr.bf16.mxu0 0
        %7269 = vmatmul.mubr.bf16.gmra.mrb[0].mxu0 %v7234
        %v7270 = vpop.f32.mrb[0].mxu0
        %v7271 = vadd.f32 0.0, %v7270
        %v7272 = vpop.f32.mrb[0].mxu0
        %v7273 = vadd.f32 0.0, %v7272
        %v7274 = vpop.f32.mrb[0].mxu0
        %v7275 = vadd.f32 0.0, %v7274
        %v7276 = vpop.f32.mrb[0].mxu0
        %v7277 = vadd.f32 0.0, %v7276
        %7278 = vdwg.mxu0
        %7279 = vmatprep.subr.bf16.mxu0 %v7224
        %7280 = vmatpush1.bf16.msra.mxu0 %v7223
        %7281 = vmatprep.subr.bf16.mxu0 0
        %7282 = vmatpush1.bf16.msra.mxu0 0
        %7283 = vmatprep.subr.bf16.mxu0 0
        %7284 = vmatpush1.bf16.msra.mxu0 0
        %7285 = vmatprep.subr.bf16.mxu0 0
        %7286 = vmatpush1.bf16.msra.mxu0 0
        %7287 = vmatprep.subr.bf16.mxu0 0
        %7288 = vmatpush1.bf16.msra.mxu0 0
        %7289 = vmatprep.subr.bf16.mxu0 0
        %7290 = vmatpush1.bf16.msra.mxu0 0
        %7291 = vmatprep.subr.bf16.mxu0 0
        %7292 = vmatpush1.bf16.msra.mxu0 0
        %7293 = vmatprep.subr.bf16.mxu0 0
        %7294 = vmatpush1.bf16.msra.mxu0 0
        %7295 = vmatprep.subr.bf16.mxu0 0
        %7296 = vmatpush1.bf16.msra.mxu0 0
        %7297 = vmatprep.subr.bf16.mxu0 0
        %7298 = vmatpush1.bf16.msra.mxu0 0
        %7299 = vmatprep.subr.bf16.mxu0 0
        %7300 = vmatpush1.bf16.msra.mxu0 0
        %7301 = vmatprep.subr.bf16.mxu0 0
        %7302 = vmatpush1.bf16.msra.mxu0 0
        %7303 = vmatprep.subr.bf16.mxu0 0
        %7304 = vmatpush1.bf16.msra.mxu0 0
        %7305 = vmatprep.subr.bf16.mxu0 0
        %7306 = vmatpush1.bf16.msra.mxu0 0
        %7307 = vmatprep.subr.bf16.mxu0 0
        %7308 = vmatpush1.bf16.msra.mxu0 0
        %7309 = vmatprep.subr.bf16.mxu0 0
        %7310 = vmatpush1.bf16.msra.mxu0 0
        %7311 = vmatprep.mubr.bf16.mxu0 0
        %7312 = vmatmul.mubr.bf16.gmra.mrb[0].mxu0 %v7234
        %v7313 = vpop.f32.mrb[0].mxu0
        %v7314 = vadd.f32 0.0, %v7313
        %v7315 = vpop.f32.mrb[0].mxu0
        %v7316 = vadd.f32 0.0, %v7315
        %v7317 = vpop.f32.mrb[0].mxu0
        %v7318 = vadd.f32 0.0, %v7317
        %v7319 = vpop.f32.mrb[0].mxu0
        %v7320 = vadd.f32 0.0, %v7319
        %7321 = vdwg.mxu0
        %v7322 = vadd.f32 %v6934, %v7271
        %v7323 = vadd.f32 %v6935, %v7273
        %v7324 = vadd.f32 %v6936, %v7314
        %v7325 = vadd.f32 %v6937, %v7316
        %v7326 = vadd.f32 %v6938, %v7275
        %v7327 = vadd.f32 %v6939, %v7277
        %v7328 = vadd.f32 %v6940, %v7318
        %v7329 = vadd.f32 %v6941, %v7320
        %s7330 = scalar_lea.vmem [#allocation21], 2048
        %v7331 = vld [vmem:[%s7330] sm:$0xff]
        %v7332 = vld [vmem:[%s7330 + $0x8] sm:$0xff]
        %v7333 = vld [vmem:[%s7330 + $0x10] sm:$0xff]
        %v7334 = vld [vmem:[%s7330 + $0x18] sm:$0xff]
        %v7335 = vld [vmem:[%s7330 + $0x20] sm:$0xff]
        %v7336 = vld [vmem:[%s7330 + $0x28] sm:$0xff]
        %v7337 = vld [vmem:[%s7330 + $0x30] sm:$0xff]
        %v7338 = vld [vmem:[%s7330 + $0x38] sm:$0xff]
        %v7339 = vld [vmem:[%s7330 + $0x40] sm:$0xff]
        %v7340 = vld [vmem:[%s7330 + $0x48] sm:$0xff]
        %v7341 = vld [vmem:[%s7330 + $0x50] sm:$0xff]
        %v7342 = vld [vmem:[%s7330 + $0x58] sm:$0xff]
        %v7343 = vld [vmem:[%s7330 + $0x60] sm:$0xff]
        %v7344 = vld [vmem:[%s7330 + $0x68] sm:$0xff]
        %v7345 = vld [vmem:[%s7330 + $0x70] sm:$0xff]
        %v7346 = vld [vmem:[%s7330 + $0x78] sm:$0xff]
        %v7347 = vld [vmem:[%s7330 + $0x80] sm:$0xff]
        %v7348 = vld [vmem:[%s7330 + $0x88] sm:$0xff]
        %v7349 = vld [vmem:[%s7330 + $0x90] sm:$0xff]
        %v7350 = vld [vmem:[%s7330 + $0x98] sm:$0xff]
        %v7351 = vld [vmem:[%s7330 + $0xa0] sm:$0xff]
        %v7352 = vld [vmem:[%s7330 + $0xa8] sm:$0xff]
        %v7353 = vld [vmem:[%s7330 + $0xb0] sm:$0xff]
        %v7354 = vld [vmem:[%s7330 + $0xb8] sm:$0xff]
        %v7355 = vld [vmem:[%s7330 + $0xc0] sm:$0xff]
        %v7356 = vld [vmem:[%s7330 + $0xc8] sm:$0xff]
        %v7357 = vld [vmem:[%s7330 + $0xd0] sm:$0xff]
        %v7358 = vld [vmem:[%s7330 + $0xd8] sm:$0xff]
        %v7359 = vld [vmem:[%s7330 + $0xe0] sm:$0xff]
        %v7360 = vld [vmem:[%s7330 + $0xe8] sm:$0xff]
        %v7361 = vld [vmem:[%s7330 + $0xf0] sm:$0xff]
        %v7362 = vld [vmem:[%s7330 + $0xf8] sm:$0xff]
        %v7395 = vunpack.c.l.b16 %v7331
        %v7396 = vunpack.c.h.b16 %v7331
        %v7397 = vunpack.c.l.b16 %v7332
        %v7398 = vunpack.c.h.b16 %v7332
        %v7399 = vunpack.c.l.b16 %v7333
        %v7400 = vunpack.c.h.b16 %v7333
        %v7401 = vunpack.c.l.b16 %v7334
        %v7402 = vunpack.c.h.b16 %v7334
        %v7403 = vunpack.c.l.b16 %v7335
        %v7404 = vunpack.c.h.b16 %v7335
        %v7405 = vunpack.c.l.b16 %v7336
        %v7406 = vunpack.c.h.b16 %v7336
        %v7407 = vunpack.c.l.b16 %v7337
        %v7408 = vunpack.c.h.b16 %v7337
        %v7409 = vunpack.c.l.b16 %v7338
        %v7410 = vunpack.c.h.b16 %v7338
        %v7411 = vunpack.c.l.b16 %v7339
        %v7412 = vunpack.c.h.b16 %v7339
        %v7413 = vunpack.c.l.b16 %v7340
        %v7414 = vunpack.c.h.b16 %v7340
        %v7415 = vunpack.c.l.b16 %v7341
        %v7416 = vunpack.c.h.b16 %v7341
        %v7417 = vunpack.c.l.b16 %v7342
        %v7418 = vunpack.c.h.b16 %v7342
        %v7419 = vunpack.c.l.b16 %v7343
        %v7420 = vunpack.c.h.b16 %v7343
        %v7421 = vunpack.c.l.b16 %v7344
        %v7422 = vunpack.c.h.b16 %v7344
        %v7423 = vunpack.c.l.b16 %v7345
        %v7424 = vunpack.c.h.b16 %v7345
        %v7425 = vunpack.c.l.b16 %v7346
        %v7426 = vunpack.c.h.b16 %v7346
        %v7427 = vunpack.c.l.b16 %v7347
        %v7428 = vunpack.c.h.b16 %v7347
        %v7429 = vunpack.c.l.b16 %v7348
        %v7430 = vunpack.c.h.b16 %v7348
        %v7431 = vunpack.c.l.b16 %v7349
        %v7432 = vunpack.c.h.b16 %v7349
        %v7433 = vunpack.c.l.b16 %v7350
        %v7434 = vunpack.c.h.b16 %v7350
        %v7435 = vunpack.c.l.b16 %v7351
        %v7436 = vunpack.c.h.b16 %v7351
        %v7437 = vunpack.c.l.b16 %v7352
        %v7438 = vunpack.c.h.b16 %v7352
        %v7439 = vunpack.c.l.b16 %v7353
        %v7440 = vunpack.c.h.b16 %v7353
        %v7441 = vunpack.c.l.b16 %v7354
        %v7442 = vunpack.c.h.b16 %v7354
        %v7443 = vunpack.c.l.b16 %v7355
        %v7444 = vunpack.c.h.b16 %v7355
        %v7445 = vunpack.c.l.b16 %v7356
        %v7446 = vunpack.c.h.b16 %v7356
        %v7447 = vunpack.c.l.b16 %v7357
        %v7448 = vunpack.c.h.b16 %v7357
        %v7449 = vunpack.c.l.b16 %v7358
        %v7450 = vunpack.c.h.b16 %v7358
        %v7451 = vunpack.c.l.b16 %v7359
        %v7452 = vunpack.c.h.b16 %v7359
        %v7453 = vunpack.c.l.b16 %v7360
        %v7454 = vunpack.c.h.b16 %v7360
        %v7455 = vunpack.c.l.b16 %v7361
        %v7456 = vunpack.c.h.b16 %v7361
        %v7457 = vunpack.c.l.b16 %v7362
        %v7458 = vunpack.c.h.b16 %v7362
        %v7459 = vpack.c.b16 %v7399, %v7395
        %v7460 = vpack.c.b16 %v7400, %v7396
        %v7461 = vpack.c.b16 %v7401, %v7397
        %v7462 = vpack.c.b16 %v7402, %v7398
        %v7463 = vpack.c.b16 %v7407, %v7403
        %v7464 = vpack.c.b16 %v7408, %v7404
        %v7465 = vpack.c.b16 %v7409, %v7405
        %v7466 = vpack.c.b16 %v7410, %v7406
        %v7467 = vpack.c.b16 %v7415, %v7411
        %v7468 = vpack.c.b16 %v7416, %v7412
        %v7469 = vpack.c.b16 %v7417, %v7413
        %v7470 = vpack.c.b16 %v7418, %v7414
        %v7471 = vpack.c.b16 %v7423, %v7419
        %v7472 = vpack.c.b16 %v7424, %v7420
        %v7473 = vpack.c.b16 %v7425, %v7421
        %v7474 = vpack.c.b16 %v7426, %v7422
        %v7475 = vpack.c.b16 %v7431, %v7427
        %v7476 = vpack.c.b16 %v7432, %v7428
        %v7477 = vpack.c.b16 %v7433, %v7429
        %v7478 = vpack.c.b16 %v7434, %v7430
        %v7479 = vpack.c.b16 %v7439, %v7435
        %v7480 = vpack.c.b16 %v7440, %v7436
        %v7481 = vpack.c.b16 %v7441, %v7437
        %v7482 = vpack.c.b16 %v7442, %v7438
        %v7483 = vpack.c.b16 %v7447, %v7443
        %v7484 = vpack.c.b16 %v7448, %v7444
        %v7485 = vpack.c.b16 %v7449, %v7445
        %v7486 = vpack.c.b16 %v7450, %v7446
        %v7487 = vpack.c.b16 %v7455, %v7451
        %v7488 = vpack.c.b16 %v7456, %v7452
        %v7489 = vpack.c.b16 %v7457, %v7453
        %v7490 = vpack.c.b16 %v7458, %v7454
        %7523 = vmatprep.subr.bf16.mxu0 %v7460
        %7524 = vmatpush1.bf16.msra.mxu0 %v7459
        %7525 = vmatprep.subr.bf16.mxu0 %v7464
        %7526 = vmatpush1.bf16.msra.mxu0 %v7463
        %7527 = vmatprep.subr.bf16.mxu0 %v7468
        %7528 = vmatpush1.bf16.msra.mxu0 %v7467
        %7529 = vmatprep.subr.bf16.mxu0 %v7472
        %7530 = vmatpush1.bf16.msra.mxu0 %v7471
        %7531 = vmatprep.subr.bf16.mxu0 %v7476
        %7532 = vmatpush1.bf16.msra.mxu0 %v7475
        %7533 = vmatprep.subr.bf16.mxu0 %v7480
        %7534 = vmatpush1.bf16.msra.mxu0 %v7479
        %7535 = vmatprep.subr.bf16.mxu0 %v7484
        %7536 = vmatpush1.bf16.msra.mxu0 %v7483
        %7537 = vmatprep.subr.bf16.mxu0 %v7488
        %7538 = vmatpush1.bf16.msra.mxu0 %v7487
        %7539 = vmatprep.subr.bf16.mxu0 0
        %7540 = vmatpush1.bf16.msra.mxu0 0
        %7541 = vmatprep.subr.bf16.mxu0 0
        %7542 = vmatpush1.bf16.msra.mxu0 0
        %7543 = vmatprep.subr.bf16.mxu0 0
        %7544 = vmatpush1.bf16.msra.mxu0 0
        %7545 = vmatprep.subr.bf16.mxu0 0
        %7546 = vmatpush1.bf16.msra.mxu0 0
        %7547 = vmatprep.subr.bf16.mxu0 0
        %7548 = vmatpush1.bf16.msra.mxu0 0
        %7549 = vmatprep.subr.bf16.mxu0 0
        %7550 = vmatpush1.bf16.msra.mxu0 0
        %7551 = vmatprep.subr.bf16.mxu0 0
        %7552 = vmatpush1.bf16.msra.mxu0 0
        %7553 = vmatprep.subr.bf16.mxu0 0
        %7554 = vmatpush1.bf16.msra.mxu0 0
        %7555 = vmatprep.mubr.bf16.mxu0 0
        %7556 = vmatmul.mubr.bf16.gmra.mrb[0].mxu0 %v4243
        %v7557 = vpop.f32.mrb[0].mxu0
        %v7558 = vadd.f32 0.0, %v7557
        %v7559 = vpop.f32.mrb[0].mxu0
        %v7560 = vadd.f32 0.0, %v7559
        %v7561 = vpop.f32.mrb[0].mxu0
        %v7562 = vadd.f32 0.0, %v7561
        %v7563 = vpop.f32.mrb[0].mxu0
        %v7564 = vadd.f32 0.0, %v7563
        %7565 = vdwg.mxu0
        %7566 = vmatprep.subr.bf16.mxu0 %v7462
        %7567 = vmatpush1.bf16.msra.mxu0 %v7461
        %7568 = vmatprep.subr.bf16.mxu0 %v7466
        %7569 = vmatpush1.bf16.msra.mxu0 %v7465
        %7570 = vmatprep.subr.bf16.mxu0 %v7470
        %7571 = vmatpush1.bf16.msra.mxu0 %v7469
        %7572 = vmatprep.subr.bf16.mxu0 %v7474
        %7573 = vmatpush1.bf16.msra.mxu0 %v7473
        %7574 = vmatprep.subr.bf16.mxu0 %v7478
        %7575 = vmatpush1.bf16.msra.mxu0 %v7477
        %7576 = vmatprep.subr.bf16.mxu0 %v7482
        %7577 = vmatpush1.bf16.msra.mxu0 %v7481
        %7578 = vmatprep.subr.bf16.mxu0 %v7486
        %7579 = vmatpush1.bf16.msra.mxu0 %v7485
        %7580 = vmatprep.subr.bf16.mxu0 %v7490
        %7581 = vmatpush1.bf16.msra.mxu0 %v7489
        %7582 = vmatprep.subr.bf16.mxu0 0
        %7583 = vmatpush1.bf16.msra.mxu0 0
        %7584 = vmatprep.subr.bf16.mxu0 0
        %7585 = vmatpush1.bf16.msra.mxu0 0
        %7586 = vmatprep.subr.bf16.mxu0 0
        %7587 = vmatpush1.bf16.msra.mxu0 0
        %7588 = vmatprep.subr.bf16.mxu0 0
        %7589 = vmatpush1.bf16.msra.mxu0 0
        %7590 = vmatprep.subr.bf16.mxu0 0
        %7591 = vmatpush1.bf16.msra.mxu0 0
        %7592 = vmatprep.subr.bf16.mxu0 0
        %7593 = vmatpush1.bf16.msra.mxu0 0
        %7594 = vmatprep.subr.bf16.mxu0 0
        %7595 = vmatpush1.bf16.msra.mxu0 0
        %7596 = vmatprep.subr.bf16.mxu0 0
        %7597 = vmatpush1.bf16.msra.mxu0 0
        %7598 = vmatprep.mubr.bf16.mxu0 0
        %7599 = vmatmul.mubr.bf16.gmra.mrb[0].mxu0 %v4243
        %v7600 = vpop.f32.mrb[0].mxu0
        %v7601 = vadd.f32 0.0, %v7600
        %v7602 = vpop.f32.mrb[0].mxu0
        %v7603 = vadd.f32 0.0, %v7602
        %v7604 = vpop.f32.mrb[0].mxu0
        %v7605 = vadd.f32 0.0, %v7604
        %v7606 = vpop.f32.mrb[0].mxu0
        %v7607 = vadd.f32 0.0, %v7606
        %7608 = vdwg.mxu0
        %v7609 = vpack.c.bf16 %v7562, %v7558
        %v7610 = vpack.c.bf16 %v7564, %v7560
        %v7611 = vpack.c.bf16 %v7605, %v7601
        %v7612 = vpack.c.bf16 %v7607, %v7603
        %s7613 = scalar_lea.vmem [#allocation19], 64
        %v7614 = vld [vmem:[%s7613] sm:$0xf]
        %v7615 = vld [vmem:[%s7613 + $0x4] sm:$0xf]
        %v7618 = vunpack.c.l.b16 %v7614
        %v7619 = vunpack.c.l.b16 %v7615
        %v7620 = vpack.c.b16 %v7619, %v7618
        %v7622 = vsel %vm1192, %v7620, 0
        %7624 = vmatprep.subr.bf16.mxu0 %v7610
        %7625 = vmatpush1.bf16.msra.mxu0 %v7609
        %7626 = vmatprep.subr.bf16.mxu0 0
        %7627 = vmatpush1.bf16.msra.mxu0 0
        %7628 = vmatprep.subr.bf16.mxu0 0
        %7629 = vmatpush1.bf16.msra.mxu0 0
        %7630 = vmatprep.subr.bf16.mxu0 0
        %7631 = vmatpush1.bf16.msra.mxu0 0
        %7632 = vmatprep.subr.bf16.mxu0 0
        %7633 = vmatpush1.bf16.msra.mxu0 0
        %7634 = vmatprep.subr.bf16.mxu0 0
        %7635 = vmatpush1.bf16.msra.mxu0 0
        %7636 = vmatprep.subr.bf16.mxu0 0
        %7637 = vmatpush1.bf16.msra.mxu0 0
        %7638 = vmatprep.subr.bf16.mxu0 0
        %7639 = vmatpush1.bf16.msra.mxu0 0
        %7640 = vmatprep.subr.bf16.mxu0 0
        %7641 = vmatpush1.bf16.msra.mxu0 0
        %7642 = vmatprep.subr.bf16.mxu0 0
        %7643 = vmatpush1.bf16.msra.mxu0 0
        %7644 = vmatprep.subr.bf16.mxu0 0
        %7645 = vmatpush1.bf16.msra.mxu0 0
        %7646 = vmatprep.subr.bf16.mxu0 0
        %7647 = vmatpush1.bf16.msra.mxu0 0
        %7648 = vmatprep.subr.bf16.mxu0 0
        %7649 = vmatpush1.bf16.msra.mxu0 0
        %7650 = vmatprep.subr.bf16.mxu0 0
        %7651 = vmatpush1.bf16.msra.mxu0 0
        %7652 = vmatprep.subr.bf16.mxu0 0
        %7653 = vmatpush1.bf16.msra.mxu0 0
        %7654 = vmatprep.subr.bf16.mxu0 0
        %7655 = vmatpush1.bf16.msra.mxu0 0
        %7656 = vmatprep.mubr.bf16.mxu0 0
        %7657 = vmatmul.mubr.bf16.gmra.mrb[0].mxu0 %v7622
        %v7658 = vpop.f32.mrb[0].mxu0
        %v7659 = vadd.f32 0.0, %v7658
        %v7660 = vpop.f32.mrb[0].mxu0
        %v7661 = vadd.f32 0.0, %v7660
        %v7662 = vpop.f32.mrb[0].mxu0
        %v7663 = vadd.f32 0.0, %v7662
        %v7664 = vpop.f32.mrb[0].mxu0
        %v7665 = vadd.f32 0.0, %v7664
        %7666 = vdwg.mxu0
        %7667 = vmatprep.subr.bf16.mxu0 %v7612
        %7668 = vmatpush1.bf16.msra.mxu0 %v7611
        %7669 = vmatprep.subr.bf16.mxu0 0
        %7670 = vmatpush1.bf16.msra.mxu0 0
        %7671 = vmatprep.subr.bf16.mxu0 0
        %7672 = vmatpush1.bf16.msra.mxu0 0
        %7673 = vmatprep.subr.bf16.mxu0 0
        %7674 = vmatpush1.bf16.msra.mxu0 0
        %7675 = vmatprep.subr.bf16.mxu0 0
        %7676 = vmatpush1.bf16.msra.mxu0 0
        %7677 = vmatprep.subr.bf16.mxu0 0
        %7678 = vmatpush1.bf16.msra.mxu0 0
        %7679 = vmatprep.subr.bf16.mxu0 0
        %7680 = vmatpush1.bf16.msra.mxu0 0
        %7681 = vmatprep.subr.bf16.mxu0 0
        %7682 = vmatpush1.bf16.msra.mxu0 0
        %7683 = vmatprep.subr.bf16.mxu0 0
        %7684 = vmatpush1.bf16.msra.mxu0 0
        %7685 = vmatprep.subr.bf16.mxu0 0
        %7686 = vmatpush1.bf16.msra.mxu0 0
        %7687 = vmatprep.subr.bf16.mxu0 0
        %7688 = vmatpush1.bf16.msra.mxu0 0
        %7689 = vmatprep.subr.bf16.mxu0 0
        %7690 = vmatpush1.bf16.msra.mxu0 0
        %7691 = vmatprep.subr.bf16.mxu0 0
        %7692 = vmatpush1.bf16.msra.mxu0 0
        %7693 = vmatprep.subr.bf16.mxu0 0
        %7694 = vmatpush1.bf16.msra.mxu0 0
        %7695 = vmatprep.subr.bf16.mxu0 0
        %7696 = vmatpush1.bf16.msra.mxu0 0
        %7697 = vmatprep.subr.bf16.mxu0 0
        %7698 = vmatpush1.bf16.msra.mxu0 0
        %7699 = vmatprep.mubr.bf16.mxu0 0
        %7700 = vmatmul.mubr.bf16.gmra.mrb[0].mxu0 %v7622
        %v7701 = vpop.f32.mrb[0].mxu0
        %v7702 = vadd.f32 0.0, %v7701
        %v7703 = vpop.f32.mrb[0].mxu0
        %v7704 = vadd.f32 0.0, %v7703
        %v7705 = vpop.f32.mrb[0].mxu0
        %v7706 = vadd.f32 0.0, %v7705
        %v7707 = vpop.f32.mrb[0].mxu0
        %v7708 = vadd.f32 0.0, %v7707
        %7709 = vdwg.mxu0
        %v7710 = vadd.f32 %v7322, %v7659
        %v7711 = vadd.f32 %v7323, %v7661
        %v7712 = vadd.f32 %v7324, %v7702
        %v7713 = vadd.f32 %v7325, %v7704
        %v7714 = vadd.f32 %v7326, %v7663
        %v7715 = vadd.f32 %v7327, %v7665
        %v7716 = vadd.f32 %v7328, %v7706
        %v7717 = vadd.f32 %v7329, %v7708
        %v7718 = vld [vmem:[%s17] sm:$0xff]
        %v7719 = vld [vmem:[%s17 + $0x8] sm:$0xff]
        %7721 = vset.pattern.permute.xlu0 0
        %7722 = vperm.xlu0 %7721, %v7718
        %v7723 = vpop.permute.xlu0 %7722
        %7726 = vset.pattern.permute.xlu0 0
        %7727 = vperm.xlu0 %7726, %v7719
        %v7728 = vpop.permute.xlu0 %7727
        %v7730 = vadd.f32 %v7710, %v7723
        %v7731 = vadd.f32 %v7711, %v7723
        %v7732 = vadd.f32 %v7712, %v7723
        %v7733 = vadd.f32 %v7713, %v7723
        %v7734 = vadd.f32 %v7714, %v7728
        %v7735 = vadd.f32 %v7715, %v7728
        %v7736 = vadd.f32 %v7716, %v7728
        %v7737 = vadd.f32 %v7717, %v7728
        %v7738 = vxor.u32 %v7730, 2147483648
        %v7739 = vxor.u32 %v7731, 2147483648
        %v7740 = vxor.u32 %v7732, 2147483648
        %v7741 = vxor.u32 %v7733, 2147483648
        %v7742 = vxor.u32 %v7734, 2147483648
        %v7743 = vxor.u32 %v7735, 2147483648
        %v7744 = vxor.u32 %v7736, 2147483648
        %v7745 = vxor.u32 %v7737, 2147483648
        %v7746 = vmul.f32 %v7738, 1.442695
        %v7747 = vpow.pop %v7746
        %v7748 = vmul.f32 %v7739, 1.442695
        %v7749 = vpow.pop %v7748
        %v7750 = vmul.f32 %v7740, 1.442695
        %v7751 = vpow.pop %v7750
        %v7752 = vmul.f32 %v7741, 1.442695
        %v7753 = vpow.pop %v7752
        %v7754 = vmul.f32 %v7742, 1.442695
        %v7755 = vpow.pop %v7754
        %v7756 = vmul.f32 %v7743, 1.442695
        %v7757 = vpow.pop %v7756
        %v7758 = vmul.f32 %v7744, 1.442695
        %v7759 = vpow.pop %v7758
        %v7760 = vmul.f32 %v7745, 1.442695
        %v7761 = vpow.pop %v7760
        %v7762 = vadd.f32 %v7747, 1.0
        %v7763 = vadd.f32 %v7749, 1.0
        %v7764 = vadd.f32 %v7751, 1.0
        %v7765 = vadd.f32 %v7753, 1.0
        %v7766 = vadd.f32 %v7755, 1.0
        %v7767 = vadd.f32 %v7757, 1.0
        %v7768 = vadd.f32 %v7759, 1.0
        %v7769 = vadd.f32 %v7761, 1.0
        %v7770 = vrcp.pop %v7762
        %v7771 = vmul.f32 1.0, %v7770
        %v7772 = vrcp.pop %v7763
        %v7773 = vmul.f32 1.0, %v7772
        %v7774 = vrcp.pop %v7764
        %v7775 = vmul.f32 1.0, %v7774
        %v7776 = vrcp.pop %v7765
        %v7777 = vmul.f32 1.0, %v7776
        %v7778 = vrcp.pop %v7766
        %v7779 = vmul.f32 1.0, %v7778
        %v7780 = vrcp.pop %v7767
        %v7781 = vmul.f32 1.0, %v7780
        %v7782 = vrcp.pop %v7768
        %v7783 = vmul.f32 1.0, %v7782
        %v7784 = vrcp.pop %v7769
        %v7785 = vmul.f32 1.0, %v7784
        %7786 = vst [vmem:[%s874] sm:$0xff] %v2536
        %7787 = vst [vmem:[%s874 + $0x8] sm:$0xff] %v2539
        %7788 = vst [vmem:[%s879] sm:$0xff] %v2656
        %7789 = vst [vmem:[%s879 + $0x8] sm:$0xff] %v2657
        %7790 = vst [vmem:[%s884] sm:$0xff] %v7771
        %7791 = vst [vmem:[%s884 + $0x8] sm:$0xff] %v7773
        %7792 = vst [vmem:[%s884 + $0x10] sm:$0xff] %v7775
        %7793 = vst [vmem:[%s884 + $0x18] sm:$0xff] %v7777
        %7794 = vst [vmem:[%s884 + $0x20] sm:$0xff] %v7779
        %7795 = vst [vmem:[%s884 + $0x28] sm:$0xff] %v7781
        %7796 = vst [vmem:[%s884 + $0x30] sm:$0xff] %v7783
        %7797 = vst [vmem:[%s884 + $0x38] sm:$0xff] %v7785
        %p7798 = scmp.lt.s32.totalorder %s40, 1
        %s7799 = scalar_select %p7798, %s40, 1
        %s7800 = smul.addr %s7799, 2
        %s7801 = smul.addr %s7800, 8
        %s7802 = scalar_lea.vmem %s19, %s7801
        %p7803 = scmp.lt.s32.totalorder %s40, 1
        %s7804 = scalar_select %p7803, %s40, 1
        %s7805 = smul.addr %s7804, 2
        %s7806 = smul.addr %s7805, 8
        %s7807 = scalar_lea.vmem %s20, %s7806
        %p7808 = scmp.lt.s32.totalorder %s40, 1
        %s7809 = scalar_select %p7808, %s40, 1
        %s7810 = smul.addr %s7809, 8
        %s7811 = smul.addr %s7810, 8
        %s7812 = scalar_lea.vmem %s21, %s7811
        // Predicated region
        $region149: #{conv_vae_forward.1} parent=95 // pred_check
          %p7813 = pneg %p467
        $region150: #{conv_vae_forward.1} parent=95 // pred_check_branch
          %7815 = sbr.rel (%p7813) target = $region152
        $region151: #{conv_vae_forward.1} parent=95 // pred_region
          _
        $region152: #{conv_vae_forward.1} parent=95 // pred_fallthru
          _
        // Predicated region
        $region153: #{conv_vae_forward.1} parent=95 // pred_check
          %p7816 = pneg %p493
        $region154: #{conv_vae_forward.1} parent=95 // pred_check_branch
          %7818 = sbr.rel (%p7816) target = $region156
        $region155: #{conv_vae_forward.1} parent=95 // pred_region
          _
        $region156: #{conv_vae_forward.1} parent=95 // pred_fallthru
          _
        // Predicated region
        $region157: #{conv_vae_forward.1} parent=95 // pred_check
          %p7819 = pneg %p519
        $region158: #{conv_vae_forward.1} parent=95 // pred_check_branch
          %7821 = sbr.rel (%p7819) target = $region160
        $region159: #{conv_vae_forward.1} parent=95 // pred_region
          _
        $region160: #{conv_vae_forward.1} parent=95 // pred_fallthru
          _
      $region96: #{conv_vae_forward.1} parent=5 // pred_fallthru
        _
      %p7822 = scmp.le.s32.totalorder 2, %s35
      // Predicated region
      $region161: #{conv_vae_forward.1} parent=5 // pred_check
        %p7823 = pneg %p7822
      $region162: #{conv_vae_forward.1} parent=5 // pred_check_branch
        %7825 = sbr.rel (%p7823) target = $region164
      $region163: #{conv_vae_forward.1} parent=5 // pred_region
        %s7826 = ssub.s32 %s35, 2
        // Predicated region
        $region165: #{conv_vae_forward.1} parent=163 // pred_check
          %p7827 = pneg %p473
        $region166: #{conv_vae_forward.1} parent=163 // pred_check_branch
          %7829 = sbr.rel (%p7827) target = $region168
        $region167: #{conv_vae_forward.1} parent=163 // pred_region
          %p7830 = scmp.lt.s32.totalorder %s41, 1
          %s7831 = scalar_select %p7830, %s41, 1
          %s7832 = smul.addr %s7831, 2
          %s7833 = smul.addr %s7832, 8
          %s7834 = scalar_lea.vmem %s19, %s7833
        $region168: #{conv_vae_forward.1} parent=163 // pred_fallthru
          _
        // Predicated region
        $region169: #{conv_vae_forward.1} parent=163 // pred_check
          %p7835 = pneg %p499
        $region170: #{conv_vae_forward.1} parent=163 // pred_check_branch
          %7837 = sbr.rel (%p7835) target = $region172
        $region171: #{conv_vae_forward.1} parent=163 // pred_region
          %p7838 = scmp.lt.s32.totalorder %s41, 1
          %s7839 = scalar_select %p7838, %s41, 1
          %s7840 = smul.addr %s7839, 2
          %s7841 = smul.addr %s7840, 8
          %s7842 = scalar_lea.vmem %s20, %s7841
        $region172: #{conv_vae_forward.1} parent=163 // pred_fallthru
          _
        // Predicated region
        $region173: #{conv_vae_forward.1} parent=163 // pred_check
          %p7843 = pneg %p525
        $region174: #{conv_vae_forward.1} parent=163 // pred_check_branch
          %7845 = sbr.rel (%p7843) target = $region176
        $region175: #{conv_vae_forward.1} parent=163 // pred_region
          %p7846 = scmp.lt.s32.totalorder %s41, 1
          %s7847 = scalar_select %p7846, %s41, 1
          %s7848 = smul.addr %s7847, 8
          %s7849 = smul.addr %s7848, 8
          %s7850 = scalar_lea.vmem %s21, %s7849
        $region176: #{conv_vae_forward.1} parent=163 // pred_fallthru
          _
      $region164: #{conv_vae_forward.1} parent=5 // pred_fallthru
        _
    $region6: #{conv_vae_forward.1} parent=1 // loop_footer
      %s39 = sadd.s32 1, %s35
    $region7: #{conv_vae_forward.1} parent=1 // loop_footer_branch
      %34 = sbr.rel target = $region3
    $region8: #{conv_vae_forward.1} parent=1 // loop_exit
      _
    %7851 = vsyncpa [#allocation3], 1
    %s7852 = scalar_lea.sflag [#allocation3], 1
    %7853 = vsyncpa %s7852, 1
    %7854 = vsyncpa [#allocation5], 1
    %7855 = vsyncpa [#allocation8], 1
    %7856 = vsyncpa [#allocation11], 1
    %7857 = vsyncpa [#allocation14], 1
    %7858 = vsyncpa [#allocation17], 1
    %7859 = vsyncpa [#allocation20], 1

</llo_original>
